<compile_context>
chip_gen: v7x
topology: tpu7x:2x2x1
jax: 0.10.0
libtpu: 0.0.40
codegen_flags: <defaults>
</compile_context>

<pallas_src>
import functools
import math

import jax
import jax.numpy as jnp
from jax.experimental import pallas as pl
from jax.experimental.pallas import tpu as pltpu

E = 300            # encoder_hidden_size (hard-coded 300 in the module)
H = 4              # attention heads
DH = E // H        # 75  true head dim (softmax scale uses this)
EP = 384           # E padded to 3 * 128 lanes
DHP = 128          # head dim padded to one lane tile
HDP = H * DHP      # 512
EPS = 1e-5         # LayerNorm eps (PyTorch default)
NEG_INF = -1e30    # additive key-padding / block-diagonal mask value
N_MQ = 4           # motif query tokens


# ----------------------------- in-kernel helpers ------------------------------
def _masked_layernorm(x, gamma, beta, d_valid):
    """LayerNorm over the first `d_valid` features of a zero-padded (R, EP) tile.

    Padded columns of `x`, `gamma`, `beta` are zero, so sums over the full lane
    width equal sums over the valid 300 features; padded output columns stay zero.
    """
    col = jax.lax.broadcasted_iota(jnp.int32, x.shape, 1)
    mean = jnp.sum(x, axis=-1, keepdims=True) * (1.0 / d_valid)
    xc = jnp.where(col < d_valid, x - mean, 0.0)
    var = jnp.sum(xc * xc, axis=-1, keepdims=True) * (1.0 / d_valid)
    inv = jax.lax.rsqrt(var + EPS)
    return xc * inv * gamma + beta


def _mha_core(qh, kvh, bias, *, num_heads, dh_pad, scale):
    """Multi-head attention on pre-projected activations.

    qh:   (Lq, H*DHP)     query projection (padded head cols are zero)
    kvh:  (Lk, 2*H*DHP)   packed [K | V] projection
    bias: (Lq, Lk) additive mask, or None
    returns ctx: (Lq, H*DHP)
    """
    hd = num_heads * dh_pad
    kh, vh = kvh[:, :hd], kvh[:, hd:]
    parts = []
    for h in range(num_heads):                      # 4 lane-aligned 128-wide slices
        lo, hi = h * dh_pad, (h + 1) * dh_pad
        s = jax.lax.dot_general(qh[:, lo:hi], kh[:, lo:hi],
                                (((1,), (1,)), ((), ())),
                                preferred_element_type=jnp.float32) * scale
        if bias is not None:
            s = s + bias
        s = s - jnp.max(s, axis=-1, keepdims=True)
        p = jnp.exp(s)
        p = p / jnp.sum(p, axis=-1, keepdims=True)
        parts.append(jnp.dot(p, vh[:, lo:hi], preferred_element_type=jnp.float32))
    return jnp.concatenate(parts, axis=-1)          # (Lq, H*DHP), 128-aligned concat


# ------------------------------ fused kernel ----------------------------------
def _projector_kernel(x_ref, h_ref, bias_ref, motif_ref, motif_w_ref,
                      qh_ref, wkv_ref, bkv_ref, wo_ref, vec_ref,
                      o_ref, xpre_ref,
                      *, num_heads, dh_pad, e_valid, dh_valid, n_motif_q):
    scale = 1.0 / math.sqrt(dh_valid)

    # Packed small vectors: rows of vec_ref (8, EP).
    vecs = vec_ref[...]
    pre_g, pre_b = vecs[0:1], vecs[1:2]
    ln_g, ln_b = vecs[2:3], vecs[3:4]
    bo_lvl, bo_m = vecs[4:5], vecs[5:6]

    # Pre-computed (batch-invariant) query projections: motif rows first, then levels.
    qh_all = qh_ref[...]
    qh_m, qh_lvl = qh_all[:n_motif_q], qh_all[n_motif_q:]

    bkv = bkv_ref[...]                               # (2, 2*HDP): [level, motif]

    # --- prenorm.  Its result is dead in the reference forward (x is overwritten and
    #     num_nodes is never used) but it is kept for fidelity; fused here it is ~free. ---
    xpre_ref[0] = _masked_layernorm(x_ref[0], pre_g, pre_b, e_valid)

    # --- 6 hierarchy-level cross attentions, fused (weights shared across levels).
    #     bias_ref bakes both the key-padding masks and the block-diagonal level
    #     structure, so one softmax over 6*Nk keys == 6 per-level softmaxes. ---
    kvh = jnp.dot(h_ref[0], wkv_ref[0],
                  preferred_element_type=jnp.float32) + bkv[0:1]            # (6*Nk, 2*HDP)
    ctx = _mha_core(qh_lvl, kvh, bias_ref[0],
                    num_heads=num_heads, dh_pad=dh_pad, scale=scale)         # (12, HDP)
    out_lvl = jnp.dot(ctx, wo_ref[0],
                      preferred_element_type=jnp.float32) + bo_lvl           # (12, EP)

    # --- motif branch: Linear(num_motifs -> 300, bias=False) fused with its attention. ---
    motif_tok = jnp.dot(motif_ref[0], motif_w_ref[...],
                        preferred_element_type=jnp.float32)                  # (M, EP)
    kvh_m = jnp.dot(motif_tok, wkv_ref[1],
                    preferred_element_type=jnp.float32) + bkv[1:2]           # (M, 2*HDP)
    ctx_m = _mha_core(qh_m, kvh_m, None,
                      num_heads=num_heads, dh_pad=dh_pad, scale=scale)       # (4, HDP)
    out_m = jnp.dot(ctx_m, wo_ref[1],
                    preferred_element_type=jnp.float32) + bo_m               # (4, EP)

    # --- cat((motif_tokens, level_tokens)) + final LayerNorm, fused epilogue:
    #     LayerNorm is row-wise, so normalize the full (nq, EP) block at once and
    #     write it back with a single lane-dense store (motif tokens first). ---
    out_all = jnp.concatenate([out_m, out_lvl], axis=0)                      # (nq, EP)
    o_ref[0] = _masked_layernorm(out_all, ln_g, ln_b, e_valid)


# ------------------------- host-side padding / packing -------------------------
def _pad_last(a, new_size):
    pad = new_size - a.shape[-1]
    if pad == 0:
        return a
    return jnp.pad(a, [(0, 0)] * (a.ndim - 1) + [(0, pad)])


def _pad_in_proj(w, b):
    """(E, H*DH) head-grouped in-projection + (H*DH,) bias -> (EP, HDP), (HDP,)."""
    wp = jnp.zeros((EP, H, DHP), jnp.float32).at[:E, :, :DH].set(w.reshape(E, H, DH))
    bp = jnp.zeros((H, DHP), jnp.float32).at[:, :DH].set(b.reshape(H, DH))
    return wp.reshape(EP, HDP), bp.reshape(HDP)


def _pad_out_proj(w, b):
    """(H*DH, E) head-grouped out-projection + (E,) bias -> (HDP, EP), (EP,)."""
    wp = jnp.zeros((H, DHP, EP), jnp.float32).at[:, :DH, :E].set(w.reshape(H, DH, E))
    bp = jnp.zeros((EP,), jnp.float32).at[:E].set(b)
    return wp.reshape(HDP, EP), bp


def _prepare(params):
    """Pad, pack and fuse weights; hoist the batch-invariant query projections (XLA)."""
    ca, ma = params["cross_attn"], params["motif_attn"]
    wq, bq = _pad_in_proj(ca["wq"], ca["bq"])
    wk, bk = _pad_in_proj(ca["wk"], ca["bk"])
    wv, bv = _pad_in_proj(ca["wv"], ca["bv"])
    wo, bo = _pad_out_proj(ca["wo"], ca["bo"])
    wq_m, bq_m = _pad_in_proj(ma["wq"], ma["bq"])
    wk_m, bk_m = _pad_in_proj(ma["wk"], ma["bk"])
    wv_m, bv_m = _pad_in_proj(ma["wv"], ma["bv"])
    wo_m, bo_m = _pad_out_proj(ma["wo"], ma["bo"])

    # Batch-invariant Q projections, computed once in XLA (hoisted out of the kernel).
    q_lvl = _pad_last(params["query_tokens"].reshape(-1, E), EP)        # (6*qpl, EP)
    q_m = _pad_last(params["motif_query_tokens"], EP)                   # (4, EP)
    qh_all = jnp.concatenate([q_m @ wq_m + bq_m,                        # motif rows first
                              q_lvl @ wq + bq], axis=0)                 # (nq, HDP)

    # Packed weight slabs: index 0 = level attention, index 1 = motif attention.
    wkv_all = jnp.stack([jnp.concatenate([wk, wv], axis=1),
                         jnp.concatenate([wk_m, wv_m], axis=1)], axis=0)   # (2, EP, 2*HDP)
    bkv_all = jnp.stack([jnp.concatenate([bk, bv]),
                         jnp.concatenate([bk_m, bv_m])], axis=0)           # (2, 2*HDP)
    wo_all = jnp.stack([wo, wo_m], axis=0)                                 # (2, HDP, EP)

    # Packed (EP,)-wide vectors: one (8, EP) slab instead of 6 separate tiny inputs.
    zeros = jnp.zeros((EP,), jnp.float32)
    vecs = jnp.stack([
        _pad_last(params["prenorm_gamma"], EP),
        _pad_last(params["prenorm_beta"], EP),
        _pad_last(params["ln_gamma"], EP),
        _pad_last(params["ln_beta"], EP),
        bo, bo_m, zeros, zeros,
    ], axis=0)                                                             # (8, EP)

    return {
        "qh_all": qh_all,
        "wkv_all": wkv_all, "bkv_all": bkv_all, "wo_all": wo_all,
        "vecs": vecs,
        "motif_w": _pad_last(params["motif_weight"], EP),                  # (num_motifs, EP)
    }


# ------------------------------- parameter init --------------------------------
def init_mha_params(key):
    ks = jax.random.split(key, 4)
    s = 1.0 / math.sqrt(E)
    return {
        # x @ wq + bq  ==  x @ Wq.T of nn.MultiheadAttention in_proj (columns grouped by head)
        "wq": jax.random.normal(ks[0], (E, E), jnp.float32) * s,
        "wk": jax.random.normal(ks[1], (E, E), jnp.float32) * s,
        "wv": jax.random.normal(ks[2], (E, E), jnp.float32) * s,
        "wo": jax.random.normal(ks[3], (E, E), jnp.float32) * s,   # ctx @ wo == ctx @ out_proj.weight.T
        "bq": jnp.zeros((E,), jnp.float32),   # PyTorch in_proj_bias init = 0
        "bk": jnp.zeros((E,), jnp.float32),
        "bv": jnp.zeros((E,), jnp.float32),
        "bo": jnp.zeros((E,), jnp.float32),   # out_proj bias init = 0
    }


def init_params(key, num_query_tokens, num_motifs):
    qpl = (num_query_tokens - 4) // 6        # query tokens per level
    ks = jax.random.split(key, 5)
    return {
        "prenorm_gamma": jnp.ones((E,), jnp.float32),
        "prenorm_beta": jnp.zeros((E,), jnp.float32),
        "ln_gamma": jnp.ones((E,), jnp.float32),
        "ln_beta": jnp.zeros((E,), jnp.float32),
        "query_tokens": jax.random.normal(ks[0], (6, qpl, E), jnp.float32),
        "motif_query_tokens": jax.random.normal(ks[1], (4, E), jnp.float32),
        "motif_weight": jax.random.normal(ks[2], (num_motifs, E), jnp.float32) * 0.1,
        # nn.ModuleList([nn.MultiheadAttention(...)] * 6) -> all 6 levels SHARE one weight set
        "cross_attn": init_mha_params(ks[3]),
        "motif_attn": init_mha_params(ks[4]),
    }


# --------------------------------- forward -------------------------------------
def multilevel_projector_forward(x, h_feats, h_masks, motifs, params):
    """
    x:       (B, L, E)  backbone features
    h_feats: list of 6 arrays (B, Nk, E)    -> h_list[i][0]
    h_masks: list of 6 bool arrays (B, Nk)  -> h_list[i][1], True = valid key
    motifs:  (B, M, num_motifs) precomputed motif-graph features
             # TODO(synk): RDKit SMILES parsing (Chem.MolFromSmiles / mol_to_graphs) is
             # host-side chemistry with no Pallas equivalent; motif features are supplied
             # as inputs and the per-sample `motif is None` fallback is not modeled.
    """
    B, L, _ = x.shape
    nl = len(h_feats)                        # 6
    nk = h_feats[0].shape[1]
    qpl = params["query_tokens"].shape[1]
    nq_lvl = nl * qpl
    nq = nq_lvl + N_MQ
    nmot, nmf = motifs.shape[1], motifs.shape[2]

    p = _prepare(params)

    # Pad feature dims to 384 lanes, flatten the 6 levels into one key axis, and bake
    # level block-structure + key-padding into a single additive bias (B, 12, 6*Nk).
    x_pad = _pad_last(x, EP)                                                    # (B, L, EP)
    h_flat = _pad_last(jnp.stack(h_feats, axis=1).reshape(B, nl * nk, E), EP)   # (B, 6*Nk, EP)
    valid = jnp.stack(h_masks, axis=1).reshape(B, nl * nk)                      # (B, 6*Nk)
    same_level = (jnp.arange(nq_lvl) // qpl)[:, None] == (jnp.arange(nl * nk) // nk)[None, :]
    bias = jnp.where(same_level[None] & valid[:, None, :], 0.0, NEG_INF).astype(jnp.float32)

    kernel = functools.partial(_projector_kernel, num_heads=H, dh_pad=DHP,
                               e_valid=E, dh_valid=DH, n_motif_q=N_MQ)

    out_p, xpre_p = pl.pallas_call(
        kernel,
        out_shape=(jax.ShapeDtypeStruct((B, nq, EP), jnp.float32),
                   jax.ShapeDtypeStruct((B, L, EP), jnp.float32)),
        grid=(B,),
        in_specs=[
            pl.BlockSpec((1, L, EP), lambda b: (b, 0, 0)),             # x (padded)
            pl.BlockSpec((1, nl * nk, EP), lambda b: (b, 0, 0)),       # flattened level keys
            pl.BlockSpec((1, nq_lvl, nl * nk), lambda b: (b, 0, 0)),   # additive bias
            pl.BlockSpec((1, nmot, nmf), lambda b: (b, 0, 0)),         # motif graph features
            pl.BlockSpec((nmf, EP), lambda b: (0, 0)),                 # motif linear weight
            pl.BlockSpec((nq, HDP), lambda b: (0, 0)),                 # packed Q projections
            pl.BlockSpec((2, EP, 2 * HDP), lambda b: (0, 0, 0)),       # packed [Wk|Wv] x {lvl,motif}
            pl.BlockSpec((2, 2 * HDP), lambda b: (0, 0)),              # packed [bk|bv] x {lvl,motif}
            pl.BlockSpec((2, HDP, EP), lambda b: (0, 0, 0)),           # packed Wo x {lvl,motif}
            pl.BlockSpec((8, EP), lambda b: (0, 0)),                   # packed LN/prenorm/bo vectors
        ],
        out_specs=(pl.BlockSpec((1, nq, EP), lambda b: (b, 0, 0)),
                   pl.BlockSpec((1, L, EP), lambda b: (b, 0, 0))),
        compiler_params=pltpu.CompilerParams(dimension_semantics=("parallel",)),
    )(x_pad, h_flat, bias, motifs, p["motif_w"], p["qh_all"],
      p["wkv_all"], p["bkv_all"], p["wo_all"], p["vecs"])

    # TODO(synk): build_net()/_forward() are abstract (NotImplementedError) in this base
    # class and eos_tokens is None, so the projector head is treated as identity.
    return out_p[..., :E], xpre_p[..., :E]


# ----------------------------------- main ---------------------------------------
if __name__ == "__main__":
    B = 2                  # batch
    L = 8                  # backbone tokens
    NUM_MOTIFS = 10        # config.num_motifs
    M_MOTIF = 5            # motif-graph nodes per molecule
    NK = 6                 # keys per hierarchy level
    NUM_QUERY_TOKENS = 16  # -> 12 level query tokens (2 per level) + 4 motif tokens

    root = jax.random.PRNGKey(0)
    k_param, k_x, k_h, k_motif = jax.random.split(root, 4)

    params = init_params(k_param, NUM_QUERY_TOKENS, NUM_MOTIFS)

    x = jax.random.normal(k_x, (B, L, E), jnp.float32)
    hk = jax.random.split(k_h, 6)
    h_feats = [jax.random.normal(hk[i], (B, NK, E), jnp.float32) for i in range(6)]
    # valid-key masks (True = keep); batch 0 has 5 valid keys, batch 1 has all 6
    valid_lens = jnp.array([[5], [6]], dtype=jnp.int32)
    h_masks = [jnp.arange(NK)[None, :] < valid_lens for _ in range(6)]
    motifs = jax.random.normal(k_motif, (B, M_MOTIF, NUM_MOTIFS), jnp.float32)

    fwd = jax.jit(multilevel_projector_forward)
    out, x_pre = fwd(x, h_feats, h_masks, motifs, params)
    jax.block_until_ready((out, x_pre))
    assert out.shape == (B, NUM_QUERY_TOKENS, E), out.shape
    assert x_pre.shape == (B, L, E), x_pre.shape
    assert bool(jnp.all(jnp.isfinite(out))), "non-finite output"
    print("KERNEL_OK")
</pallas_src>

<mosaic_0001>
module attributes {stable_mosaic.version = 11 : i64} {
  func.func @_projector_kernel(%arg0: i32, %arg1: memref<1x8x384xf32, #tpu.memory_space<vmem>>, %arg2: memref<1x36x384xf32, #tpu.memory_space<vmem>>, %arg3: memref<1x12x36xf32, #tpu.memory_space<vmem>>, %arg4: memref<1x5x10xf32, #tpu.memory_space<vmem>>, %arg5: memref<10x384xf32, #tpu.memory_space<vmem>>, %arg6: memref<16x512xf32, #tpu.memory_space<vmem>>, %arg7: memref<2x384x1024xf32, #tpu.memory_space<vmem>>, %arg8: memref<2x1024xf32, #tpu.memory_space<vmem>>, %arg9: memref<2x512x384xf32, #tpu.memory_space<vmem>>, %arg10: memref<8x384xf32, #tpu.memory_space<vmem>>, %arg11: memref<1x16x384xf32, #tpu.memory_space<vmem>>, %arg12: memref<1x8x384xf32, #tpu.memory_space<vmem>>) attributes {dimension_semantics = [#tpu.dimension_semantics<parallel>], iteration_bounds = array<i64: 2>, scalar_prefetch = 0 : i64, scratch_operands = 0 : i64, tpu.core_type = #tpu.core_type<tc>, window_params = [{transform_indices = @transform_0, window_bounds = array<i64: 1, 8, 384>}, {transform_indices = @transform_1, window_bounds = array<i64: 1, 36, 384>}, {transform_indices = @transform_2, window_bounds = array<i64: 1, 12, 36>}, {transform_indices = @transform_3, window_bounds = array<i64: 1, 5, 10>}, {pipeline_mode = #tpu.pipeline_mode<synchronous>, transform_indices = @transform_4, window_bounds = array<i64: 10, 384>}, {pipeline_mode = #tpu.pipeline_mode<synchronous>, transform_indices = @transform_5, window_bounds = array<i64: 16, 512>}, {pipeline_mode = #tpu.pipeline_mode<synchronous>, transform_indices = @transform_6, window_bounds = array<i64: 2, 384, 1024>}, {pipeline_mode = #tpu.pipeline_mode<synchronous>, transform_indices = @transform_7, window_bounds = array<i64: 2, 1024>}, {pipeline_mode = #tpu.pipeline_mode<synchronous>, transform_indices = @transform_8, window_bounds = array<i64: 2, 512, 384>}, {pipeline_mode = #tpu.pipeline_mode<synchronous>, transform_indices = @transform_9, window_bounds = array<i64: 8, 384>}, {transform_indices = @transform_10, window_bounds = array<i64: 1, 16, 384>}, {transform_indices = @transform_11, window_bounds = array<i64: 1, 8, 384>}]} {
    %c0 = arith.constant 0 : index
    %c0_0 = arith.constant 0 : index
    %0 = vector.load %arg10[%c0, %c0_0] : memref<8x384xf32, #tpu.memory_space<vmem>>, vector<8x384xf32>
    %1 = vector.extract_strided_slice %0 {offsets = [0, 0], sizes = [1, 384], strides = [1, 1]} : vector<8x384xf32> to vector<1x384xf32>
    %2 = vector.extract_strided_slice %0 {offsets = [1, 0], sizes = [1, 384], strides = [1, 1]} : vector<8x384xf32> to vector<1x384xf32>
    %3 = vector.extract_strided_slice %0 {offsets = [2, 0], sizes = [1, 384], strides = [1, 1]} : vector<8x384xf32> to vector<1x384xf32>
    %4 = vector.extract_strided_slice %0 {offsets = [3, 0], sizes = [1, 384], strides = [1, 1]} : vector<8x384xf32> to vector<1x384xf32>
    %5 = vector.extract_strided_slice %0 {offsets = [4, 0], sizes = [1, 384], strides = [1, 1]} : vector<8x384xf32> to vector<1x384xf32>
    %6 = vector.extract_strided_slice %0 {offsets = [5, 0], sizes = [1, 384], strides = [1, 1]} : vector<8x384xf32> to vector<1x384xf32>
    %c0_1 = arith.constant 0 : index
    %c0_2 = arith.constant 0 : index
    %7 = vector.load %arg6[%c0_1, %c0_2] : memref<16x512xf32, #tpu.memory_space<vmem>>, vector<16x512xf32>
    %8 = vector.extract_strided_slice %7 {offsets = [0, 0], sizes = [4, 512], strides = [1, 1]} : vector<16x512xf32> to vector<4x512xf32>
    %9 = vector.extract_strided_slice %7 {offsets = [4, 0], sizes = [12, 512], strides = [1, 1]} : vector<16x512xf32> to vector<12x512xf32>
    %c0_3 = arith.constant 0 : index
    %c0_4 = arith.constant 0 : index
    %10 = vector.load %arg8[%c0_3, %c0_4] : memref<2x1024xf32, #tpu.memory_space<vmem>>, vector<2x1024xf32>
    %c0_5 = arith.constant 0 : index
    %c0_6 = arith.constant 0 : index
    %c0_7 = arith.constant 0 : index
    %11 = vector.load %arg1[%c0_5, %c0_6, %c0_7] : memref<1x8x384xf32, #tpu.memory_space<vmem>>, vector<1x8x384xf32>
    %12 = vector.shape_cast %11 : vector<1x8x384xf32> to vector<8x384xf32>
    %13 = tpu.iota {dimensions = array<i32: 1>} : vector<8x384xi32>
    %cst = arith.constant dense<0.000000e+00> : vector<8xf32>
    %14 = vector.multi_reduction <add>, %12, %cst [1] : vector<8x384xf32> to vector<8xf32>
    %15 = vector.shape_cast %14 : vector<8xf32> to vector<8x1xf32>
    %cst_8 = arith.constant 0.00333333341 : f32
    %16 = vector.broadcast %cst_8 : f32 to vector<8x1xf32>
    %17 = arith.mulf %15, %16 : vector<8x1xf32>
    %c300_i32 = arith.constant 300 : i32
    %18 = vector.broadcast %c300_i32 : i32 to vector<8x384xi32>
    %19 = arith.cmpi slt, %13, %18 : vector<8x384xi32>
    %20 = vector.broadcast %17 : vector<8x1xf32> to vector<8x384xf32>
    %21 = arith.subf %12, %20 : vector<8x384xf32>
    %cst_9 = arith.constant 0.000000e+00 : f32
    %22 = vector.broadcast %cst_9 : f32 to vector<8x384xf32>
    %23 = arith.select %19, %21, %22 : vector<8x384xi1>, vector<8x384xf32>
    %24 = arith.mulf %23, %23 : vector<8x384xf32>
    %cst_10 = arith.constant dense<0.000000e+00> : vector<8xf32>
    %25 = vector.multi_reduction <add>, %24, %cst_10 [1] : vector<8x384xf32> to vector<8xf32>
    %26 = vector.shape_cast %25 : vector<8xf32> to vector<8x1xf32>
    %cst_11 = arith.constant 0.00333333341 : f32
    %27 = vector.broadcast %cst_11 : f32 to vector<8x1xf32>
    %28 = arith.mulf %26, %27 : vector<8x1xf32>
    %cst_12 = arith.constant 9.99999974E-6 : f32
    %29 = vector.broadcast %cst_12 : f32 to vector<8x1xf32>
    %30 = arith.addf %28, %29 : vector<8x1xf32>
    %31 = math.rsqrt %30 : vector<8x1xf32>
    %32 = vector.broadcast %31 : vector<8x1xf32> to vector<8x384xf32>
    %33 = arith.mulf %23, %32 : vector<8x384xf32>
    %34 = vector.broadcast %1 : vector<1x384xf32> to vector<8x384xf32>
    %35 = arith.mulf %33, %34 : vector<8x384xf32>
    %36 = vector.broadcast %2 : vector<1x384xf32> to vector<8x384xf32>
    %37 = arith.addf %35, %36 : vector<8x384xf32>
    %c0_13 = arith.constant 0 : index
    %c0_14 = arith.constant 0 : index
    %c0_15 = arith.constant 0 : index
    %38 = vector.load %arg12[%c0_13, %c0_14, %c0_15] : memref<1x8x384xf32, #tpu.memory_space<vmem>>, vector<1x8x384xf32>
    %39 = vector.shape_cast %38 : vector<1x8x384xf32> to vector<8x384xf32>
    %40 = vector.shape_cast %37 : vector<8x384xf32> to vector<1x8x384xf32>
    tpu.vector_store %arg12[%c0_13, %c0_14, %c0_15], %40 {strides = array<i32>} : memref<1x8x384xf32, #tpu.memory_space<vmem>>, vector<1x8x384xf32>,
    %c0_16 = arith.constant 0 : index
    %c0_17 = arith.constant 0 : index
    %c0_18 = arith.constant 0 : index
    %41 = vector.load %arg2[%c0_16, %c0_17, %c0_18] : memref<1x36x384xf32, #tpu.memory_space<vmem>>, vector<1x36x384xf32>
    %42 = vector.shape_cast %41 : vector<1x36x384xf32> to vector<36x384xf32>
    %c0_19 = arith.constant 0 : index
    %c0_20 = arith.constant 0 : index
    %c0_21 = arith.constant 0 : index
    %43 = vector.load %arg7[%c0_19, %c0_20, %c0_21] : memref<2x384x1024xf32, #tpu.memory_space<vmem>>, vector<1x384x1024xf32>
    %44 = vector.shape_cast %43 : vector<1x384x1024xf32> to vector<384x1024xf32>
    %cst_22 = arith.constant dense<0.000000e+00> : vector<36x1024xf32>
    %45 = tpu.matmul %42, %44, %cst_22 {dimension_numbers = #tpu.dot_dimension_numbers<[1], [0], [0], [1], [0, 0, 1, 1], [], []>} : vector<36x384xf32>, vector<384x1024xf32>, vector<36x1024xf32> -> vector<36x1024xf32>
    %46 = vector.extract_strided_slice %10 {offsets = [0, 0], sizes = [1, 1024], strides = [1, 1]} : vector<2x1024xf32> to vector<1x1024xf32>
    %47 = vector.broadcast %46 : vector<1x1024xf32> to vector<36x1024xf32>
    %48 = arith.addf %45, %47 : vector<36x1024xf32>
    %c0_23 = arith.constant 0 : index
    %c0_24 = arith.constant 0 : index
    %c0_25 = arith.constant 0 : index
    %49 = vector.load %arg3[%c0_23, %c0_24, %c0_25] : memref<1x12x36xf32, #tpu.memory_space<vmem>>, vector<1x12x36xf32>
    %50 = vector.shape_cast %49 : vector<1x12x36xf32> to vector<12x36xf32>
    %51 = vector.extract_strided_slice %48 {offsets = [0, 0], sizes = [36, 512], strides = [1, 1]} : vector<36x1024xf32> to vector<36x512xf32>
    %52 = vector.extract_strided_slice %48 {offsets = [0, 512], sizes = [36, 512], strides = [1, 1]} : vector<36x1024xf32> to vector<36x512xf32>
    %53 = vector.extract_strided_slice %9 {offsets = [0, 0], sizes = [12, 128], strides = [1, 1]} : vector<12x512xf32> to vector<12x128xf32>
    %54 = vector.extract_strided_slice %51 {offsets = [0, 0], sizes = [36, 128], strides = [1, 1]} : vector<36x512xf32> to vector<36x128xf32>
    %cst_26 = arith.constant dense<0.000000e+00> : vector<12x36xf32>
    %55 = tpu.matmul %53, %54, %cst_26 {dimension_numbers = #tpu.dot_dimension_numbers<[1], [1], [0], [0], [0, 0, 1, 0], [], []>} : vector<12x128xf32>, vector<36x128xf32>, vector<12x36xf32> -> vector<12x36xf32>
    %cst_27 = arith.constant 0.115470052 : f32
    %56 = vector.broadcast %cst_27 : f32 to vector<12x36xf32>
    %57 = arith.mulf %55, %56 : vector<12x36xf32>
    %58 = arith.addf %57, %50 : vector<12x36xf32>
    %cst_28 = arith.constant dense<0xFF800000> : vector<12xf32>
    %59 = vector.multi_reduction <maximumf>, %58, %cst_28 [1] : vector<12x36xf32> to vector<12xf32>
    %60 = vector.shape_cast %59 : vector<12xf32> to vector<12x1xf32>
    %61 = vector.broadcast %60 : vector<12x1xf32> to vector<12x36xf32>
    %62 = arith.subf %58, %61 : vector<12x36xf32>
    %63 = math.exp %62 : vector<12x36xf32>
    %cst_29 = arith.constant dense<0.000000e+00> : vector<12xf32>
    %64 = vector.multi_reduction <add>, %63, %cst_29 [1] : vector<12x36xf32> to vector<12xf32>
    %65 = vector.shape_cast %64 : vector<12xf32> to vector<12x1xf32>
    %66 = vector.broadcast %65 : vector<12x1xf32> to vector<12x36xf32>
    %67 = arith.divf %63, %66 : vector<12x36xf32>
    %68 = vector.extract_strided_slice %52 {offsets = [0, 0], sizes = [36, 128], strides = [1, 1]} : vector<36x512xf32> to vector<36x128xf32>
    %cst_30 = arith.constant dense<0.000000e+00> : vector<12x128xf32>
    %69 = tpu.matmul %67, %68, %cst_30 {dimension_numbers = #tpu.dot_dimension_numbers<[1], [0], [0], [1], [0, 0, 1, 1], [], []>} : vector<12x36xf32>, vector<36x128xf32>, vector<12x128xf32> -> vector<12x128xf32>
    %70 = vector.extract_strided_slice %9 {offsets = [0, 128], sizes = [12, 128], strides = [1, 1]} : vector<12x512xf32> to vector<12x128xf32>
    %71 = vector.extract_strided_slice %51 {offsets = [0, 128], sizes = [36, 128], strides = [1, 1]} : vector<36x512xf32> to vector<36x128xf32>
    %cst_31 = arith.constant dense<0.000000e+00> : vector<12x36xf32>
    %72 = tpu.matmul %70, %71, %cst_31 {dimension_numbers = #tpu.dot_dimension_numbers<[1], [1], [0], [0], [0, 0, 1, 0], [], []>} : vector<12x128xf32>, vector<36x128xf32>, vector<12x36xf32> -> vector<12x36xf32>
    %cst_32 = arith.constant 0.115470052 : f32
    %73 = vector.broadcast %cst_32 : f32 to vector<12x36xf32>
    %74 = arith.mulf %72, %73 : vector<12x36xf32>
    %75 = arith.addf %74, %50 : vector<12x36xf32>
    %cst_33 = arith.constant dense<0xFF800000> : vector<12xf32>
    %76 = vector.multi_reduction <maximumf>, %75, %cst_33 [1] : vector<12x36xf32> to vector<12xf32>
    %77 = vector.shape_cast %76 : vector<12xf32> to vector<12x1xf32>
    %78 = vector.broadcast %77 : vector<12x1xf32> to vector<12x36xf32>
    %79 = arith.subf %75, %78 : vector<12x36xf32>
    %80 = math.exp %79 : vector<12x36xf32>
    %cst_34 = arith.constant dense<0.000000e+00> : vector<12xf32>
    %81 = vector.multi_reduction <add>, %80, %cst_34 [1] : vector<12x36xf32> to vector<12xf32>
    %82 = vector.shape_cast %81 : vector<12xf32> to vector<12x1xf32>
    %83 = vector.broadcast %82 : vector<12x1xf32> to vector<12x36xf32>
    %84 = arith.divf %80, %83 : vector<12x36xf32>
    %85 = vector.extract_strided_slice %52 {offsets = [0, 128], sizes = [36, 128], strides = [1, 1]} : vector<36x512xf32> to vector<36x128xf32>
    %cst_35 = arith.constant dense<0.000000e+00> : vector<12x128xf32>
    %86 = tpu.matmul %84, %85, %cst_35 {dimension_numbers = #tpu.dot_dimension_numbers<[1], [0], [0], [1], [0, 0, 1, 1], [], []>} : vector<12x36xf32>, vector<36x128xf32>, vector<12x128xf32> -> vector<12x128xf32>
    %87 = vector.extract_strided_slice %9 {offsets = [0, 256], sizes = [12, 128], strides = [1, 1]} : vector<12x512xf32> to vector<12x128xf32>
    %88 = vector.extract_strided_slice %51 {offsets = [0, 256], sizes = [36, 128], strides = [1, 1]} : vector<36x512xf32> to vector<36x128xf32>
    %cst_36 = arith.constant dense<0.000000e+00> : vector<12x36xf32>
    %89 = tpu.matmul %87, %88, %cst_36 {dimension_numbers = #tpu.dot_dimension_numbers<[1], [1], [0], [0], [0, 0, 1, 0], [], []>} : vector<12x128xf32>, vector<36x128xf32>, vector<12x36xf32> -> vector<12x36xf32>
    %cst_37 = arith.constant 0.115470052 : f32
    %90 = vector.broadcast %cst_37 : f32 to vector<12x36xf32>
    %91 = arith.mulf %89, %90 : vector<12x36xf32>
    %92 = arith.addf %91, %50 : vector<12x36xf32>
    %cst_38 = arith.constant dense<0xFF800000> : vector<12xf32>
    %93 = vector.multi_reduction <maximumf>, %92, %cst_38 [1] : vector<12x36xf32> to vector<12xf32>
    %94 = vector.shape_cast %93 : vector<12xf32> to vector<12x1xf32>
    %95 = vector.broadcast %94 : vector<12x1xf32> to vector<12x36xf32>
    %96 = arith.subf %92, %95 : vector<12x36xf32>
    %97 = math.exp %96 : vector<12x36xf32>
    %cst_39 = arith.constant dense<0.000000e+00> : vector<12xf32>
    %98 = vector.multi_reduction <add>, %97, %cst_39 [1] : vector<12x36xf32> to vector<12xf32>
    %99 = vector.shape_cast %98 : vector<12xf32> to vector<12x1xf32>
    %100 = vector.broadcast %99 : vector<12x1xf32> to vector<12x36xf32>
    %101 = arith.divf %97, %100 : vector<12x36xf32>
    %102 = vector.extract_strided_slice %52 {offsets = [0, 256], sizes = [36, 128], strides = [1, 1]} : vector<36x512xf32> to vector<36x128xf32>
    %cst_40 = arith.constant dense<0.000000e+00> : vector<12x128xf32>
    %103 = tpu.matmul %101, %102, %cst_40 {dimension_numbers = #tpu.dot_dimension_numbers<[1], [0], [0], [1], [0, 0, 1, 1], [], []>} : vector<12x36xf32>, vector<36x128xf32>, vector<12x128xf32> -> vector<12x128xf32>
    %104 = vector.extract_strided_slice %9 {offsets = [0, 384], sizes = [12, 128], strides = [1, 1]} : vector<12x512xf32> to vector<12x128xf32>
    %105 = vector.extract_strided_slice %51 {offsets = [0, 384], sizes = [36, 128], strides = [1, 1]} : vector<36x512xf32> to vector<36x128xf32>
    %cst_41 = arith.constant dense<0.000000e+00> : vector<12x36xf32>
    %106 = tpu.matmul %104, %105, %cst_41 {dimension_numbers = #tpu.dot_dimension_numbers<[1], [1], [0], [0], [0, 0, 1, 0], [], []>} : vector<12x128xf32>, vector<36x128xf32>, vector<12x36xf32> -> vector<12x36xf32>
    %cst_42 = arith.constant 0.115470052 : f32
    %107 = vector.broadcast %cst_42 : f32 to vector<12x36xf32>
    %108 = arith.mulf %106, %107 : vector<12x36xf32>
    %109 = arith.addf %108, %50 : vector<12x36xf32>
    %cst_43 = arith.constant dense<0xFF800000> : vector<12xf32>
    %110 = vector.multi_reduction <maximumf>, %109, %cst_43 [1] : vector<12x36xf32> to vector<12xf32>
    %111 = vector.shape_cast %110 : vector<12xf32> to vector<12x1xf32>
    %112 = vector.broadcast %111 : vector<12x1xf32> to vector<12x36xf32>
    %113 = arith.subf %109, %112 : vector<12x36xf32>
    %114 = math.exp %113 : vector<12x36xf32>
    %cst_44 = arith.constant dense<0.000000e+00> : vector<12xf32>
    %115 = vector.multi_reduction <add>, %114, %cst_44 [1] : vector<12x36xf32> to vector<12xf32>
    %116 = vector.shape_cast %115 : vector<12xf32> to vector<12x1xf32>
    %117 = vector.broadcast %116 : vector<12x1xf32> to vector<12x36xf32>
    %118 = arith.divf %114, %117 : vector<12x36xf32>
    %119 = vector.extract_strided_slice %52 {offsets = [0, 384], sizes = [36, 128], strides = [1, 1]} : vector<36x512xf32> to vector<36x128xf32>
    %cst_45 = arith.constant dense<0.000000e+00> : vector<12x128xf32>
    %120 = tpu.matmul %118, %119, %cst_45 {dimension_numbers = #tpu.dot_dimension_numbers<[1], [0], [0], [1], [0, 0, 1, 1], [], []>} : vector<12x36xf32>, vector<36x128xf32>, vector<12x128xf32> -> vector<12x128xf32>
    %121 = tpu.concatenate %69, %86, %103, %120 in 1 : vector<12x128xf32>, vector<12x128xf32>, vector<12x128xf32>, vector<12x128xf32> -> vector<12x512xf32>
    %c0_46 = arith.constant 0 : index
    %c0_47 = arith.constant 0 : index
    %c0_48 = arith.constant 0 : index
    %122 = vector.load %arg9[%c0_46, %c0_47, %c0_48] : memref<2x512x384xf32, #tpu.memory_space<vmem>>, vector<1x512x384xf32>
    %123 = vector.shape_cast %122 : vector<1x512x384xf32> to vector<512x384xf32>
    %cst_49 = arith.constant dense<0.000000e+00> : vector<12x384xf32>
    %124 = tpu.matmul %121, %123, %cst_49 {dimension_numbers = #tpu.dot_dimension_numbers<[1], [0], [0], [1], [0, 0, 1, 1], [], []>} : vector<12x512xf32>, vector<512x384xf32>, vector<12x384xf32> -> vector<12x384xf32>
    %125 = vector.broadcast %5 : vector<1x384xf32> to vector<12x384xf32>
    %126 = arith.addf %124, %125 : vector<12x384xf32>
    %c0_50 = arith.constant 0 : index
    %c0_51 = arith.constant 0 : index
    %c0_52 = arith.constant 0 : index
    %127 = vector.load %arg4[%c0_50, %c0_51, %c0_52] : memref<1x5x10xf32, #tpu.memory_space<vmem>>, vector<1x5x10xf32>
    %128 = vector.shape_cast %127 : vector<1x5x10xf32> to vector<5x10xf32>
    %c0_53 = arith.constant 0 : index
    %c0_54 = arith.constant 0 : index
    %129 = vector.load %arg5[%c0_53, %c0_54] : memref<10x384xf32, #tpu.memory_space<vmem>>, vector<10x384xf32>
    %cst_55 = arith.constant dense<0.000000e+00> : vector<5x384xf32>
    %130 = tpu.matmul %128, %129, %cst_55 {dimension_numbers = #tpu.dot_dimension_numbers<[1], [0], [0], [1], [0, 0, 1, 1], [], []>} : vector<5x10xf32>, vector<10x384xf32>, vector<5x384xf32> -> vector<5x384xf32>
    %c1 = arith.constant 1 : index
    %c0_56 = arith.constant 0 : index
    %c0_57 = arith.constant 0 : index
    %131 = vector.load %arg7[%c1, %c0_56, %c0_57] : memref<2x384x1024xf32, #tpu.memory_space<vmem>>, vector<1x384x1024xf32>
    %132 = vector.shape_cast %131 : vector<1x384x1024xf32> to vector<384x1024xf32>
    %cst_58 = arith.constant dense<0.000000e+00> : vector<5x1024xf32>
    %133 = tpu.matmul %130, %132, %cst_58 {dimension_numbers = #tpu.dot_dimension_numbers<[1], [0], [0], [1], [0, 0, 1, 1], [], []>} : vector<5x384xf32>, vector<384x1024xf32>, vector<5x1024xf32> -> vector<5x1024xf32>
    %134 = vector.extract_strided_slice %10 {offsets = [1, 0], sizes = [1, 1024], strides = [1, 1]} : vector<2x1024xf32> to vector<1x1024xf32>
    %135 = vector.broadcast %134 : vector<1x1024xf32> to vector<5x1024xf32>
    %136 = arith.addf %133, %135 : vector<5x1024xf32>
    %137 = vector.extract_strided_slice %136 {offsets = [0, 0], sizes = [5, 512], strides = [1, 1]} : vector<5x1024xf32> to vector<5x512xf32>
    %138 = vector.extract_strided_slice %136 {offsets = [0, 512], sizes = [5, 512], strides = [1, 1]} : vector<5x1024xf32> to vector<5x512xf32>
    %139 = vector.extract_strided_slice %8 {offsets = [0, 0], sizes = [4, 128], strides = [1, 1]} : vector<4x512xf32> to vector<4x128xf32>
    %140 = vector.extract_strided_slice %137 {offsets = [0, 0], sizes = [5, 128], strides = [1, 1]} : vector<5x512xf32> to vector<5x128xf32>
    %cst_59 = arith.constant dense<0.000000e+00> : vector<4x5xf32>
    %141 = tpu.matmul %139, %140, %cst_59 {dimension_numbers = #tpu.dot_dimension_numbers<[1], [1], [0], [0], [0, 0, 1, 0], [], []>} : vector<4x128xf32>, vector<5x128xf32>, vector<4x5xf32> -> vector<4x5xf32>
    %cst_60 = arith.constant 0.115470052 : f32
    %142 = vector.broadcast %cst_60 : f32 to vector<4x5xf32>
    %143 = arith.mulf %141, %142 : vector<4x5xf32>
    %cst_61 = arith.constant dense<0xFF800000> : vector<4xf32>
    %144 = vector.multi_reduction <maximumf>, %143, %cst_61 [1] : vector<4x5xf32> to vector<4xf32>
    %145 = vector.shape_cast %144 : vector<4xf32> to vector<4x1xf32>
    %146 = vector.broadcast %145 : vector<4x1xf32> to vector<4x5xf32>
    %147 = arith.subf %143, %146 : vector<4x5xf32>
    %148 = math.exp %147 : vector<4x5xf32>
    %cst_62 = arith.constant dense<0.000000e+00> : vector<4xf32>
    %149 = vector.multi_reduction <add>, %148, %cst_62 [1] : vector<4x5xf32> to vector<4xf32>
    %150 = vector.shape_cast %149 : vector<4xf32> to vector<4x1xf32>
    %151 = vector.broadcast %150 : vector<4x1xf32> to vector<4x5xf32>
    %152 = arith.divf %148, %151 : vector<4x5xf32>
    %153 = vector.extract_strided_slice %138 {offsets = [0, 0], sizes = [5, 128], strides = [1, 1]} : vector<5x512xf32> to vector<5x128xf32>
    %cst_63 = arith.constant dense<0.000000e+00> : vector<4x128xf32>
    %154 = tpu.matmul %152, %153, %cst_63 {dimension_numbers = #tpu.dot_dimension_numbers<[1], [0], [0], [1], [0, 0, 1, 1], [], []>} : vector<4x5xf32>, vector<5x128xf32>, vector<4x128xf32> -> vector<4x128xf32>
    %155 = vector.extract_strided_slice %8 {offsets = [0, 128], sizes = [4, 128], strides = [1, 1]} : vector<4x512xf32> to vector<4x128xf32>
    %156 = vector.extract_strided_slice %137 {offsets = [0, 128], sizes = [5, 128], strides = [1, 1]} : vector<5x512xf32> to vector<5x128xf32>
    %cst_64 = arith.constant dense<0.000000e+00> : vector<4x5xf32>
    %157 = tpu.matmul %155, %156, %cst_64 {dimension_numbers = #tpu.dot_dimension_numbers<[1], [1], [0], [0], [0, 0, 1, 0], [], []>} : vector<4x128xf32>, vector<5x128xf32>, vector<4x5xf32> -> vector<4x5xf32>
    %cst_65 = arith.constant 0.115470052 : f32
    %158 = vector.broadcast %cst_65 : f32 to vector<4x5xf32>
    %159 = arith.mulf %157, %158 : vector<4x5xf32>
    %cst_66 = arith.constant dense<0xFF800000> : vector<4xf32>
    %160 = vector.multi_reduction <maximumf>, %159, %cst_66 [1] : vector<4x5xf32> to vector<4xf32>
    %161 = vector.shape_cast %160 : vector<4xf32> to vector<4x1xf32>
    %162 = vector.broadcast %161 : vector<4x1xf32> to vector<4x5xf32>
    %163 = arith.subf %159, %162 : vector<4x5xf32>
    %164 = math.exp %163 : vector<4x5xf32>
    %cst_67 = arith.constant dense<0.000000e+00> : vector<4xf32>
    %165 = vector.multi_reduction <add>, %164, %cst_67 [1] : vector<4x5xf32> to vector<4xf32>
    %166 = vector.shape_cast %165 : vector<4xf32> to vector<4x1xf32>
    %167 = vector.broadcast %166 : vector<4x1xf32> to vector<4x5xf32>
    %168 = arith.divf %164, %167 : vector<4x5xf32>
    %169 = vector.extract_strided_slice %138 {offsets = [0, 128], sizes = [5, 128], strides = [1, 1]} : vector<5x512xf32> to vector<5x128xf32>
    %cst_68 = arith.constant dense<0.000000e+00> : vector<4x128xf32>
    %170 = tpu.matmul %168, %169, %cst_68 {dimension_numbers = #tpu.dot_dimension_numbers<[1], [0], [0], [1], [0, 0, 1, 1], [], []>} : vector<4x5xf32>, vector<5x128xf32>, vector<4x128xf32> -> vector<4x128xf32>
    %171 = vector.extract_strided_slice %8 {offsets = [0, 256], sizes = [4, 128], strides = [1, 1]} : vector<4x512xf32> to vector<4x128xf32>
    %172 = vector.extract_strided_slice %137 {offsets = [0, 256], sizes = [5, 128], strides = [1, 1]} : vector<5x512xf32> to vector<5x128xf32>
    %cst_69 = arith.constant dense<0.000000e+00> : vector<4x5xf32>
    %173 = tpu.matmul %171, %172, %cst_69 {dimension_numbers = #tpu.dot_dimension_numbers<[1], [1], [0], [0], [0, 0, 1, 0], [], []>} : vector<4x128xf32>, vector<5x128xf32>, vector<4x5xf32> -> vector<4x5xf32>
    %cst_70 = arith.constant 0.115470052 : f32
    %174 = vector.broadcast %cst_70 : f32 to vector<4x5xf32>
    %175 = arith.mulf %173, %174 : vector<4x5xf32>
    %cst_71 = arith.constant dense<0xFF800000> : vector<4xf32>
    %176 = vector.multi_reduction <maximumf>, %175, %cst_71 [1] : vector<4x5xf32> to vector<4xf32>
    %177 = vector.shape_cast %176 : vector<4xf32> to vector<4x1xf32>
    %178 = vector.broadcast %177 : vector<4x1xf32> to vector<4x5xf32>
    %179 = arith.subf %175, %178 : vector<4x5xf32>
    %180 = math.exp %179 : vector<4x5xf32>
    %cst_72 = arith.constant dense<0.000000e+00> : vector<4xf32>
    %181 = vector.multi_reduction <add>, %180, %cst_72 [1] : vector<4x5xf32> to vector<4xf32>
    %182 = vector.shape_cast %181 : vector<4xf32> to vector<4x1xf32>
    %183 = vector.broadcast %182 : vector<4x1xf32> to vector<4x5xf32>
    %184 = arith.divf %180, %183 : vector<4x5xf32>
    %185 = vector.extract_strided_slice %138 {offsets = [0, 256], sizes = [5, 128], strides = [1, 1]} : vector<5x512xf32> to vector<5x128xf32>
    %cst_73 = arith.constant dense<0.000000e+00> : vector<4x128xf32>
    %186 = tpu.matmul %184, %185, %cst_73 {dimension_numbers = #tpu.dot_dimension_numbers<[1], [0], [0], [1], [0, 0, 1, 1], [], []>} : vector<4x5xf32>, vector<5x128xf32>, vector<4x128xf32> -> vector<4x128xf32>
    %187 = vector.extract_strided_slice %8 {offsets = [0, 384], sizes = [4, 128], strides = [1, 1]} : vector<4x512xf32> to vector<4x128xf32>
    %188 = vector.extract_strided_slice %137 {offsets = [0, 384], sizes = [5, 128], strides = [1, 1]} : vector<5x512xf32> to vector<5x128xf32>
    %cst_74 = arith.constant dense<0.000000e+00> : vector<4x5xf32>
    %189 = tpu.matmul %187, %188, %cst_74 {dimension_numbers = #tpu.dot_dimension_numbers<[1], [1], [0], [0], [0, 0, 1, 0], [], []>} : vector<4x128xf32>, vector<5x128xf32>, vector<4x5xf32> -> vector<4x5xf32>
    %cst_75 = arith.constant 0.115470052 : f32
    %190 = vector.broadcast %cst_75 : f32 to vector<4x5xf32>
    %191 = arith.mulf %189, %190 : vector<4x5xf32>
    %cst_76 = arith.constant dense<0xFF800000> : vector<4xf32>
    %192 = vector.multi_reduction <maximumf>, %191, %cst_76 [1] : vector<4x5xf32> to vector<4xf32>
    %193 = vector.shape_cast %192 : vector<4xf32> to vector<4x1xf32>
    %194 = vector.broadcast %193 : vector<4x1xf32> to vector<4x5xf32>
    %195 = arith.subf %191, %194 : vector<4x5xf32>
    %196 = math.exp %195 : vector<4x5xf32>
    %cst_77 = arith.constant dense<0.000000e+00> : vector<4xf32>
    %197 = vector.multi_reduction <add>, %196, %cst_77 [1] : vector<4x5xf32> to vector<4xf32>
    %198 = vector.shape_cast %197 : vector<4xf32> to vector<4x1xf32>
    %199 = vector.broadcast %198 : vector<4x1xf32> to vector<4x5xf32>
    %200 = arith.divf %196, %199 : vector<4x5xf32>
    %201 = vector.extract_strided_slice %138 {offsets = [0, 384], sizes = [5, 128], strides = [1, 1]} : vector<5x512xf32> to vector<5x128xf32>
    %cst_78 = arith.constant dense<0.000000e+00> : vector<4x128xf32>
    %202 = tpu.matmul %200, %201, %cst_78 {dimension_numbers = #tpu.dot_dimension_numbers<[1], [0], [0], [1], [0, 0, 1, 1], [], []>} : vector<4x5xf32>, vector<5x128xf32>, vector<4x128xf32> -> vector<4x128xf32>
    %203 = tpu.concatenate %154, %170, %186, %202 in 1 : vector<4x128xf32>, vector<4x128xf32>, vector<4x128xf32>, vector<4x128xf32> -> vector<4x512xf32>
    %c1_79 = arith.constant 1 : index
    %c0_80 = arith.constant 0 : index
    %c0_81 = arith.constant 0 : index
    %204 = vector.load %arg9[%c1_79, %c0_80, %c0_81] : memref<2x512x384xf32, #tpu.memory_space<vmem>>, vector<1x512x384xf32>
    %205 = vector.shape_cast %204 : vector<1x512x384xf32> to vector<512x384xf32>
    %cst_82 = arith.constant dense<0.000000e+00> : vector<4x384xf32>
    %206 = tpu.matmul %203, %205, %cst_82 {dimension_numbers = #tpu.dot_dimension_numbers<[1], [0], [0], [1], [0, 0, 1, 1], [], []>} : vector<4x512xf32>, vector<512x384xf32>, vector<4x384xf32> -> vector<4x384xf32>
    %207 = vector.broadcast %6 : vector<1x384xf32> to vector<4x384xf32>
    %208 = arith.addf %206, %207 : vector<4x384xf32>
    %209 = tpu.concatenate %208, %126 in 0 : vector<4x384xf32>, vector<12x384xf32> -> vector<16x384xf32>
    %210 = tpu.iota {dimensions = array<i32: 1>} : vector<16x384xi32>
    %cst_83 = arith.constant dense<0.000000e+00> : vector<16xf32>
    %211 = vector.multi_reduction <add>, %209, %cst_83 [1] : vector<16x384xf32> to vector<16xf32>
    %212 = vector.shape_cast %211 : vector<16xf32> to vector<16x1xf32>
    %cst_84 = arith.constant 0.00333333341 : f32
    %213 = vector.broadcast %cst_84 : f32 to vector<16x1xf32>
    %214 = arith.mulf %212, %213 : vector<16x1xf32>
    %c300_i32_85 = arith.constant 300 : i32
    %215 = vector.broadcast %c300_i32_85 : i32 to vector<16x384xi32>
    %216 = arith.cmpi slt, %210, %215 : vector<16x384xi32>
    %217 = vector.broadcast %214 : vector<16x1xf32> to vector<16x384xf32>
    %218 = arith.subf %209, %217 : vector<16x384xf32>
    %cst_86 = arith.constant 0.000000e+00 : f32
    %219 = vector.broadcast %cst_86 : f32 to vector<16x384xf32>
    %220 = arith.select %216, %218, %219 : vector<16x384xi1>, vector<16x384xf32>
    %221 = arith.mulf %220, %220 : vector<16x384xf32>
    %cst_87 = arith.constant dense<0.000000e+00> : vector<16xf32>
    %222 = vector.multi_reduction <add>, %221, %cst_87 [1] : vector<16x384xf32> to vector<16xf32>
    %223 = vector.shape_cast %222 : vector<16xf32> to vector<16x1xf32>
    %cst_88 = arith.constant 0.00333333341 : f32
    %224 = vector.broadcast %cst_88 : f32 to vector<16x1xf32>
    %225 = arith.mulf %223, %224 : vector<16x1xf32>
    %cst_89 = arith.constant 9.99999974E-6 : f32
    %226 = vector.broadcast %cst_89 : f32 to vector<16x1xf32>
    %227 = arith.addf %225, %226 : vector<16x1xf32>
    %228 = math.rsqrt %227 : vector<16x1xf32>
    %229 = vector.broadcast %228 : vector<16x1xf32> to vector<16x384xf32>
    %230 = arith.mulf %220, %229 : vector<16x384xf32>
    %231 = vector.broadcast %3 : vector<1x384xf32> to vector<16x384xf32>
    %232 = arith.mulf %230, %231 : vector<16x384xf32>
    %233 = vector.broadcast %4 : vector<1x384xf32> to vector<16x384xf32>
    %234 = arith.addf %232, %233 : vector<16x384xf32>
    %c0_90 = arith.constant 0 : index
    %c0_91 = arith.constant 0 : index
    %c0_92 = arith.constant 0 : index
    %235 = vector.load %arg11[%c0_90, %c0_91, %c0_92] : memref<1x16x384xf32, #tpu.memory_space<vmem>>, vector<1x16x384xf32>
    %236 = vector.shape_cast %235 : vector<1x16x384xf32> to vector<16x384xf32>
    %237 = vector.shape_cast %234 : vector<16x384xf32> to vector<1x16x384xf32>
    tpu.vector_store %arg11[%c0_90, %c0_91, %c0_92], %237 {strides = array<i32>} : memref<1x16x384xf32, #tpu.memory_space<vmem>>, vector<1x16x384xf32>,
    return
  }
  func.func @transform_0(%arg0: i32) -> (i32, i32, i32) {
    %c0_i32 = arith.constant 0 : i32
    %c0_i32_0 = arith.constant 0 : i32
    %c0_i32_1 = arith.constant 0 : i32
    return %arg0, %c0_i32, %c0_i32_0 : i32, i32, i32
  }
  func.func @transform_1(%arg0: i32) -> (i32, i32, i32) {
    %c0_i32 = arith.constant 0 : i32
    %c0_i32_0 = arith.constant 0 : i32
    %c0_i32_1 = arith.constant 0 : i32
    return %arg0, %c0_i32, %c0_i32_0 : i32, i32, i32
  }
  func.func @transform_2(%arg0: i32) -> (i32, i32, i32) {
    %c0_i32 = arith.constant 0 : i32
    %c0_i32_0 = arith.constant 0 : i32
    %c0_i32_1 = arith.constant 0 : i32
    return %arg0, %c0_i32, %c0_i32_0 : i32, i32, i32
  }
  func.func @transform_3(%arg0: i32) -> (i32, i32, i32) {
    %c0_i32 = arith.constant 0 : i32
    %c0_i32_0 = arith.constant 0 : i32
    %c0_i32_1 = arith.constant 0 : i32
    return %arg0, %c0_i32, %c0_i32_0 : i32, i32, i32
  }
  func.func @transform_4(%arg0: i32) -> (i32, i32) {
    %c0_i32 = arith.constant 0 : i32
    %c0_i32_0 = arith.constant 0 : i32
    %c0_i32_1 = arith.constant 0 : i32
    return %c0_i32, %c0_i32_0 : i32, i32
  }
  func.func @transform_5(%arg0: i32) -> (i32, i32) {
    %c0_i32 = arith.constant 0 : i32
    %c0_i32_0 = arith.constant 0 : i32
    %c0_i32_1 = arith.constant 0 : i32
    return %c0_i32, %c0_i32_0 : i32, i32
  }
  func.func @transform_6(%arg0: i32) -> (i32, i32, i32) {
    %c0_i32 = arith.constant 0 : i32
    %c0_i32_0 = arith.constant 0 : i32
    %c0_i32_1 = arith.constant 0 : i32
    %c0_i32_2 = arith.constant 0 : i32
    return %c0_i32, %c0_i32_0, %c0_i32_1 : i32, i32, i32
  }
  func.func @transform_7(%arg0: i32) -> (i32, i32) {
    %c0_i32 = arith.constant 0 : i32
    %c0_i32_0 = arith.constant 0 : i32
    %c0_i32_1 = arith.constant 0 : i32
    return %c0_i32, %c0_i32_0 : i32, i32
  }
  func.func @transform_8(%arg0: i32) -> (i32, i32, i32) {
    %c0_i32 = arith.constant 0 : i32
    %c0_i32_0 = arith.constant 0 : i32
    %c0_i32_1 = arith.constant 0 : i32
    %c0_i32_2 = arith.constant 0 : i32
    return %c0_i32, %c0_i32_0, %c0_i32_1 : i32, i32, i32
  }
  func.func @transform_9(%arg0: i32) -> (i32, i32) {
    %c0_i32 = arith.constant 0 : i32
    %c0_i32_0 = arith.constant 0 : i32
    %c0_i32_1 = arith.constant 0 : i32
    return %c0_i32, %c0_i32_0 : i32, i32
  }
  func.func @transform_10(%arg0: i32) -> (i32, i32, i32) {
    %c0_i32 = arith.constant 0 : i32
    %c0_i32_0 = arith.constant 0 : i32
    %c0_i32_1 = arith.constant 0 : i32
    return %arg0, %c0_i32, %c0_i32_0 : i32, i32, i32
  }
  func.func @transform_11(%arg0: i32) -> (i32, i32, i32) {
    %c0_i32 = arith.constant 0 : i32
    %c0_i32_0 = arith.constant 0 : i32
    %c0_i32_1 = arith.constant 0 : i32
    return %arg0, %c0_i32, %c0_i32_0 : i32, i32, i32
  }
}

</mosaic_0001>

<llo_original>
// kernel: multilevel_projector_forward.1
$region0: #{multilevel_projector_forward.1}
  #allocation0 [shape = 'u32[]', space=smem, size = 0x4, offset = 0x4, fixed_abs, tag = 'smem constant byte address 0x4 - core index']
  #allocation1 [shape = 'u32[144,128]{1,0:T(1,128)}', space=vmem, size = 0x12000, scoped, tag = 'internal scratch']
  %s0 = inlined_call_operand.vmem [shape: f32[2,8,384], index: 0, kind: input, shape index: {}]
  %s1 = inlined_call_operand.vmem [shape: f32[2,36,384], index: 1, kind: input, shape index: {}]
  %s2 = inlined_call_operand.vmem [shape: f32[2,12,36], index: 2, kind: input, shape index: {}]
  %s3 = inlined_call_operand.vmem [shape: f32[2,5,10], index: 3, kind: input, shape index: {}]
  %s4 = inlined_call_operand.vmem [shape: f32[10,384], index: 4, kind: input, shape index: {}]
  %s5 = inlined_call_operand.vmem [shape: f32[16,512], index: 5, kind: input, shape index: {}]
  %s6 = inlined_call_operand.vmem [shape: f32[2,384,1024], index: 6, kind: input, shape index: {}]
  %s7 = inlined_call_operand.vmem [shape: f32[2,1024], index: 7, kind: input, shape index: {}]
  %s8 = inlined_call_operand.vmem [shape: f32[2,512,384], index: 8, kind: input, shape index: {}]
  %s9 = inlined_call_operand.vmem [shape: f32[8,384], index: 9, kind: input, shape index: {}]
  %s10 = inlined_call_operand.hbm [shape: f32[2,16,384], index: 10, kind: output, shape index: {0}]
  %s11 = inlined_call_operand.hbm [shape: f32[2,8,384], index: 11, kind: output, shape index: {1}]
  %12 = xla_tuple %s10, %s11
  %s13 = sld [smem:[#allocation0]]
  $region81: #{multilevel_projector_forward.1} parent=0
    _
  %s15 = ssub.s32 1, %s13
  %s16 = scalar_select 0, %s15, %s13
  $region1: #{multilevel_projector_forward.1} parent=0
    #allocation2 [shape = 'u8[49152]{0}', space=vmem, size = 0xc000, scoped, tag = 'output window, operand 0']
    #allocation3 [shape = 's32[2]{0}', space=sflag, size = 0x8, scoped, tag = 'scoped memory for multilevel_projector_forward.1']
    #allocation4 [shape = 'u8[24576]{0}', space=vmem, size = 0x6000, scoped, tag = 'output window, operand 1']
    #allocation5 [shape = 's32[2]{0}', space=sflag, size = 0x8, scoped, tag = 'scoped memory for multilevel_projector_forward.1']
    %17 = vsyncpa [#allocation3], 0
    %s18 = scalar_lea.sflag [#allocation3], 1
    %19 = vsyncpa %s18, 0
    %20 = vsyncpa [#allocation5], 0
    %s21 = scalar_lea.sflag [#allocation5], 1
    %22 = vsyncpa %s21, 0
    loop: start=0, step=1, limit=4
    $region2: #{multilevel_projector_forward.1} parent=1 // loop_pre_header
      _
    $region3: #{multilevel_projector_forward.1} parent=1 // loop_header
      %s24 = sphi 0, %s28
      %p25 = scmp.ge.s32.totalorder %s24, 4
      %s34 = sphi 0, %s36
      %s37 = sphi 0, %s34
      %s38 = sphi 0, %s37
      %s54 = sphi 0, %s38
      %s60 = sphi 0, %s62
      %s63 = sphi 0, %s60
      %s64 = sphi 0, %s63
      %s80 = sphi 0, %s64
      %s86 = sphi 0, %s88
      %s89 = sphi 0, %s86
      %s90 = sphi 0, %s89
      %s106 = sphi 0, %s90
      %s112 = sphi 0, %s114
      %s115 = sphi 0, %s112
      %s116 = sphi 0, %s115
      %s132 = sphi 0, %s116
      %s136 = sphi 0, %s136
      %s138 = sphi 0, %s136
      %s139 = sphi 0, %s138
      %s153 = sphi 0, %s139
      %s157 = sphi 0, %s157
      %s159 = sphi 0, %s157
      %s160 = sphi 0, %s159
      %s174 = sphi 0, %s160
      %s178 = sphi 0, %s178
      %s180 = sphi 0, %s178
      %s181 = sphi 0, %s180
      %s195 = sphi 0, %s181
      %s199 = sphi 0, %s199
      %s201 = sphi 0, %s199
      %s202 = sphi 0, %s201
      %s216 = sphi 0, %s202
      %s220 = sphi 0, %s220
      %s222 = sphi 0, %s220
      %s223 = sphi 0, %s222
      %s237 = sphi 0, %s223
      %s241 = sphi 0, %s241
      %s243 = sphi 0, %s241
      %s244 = sphi 0, %s243
      %s258 = sphi 0, %s244
      %s264 = sphi 0, %s266
      %s267 = sphi 0, %s264
      %s268 = sphi 0, %s267
      %s284 = sphi 0, %s268
      %s290 = sphi 0, %s292
      %s293 = sphi 0, %s290
      %s294 = sphi 0, %s293
      %s310 = sphi 0, %s294
    $region4: #{multilevel_projector_forward.1} parent=1 // loop_header_branch
      %27 = sbr.rel (%p25) target = $region8
    $region5: #{multilevel_projector_forward.1} parent=1 // loop_body
      %s29 = ssub.s32 %s24, 1
      %s30 = ssub.s32 %s24, 2
      %s31 = sadd.s32 %s24, 1
      %s32 = ssub.s32 %s24, %s31
      %p33 = scmp.eq.s32.totalorder %s32, 0
      %s35 = sadd.s32 %s34, 1
      %s36 = scalar_select %p33, %s34, %s35
      %p39 = pneg %p33
      %p40 = scmp.eq.s32.totalorder %s24, 1
      %p41 = por %p39, %p40
      %p42 = scmp.ne.s32.totalorder %s34, %s37
      %p43 = scmp.eq.s32.totalorder %s24, 0
      %p44 = por %p42, %p43
      %p45 = scmp.ne.s32.totalorder %s34, %s37
      %p46 = scmp.eq.s32.totalorder %s29, 1
      %p47 = por %p45, %p46
      %p48 = scmp.ne.s32.totalorder %s37, %s38
      %p49 = scmp.eq.s32.totalorder %s29, 0
      %p50 = por %p48, %p49
      %p51 = scmp.ne.s32.totalorder %s37, %s38
      %p52 = scmp.eq.s32.totalorder %s30, 1
      %p53 = por %p51, %p52
      %p55 = scmp.ne.s32.totalorder %s38, %s54
      %p56 = scmp.eq.s32.totalorder %s30, 0
      %p57 = por %p55, %p56
      %s58 = ssub.s32 %s24, %s31
      %p59 = scmp.eq.s32.totalorder %s58, 0
      %s61 = sadd.s32 %s60, 1
      %s62 = scalar_select %p59, %s60, %s61
      %p65 = pneg %p59
      %p66 = scmp.eq.s32.totalorder %s24, 1
      %p67 = por %p65, %p66
      %p68 = scmp.ne.s32.totalorder %s60, %s63
      %p69 = scmp.eq.s32.totalorder %s24, 0
      %p70 = por %p68, %p69
      %p71 = scmp.ne.s32.totalorder %s60, %s63
      %p72 = scmp.eq.s32.totalorder %s29, 1
      %p73 = por %p71, %p72
      %p74 = scmp.ne.s32.totalorder %s63, %s64
      %p75 = scmp.eq.s32.totalorder %s29, 0
      %p76 = por %p74, %p75
      %p77 = scmp.ne.s32.totalorder %s63, %s64
      %p78 = scmp.eq.s32.totalorder %s30, 1
      %p79 = por %p77, %p78
      %p81 = scmp.ne.s32.totalorder %s64, %s80
      %p82 = scmp.eq.s32.totalorder %s30, 0
      %p83 = por %p81, %p82
      %s84 = ssub.s32 %s24, %s31
      %p85 = scmp.eq.s32.totalorder %s84, 0
      %s87 = sadd.s32 %s86, 1
      %s88 = scalar_select %p85, %s86, %s87
      %p91 = pneg %p85
      %p92 = scmp.eq.s32.totalorder %s24, 1
      %p93 = por %p91, %p92
      %p94 = scmp.ne.s32.totalorder %s86, %s89
      %p95 = scmp.eq.s32.totalorder %s24, 0
      %p96 = por %p94, %p95
      %p97 = scmp.ne.s32.totalorder %s86, %s89
      %p98 = scmp.eq.s32.totalorder %s29, 1
      %p99 = por %p97, %p98
      %p100 = scmp.ne.s32.totalorder %s89, %s90
      %p101 = scmp.eq.s32.totalorder %s29, 0
      %p102 = por %p100, %p101
      %p103 = scmp.ne.s32.totalorder %s89, %s90
      %p104 = scmp.eq.s32.totalorder %s30, 1
      %p105 = por %p103, %p104
      %p107 = scmp.ne.s32.totalorder %s90, %s106
      %p108 = scmp.eq.s32.totalorder %s30, 0
      %p109 = por %p107, %p108
      %s110 = ssub.s32 %s24, %s31
      %p111 = scmp.eq.s32.totalorder %s110, 0
      %s113 = sadd.s32 %s112, 1
      %s114 = scalar_select %p111, %s112, %s113
      %p117 = pneg %p111
      %p118 = scmp.eq.s32.totalorder %s24, 1
      %p119 = por %p117, %p118
      %p120 = scmp.ne.s32.totalorder %s112, %s115
      %p121 = scmp.eq.s32.totalorder %s24, 0
      %p122 = por %p120, %p121
      %p123 = scmp.ne.s32.totalorder %s112, %s115
      %p124 = scmp.eq.s32.totalorder %s29, 1
      %p125 = por %p123, %p124
      %p126 = scmp.ne.s32.totalorder %s115, %s116
      %p127 = scmp.eq.s32.totalorder %s29, 0
      %p128 = por %p126, %p127
      %p129 = scmp.ne.s32.totalorder %s115, %s116
      %p130 = scmp.eq.s32.totalorder %s30, 1
      %p131 = por %p129, %p130
      %p133 = scmp.ne.s32.totalorder %s116, %s132
      %p134 = scmp.eq.s32.totalorder %s30, 0
      %p135 = por %p133, %p134
      %s137 = sadd.s32 %s136, 1
      %p140 = scmp.eq.s32.totalorder %s24, 1
      %p141 = scmp.ne.s32.totalorder %s136, %s138
      %p142 = scmp.eq.s32.totalorder %s24, 0
      %p143 = por %p141, %p142
      %p144 = scmp.ne.s32.totalorder %s136, %s138
      %p145 = scmp.eq.s32.totalorder %s29, 1
      %p146 = por %p144, %p145
      %p147 = scmp.ne.s32.totalorder %s138, %s139
      %p148 = scmp.eq.s32.totalorder %s29, 0
      %p149 = por %p147, %p148
      %p150 = scmp.ne.s32.totalorder %s138, %s139
      %p151 = scmp.eq.s32.totalorder %s30, 1
      %p152 = por %p150, %p151
      %p154 = scmp.ne.s32.totalorder %s139, %s153
      %p155 = scmp.eq.s32.totalorder %s30, 0
      %p156 = por %p154, %p155
      %s158 = sadd.s32 %s157, 1
      %p161 = scmp.eq.s32.totalorder %s24, 1
      %p162 = scmp.ne.s32.totalorder %s157, %s159
      %p163 = scmp.eq.s32.totalorder %s24, 0
      %p164 = por %p162, %p163
      %p165 = scmp.ne.s32.totalorder %s157, %s159
      %p166 = scmp.eq.s32.totalorder %s29, 1
      %p167 = por %p165, %p166
      %p168 = scmp.ne.s32.totalorder %s159, %s160
      %p169 = scmp.eq.s32.totalorder %s29, 0
      %p170 = por %p168, %p169
      %p171 = scmp.ne.s32.totalorder %s159, %s160
      %p172 = scmp.eq.s32.totalorder %s30, 1
      %p173 = por %p171, %p172
      %p175 = scmp.ne.s32.totalorder %s160, %s174
      %p176 = scmp.eq.s32.totalorder %s30, 0
      %p177 = por %p175, %p176
      %s179 = sadd.s32 %s178, 1
      %p182 = scmp.eq.s32.totalorder %s24, 1
      %p183 = scmp.ne.s32.totalorder %s178, %s180
      %p184 = scmp.eq.s32.totalorder %s24, 0
      %p185 = por %p183, %p184
      %p186 = scmp.ne.s32.totalorder %s178, %s180
      %p187 = scmp.eq.s32.totalorder %s29, 1
      %p188 = por %p186, %p187
      %p189 = scmp.ne.s32.totalorder %s180, %s181
      %p190 = scmp.eq.s32.totalorder %s29, 0
      %p191 = por %p189, %p190
      %p192 = scmp.ne.s32.totalorder %s180, %s181
      %p193 = scmp.eq.s32.totalorder %s30, 1
      %p194 = por %p192, %p193
      %p196 = scmp.ne.s32.totalorder %s181, %s195
      %p197 = scmp.eq.s32.totalorder %s30, 0
      %p198 = por %p196, %p197
      %s200 = sadd.s32 %s199, 1
      %p203 = scmp.eq.s32.totalorder %s24, 1
      %p204 = scmp.ne.s32.totalorder %s199, %s201
      %p205 = scmp.eq.s32.totalorder %s24, 0
      %p206 = por %p204, %p205
      %p207 = scmp.ne.s32.totalorder %s199, %s201
      %p208 = scmp.eq.s32.totalorder %s29, 1
      %p209 = por %p207, %p208
      %p210 = scmp.ne.s32.totalorder %s201, %s202
      %p211 = scmp.eq.s32.totalorder %s29, 0
      %p212 = por %p210, %p211
      %p213 = scmp.ne.s32.totalorder %s201, %s202
      %p214 = scmp.eq.s32.totalorder %s30, 1
      %p215 = por %p213, %p214
      %p217 = scmp.ne.s32.totalorder %s202, %s216
      %p218 = scmp.eq.s32.totalorder %s30, 0
      %p219 = por %p217, %p218
      %s221 = sadd.s32 %s220, 1
      %p224 = scmp.eq.s32.totalorder %s24, 1
      %p225 = scmp.ne.s32.totalorder %s220, %s222
      %p226 = scmp.eq.s32.totalorder %s24, 0
      %p227 = por %p225, %p226
      %p228 = scmp.ne.s32.totalorder %s220, %s222
      %p229 = scmp.eq.s32.totalorder %s29, 1
      %p230 = por %p228, %p229
      %p231 = scmp.ne.s32.totalorder %s222, %s223
      %p232 = scmp.eq.s32.totalorder %s29, 0
      %p233 = por %p231, %p232
      %p234 = scmp.ne.s32.totalorder %s222, %s223
      %p235 = scmp.eq.s32.totalorder %s30, 1
      %p236 = por %p234, %p235
      %p238 = scmp.ne.s32.totalorder %s223, %s237
      %p239 = scmp.eq.s32.totalorder %s30, 0
      %p240 = por %p238, %p239
      %s242 = sadd.s32 %s241, 1
      %p245 = scmp.eq.s32.totalorder %s24, 1
      %p246 = scmp.ne.s32.totalorder %s241, %s243
      %p247 = scmp.eq.s32.totalorder %s24, 0
      %p248 = por %p246, %p247
      %p249 = scmp.ne.s32.totalorder %s241, %s243
      %p250 = scmp.eq.s32.totalorder %s29, 1
      %p251 = por %p249, %p250
      %p252 = scmp.ne.s32.totalorder %s243, %s244
      %p253 = scmp.eq.s32.totalorder %s29, 0
      %p254 = por %p252, %p253
      %p255 = scmp.ne.s32.totalorder %s243, %s244
      %p256 = scmp.eq.s32.totalorder %s30, 1
      %p257 = por %p255, %p256
      %p259 = scmp.ne.s32.totalorder %s244, %s258
      %p260 = scmp.eq.s32.totalorder %s30, 0
      %p261 = por %p259, %p260
      %s262 = ssub.s32 %s24, %s31
      %p263 = scmp.eq.s32.totalorder %s262, 0
      %s265 = sadd.s32 %s264, 1
      %s266 = scalar_select %p263, %s264, %s265
      %p269 = pneg %p263
      %p270 = scmp.eq.s32.totalorder %s24, 1
      %p271 = por %p269, %p270
      %p272 = scmp.ne.s32.totalorder %s264, %s267
      %p273 = scmp.eq.s32.totalorder %s24, 0
      %p274 = por %p272, %p273
      %p275 = scmp.ne.s32.totalorder %s264, %s267
      %p276 = scmp.eq.s32.totalorder %s29, 1
      %p277 = por %p275, %p276
      %p278 = scmp.ne.s32.totalorder %s267, %s268
      %p279 = scmp.eq.s32.totalorder %s29, 0
      %p280 = por %p278, %p279
      %p281 = scmp.ne.s32.totalorder %s267, %s268
      %p282 = scmp.eq.s32.totalorder %s30, 1
      %p283 = por %p281, %p282
      %p285 = scmp.ne.s32.totalorder %s268, %s284
      %p286 = scmp.eq.s32.totalorder %s30, 0
      %p287 = por %p285, %p286
      %s288 = ssub.s32 %s24, %s31
      %p289 = scmp.eq.s32.totalorder %s288, 0
      %s291 = sadd.s32 %s290, 1
      %s292 = scalar_select %p289, %s290, %s291
      %p295 = pneg %p289
      %p296 = scmp.eq.s32.totalorder %s24, 1
      %p297 = por %p295, %p296
      %p298 = scmp.ne.s32.totalorder %s290, %s293
      %p299 = scmp.eq.s32.totalorder %s24, 0
      %p300 = por %p298, %p299
      %p301 = scmp.ne.s32.totalorder %s290, %s293
      %p302 = scmp.eq.s32.totalorder %s29, 1
      %p303 = por %p301, %p302
      %p304 = scmp.ne.s32.totalorder %s293, %s294
      %p305 = scmp.eq.s32.totalorder %s29, 0
      %p306 = por %p304, %p305
      %p307 = scmp.ne.s32.totalorder %s293, %s294
      %p308 = scmp.eq.s32.totalorder %s30, 1
      %p309 = por %p307, %p308
      %p311 = scmp.ne.s32.totalorder %s294, %s310
      %p312 = scmp.eq.s32.totalorder %s30, 0
      %p313 = por %p311, %p312
      %p314 = scmp.le.s32.totalorder 1, %s24
      %p315 = scmp.lt.s32.totalorder %s24, 3
      %p316 = pnand %p314, %p315
      %p317 = pneg %p316
      // Predicated region
      $region9: #{multilevel_projector_forward.1} parent=5 // pred_check
        _
      $region10: #{multilevel_projector_forward.1} parent=5 // pred_check_branch
        %319 = sbr.rel (%p316) target = $region12
      $region11: #{multilevel_projector_forward.1} parent=5 // pred_region
        %s320 = ssub.s32 %s24, 1
        // Predicated region
        $region13: #{multilevel_projector_forward.1} parent=11 // pred_check
          %p321 = pneg %p149
        $region14: #{multilevel_projector_forward.1} parent=11 // pred_check_branch
          %323 = sbr.rel (%p321) target = $region16
        $region15: #{multilevel_projector_forward.1} parent=11 // pred_region
          _
        $region16: #{multilevel_projector_forward.1} parent=11 // pred_fallthru
          _
        // Predicated region
        $region17: #{multilevel_projector_forward.1} parent=11 // pred_check
          %p324 = pneg %p170
        $region18: #{multilevel_projector_forward.1} parent=11 // pred_check_branch
          %326 = sbr.rel (%p324) target = $region20
        $region19: #{multilevel_projector_forward.1} parent=11 // pred_region
          _
        $region20: #{multilevel_projector_forward.1} parent=11 // pred_fallthru
          _
        // Predicated region
        $region21: #{multilevel_projector_forward.1} parent=11 // pred_check
          %p327 = pneg %p191
        $region22: #{multilevel_projector_forward.1} parent=11 // pred_check_branch
          %329 = sbr.rel (%p327) target = $region24
        $region23: #{multilevel_projector_forward.1} parent=11 // pred_region
          _
        $region24: #{multilevel_projector_forward.1} parent=11 // pred_fallthru
          _
        // Predicated region
        $region25: #{multilevel_projector_forward.1} parent=11 // pred_check
          %p330 = pneg %p212
        $region26: #{multilevel_projector_forward.1} parent=11 // pred_check_branch
          %332 = sbr.rel (%p330) target = $region28
        $region27: #{multilevel_projector_forward.1} parent=11 // pred_region
          _
        $region28: #{multilevel_projector_forward.1} parent=11 // pred_fallthru
          _
        // Predicated region
        $region29: #{multilevel_projector_forward.1} parent=11 // pred_check
          %p333 = pneg %p233
        $region30: #{multilevel_projector_forward.1} parent=11 // pred_check_branch
          %335 = sbr.rel (%p333) target = $region32
        $region31: #{multilevel_projector_forward.1} parent=11 // pred_region
          _
        $region32: #{multilevel_projector_forward.1} parent=11 // pred_fallthru
          _
        // Predicated region
        $region33: #{multilevel_projector_forward.1} parent=11 // pred_check
          %p336 = pneg %p254
        $region34: #{multilevel_projector_forward.1} parent=11 // pred_check_branch
          %338 = sbr.rel (%p336) target = $region36
        $region35: #{multilevel_projector_forward.1} parent=11 // pred_region
          _
        $region36: #{multilevel_projector_forward.1} parent=11 // pred_fallthru
          _
      $region12: #{multilevel_projector_forward.1} parent=5 // pred_fallthru
        _
      %p339 = scmp.lt.s32.totalorder %s24, 2
      // Predicated region
      $region37: #{multilevel_projector_forward.1} parent=5 // pred_check
        %p340 = pneg %p339
      $region38: #{multilevel_projector_forward.1} parent=5 // pred_check_branch
        %342 = sbr.rel (%p340) target = $region40
      $region39: #{multilevel_projector_forward.1} parent=5 // pred_region
        // Predicated region
        $region41: #{multilevel_projector_forward.1} parent=39 // pred_check
          %p343 = pneg %p44
        $region42: #{multilevel_projector_forward.1} parent=39 // pred_check_branch
          %345 = sbr.rel (%p343) target = $region44
        $region43: #{multilevel_projector_forward.1} parent=39 // pred_region
          %p346 = scmp.lt.s32.totalorder %s24, 1
          %s347 = scalar_select %p346, %s24, 1
          %s348 = smul.addr %s347, 3
          %s349 = smul.addr %s348, 8
          %s350 = scalar_lea.vmem %s0, %s349
        $region44: #{multilevel_projector_forward.1} parent=39 // pred_fallthru
          _
        // Predicated region
        $region45: #{multilevel_projector_forward.1} parent=39 // pred_check
          %p351 = pneg %p70
        $region46: #{multilevel_projector_forward.1} parent=39 // pred_check_branch
          %353 = sbr.rel (%p351) target = $region48
        $region47: #{multilevel_projector_forward.1} parent=39 // pred_region
          %p354 = scmp.lt.s32.totalorder %s24, 1
          %s355 = scalar_select %p354, %s24, 1
          %s356 = smul.addr %s355, 15
          %s357 = smul.addr %s356, 8
          %s358 = scalar_lea.vmem %s1, %s357
        $region48: #{multilevel_projector_forward.1} parent=39 // pred_fallthru
          _
        // Predicated region
        $region49: #{multilevel_projector_forward.1} parent=39 // pred_check
          %p359 = pneg %p96
        $region50: #{multilevel_projector_forward.1} parent=39 // pred_check_branch
          %361 = sbr.rel (%p359) target = $region52
        $region51: #{multilevel_projector_forward.1} parent=39 // pred_region
          %p362 = scmp.lt.s32.totalorder %s24, 1
          %s363 = scalar_select %p362, %s24, 1
          %s364 = smul.addr %s363, 2
          %s365 = smul.addr %s364, 8
          %s366 = scalar_lea.vmem %s2, %s365
        $region52: #{multilevel_projector_forward.1} parent=39 // pred_fallthru
          _
        // Predicated region
        $region53: #{multilevel_projector_forward.1} parent=39 // pred_check
          %p367 = pneg %p122
        $region54: #{multilevel_projector_forward.1} parent=39 // pred_check_branch
          %369 = sbr.rel (%p367) target = $region56
        $region55: #{multilevel_projector_forward.1} parent=39 // pred_region
          %p370 = scmp.lt.s32.totalorder %s24, 1
          %s371 = scalar_select %p370, %s24, 1
          %s372 = smul.addr %s371, 8
          %s373 = scalar_lea.vmem %s3, %s372
        $region56: #{multilevel_projector_forward.1} parent=39 // pred_fallthru
          _
      $region40: #{multilevel_projector_forward.1} parent=5 // pred_fallthru
        _
      %p374 = scmp.le.s32.totalorder 1, %s24
      %p375 = scmp.lt.s32.totalorder %s24, 3
      %p376 = pnand %p374, %p375
      %p377 = pneg %p376
      // Predicated region
      $region57: #{multilevel_projector_forward.1} parent=5 // pred_check
        _
      $region58: #{multilevel_projector_forward.1} parent=5 // pred_check_branch
        %379 = sbr.rel (%p376) target = $region60
      $region59: #{multilevel_projector_forward.1} parent=5 // pred_region
        %s380 = ssub.s32 %s24, 1
        %p381 = scmp.lt.s32.totalorder %s29, 1
        %s382 = scalar_select %p381, %s29, 1
        %s383 = smul.addr %s382, 3
        %s384 = smul.addr %s383, 8
        %s385 = scalar_lea.vmem %s0, %s384
        %p386 = pneg %p50
        %p387 = pneg %p47
        %p388 = scmp.lt.s32.totalorder %s29, 1
        %s389 = scalar_select %p388, %s29, 1
        %s390 = smul.addr %s389, 15
        %s391 = smul.addr %s390, 8
        %s392 = scalar_lea.vmem %s1, %s391
        %p393 = pneg %p76
        %p394 = pneg %p73
        %p395 = scmp.lt.s32.totalorder %s29, 1
        %s396 = scalar_select %p395, %s29, 1
        %s397 = smul.addr %s396, 2
        %s398 = smul.addr %s397, 8
        %s399 = scalar_lea.vmem %s2, %s398
        %p400 = pneg %p102
        %p401 = pneg %p99
        %p402 = scmp.lt.s32.totalorder %s29, 1
        %s403 = scalar_select %p402, %s29, 1
        %s404 = smul.addr %s403, 8
        %s405 = scalar_lea.vmem %s3, %s404
        %p406 = pneg %p128
        %p407 = pneg %p125
        %p408 = pneg %p149
        %p409 = pneg %p146
        %p410 = pneg %p170
        %p411 = pneg %p167
        %p412 = pneg %p191
        %p413 = pneg %p188
        %p414 = pneg %p212
        %p415 = pneg %p209
        %p416 = pneg %p233
        %p417 = pneg %p230
        %p418 = pneg %p254
        %p419 = pneg %p251
        %p420 = pneg %p280
        %p421 = pneg %p277
        %s422 = sand.u32 %s267, 1
        %s423 = scalar_lea.sflag [#allocation3], %s422
        %s424 = sand.u32 %s267, 1
        %s425 = smul.addr %s424, 48
        %s426 = scalar_lea.vmem [#allocation2], %s425
        %p427 = pneg %p306
        %p428 = pneg %p303
        %s429 = sand.u32 %s293, 1
        %s430 = scalar_lea.sflag [#allocation5], %s429
        %s431 = sand.u32 %s293, 1
        %s432 = smul.addr %s431, 24
        %s433 = scalar_lea.vmem [#allocation4], %s432
        %p434 = scmp.lt.s32.totalorder %s29, 1
        %s435 = scalar_select %p434, %s29, 1
        %s436 = smul.addr %s435, 3
        %s437 = smul.addr %s436, 8
        %s438 = scalar_lea.vmem %s0, %s437
        %p439 = scmp.lt.s32.totalorder %s29, 1
        %s440 = scalar_select %p439, %s29, 1
        %s441 = smul.addr %s440, 15
        %s442 = smul.addr %s441, 8
        %s443 = scalar_lea.vmem %s1, %s442
        %p444 = scmp.lt.s32.totalorder %s29, 1
        %s445 = scalar_select %p444, %s29, 1
        %s446 = smul.addr %s445, 2
        %s447 = smul.addr %s446, 8
        %s448 = scalar_lea.vmem %s2, %s447
        %p449 = scmp.lt.s32.totalorder %s29, 1
        %s450 = scalar_select %p449, %s29, 1
        %s451 = smul.addr %s450, 8
        %s452 = scalar_lea.vmem %s3, %s451
        %v453 = vld [vmem:[%s9] sm:$0xff]
        %v454 = vld [vmem:[%s9 + $0x8] sm:$0xff]
        %v455 = vld [vmem:[%s9 + $0x10] sm:$0xff]
        %v456 = vld [vmem:[%s5] sm:$0xff]
        %v457 = vld [vmem:[%s5 + $0x8] sm:$0xff]
        %v458 = vld [vmem:[%s5 + $0x10] sm:$0xff]
        %v459 = vld [vmem:[%s5 + $0x18] sm:$0xff]
        %v460 = vld [vmem:[%s5 + $0x20] sm:$0xff]
        %v461 = vld [vmem:[%s5 + $0x28] sm:$0xff]
        %v462 = vld [vmem:[%s5 + $0x30] sm:$0xff]
        %v463 = vld [vmem:[%s5 + $0x38] sm:$0xff]
        %v464 = vld [vmem:[%s7] sm:$0xff]
        %v465 = vld [vmem:[%s7 + $0x8] sm:$0xff]
        %v466 = vld [vmem:[%s438] sm:$0xff]
        %v467 = vld [vmem:[%s438 + $0x8] sm:$0xff]
        %v468 = vld [vmem:[%s438 + $0x10] sm:$0xff]
        %v469 = vlaneseq
        %v470 = vand.u32 %v469, 127
        %v471 = vadd.s32 %v470, 128
        %v472 = vadd.s32 %v470, 256
        %v473 = vadd.f32 %v466, %v467
        %v474 = vadd.f32 %v473, %v468
        %475 = vadd.xlane.f32.xlu0 %v474
        %v476 = vpop.xlane.xlu0 %475
        %v477 = vmul.f32 %v476, 0.0033333334
        %vm478 = vcmp.lt.s32.totalorder %v470, 300
        %vm479 = vcmp.lt.s32.totalorder %v471, 300
        %vm480 = vcmp.lt.s32.totalorder %v472, 300
        %v481 = vsub.f32 %v466, %v477
        %v482 = vsub.f32 %v467, %v477
        %v483 = vsub.f32 %v468, %v477
        %v484 = vsel %vm478, %v481, 0.0
        %v485 = vsel %vm479, %v482, 0.0
        %v486 = vsel %vm480, %v483, 0.0
        %v487 = vmul.f32 %v484, %v484
        %v488 = vmul.f32 %v485, %v485
        %v489 = vmul.f32 %v486, %v486
        %v490 = vadd.f32 %v487, %v488
        %v491 = vadd.f32 %v490, %v489
        %492 = vadd.xlane.f32.xlu0 %v491
        %v493 = vpop.xlane.xlu0 %492
        %v494 = vmul.f32 %v493, 0.0033333334
        %v495 = vadd.f32 %v494, 1e-05
        %v496 = vrsqrt.pop %v495
        %v497 = vmul.f32 %v484, %v496
        %v498 = vmul.f32 %v485, %v496
        %v499 = vmul.f32 %v486, %v496
        %v500 = vlaneseq
        %v501 = vshrl.u32 %v500, 7
        %v502 = vsub.s32 0, %v501
        %v503 = vrot.slane %v453, %v502
        %v504 = vlaneseq
        %v505 = vshrl.u32 %v504, 7
        %v506 = vsub.s32 0, %v505
        %v507 = vrot.slane %v454, %v506
        %v508 = vlaneseq
        %v509 = vshrl.u32 %v508, 7
        %v510 = vsub.s32 0, %v509
        %v511 = vrot.slane %v455, %v510
        %v512 = vmul.f32 %v497, %v503
        %v513 = vmul.f32 %v498, %v507
        %v514 = vmul.f32 %v499, %v511
        %v515 = vlaneseq
        %v516 = vshrl.u32 %v515, 7
        %v517 = vsub.s32 1, %v516
        %v518 = vrot.slane %v453, %v517
        %v519 = vlaneseq
        %v520 = vshrl.u32 %v519, 7
        %v521 = vsub.s32 1, %v520
        %v522 = vrot.slane %v454, %v521
        %v523 = vlaneseq
        %v524 = vshrl.u32 %v523, 7
        %v525 = vsub.s32 1, %v524
        %v526 = vrot.slane %v455, %v525
        %v527 = vadd.f32 %v512, %v518
        %v528 = vadd.f32 %v513, %v522
        %v529 = vadd.f32 %v514, %v526
        %530 = vst [vmem:[%s433] sm:$0xff] %v527
        %531 = vst [vmem:[%s433 + $0x8] sm:$0xff] %v528
        %532 = vst [vmem:[%s433 + $0x10] sm:$0xff] %v529
        %v533 = vld [vmem:[%s443] sm:$0xff]
        %v534 = vld [vmem:[%s443 + $0x8] sm:$0xff]
        %v535 = vld [vmem:[%s443 + $0x10] sm:$0xff]
        %v536 = vld [vmem:[%s443 + $0x18] sm:$0xff]
        %v537 = vld [vmem:[%s443 + $0x20] sm:$0xff]
        %v538 = vld [vmem:[%s443 + $0x28] sm:$0xff]
        %v539 = vld [vmem:[%s443 + $0x30] sm:$0xff]
        %v540 = vld [vmem:[%s443 + $0x38] sm:$0xff]
        %v541 = vld [vmem:[%s443 + $0x40] sm:$0xff]
        %v542 = vld [vmem:[%s443 + $0x48] sm:$0xff]
        %v543 = vld [vmem:[%s443 + $0x50] sm:$0xff]
        %v544 = vld [vmem:[%s443 + $0x58] sm:$0xff]
        %v545 = vld [vmem:[%s443 + $0x60] sm:$0xf]
        %v546 = vld [vmem:[%s443 + $0x68] sm:$0xf]
        %v547 = vld [vmem:[%s443 + $0x70] sm:$0xf]
        %v548 = vld [vmem:[%s6] sm:$0xff]
        %v549 = vld [vmem:[%s6 + $0x8] sm:$0xff]
        %v550 = vld [vmem:[%s6 + $0x10] sm:$0xff]
        %v551 = vld [vmem:[%s6 + $0x18] sm:$0xff]
        %v552 = vld [vmem:[%s6 + $0x20] sm:$0xff]
        %v553 = vld [vmem:[%s6 + $0x28] sm:$0xff]
        %v554 = vld [vmem:[%s6 + $0x30] sm:$0xff]
        %v555 = vld [vmem:[%s6 + $0x38] sm:$0xff]
        %v556 = vld [vmem:[%s6 + $0x40] sm:$0xff]
        %v557 = vld [vmem:[%s6 + $0x48] sm:$0xff]
        %v558 = vld [vmem:[%s6 + $0x50] sm:$0xff]
        %v559 = vld [vmem:[%s6 + $0x58] sm:$0xff]
        %v560 = vld [vmem:[%s6 + $0x60] sm:$0xff]
        %v561 = vld [vmem:[%s6 + $0x68] sm:$0xff]
        %v562 = vld [vmem:[%s6 + $0x70] sm:$0xff]
        %v563 = vld [vmem:[%s6 + $0x78] sm:$0xff]
        %v564 = vld [vmem:[%s6 + $0x80] sm:$0xff]
        %v565 = vld [vmem:[%s6 + $0x88] sm:$0xff]
        %v566 = vld [vmem:[%s6 + $0x90] sm:$0xff]
        %v567 = vld [vmem:[%s6 + $0x98] sm:$0xff]
        %v568 = vld [vmem:[%s6 + $0xa0] sm:$0xff]
        %v569 = vld [vmem:[%s6 + $0xa8] sm:$0xff]
        %v570 = vld [vmem:[%s6 + $0xb0] sm:$0xff]
        %v571 = vld [vmem:[%s6 + $0xb8] sm:$0xff]
        %v572 = vld [vmem:[%s6 + $0xc0] sm:$0xff]
        %v573 = vld [vmem:[%s6 + $0xc8] sm:$0xff]
        %v574 = vld [vmem:[%s6 + $0xd0] sm:$0xff]
        %v575 = vld [vmem:[%s6 + $0xd8] sm:$0xff]
        %v576 = vld [vmem:[%s6 + $0xe0] sm:$0xff]
        %v577 = vld [vmem:[%s6 + $0xe8] sm:$0xff]
        %v578 = vld [vmem:[%s6 + $0xf0] sm:$0xff]
        %v579 = vld [vmem:[%s6 + $0xf8] sm:$0xff]
        %v580 = vld [vmem:[%s6 + $0x100] sm:$0xff]
        %v581 = vld [vmem:[%s6 + $0x108] sm:$0xff]
        %v582 = vld [vmem:[%s6 + $0x110] sm:$0xff]
        %v583 = vld [vmem:[%s6 + $0x118] sm:$0xff]
        %v584 = vld [vmem:[%s6 + $0x120] sm:$0xff]
        %v585 = vld [vmem:[%s6 + $0x128] sm:$0xff]
        %v586 = vld [vmem:[%s6 + $0x130] sm:$0xff]
        %v587 = vld [vmem:[%s6 + $0x138] sm:$0xff]
        %v588 = vld [vmem:[%s6 + $0x140] sm:$0xff]
        %v589 = vld [vmem:[%s6 + $0x148] sm:$0xff]
        %v590 = vld [vmem:[%s6 + $0x150] sm:$0xff]
        %v591 = vld [vmem:[%s6 + $0x158] sm:$0xff]
        %v592 = vld [vmem:[%s6 + $0x160] sm:$0xff]
        %v593 = vld [vmem:[%s6 + $0x168] sm:$0xff]
        %v594 = vld [vmem:[%s6 + $0x170] sm:$0xff]
        %v595 = vld [vmem:[%s6 + $0x178] sm:$0xff]
        %v596 = vld [vmem:[%s6 + $0x180] sm:$0xff]
        %v597 = vld [vmem:[%s6 + $0x188] sm:$0xff]
        %v598 = vld [vmem:[%s6 + $0x190] sm:$0xff]
        %v599 = vld [vmem:[%s6 + $0x198] sm:$0xff]
        %v600 = vld [vmem:[%s6 + $0x1a0] sm:$0xff]
        %v601 = vld [vmem:[%s6 + $0x1a8] sm:$0xff]
        %v602 = vld [vmem:[%s6 + $0x1b0] sm:$0xff]
        %v603 = vld [vmem:[%s6 + $0x1b8] sm:$0xff]
        %v604 = vld [vmem:[%s6 + $0x1c0] sm:$0xff]
        %v605 = vld [vmem:[%s6 + $0x1c8] sm:$0xff]
        %v606 = vld [vmem:[%s6 + $0x1d0] sm:$0xff]
        %v607 = vld [vmem:[%s6 + $0x1d8] sm:$0xff]
        %v608 = vld [vmem:[%s6 + $0x1e0] sm:$0xff]
        %v609 = vld [vmem:[%s6 + $0x1e8] sm:$0xff]
        %v610 = vld [vmem:[%s6 + $0x1f0] sm:$0xff]
        %v611 = vld [vmem:[%s6 + $0x1f8] sm:$0xff]
        %v612 = vld [vmem:[%s6 + $0x200] sm:$0xff]
        %v613 = vld [vmem:[%s6 + $0x208] sm:$0xff]
        %v614 = vld [vmem:[%s6 + $0x210] sm:$0xff]
        %v615 = vld [vmem:[%s6 + $0x218] sm:$0xff]
        %v616 = vld [vmem:[%s6 + $0x220] sm:$0xff]
        %v617 = vld [vmem:[%s6 + $0x228] sm:$0xff]
        %v618 = vld [vmem:[%s6 + $0x230] sm:$0xff]
        %v619 = vld [vmem:[%s6 + $0x238] sm:$0xff]
        %v620 = vld [vmem:[%s6 + $0x240] sm:$0xff]
        %v621 = vld [vmem:[%s6 + $0x248] sm:$0xff]
        %v622 = vld [vmem:[%s6 + $0x250] sm:$0xff]
        %v623 = vld [vmem:[%s6 + $0x258] sm:$0xff]
        %v624 = vld [vmem:[%s6 + $0x260] sm:$0xff]
        %v625 = vld [vmem:[%s6 + $0x268] sm:$0xff]
        %v626 = vld [vmem:[%s6 + $0x270] sm:$0xff]
        %v627 = vld [vmem:[%s6 + $0x278] sm:$0xff]
        %v628 = vld [vmem:[%s6 + $0x280] sm:$0xff]
        %v629 = vld [vmem:[%s6 + $0x288] sm:$0xff]
        %v630 = vld [vmem:[%s6 + $0x290] sm:$0xff]
        %v631 = vld [vmem:[%s6 + $0x298] sm:$0xff]
        %v632 = vld [vmem:[%s6 + $0x2a0] sm:$0xff]
        %v633 = vld [vmem:[%s6 + $0x2a8] sm:$0xff]
        %v634 = vld [vmem:[%s6 + $0x2b0] sm:$0xff]
        %v635 = vld [vmem:[%s6 + $0x2b8] sm:$0xff]
        %v636 = vld [vmem:[%s6 + $0x2c0] sm:$0xff]
        %v637 = vld [vmem:[%s6 + $0x2c8] sm:$0xff]
        %v638 = vld [vmem:[%s6 + $0x2d0] sm:$0xff]
        %v639 = vld [vmem:[%s6 + $0x2d8] sm:$0xff]
        %v640 = vld [vmem:[%s6 + $0x2e0] sm:$0xff]
        %v641 = vld [vmem:[%s6 + $0x2e8] sm:$0xff]
        %v642 = vld [vmem:[%s6 + $0x2f0] sm:$0xff]
        %v643 = vld [vmem:[%s6 + $0x2f8] sm:$0xff]
        %v644 = vld [vmem:[%s6 + $0x300] sm:$0xff]
        %v645 = vld [vmem:[%s6 + $0x308] sm:$0xff]
        %v646 = vld [vmem:[%s6 + $0x310] sm:$0xff]
        %v647 = vld [vmem:[%s6 + $0x318] sm:$0xff]
        %v648 = vld [vmem:[%s6 + $0x320] sm:$0xff]
        %v649 = vld [vmem:[%s6 + $0x328] sm:$0xff]
        %v650 = vld [vmem:[%s6 + $0x330] sm:$0xff]
        %v651 = vld [vmem:[%s6 + $0x338] sm:$0xff]
        %v652 = vld [vmem:[%s6 + $0x340] sm:$0xff]
        %v653 = vld [vmem:[%s6 + $0x348] sm:$0xff]
        %v654 = vld [vmem:[%s6 + $0x350] sm:$0xff]
        %v655 = vld [vmem:[%s6 + $0x358] sm:$0xff]
        %v656 = vld [vmem:[%s6 + $0x360] sm:$0xff]
        %v657 = vld [vmem:[%s6 + $0x368] sm:$0xff]
        %v658 = vld [vmem:[%s6 + $0x370] sm:$0xff]
        %v659 = vld [vmem:[%s6 + $0x378] sm:$0xff]
        %v660 = vld [vmem:[%s6 + $0x380] sm:$0xff]
        %v661 = vld [vmem:[%s6 + $0x388] sm:$0xff]
        %v662 = vld [vmem:[%s6 + $0x390] sm:$0xff]
        %v663 = vld [vmem:[%s6 + $0x398] sm:$0xff]
        %v664 = vld [vmem:[%s6 + $0x3a0] sm:$0xff]
        %v665 = vld [vmem:[%s6 + $0x3a8] sm:$0xff]
        %v666 = vld [vmem:[%s6 + $0x3b0] sm:$0xff]
        %v667 = vld [vmem:[%s6 + $0x3b8] sm:$0xff]
        %v668 = vld [vmem:[%s6 + $0x3c0] sm:$0xff]
        %v669 = vld [vmem:[%s6 + $0x3c8] sm:$0xff]
        %v670 = vld [vmem:[%s6 + $0x3d0] sm:$0xff]
        %v671 = vld [vmem:[%s6 + $0x3d8] sm:$0xff]
        %v672 = vld [vmem:[%s6 + $0x3e0] sm:$0xff]
        %v673 = vld [vmem:[%s6 + $0x3e8] sm:$0xff]
        %v674 = vld [vmem:[%s6 + $0x3f0] sm:$0xff]
        %v675 = vld [vmem:[%s6 + $0x3f8] sm:$0xff]
        %v676 = vld [vmem:[%s6 + $0x400] sm:$0xff]
        %v677 = vld [vmem:[%s6 + $0x408] sm:$0xff]
        %v678 = vld [vmem:[%s6 + $0x410] sm:$0xff]
        %v679 = vld [vmem:[%s6 + $0x418] sm:$0xff]
        %v680 = vld [vmem:[%s6 + $0x420] sm:$0xff]
        %v681 = vld [vmem:[%s6 + $0x428] sm:$0xff]
        %v682 = vld [vmem:[%s6 + $0x430] sm:$0xff]
        %v683 = vld [vmem:[%s6 + $0x438] sm:$0xff]
        %v684 = vld [vmem:[%s6 + $0x440] sm:$0xff]
        %v685 = vld [vmem:[%s6 + $0x448] sm:$0xff]
        %v686 = vld [vmem:[%s6 + $0x450] sm:$0xff]
        %v687 = vld [vmem:[%s6 + $0x458] sm:$0xff]
        %v688 = vld [vmem:[%s6 + $0x460] sm:$0xff]
        %v689 = vld [vmem:[%s6 + $0x468] sm:$0xff]
        %v690 = vld [vmem:[%s6 + $0x470] sm:$0xff]
        %v691 = vld [vmem:[%s6 + $0x478] sm:$0xff]
        %v692 = vld [vmem:[%s6 + $0x480] sm:$0xff]
        %v693 = vld [vmem:[%s6 + $0x488] sm:$0xff]
        %v694 = vld [vmem:[%s6 + $0x490] sm:$0xff]
        %v695 = vld [vmem:[%s6 + $0x498] sm:$0xff]
        %v696 = vld [vmem:[%s6 + $0x4a0] sm:$0xff]
        %v697 = vld [vmem:[%s6 + $0x4a8] sm:$0xff]
        %v698 = vld [vmem:[%s6 + $0x4b0] sm:$0xff]
        %v699 = vld [vmem:[%s6 + $0x4b8] sm:$0xff]
        %v700 = vld [vmem:[%s6 + $0x4c0] sm:$0xff]
        %v701 = vld [vmem:[%s6 + $0x4c8] sm:$0xff]
        %v702 = vld [vmem:[%s6 + $0x4d0] sm:$0xff]
        %v703 = vld [vmem:[%s6 + $0x4d8] sm:$0xff]
        %v704 = vld [vmem:[%s6 + $0x4e0] sm:$0xff]
        %v705 = vld [vmem:[%s6 + $0x4e8] sm:$0xff]
        %v706 = vld [vmem:[%s6 + $0x4f0] sm:$0xff]
        %v707 = vld [vmem:[%s6 + $0x4f8] sm:$0xff]
        %v708 = vld [vmem:[%s6 + $0x500] sm:$0xff]
        %v709 = vld [vmem:[%s6 + $0x508] sm:$0xff]
        %v710 = vld [vmem:[%s6 + $0x510] sm:$0xff]
        %v711 = vld [vmem:[%s6 + $0x518] sm:$0xff]
        %v712 = vld [vmem:[%s6 + $0x520] sm:$0xff]
        %v713 = vld [vmem:[%s6 + $0x528] sm:$0xff]
        %v714 = vld [vmem:[%s6 + $0x530] sm:$0xff]
        %v715 = vld [vmem:[%s6 + $0x538] sm:$0xff]
        %v716 = vld [vmem:[%s6 + $0x540] sm:$0xff]
        %v717 = vld [vmem:[%s6 + $0x548] sm:$0xff]
        %v718 = vld [vmem:[%s6 + $0x550] sm:$0xff]
        %v719 = vld [vmem:[%s6 + $0x558] sm:$0xff]
        %v720 = vld [vmem:[%s6 + $0x560] sm:$0xff]
        %v721 = vld [vmem:[%s6 + $0x568] sm:$0xff]
        %v722 = vld [vmem:[%s6 + $0x570] sm:$0xff]
        %v723 = vld [vmem:[%s6 + $0x578] sm:$0xff]
        %v724 = vld [vmem:[%s6 + $0x580] sm:$0xff]
        %v725 = vld [vmem:[%s6 + $0x588] sm:$0xff]
        %v726 = vld [vmem:[%s6 + $0x590] sm:$0xff]
        %v727 = vld [vmem:[%s6 + $0x598] sm:$0xff]
        %v728 = vld [vmem:[%s6 + $0x5a0] sm:$0xff]
        %v729 = vld [vmem:[%s6 + $0x5a8] sm:$0xff]
        %v730 = vld [vmem:[%s6 + $0x5b0] sm:$0xff]
        %v731 = vld [vmem:[%s6 + $0x5b8] sm:$0xff]
        %v732 = vld [vmem:[%s6 + $0x5c0] sm:$0xff]
        %v733 = vld [vmem:[%s6 + $0x5c8] sm:$0xff]
        %v734 = vld [vmem:[%s6 + $0x5d0] sm:$0xff]
        %v735 = vld [vmem:[%s6 + $0x5d8] sm:$0xff]
        %v736 = vld [vmem:[%s6 + $0x5e0] sm:$0xff]
        %v737 = vld [vmem:[%s6 + $0x5e8] sm:$0xff]
        %v738 = vld [vmem:[%s6 + $0x5f0] sm:$0xff]
        %v739 = vld [vmem:[%s6 + $0x5f8] sm:$0xff]
        %v740 = vld [vmem:[%s6 + $0x600] sm:$0xff]
        %v741 = vld [vmem:[%s6 + $0x608] sm:$0xff]
        %v742 = vld [vmem:[%s6 + $0x610] sm:$0xff]
        %v743 = vld [vmem:[%s6 + $0x618] sm:$0xff]
        %v744 = vld [vmem:[%s6 + $0x620] sm:$0xff]
        %v745 = vld [vmem:[%s6 + $0x628] sm:$0xff]
        %v746 = vld [vmem:[%s6 + $0x630] sm:$0xff]
        %v747 = vld [vmem:[%s6 + $0x638] sm:$0xff]
        %v748 = vld [vmem:[%s6 + $0x640] sm:$0xff]
        %v749 = vld [vmem:[%s6 + $0x648] sm:$0xff]
        %v750 = vld [vmem:[%s6 + $0x650] sm:$0xff]
        %v751 = vld [vmem:[%s6 + $0x658] sm:$0xff]
        %v752 = vld [vmem:[%s6 + $0x660] sm:$0xff]
        %v753 = vld [vmem:[%s6 + $0x668] sm:$0xff]
        %v754 = vld [vmem:[%s6 + $0x670] sm:$0xff]
        %v755 = vld [vmem:[%s6 + $0x678] sm:$0xff]
        %v756 = vld [vmem:[%s6 + $0x680] sm:$0xff]
        %v757 = vld [vmem:[%s6 + $0x688] sm:$0xff]
        %v758 = vld [vmem:[%s6 + $0x690] sm:$0xff]
        %v759 = vld [vmem:[%s6 + $0x698] sm:$0xff]
        %v760 = vld [vmem:[%s6 + $0x6a0] sm:$0xff]
        %v761 = vld [vmem:[%s6 + $0x6a8] sm:$0xff]
        %v762 = vld [vmem:[%s6 + $0x6b0] sm:$0xff]
        %v763 = vld [vmem:[%s6 + $0x6b8] sm:$0xff]
        %v764 = vld [vmem:[%s6 + $0x6c0] sm:$0xff]
        %v765 = vld [vmem:[%s6 + $0x6c8] sm:$0xff]
        %v766 = vld [vmem:[%s6 + $0x6d0] sm:$0xff]
        %v767 = vld [vmem:[%s6 + $0x6d8] sm:$0xff]
        %v768 = vld [vmem:[%s6 + $0x6e0] sm:$0xff]
        %v769 = vld [vmem:[%s6 + $0x6e8] sm:$0xff]
        %v770 = vld [vmem:[%s6 + $0x6f0] sm:$0xff]
        %v771 = vld [vmem:[%s6 + $0x6f8] sm:$0xff]
        %v772 = vld [vmem:[%s6 + $0x700] sm:$0xff]
        %v773 = vld [vmem:[%s6 + $0x708] sm:$0xff]
        %v774 = vld [vmem:[%s6 + $0x710] sm:$0xff]
        %v775 = vld [vmem:[%s6 + $0x718] sm:$0xff]
        %v776 = vld [vmem:[%s6 + $0x720] sm:$0xff]
        %v777 = vld [vmem:[%s6 + $0x728] sm:$0xff]
        %v778 = vld [vmem:[%s6 + $0x730] sm:$0xff]
        %v779 = vld [vmem:[%s6 + $0x738] sm:$0xff]
        %v780 = vld [vmem:[%s6 + $0x740] sm:$0xff]
        %v781 = vld [vmem:[%s6 + $0x748] sm:$0xff]
        %v782 = vld [vmem:[%s6 + $0x750] sm:$0xff]
        %v783 = vld [vmem:[%s6 + $0x758] sm:$0xff]
        %v784 = vld [vmem:[%s6 + $0x760] sm:$0xff]
        %v785 = vld [vmem:[%s6 + $0x768] sm:$0xff]
        %v786 = vld [vmem:[%s6 + $0x770] sm:$0xff]
        %v787 = vld [vmem:[%s6 + $0x778] sm:$0xff]
        %v788 = vld [vmem:[%s6 + $0x780] sm:$0xff]
        %v789 = vld [vmem:[%s6 + $0x788] sm:$0xff]
        %v790 = vld [vmem:[%s6 + $0x790] sm:$0xff]
        %v791 = vld [vmem:[%s6 + $0x798] sm:$0xff]
        %v792 = vld [vmem:[%s6 + $0x7a0] sm:$0xff]
        %v793 = vld [vmem:[%s6 + $0x7a8] sm:$0xff]
        %v794 = vld [vmem:[%s6 + $0x7b0] sm:$0xff]
        %v795 = vld [vmem:[%s6 + $0x7b8] sm:$0xff]
        %v796 = vld [vmem:[%s6 + $0x7c0] sm:$0xff]
        %v797 = vld [vmem:[%s6 + $0x7c8] sm:$0xff]
        %v798 = vld [vmem:[%s6 + $0x7d0] sm:$0xff]
        %v799 = vld [vmem:[%s6 + $0x7d8] sm:$0xff]
        %v800 = vld [vmem:[%s6 + $0x7e0] sm:$0xff]
        %v801 = vld [vmem:[%s6 + $0x7e8] sm:$0xff]
        %v802 = vld [vmem:[%s6 + $0x7f0] sm:$0xff]
        %v803 = vld [vmem:[%s6 + $0x7f8] sm:$0xff]
        %v804 = vld [vmem:[%s6 + $0x800] sm:$0xff]
        %v805 = vld [vmem:[%s6 + $0x808] sm:$0xff]
        %v806 = vld [vmem:[%s6 + $0x810] sm:$0xff]
        %v807 = vld [vmem:[%s6 + $0x818] sm:$0xff]
        %v808 = vld [vmem:[%s6 + $0x820] sm:$0xff]
        %v809 = vld [vmem:[%s6 + $0x828] sm:$0xff]
        %v810 = vld [vmem:[%s6 + $0x830] sm:$0xff]
        %v811 = vld [vmem:[%s6 + $0x838] sm:$0xff]
        %v812 = vld [vmem:[%s6 + $0x840] sm:$0xff]
        %v813 = vld [vmem:[%s6 + $0x848] sm:$0xff]
        %v814 = vld [vmem:[%s6 + $0x850] sm:$0xff]
        %v815 = vld [vmem:[%s6 + $0x858] sm:$0xff]
        %v816 = vld [vmem:[%s6 + $0x860] sm:$0xff]
        %v817 = vld [vmem:[%s6 + $0x868] sm:$0xff]
        %v818 = vld [vmem:[%s6 + $0x870] sm:$0xff]
        %v819 = vld [vmem:[%s6 + $0x878] sm:$0xff]
        %v820 = vld [vmem:[%s6 + $0x880] sm:$0xff]
        %v821 = vld [vmem:[%s6 + $0x888] sm:$0xff]
        %v822 = vld [vmem:[%s6 + $0x890] sm:$0xff]
        %v823 = vld [vmem:[%s6 + $0x898] sm:$0xff]
        %v824 = vld [vmem:[%s6 + $0x8a0] sm:$0xff]
        %v825 = vld [vmem:[%s6 + $0x8a8] sm:$0xff]
        %v826 = vld [vmem:[%s6 + $0x8b0] sm:$0xff]
        %v827 = vld [vmem:[%s6 + $0x8b8] sm:$0xff]
        %v828 = vld [vmem:[%s6 + $0x8c0] sm:$0xff]
        %v829 = vld [vmem:[%s6 + $0x8c8] sm:$0xff]
        %v830 = vld [vmem:[%s6 + $0x8d0] sm:$0xff]
        %v831 = vld [vmem:[%s6 + $0x8d8] sm:$0xff]
        %v832 = vld [vmem:[%s6 + $0x8e0] sm:$0xff]
        %v833 = vld [vmem:[%s6 + $0x8e8] sm:$0xff]
        %v834 = vld [vmem:[%s6 + $0x8f0] sm:$0xff]
        %v835 = vld [vmem:[%s6 + $0x8f8] sm:$0xff]
        %v836 = vld [vmem:[%s6 + $0x900] sm:$0xff]
        %v837 = vld [vmem:[%s6 + $0x908] sm:$0xff]
        %v838 = vld [vmem:[%s6 + $0x910] sm:$0xff]
        %v839 = vld [vmem:[%s6 + $0x918] sm:$0xff]
        %v840 = vld [vmem:[%s6 + $0x920] sm:$0xff]
        %v841 = vld [vmem:[%s6 + $0x928] sm:$0xff]
        %v842 = vld [vmem:[%s6 + $0x930] sm:$0xff]
        %v843 = vld [vmem:[%s6 + $0x938] sm:$0xff]
        %v844 = vld [vmem:[%s6 + $0x940] sm:$0xff]
        %v845 = vld [vmem:[%s6 + $0x948] sm:$0xff]
        %v846 = vld [vmem:[%s6 + $0x950] sm:$0xff]
        %v847 = vld [vmem:[%s6 + $0x958] sm:$0xff]
        %v848 = vld [vmem:[%s6 + $0x960] sm:$0xff]
        %v849 = vld [vmem:[%s6 + $0x968] sm:$0xff]
        %v850 = vld [vmem:[%s6 + $0x970] sm:$0xff]
        %v851 = vld [vmem:[%s6 + $0x978] sm:$0xff]
        %v852 = vld [vmem:[%s6 + $0x980] sm:$0xff]
        %v853 = vld [vmem:[%s6 + $0x988] sm:$0xff]
        %v854 = vld [vmem:[%s6 + $0x990] sm:$0xff]
        %v855 = vld [vmem:[%s6 + $0x998] sm:$0xff]
        %v856 = vld [vmem:[%s6 + $0x9a0] sm:$0xff]
        %v857 = vld [vmem:[%s6 + $0x9a8] sm:$0xff]
        %v858 = vld [vmem:[%s6 + $0x9b0] sm:$0xff]
        %v859 = vld [vmem:[%s6 + $0x9b8] sm:$0xff]
        %v860 = vld [vmem:[%s6 + $0x9c0] sm:$0xff]
        %v861 = vld [vmem:[%s6 + $0x9c8] sm:$0xff]
        %v862 = vld [vmem:[%s6 + $0x9d0] sm:$0xff]
        %v863 = vld [vmem:[%s6 + $0x9d8] sm:$0xff]
        %v864 = vld [vmem:[%s6 + $0x9e0] sm:$0xff]
        %v865 = vld [vmem:[%s6 + $0x9e8] sm:$0xff]
        %v866 = vld [vmem:[%s6 + $0x9f0] sm:$0xff]
        %v867 = vld [vmem:[%s6 + $0x9f8] sm:$0xff]
        %v868 = vld [vmem:[%s6 + $0xa00] sm:$0xff]
        %v869 = vld [vmem:[%s6 + $0xa08] sm:$0xff]
        %v870 = vld [vmem:[%s6 + $0xa10] sm:$0xff]
        %v871 = vld [vmem:[%s6 + $0xa18] sm:$0xff]
        %v872 = vld [vmem:[%s6 + $0xa20] sm:$0xff]
        %v873 = vld [vmem:[%s6 + $0xa28] sm:$0xff]
        %v874 = vld [vmem:[%s6 + $0xa30] sm:$0xff]
        %v875 = vld [vmem:[%s6 + $0xa38] sm:$0xff]
        %v876 = vld [vmem:[%s6 + $0xa40] sm:$0xff]
        %v877 = vld [vmem:[%s6 + $0xa48] sm:$0xff]
        %v878 = vld [vmem:[%s6 + $0xa50] sm:$0xff]
        %v879 = vld [vmem:[%s6 + $0xa58] sm:$0xff]
        %v880 = vld [vmem:[%s6 + $0xa60] sm:$0xff]
        %v881 = vld [vmem:[%s6 + $0xa68] sm:$0xff]
        %v882 = vld [vmem:[%s6 + $0xa70] sm:$0xff]
        %v883 = vld [vmem:[%s6 + $0xa78] sm:$0xff]
        %v884 = vld [vmem:[%s6 + $0xa80] sm:$0xff]
        %v885 = vld [vmem:[%s6 + $0xa88] sm:$0xff]
        %v886 = vld [vmem:[%s6 + $0xa90] sm:$0xff]
        %v887 = vld [vmem:[%s6 + $0xa98] sm:$0xff]
        %v888 = vld [vmem:[%s6 + $0xaa0] sm:$0xff]
        %v889 = vld [vmem:[%s6 + $0xaa8] sm:$0xff]
        %v890 = vld [vmem:[%s6 + $0xab0] sm:$0xff]
        %v891 = vld [vmem:[%s6 + $0xab8] sm:$0xff]
        %v892 = vld [vmem:[%s6 + $0xac0] sm:$0xff]
        %v893 = vld [vmem:[%s6 + $0xac8] sm:$0xff]
        %v894 = vld [vmem:[%s6 + $0xad0] sm:$0xff]
        %v895 = vld [vmem:[%s6 + $0xad8] sm:$0xff]
        %v896 = vld [vmem:[%s6 + $0xae0] sm:$0xff]
        %v897 = vld [vmem:[%s6 + $0xae8] sm:$0xff]
        %v898 = vld [vmem:[%s6 + $0xaf0] sm:$0xff]
        %v899 = vld [vmem:[%s6 + $0xaf8] sm:$0xff]
        %v900 = vld [vmem:[%s6 + $0xb00] sm:$0xff]
        %v901 = vld [vmem:[%s6 + $0xb08] sm:$0xff]
        %v902 = vld [vmem:[%s6 + $0xb10] sm:$0xff]
        %v903 = vld [vmem:[%s6 + $0xb18] sm:$0xff]
        %v904 = vld [vmem:[%s6 + $0xb20] sm:$0xff]
        %v905 = vld [vmem:[%s6 + $0xb28] sm:$0xff]
        %v906 = vld [vmem:[%s6 + $0xb30] sm:$0xff]
        %v907 = vld [vmem:[%s6 + $0xb38] sm:$0xff]
        %v908 = vld [vmem:[%s6 + $0xb40] sm:$0xff]
        %v909 = vld [vmem:[%s6 + $0xb48] sm:$0xff]
        %v910 = vld [vmem:[%s6 + $0xb50] sm:$0xff]
        %v911 = vld [vmem:[%s6 + $0xb58] sm:$0xff]
        %v912 = vld [vmem:[%s6 + $0xb60] sm:$0xff]
        %v913 = vld [vmem:[%s6 + $0xb68] sm:$0xff]
        %v914 = vld [vmem:[%s6 + $0xb70] sm:$0xff]
        %v915 = vld [vmem:[%s6 + $0xb78] sm:$0xff]
        %v916 = vld [vmem:[%s6 + $0xb80] sm:$0xff]
        %v917 = vld [vmem:[%s6 + $0xb88] sm:$0xff]
        %v918 = vld [vmem:[%s6 + $0xb90] sm:$0xff]
        %v919 = vld [vmem:[%s6 + $0xb98] sm:$0xff]
        %v920 = vld [vmem:[%s6 + $0xba0] sm:$0xff]
        %v921 = vld [vmem:[%s6 + $0xba8] sm:$0xff]
        %v922 = vld [vmem:[%s6 + $0xbb0] sm:$0xff]
        %v923 = vld [vmem:[%s6 + $0xbb8] sm:$0xff]
        %v924 = vld [vmem:[%s6 + $0xbc0] sm:$0xff]
        %v925 = vld [vmem:[%s6 + $0xbc8] sm:$0xff]
        %v926 = vld [vmem:[%s6 + $0xbd0] sm:$0xff]
        %v927 = vld [vmem:[%s6 + $0xbd8] sm:$0xff]
        %v928 = vld [vmem:[%s6 + $0xbe0] sm:$0xff]
        %v929 = vld [vmem:[%s6 + $0xbe8] sm:$0xff]
        %v930 = vld [vmem:[%s6 + $0xbf0] sm:$0xff]
        %v931 = vld [vmem:[%s6 + $0xbf8] sm:$0xff]
        %v934 = vlaneseq
        %v935 = vshrl.u32 %v934, 7
        %v936 = vsub.s32 0, %v935
        %v937 = vrot.slane %v464, %v936
        %v938 = vlaneseq
        %v939 = vshrl.u32 %v938, 7
        %v940 = vsub.s32 2, %v939
        %v941 = vrot.slane %v464, %v940
        %v942 = vlaneseq
        %v943 = vshrl.u32 %v942, 7
        %v944 = vsub.s32 4, %v943
        %v945 = vrot.slane %v464, %v944
        %v946 = vlaneseq
        %v947 = vshrl.u32 %v946, 7
        %v948 = vsub.s32 6, %v947
        %v949 = vrot.slane %v464, %v948
        %v950 = vlaneseq
        %v951 = vshrl.u32 %v950, 7
        %v952 = vsub.s32 0, %v951
        %v953 = vrot.slane %v465, %v952
        %v954 = vlaneseq
        %v955 = vshrl.u32 %v954, 7
        %v956 = vsub.s32 2, %v955
        %v957 = vrot.slane %v465, %v956
        %v958 = vlaneseq
        %v959 = vshrl.u32 %v958, 7
        %v960 = vsub.s32 4, %v959
        %v961 = vrot.slane %v465, %v960
        %v962 = vlaneseq
        %v963 = vshrl.u32 %v962, 7
        %v964 = vsub.s32 6, %v963
        %v965 = vrot.slane %v465, %v964
        %v974 = vlaneseq
        %v975 = vshrl.u32 %v974, 7
        %v976 = vsub.s32 0, %v975
        %v977 = vrot.slane %v937, %v976
        %v978 = vlaneseq
        %v979 = vshrl.u32 %v978, 7
        %v980 = vsub.s32 0, %v979
        %v981 = vrot.slane %v941, %v980
        %v982 = vlaneseq
        %v983 = vshrl.u32 %v982, 7
        %v984 = vsub.s32 0, %v983
        %v985 = vrot.slane %v945, %v984
        %v986 = vlaneseq
        %v987 = vshrl.u32 %v986, 7
        %v988 = vsub.s32 0, %v987
        %v989 = vrot.slane %v949, %v988
        %v990 = vlaneseq
        %v991 = vshrl.u32 %v990, 7
        %v992 = vsub.s32 0, %v991
        %v993 = vrot.slane %v953, %v992
        %v994 = vlaneseq
        %v995 = vshrl.u32 %v994, 7
        %v996 = vsub.s32 0, %v995
        %v997 = vrot.slane %v957, %v996
        %v998 = vlaneseq
        %v999 = vshrl.u32 %v998, 7
        %v1000 = vsub.s32 0, %v999
        %v1001 = vrot.slane %v961, %v1000
        %v1002 = vlaneseq
        %v1003 = vshrl.u32 %v1002, 7
        %v1004 = vsub.s32 0, %v1003
        %v1005 = vrot.slane %v965, %v1004
        %1006 = vmatprep.subr.mxu0 %v549
        %1007 = vmatpush1.msra.mxu0 %v548
        %1008 = vmatprep.subr.mxu0 %v557
        %1009 = vmatpush1.msra.mxu0 %v556
        %1010 = vmatprep.subr.mxu0 %v565
        %1011 = vmatpush1.msra.mxu0 %v564
        %1012 = vmatprep.subr.mxu0 %v573
        %1013 = vmatpush1.msra.mxu0 %v572
        %1014 = vmatprep.subr.mxu0 %v581
        %1015 = vmatpush1.msra.mxu0 %v580
        %1016 = vmatprep.subr.mxu0 %v589
        %1017 = vmatpush1.msra.mxu0 %v588
        %1018 = vmatprep.subr.mxu0 %v597
        %1019 = vmatpush1.msra.mxu0 %v596
        %1020 = vmatprep.subr.mxu0 %v605
        %1021 = vmatpush1.msra.mxu0 %v604
        %1022 = vmatprep.subr.mxu0 %v613
        %1023 = vmatpush1.msra.mxu0 %v612
        %1024 = vmatprep.subr.mxu0 %v621
        %1025 = vmatpush1.msra.mxu0 %v620
        %1026 = vmatprep.subr.mxu0 %v629
        %1027 = vmatpush1.msra.mxu0 %v628
        %1028 = vmatprep.subr.mxu0 %v637
        %1029 = vmatpush1.msra.mxu0 %v636
        %1030 = vmatprep.subr.mxu0 %v645
        %1031 = vmatpush1.msra.mxu0 %v644
        %1032 = vmatprep.subr.mxu0 %v653
        %1033 = vmatpush1.msra.mxu0 %v652
        %1034 = vmatprep.subr.mxu0 %v661
        %1035 = vmatpush1.msra.mxu0 %v660
        %1036 = vmatprep.subr.mxu0 %v669
        %1037 = vmatpush1.msra.mxu0 %v668
        %1038 = vmatprep.subr.mxu0 %v677
        %1039 = vmatpush1.msra.mxu0 %v676
        %1040 = vmatprep.subr.mxu0 %v685
        %1041 = vmatpush1.msra.mxu0 %v684
        %1042 = vmatprep.subr.mxu0 %v693
        %1043 = vmatpush1.msra.mxu0 %v692
        %1044 = vmatprep.subr.mxu0 %v701
        %1045 = vmatpush1.msra.mxu0 %v700
        %1046 = vmatprep.subr.mxu0 %v709
        %1047 = vmatpush1.msra.mxu0 %v708
        %1048 = vmatprep.subr.mxu0 %v717
        %1049 = vmatpush1.msra.mxu0 %v716
        %1050 = vmatprep.subr.mxu0 %v725
        %1051 = vmatpush1.msra.mxu0 %v724
        %1052 = vmatprep.subr.mxu0 %v733
        %1053 = vmatpush1.msra.mxu0 %v732
        %1054 = vmatprep.subr.mxu0 %v741
        %1055 = vmatpush1.msra.mxu0 %v740
        %1056 = vmatprep.subr.mxu0 %v749
        %1057 = vmatpush1.msra.mxu0 %v748
        %1058 = vmatprep.subr.mxu0 %v757
        %1059 = vmatpush1.msra.mxu0 %v756
        %1060 = vmatprep.subr.mxu0 %v765
        %1061 = vmatpush1.msra.mxu0 %v764
        %1062 = vmatprep.subr.mxu0 %v773
        %1063 = vmatpush1.msra.mxu0 %v772
        %1064 = vmatprep.subr.mxu0 %v781
        %1065 = vmatpush1.msra.mxu0 %v780
        %1066 = vmatprep.subr.mxu0 %v789
        %1067 = vmatpush1.msra.mxu0 %v788
        %1068 = vmatprep.subr.mxu0 %v797
        %1069 = vmatpush1.msra.mxu0 %v796
        %1070 = vmatprep.mubr.f32.mxu0 %v534
        %1071 = vmatmul.mubr.f32.gmra.mrb[0].mxu0 %v533
        %v1072 = vpop.f32.mrb[0].mxu0
        %v1073 = vadd.f32 %v977, %v1072
        %v1074 = vpop.f32.mrb[0].mxu0
        %v1075 = vadd.f32 %v981, %v1074
        %1076 = vmatprep.mubr.f32.mxu0 %v537
        %1077 = vmatmul.mubr.f32.gmra.mrb[0].mxu0 %v536
        %v1078 = vpop.f32.mrb[0].mxu0
        %v1079 = vadd.f32 %v977, %v1078
        %v1080 = vpop.f32.mrb[0].mxu0
        %v1081 = vadd.f32 %v981, %v1080
        %1082 = vmatprep.mubr.f32.mxu0 %v540
        %1083 = vmatmul.mubr.f32.gmra.mrb[0].mxu0 %v539
        %v1084 = vpop.f32.mrb[0].mxu0
        %v1085 = vadd.f32 %v977, %v1084
        %v1086 = vpop.f32.mrb[0].mxu0
        %v1087 = vadd.f32 %v981, %v1086
        %1088 = vmatprep.mubr.f32.mxu0 %v543
        %1089 = vmatmul.mubr.f32.gmra.mrb[0].mxu0 %v542
        %v1090 = vpop.f32.mrb[0].mxu0
        %v1091 = vadd.f32 %v977, %v1090
        %v1092 = vpop.f32.mrb[0].mxu0
        %v1093 = vadd.f32 %v981, %v1092
        %1094 = vmatprep.mubr.f32.mxu0 %v546
        %1095 = vmatmul.mubr.f32.gmra.mrb[0].mxu0 %v545
        %v1096 = vpop.f32.mrb[0].mxu0
        %v1097 = vadd.f32 %v977, %v1096
        %v1098 = vpop.f32.mrb[0].mxu0
        %v1099 = vadd.f32 %v981, %v1098
        %1100 = vdwg.mxu0
        %1101 = vmatprep.subr.mxu0 %v805
        %1102 = vmatpush1.msra.mxu0 %v804
        %1103 = vmatprep.subr.mxu0 %v813
        %1104 = vmatpush1.msra.mxu0 %v812
        %1105 = vmatprep.subr.mxu0 %v821
        %1106 = vmatpush1.msra.mxu0 %v820
        %1107 = vmatprep.subr.mxu0 %v829
        %1108 = vmatpush1.msra.mxu0 %v828
        %1109 = vmatprep.subr.mxu0 %v837
        %1110 = vmatpush1.msra.mxu0 %v836
        %1111 = vmatprep.subr.mxu0 %v845
        %1112 = vmatpush1.msra.mxu0 %v844
        %1113 = vmatprep.subr.mxu0 %v853
        %1114 = vmatpush1.msra.mxu0 %v852
        %1115 = vmatprep.subr.mxu0 %v861
        %1116 = vmatpush1.msra.mxu0 %v860
        %1117 = vmatprep.subr.mxu0 %v869
        %1118 = vmatpush1.msra.mxu0 %v868
        %1119 = vmatprep.subr.mxu0 %v877
        %1120 = vmatpush1.msra.mxu0 %v876
        %1121 = vmatprep.subr.mxu0 %v885
        %1122 = vmatpush1.msra.mxu0 %v884
        %1123 = vmatprep.subr.mxu0 %v893
        %1124 = vmatpush1.msra.mxu0 %v892
        %1125 = vmatprep.subr.mxu0 %v901
        %1126 = vmatpush1.msra.mxu0 %v900
        %1127 = vmatprep.subr.mxu0 %v909
        %1128 = vmatpush1.msra.mxu0 %v908
        %1129 = vmatprep.subr.mxu0 %v917
        %1130 = vmatpush1.msra.mxu0 %v916
        %1131 = vmatprep.subr.mxu0 %v925
        %1132 = vmatpush1.msra.mxu0 %v924
        %1133 = vmatprep.subr.mxu0 0.0
        %1134 = vmatpush1.msra.mxu0 0.0
        %1135 = vmatprep.subr.mxu0 0.0
        %1136 = vmatpush1.msra.mxu0 0.0
        %1137 = vmatprep.subr.mxu0 0.0
        %1138 = vmatpush1.msra.mxu0 0.0
        %1139 = vmatprep.subr.mxu0 0.0
        %1140 = vmatpush1.msra.mxu0 0.0
        %1141 = vmatprep.subr.mxu0 0.0
        %1142 = vmatpush1.msra.mxu0 0.0
        %1143 = vmatprep.subr.mxu0 0.0
        %1144 = vmatpush1.msra.mxu0 0.0
        %1145 = vmatprep.subr.mxu0 0.0
        %1146 = vmatpush1.msra.mxu0 0.0
        %1147 = vmatprep.subr.mxu0 0.0
        %1148 = vmatpush1.msra.mxu0 0.0
        %1149 = vmatprep.subr.mxu0 0.0
        %1150 = vmatpush1.msra.mxu0 0.0
        %1151 = vmatprep.subr.mxu0 0.0
        %1152 = vmatpush1.msra.mxu0 0.0
        %1153 = vmatprep.subr.mxu0 0.0
        %1154 = vmatpush1.msra.mxu0 0.0
        %1155 = vmatprep.subr.mxu0 0.0
        %1156 = vmatpush1.msra.mxu0 0.0
        %1157 = vmatprep.subr.mxu0 0.0
        %1158 = vmatpush1.msra.mxu0 0.0
        %1159 = vmatprep.subr.mxu0 0.0
        %1160 = vmatpush1.msra.mxu0 0.0
        %1161 = vmatprep.subr.mxu0 0.0
        %1162 = vmatpush1.msra.mxu0 0.0
        %1163 = vmatprep.subr.mxu0 0.0
        %1164 = vmatpush1.msra.mxu0 0.0
        %1165 = vmatprep.mubr.f32.mxu0 0.0
        %1166 = vmatmul.mubr.f32.gmra.mrb[0].mxu0 %v535
        %v1167 = vpop.f32.mrb[0].mxu0
        %v1168 = vadd.f32 %v1073, %v1167
        %v1169 = vpop.f32.mrb[0].mxu0
        %v1170 = vadd.f32 %v1075, %v1169
        %1171 = vmatprep.mubr.f32.mxu0 0.0
        %1172 = vmatmul.mubr.f32.gmra.mrb[0].mxu0 %v538
        %v1173 = vpop.f32.mrb[0].mxu0
        %v1174 = vadd.f32 %v1079, %v1173
        %v1175 = vpop.f32.mrb[0].mxu0
        %v1176 = vadd.f32 %v1081, %v1175
        %1177 = vmatprep.mubr.f32.mxu0 0.0
        %1178 = vmatmul.mubr.f32.gmra.mrb[0].mxu0 %v541
        %v1179 = vpop.f32.mrb[0].mxu0
        %v1180 = vadd.f32 %v1085, %v1179
        %v1181 = vpop.f32.mrb[0].mxu0
        %v1182 = vadd.f32 %v1087, %v1181
        %1183 = vmatprep.mubr.f32.mxu0 0.0
        %1184 = vmatmul.mubr.f32.gmra.mrb[0].mxu0 %v544
        %v1185 = vpop.f32.mrb[0].mxu0
        %v1186 = vadd.f32 %v1091, %v1185
        %v1187 = vpop.f32.mrb[0].mxu0
        %v1188 = vadd.f32 %v1093, %v1187
        %1189 = vmatprep.mubr.f32.mxu0 0.0
        %1190 = vmatmul.mubr.f32.gmra.mrb[0].mxu0 %v547
        %v1191 = vpop.f32.mrb[0].mxu0
        %v1192 = vadd.f32 %v1097, %v1191
        %v1193 = vpop.f32.mrb[0].mxu0
        %v1194 = vadd.f32 %v1099, %v1193
        %1195 = vdwg.mxu0
        %1196 = vmatprep.subr.mxu0 %v551
        %1197 = vmatpush1.msra.mxu0 %v550
        %1198 = vmatprep.subr.mxu0 %v559
        %1199 = vmatpush1.msra.mxu0 %v558
        %1200 = vmatprep.subr.mxu0 %v567
        %1201 = vmatpush1.msra.mxu0 %v566
        %1202 = vmatprep.subr.mxu0 %v575
        %1203 = vmatpush1.msra.mxu0 %v574
        %1204 = vmatprep.subr.mxu0 %v583
        %1205 = vmatpush1.msra.mxu0 %v582
        %1206 = vmatprep.subr.mxu0 %v591
        %1207 = vmatpush1.msra.mxu0 %v590
        %1208 = vmatprep.subr.mxu0 %v599
        %1209 = vmatpush1.msra.mxu0 %v598
        %1210 = vmatprep.subr.mxu0 %v607
        %1211 = vmatpush1.msra.mxu0 %v606
        %1212 = vmatprep.subr.mxu0 %v615
        %1213 = vmatpush1.msra.mxu0 %v614
        %1214 = vmatprep.subr.mxu0 %v623
        %1215 = vmatpush1.msra.mxu0 %v622
        %1216 = vmatprep.subr.mxu0 %v631
        %1217 = vmatpush1.msra.mxu0 %v630
        %1218 = vmatprep.subr.mxu0 %v639
        %1219 = vmatpush1.msra.mxu0 %v638
        %1220 = vmatprep.subr.mxu0 %v647
        %1221 = vmatpush1.msra.mxu0 %v646
        %1222 = vmatprep.subr.mxu0 %v655
        %1223 = vmatpush1.msra.mxu0 %v654
        %1224 = vmatprep.subr.mxu0 %v663
        %1225 = vmatpush1.msra.mxu0 %v662
        %1226 = vmatprep.subr.mxu0 %v671
        %1227 = vmatpush1.msra.mxu0 %v670
        %1228 = vmatprep.subr.mxu0 %v679
        %1229 = vmatpush1.msra.mxu0 %v678
        %1230 = vmatprep.subr.mxu0 %v687
        %1231 = vmatpush1.msra.mxu0 %v686
        %1232 = vmatprep.subr.mxu0 %v695
        %1233 = vmatpush1.msra.mxu0 %v694
        %1234 = vmatprep.subr.mxu0 %v703
        %1235 = vmatpush1.msra.mxu0 %v702
        %1236 = vmatprep.subr.mxu0 %v711
        %1237 = vmatpush1.msra.mxu0 %v710
        %1238 = vmatprep.subr.mxu0 %v719
        %1239 = vmatpush1.msra.mxu0 %v718
        %1240 = vmatprep.subr.mxu0 %v727
        %1241 = vmatpush1.msra.mxu0 %v726
        %1242 = vmatprep.subr.mxu0 %v735
        %1243 = vmatpush1.msra.mxu0 %v734
        %1244 = vmatprep.subr.mxu0 %v743
        %1245 = vmatpush1.msra.mxu0 %v742
        %1246 = vmatprep.subr.mxu0 %v751
        %1247 = vmatpush1.msra.mxu0 %v750
        %1248 = vmatprep.subr.mxu0 %v759
        %1249 = vmatpush1.msra.mxu0 %v758
        %1250 = vmatprep.subr.mxu0 %v767
        %1251 = vmatpush1.msra.mxu0 %v766
        %1252 = vmatprep.subr.mxu0 %v775
        %1253 = vmatpush1.msra.mxu0 %v774
        %1254 = vmatprep.subr.mxu0 %v783
        %1255 = vmatpush1.msra.mxu0 %v782
        %1256 = vmatprep.subr.mxu0 %v791
        %1257 = vmatpush1.msra.mxu0 %v790
        %1258 = vmatprep.subr.mxu0 %v799
        %1259 = vmatpush1.msra.mxu0 %v798
        %1260 = vmatprep.mubr.f32.mxu0 %v534
        %1261 = vmatmul.mubr.f32.gmra.mrb[0].mxu0 %v533
        %v1262 = vpop.f32.mrb[0].mxu0
        %v1263 = vadd.f32 %v985, %v1262
        %v1264 = vpop.f32.mrb[0].mxu0
        %v1265 = vadd.f32 %v989, %v1264
        %1266 = vmatprep.mubr.f32.mxu0 %v537
        %1267 = vmatmul.mubr.f32.gmra.mrb[0].mxu0 %v536
        %v1268 = vpop.f32.mrb[0].mxu0
        %v1269 = vadd.f32 %v985, %v1268
        %v1270 = vpop.f32.mrb[0].mxu0
        %v1271 = vadd.f32 %v989, %v1270
        %1272 = vmatprep.mubr.f32.mxu0 %v540
        %1273 = vmatmul.mubr.f32.gmra.mrb[0].mxu0 %v539
        %v1274 = vpop.f32.mrb[0].mxu0
        %v1275 = vadd.f32 %v985, %v1274
        %v1276 = vpop.f32.mrb[0].mxu0
        %v1277 = vadd.f32 %v989, %v1276
        %1278 = vmatprep.mubr.f32.mxu0 %v543
        %1279 = vmatmul.mubr.f32.gmra.mrb[0].mxu0 %v542
        %v1280 = vpop.f32.mrb[0].mxu0
        %v1281 = vadd.f32 %v985, %v1280
        %v1282 = vpop.f32.mrb[0].mxu0
        %v1283 = vadd.f32 %v989, %v1282
        %1284 = vmatprep.mubr.f32.mxu0 %v546
        %1285 = vmatmul.mubr.f32.gmra.mrb[0].mxu0 %v545
        %v1286 = vpop.f32.mrb[0].mxu0
        %v1287 = vadd.f32 %v985, %v1286
        %v1288 = vpop.f32.mrb[0].mxu0
        %v1289 = vadd.f32 %v989, %v1288
        %1290 = vdwg.mxu0
        %1291 = vmatprep.subr.mxu0 %v807
        %1292 = vmatpush1.msra.mxu0 %v806
        %1293 = vmatprep.subr.mxu0 %v815
        %1294 = vmatpush1.msra.mxu0 %v814
        %1295 = vmatprep.subr.mxu0 %v823
        %1296 = vmatpush1.msra.mxu0 %v822
        %1297 = vmatprep.subr.mxu0 %v831
        %1298 = vmatpush1.msra.mxu0 %v830
        %1299 = vmatprep.subr.mxu0 %v839
        %1300 = vmatpush1.msra.mxu0 %v838
        %1301 = vmatprep.subr.mxu0 %v847
        %1302 = vmatpush1.msra.mxu0 %v846
        %1303 = vmatprep.subr.mxu0 %v855
        %1304 = vmatpush1.msra.mxu0 %v854
        %1305 = vmatprep.subr.mxu0 %v863
        %1306 = vmatpush1.msra.mxu0 %v862
        %1307 = vmatprep.subr.mxu0 %v871
        %1308 = vmatpush1.msra.mxu0 %v870
        %1309 = vmatprep.subr.mxu0 %v879
        %1310 = vmatpush1.msra.mxu0 %v878
        %1311 = vmatprep.subr.mxu0 %v887
        %1312 = vmatpush1.msra.mxu0 %v886
        %1313 = vmatprep.subr.mxu0 %v895
        %1314 = vmatpush1.msra.mxu0 %v894
        %1315 = vmatprep.subr.mxu0 %v903
        %1316 = vmatpush1.msra.mxu0 %v902
        %1317 = vmatprep.subr.mxu0 %v911
        %1318 = vmatpush1.msra.mxu0 %v910
        %1319 = vmatprep.subr.mxu0 %v919
        %1320 = vmatpush1.msra.mxu0 %v918
        %1321 = vmatprep.subr.mxu0 %v927
        %1322 = vmatpush1.msra.mxu0 %v926
        %1323 = vmatprep.subr.mxu0 0.0
        %1324 = vmatpush1.msra.mxu0 0.0
        %1325 = vmatprep.subr.mxu0 0.0
        %1326 = vmatpush1.msra.mxu0 0.0
        %1327 = vmatprep.subr.mxu0 0.0
        %1328 = vmatpush1.msra.mxu0 0.0
        %1329 = vmatprep.subr.mxu0 0.0
        %1330 = vmatpush1.msra.mxu0 0.0
        %1331 = vmatprep.subr.mxu0 0.0
        %1332 = vmatpush1.msra.mxu0 0.0
        %1333 = vmatprep.subr.mxu0 0.0
        %1334 = vmatpush1.msra.mxu0 0.0
        %1335 = vmatprep.subr.mxu0 0.0
        %1336 = vmatpush1.msra.mxu0 0.0
        %1337 = vmatprep.subr.mxu0 0.0
        %1338 = vmatpush1.msra.mxu0 0.0
        %1339 = vmatprep.subr.mxu0 0.0
        %1340 = vmatpush1.msra.mxu0 0.0
        %1341 = vmatprep.subr.mxu0 0.0
        %1342 = vmatpush1.msra.mxu0 0.0
        %1343 = vmatprep.subr.mxu0 0.0
        %1344 = vmatpush1.msra.mxu0 0.0
        %1345 = vmatprep.subr.mxu0 0.0
        %1346 = vmatpush1.msra.mxu0 0.0
        %1347 = vmatprep.subr.mxu0 0.0
        %1348 = vmatpush1.msra.mxu0 0.0
        %1349 = vmatprep.subr.mxu0 0.0
        %1350 = vmatpush1.msra.mxu0 0.0
        %1351 = vmatprep.subr.mxu0 0.0
        %1352 = vmatpush1.msra.mxu0 0.0
        %1353 = vmatprep.subr.mxu0 0.0
        %1354 = vmatpush1.msra.mxu0 0.0
        %1355 = vmatprep.mubr.f32.mxu0 0.0
        %1356 = vmatmul.mubr.f32.gmra.mrb[0].mxu0 %v535
        %v1357 = vpop.f32.mrb[0].mxu0
        %v1358 = vadd.f32 %v1263, %v1357
        %v1359 = vpop.f32.mrb[0].mxu0
        %v1360 = vadd.f32 %v1265, %v1359
        %1361 = vmatprep.mubr.f32.mxu0 0.0
        %1362 = vmatmul.mubr.f32.gmra.mrb[0].mxu0 %v538
        %v1363 = vpop.f32.mrb[0].mxu0
        %v1364 = vadd.f32 %v1269, %v1363
        %v1365 = vpop.f32.mrb[0].mxu0
        %v1366 = vadd.f32 %v1271, %v1365
        %1367 = vmatprep.mubr.f32.mxu0 0.0
        %1368 = vmatmul.mubr.f32.gmra.mrb[0].mxu0 %v541
        %v1369 = vpop.f32.mrb[0].mxu0
        %v1370 = vadd.f32 %v1275, %v1369
        %v1371 = vpop.f32.mrb[0].mxu0
        %v1372 = vadd.f32 %v1277, %v1371
        %1373 = vmatprep.mubr.f32.mxu0 0.0
        %1374 = vmatmul.mubr.f32.gmra.mrb[0].mxu0 %v544
        %v1375 = vpop.f32.mrb[0].mxu0
        %v1376 = vadd.f32 %v1281, %v1375
        %v1377 = vpop.f32.mrb[0].mxu0
        %v1378 = vadd.f32 %v1283, %v1377
        %1379 = vmatprep.mubr.f32.mxu0 0.0
        %1380 = vmatmul.mubr.f32.gmra.mrb[0].mxu0 %v547
        %v1381 = vpop.f32.mrb[0].mxu0
        %v1382 = vadd.f32 %v1287, %v1381
        %v1383 = vpop.f32.mrb[0].mxu0
        %v1384 = vadd.f32 %v1289, %v1383
        %1385 = vdwg.mxu0
        %1386 = vmatprep.subr.mxu0 %v553
        %1387 = vmatpush1.msra.mxu0 %v552
        %1388 = vmatprep.subr.mxu0 %v561
        %1389 = vmatpush1.msra.mxu0 %v560
        %1390 = vmatprep.subr.mxu0 %v569
        %1391 = vmatpush1.msra.mxu0 %v568
        %1392 = vmatprep.subr.mxu0 %v577
        %1393 = vmatpush1.msra.mxu0 %v576
        %1394 = vmatprep.subr.mxu0 %v585
        %1395 = vmatpush1.msra.mxu0 %v584
        %1396 = vmatprep.subr.mxu0 %v593
        %1397 = vmatpush1.msra.mxu0 %v592
        %1398 = vmatprep.subr.mxu0 %v601
        %1399 = vmatpush1.msra.mxu0 %v600
        %1400 = vmatprep.subr.mxu0 %v609
        %1401 = vmatpush1.msra.mxu0 %v608
        %1402 = vmatprep.subr.mxu0 %v617
        %1403 = vmatpush1.msra.mxu0 %v616
        %1404 = vmatprep.subr.mxu0 %v625
        %1405 = vmatpush1.msra.mxu0 %v624
        %1406 = vmatprep.subr.mxu0 %v633
        %1407 = vmatpush1.msra.mxu0 %v632
        %1408 = vmatprep.subr.mxu0 %v641
        %1409 = vmatpush1.msra.mxu0 %v640
        %1410 = vmatprep.subr.mxu0 %v649
        %1411 = vmatpush1.msra.mxu0 %v648
        %1412 = vmatprep.subr.mxu0 %v657
        %1413 = vmatpush1.msra.mxu0 %v656
        %1414 = vmatprep.subr.mxu0 %v665
        %1415 = vmatpush1.msra.mxu0 %v664
        %1416 = vmatprep.subr.mxu0 %v673
        %1417 = vmatpush1.msra.mxu0 %v672
        %1418 = vmatprep.subr.mxu0 %v681
        %1419 = vmatpush1.msra.mxu0 %v680
        %1420 = vmatprep.subr.mxu0 %v689
        %1421 = vmatpush1.msra.mxu0 %v688
        %1422 = vmatprep.subr.mxu0 %v697
        %1423 = vmatpush1.msra.mxu0 %v696
        %1424 = vmatprep.subr.mxu0 %v705
        %1425 = vmatpush1.msra.mxu0 %v704
        %1426 = vmatprep.subr.mxu0 %v713
        %1427 = vmatpush1.msra.mxu0 %v712
        %1428 = vmatprep.subr.mxu0 %v721
        %1429 = vmatpush1.msra.mxu0 %v720
        %1430 = vmatprep.subr.mxu0 %v729
        %1431 = vmatpush1.msra.mxu0 %v728
        %1432 = vmatprep.subr.mxu0 %v737
        %1433 = vmatpush1.msra.mxu0 %v736
        %1434 = vmatprep.subr.mxu0 %v745
        %1435 = vmatpush1.msra.mxu0 %v744
        %1436 = vmatprep.subr.mxu0 %v753
        %1437 = vmatpush1.msra.mxu0 %v752
        %1438 = vmatprep.subr.mxu0 %v761
        %1439 = vmatpush1.msra.mxu0 %v760
        %1440 = vmatprep.subr.mxu0 %v769
        %1441 = vmatpush1.msra.mxu0 %v768
        %1442 = vmatprep.subr.mxu0 %v777
        %1443 = vmatpush1.msra.mxu0 %v776
        %1444 = vmatprep.subr.mxu0 %v785
        %1445 = vmatpush1.msra.mxu0 %v784
        %1446 = vmatprep.subr.mxu0 %v793
        %1447 = vmatpush1.msra.mxu0 %v792
        %1448 = vmatprep.subr.mxu0 %v801
        %1449 = vmatpush1.msra.mxu0 %v800
        %1450 = vmatprep.mubr.f32.mxu0 %v534
        %1451 = vmatmul.mubr.f32.gmra.mrb[0].mxu0 %v533
        %v1452 = vpop.f32.mrb[0].mxu0
        %v1453 = vadd.f32 %v993, %v1452
        %v1454 = vpop.f32.mrb[0].mxu0
        %v1455 = vadd.f32 %v997, %v1454
        %1456 = vmatprep.mubr.f32.mxu0 %v537
        %1457 = vmatmul.mubr.f32.gmra.mrb[0].mxu0 %v536
        %v1458 = vpop.f32.mrb[0].mxu0
        %v1459 = vadd.f32 %v993, %v1458
        %v1460 = vpop.f32.mrb[0].mxu0
        %v1461 = vadd.f32 %v997, %v1460
        %1462 = vmatprep.mubr.f32.mxu0 %v540
        %1463 = vmatmul.mubr.f32.gmra.mrb[0].mxu0 %v539
        %v1464 = vpop.f32.mrb[0].mxu0
        %v1465 = vadd.f32 %v993, %v1464
        %v1466 = vpop.f32.mrb[0].mxu0
        %v1467 = vadd.f32 %v997, %v1466
        %1468 = vmatprep.mubr.f32.mxu0 %v543
        %1469 = vmatmul.mubr.f32.gmra.mrb[0].mxu0 %v542
        %v1470 = vpop.f32.mrb[0].mxu0
        %v1471 = vadd.f32 %v993, %v1470
        %v1472 = vpop.f32.mrb[0].mxu0
        %v1473 = vadd.f32 %v997, %v1472
        %1474 = vmatprep.mubr.f32.mxu0 %v546
        %1475 = vmatmul.mubr.f32.gmra.mrb[0].mxu0 %v545
        %v1476 = vpop.f32.mrb[0].mxu0
        %v1477 = vadd.f32 %v993, %v1476
        %v1478 = vpop.f32.mrb[0].mxu0
        %v1479 = vadd.f32 %v997, %v1478
        %1480 = vdwg.mxu0
        %1481 = vmatprep.subr.mxu0 %v809
        %1482 = vmatpush1.msra.mxu0 %v808
        %1483 = vmatprep.subr.mxu0 %v817
        %1484 = vmatpush1.msra.mxu0 %v816
        %1485 = vmatprep.subr.mxu0 %v825
        %1486 = vmatpush1.msra.mxu0 %v824
        %1487 = vmatprep.subr.mxu0 %v833
        %1488 = vmatpush1.msra.mxu0 %v832
        %1489 = vmatprep.subr.mxu0 %v841
        %1490 = vmatpush1.msra.mxu0 %v840
        %1491 = vmatprep.subr.mxu0 %v849
        %1492 = vmatpush1.msra.mxu0 %v848
        %1493 = vmatprep.subr.mxu0 %v857
        %1494 = vmatpush1.msra.mxu0 %v856
        %1495 = vmatprep.subr.mxu0 %v865
        %1496 = vmatpush1.msra.mxu0 %v864
        %1497 = vmatprep.subr.mxu0 %v873
        %1498 = vmatpush1.msra.mxu0 %v872
        %1499 = vmatprep.subr.mxu0 %v881
        %1500 = vmatpush1.msra.mxu0 %v880
        %1501 = vmatprep.subr.mxu0 %v889
        %1502 = vmatpush1.msra.mxu0 %v888
        %1503 = vmatprep.subr.mxu0 %v897
        %1504 = vmatpush1.msra.mxu0 %v896
        %1505 = vmatprep.subr.mxu0 %v905
        %1506 = vmatpush1.msra.mxu0 %v904
        %1507 = vmatprep.subr.mxu0 %v913
        %1508 = vmatpush1.msra.mxu0 %v912
        %1509 = vmatprep.subr.mxu0 %v921
        %1510 = vmatpush1.msra.mxu0 %v920
        %1511 = vmatprep.subr.mxu0 %v929
        %1512 = vmatpush1.msra.mxu0 %v928
        %1513 = vmatprep.subr.mxu0 0.0
        %1514 = vmatpush1.msra.mxu0 0.0
        %1515 = vmatprep.subr.mxu0 0.0
        %1516 = vmatpush1.msra.mxu0 0.0
        %1517 = vmatprep.subr.mxu0 0.0
        %1518 = vmatpush1.msra.mxu0 0.0
        %1519 = vmatprep.subr.mxu0 0.0
        %1520 = vmatpush1.msra.mxu0 0.0
        %1521 = vmatprep.subr.mxu0 0.0
        %1522 = vmatpush1.msra.mxu0 0.0
        %1523 = vmatprep.subr.mxu0 0.0
        %1524 = vmatpush1.msra.mxu0 0.0
        %1525 = vmatprep.subr.mxu0 0.0
        %1526 = vmatpush1.msra.mxu0 0.0
        %1527 = vmatprep.subr.mxu0 0.0
        %1528 = vmatpush1.msra.mxu0 0.0
        %1529 = vmatprep.subr.mxu0 0.0
        %1530 = vmatpush1.msra.mxu0 0.0
        %1531 = vmatprep.subr.mxu0 0.0
        %1532 = vmatpush1.msra.mxu0 0.0
        %1533 = vmatprep.subr.mxu0 0.0
        %1534 = vmatpush1.msra.mxu0 0.0
        %1535 = vmatprep.subr.mxu0 0.0
        %1536 = vmatpush1.msra.mxu0 0.0
        %1537 = vmatprep.subr.mxu0 0.0
        %1538 = vmatpush1.msra.mxu0 0.0
        %1539 = vmatprep.subr.mxu0 0.0
        %1540 = vmatpush1.msra.mxu0 0.0
        %1541 = vmatprep.subr.mxu0 0.0
        %1542 = vmatpush1.msra.mxu0 0.0
        %1543 = vmatprep.subr.mxu0 0.0
        %1544 = vmatpush1.msra.mxu0 0.0
        %1545 = vmatprep.mubr.f32.mxu0 0.0
        %1546 = vmatmul.mubr.f32.gmra.mrb[0].mxu0 %v535
        %v1547 = vpop.f32.mrb[0].mxu0
        %v1548 = vadd.f32 %v1453, %v1547
        %v1549 = vpop.f32.mrb[0].mxu0
        %v1550 = vadd.f32 %v1455, %v1549
        %1551 = vmatprep.mubr.f32.mxu0 0.0
        %1552 = vmatmul.mubr.f32.gmra.mrb[0].mxu0 %v538
        %v1553 = vpop.f32.mrb[0].mxu0
        %v1554 = vadd.f32 %v1459, %v1553
        %v1555 = vpop.f32.mrb[0].mxu0
        %v1556 = vadd.f32 %v1461, %v1555
        %1557 = vmatprep.mubr.f32.mxu0 0.0
        %1558 = vmatmul.mubr.f32.gmra.mrb[0].mxu0 %v541
        %v1559 = vpop.f32.mrb[0].mxu0
        %v1560 = vadd.f32 %v1465, %v1559
        %v1561 = vpop.f32.mrb[0].mxu0
        %v1562 = vadd.f32 %v1467, %v1561
        %1563 = vmatprep.mubr.f32.mxu0 0.0
        %1564 = vmatmul.mubr.f32.gmra.mrb[0].mxu0 %v544
        %v1565 = vpop.f32.mrb[0].mxu0
        %v1566 = vadd.f32 %v1471, %v1565
        %v1567 = vpop.f32.mrb[0].mxu0
        %v1568 = vadd.f32 %v1473, %v1567
        %1569 = vmatprep.mubr.f32.mxu0 0.0
        %1570 = vmatmul.mubr.f32.gmra.mrb[0].mxu0 %v547
        %v1571 = vpop.f32.mrb[0].mxu0
        %v1572 = vadd.f32 %v1477, %v1571
        %v1573 = vpop.f32.mrb[0].mxu0
        %v1574 = vadd.f32 %v1479, %v1573
        %1575 = vdwg.mxu0
        %1576 = vmatprep.subr.mxu0 %v555
        %1577 = vmatpush1.msra.mxu0 %v554
        %1578 = vmatprep.subr.mxu0 %v563
        %1579 = vmatpush1.msra.mxu0 %v562
        %1580 = vmatprep.subr.mxu0 %v571
        %1581 = vmatpush1.msra.mxu0 %v570
        %1582 = vmatprep.subr.mxu0 %v579
        %1583 = vmatpush1.msra.mxu0 %v578
        %1584 = vmatprep.subr.mxu0 %v587
        %1585 = vmatpush1.msra.mxu0 %v586
        %1586 = vmatprep.subr.mxu0 %v595
        %1587 = vmatpush1.msra.mxu0 %v594
        %1588 = vmatprep.subr.mxu0 %v603
        %1589 = vmatpush1.msra.mxu0 %v602
        %1590 = vmatprep.subr.mxu0 %v611
        %1591 = vmatpush1.msra.mxu0 %v610
        %1592 = vmatprep.subr.mxu0 %v619
        %1593 = vmatpush1.msra.mxu0 %v618
        %1594 = vmatprep.subr.mxu0 %v627
        %1595 = vmatpush1.msra.mxu0 %v626
        %1596 = vmatprep.subr.mxu0 %v635
        %1597 = vmatpush1.msra.mxu0 %v634
        %1598 = vmatprep.subr.mxu0 %v643
        %1599 = vmatpush1.msra.mxu0 %v642
        %1600 = vmatprep.subr.mxu0 %v651
        %1601 = vmatpush1.msra.mxu0 %v650
        %1602 = vmatprep.subr.mxu0 %v659
        %1603 = vmatpush1.msra.mxu0 %v658
        %1604 = vmatprep.subr.mxu0 %v667
        %1605 = vmatpush1.msra.mxu0 %v666
        %1606 = vmatprep.subr.mxu0 %v675
        %1607 = vmatpush1.msra.mxu0 %v674
        %1608 = vmatprep.subr.mxu0 %v683
        %1609 = vmatpush1.msra.mxu0 %v682
        %1610 = vmatprep.subr.mxu0 %v691
        %1611 = vmatpush1.msra.mxu0 %v690
        %1612 = vmatprep.subr.mxu0 %v699
        %1613 = vmatpush1.msra.mxu0 %v698
        %1614 = vmatprep.subr.mxu0 %v707
        %1615 = vmatpush1.msra.mxu0 %v706
        %1616 = vmatprep.subr.mxu0 %v715
        %1617 = vmatpush1.msra.mxu0 %v714
        %1618 = vmatprep.subr.mxu0 %v723
        %1619 = vmatpush1.msra.mxu0 %v722
        %1620 = vmatprep.subr.mxu0 %v731
        %1621 = vmatpush1.msra.mxu0 %v730
        %1622 = vmatprep.subr.mxu0 %v739
        %1623 = vmatpush1.msra.mxu0 %v738
        %1624 = vmatprep.subr.mxu0 %v747
        %1625 = vmatpush1.msra.mxu0 %v746
        %1626 = vmatprep.subr.mxu0 %v755
        %1627 = vmatpush1.msra.mxu0 %v754
        %1628 = vmatprep.subr.mxu0 %v763
        %1629 = vmatpush1.msra.mxu0 %v762
        %1630 = vmatprep.subr.mxu0 %v771
        %1631 = vmatpush1.msra.mxu0 %v770
        %1632 = vmatprep.subr.mxu0 %v779
        %1633 = vmatpush1.msra.mxu0 %v778
        %1634 = vmatprep.subr.mxu0 %v787
        %1635 = vmatpush1.msra.mxu0 %v786
        %1636 = vmatprep.subr.mxu0 %v795
        %1637 = vmatpush1.msra.mxu0 %v794
        %1638 = vmatprep.subr.mxu0 %v803
        %1639 = vmatpush1.msra.mxu0 %v802
        %1640 = vmatprep.mubr.f32.mxu0 %v534
        %1641 = vmatmul.mubr.f32.gmra.mrb[0].mxu0 %v533
        %v1642 = vpop.f32.mrb[0].mxu0
        %v1643 = vadd.f32 %v1001, %v1642
        %v1644 = vpop.f32.mrb[0].mxu0
        %v1645 = vadd.f32 %v1005, %v1644
        %1646 = vmatprep.mubr.f32.mxu0 %v537
        %1647 = vmatmul.mubr.f32.gmra.mrb[0].mxu0 %v536
        %v1648 = vpop.f32.mrb[0].mxu0
        %v1649 = vadd.f32 %v1001, %v1648
        %v1650 = vpop.f32.mrb[0].mxu0
        %v1651 = vadd.f32 %v1005, %v1650
        %1652 = vmatprep.mubr.f32.mxu0 %v540
        %1653 = vmatmul.mubr.f32.gmra.mrb[0].mxu0 %v539
        %v1654 = vpop.f32.mrb[0].mxu0
        %v1655 = vadd.f32 %v1001, %v1654
        %v1656 = vpop.f32.mrb[0].mxu0
        %v1657 = vadd.f32 %v1005, %v1656
        %1658 = vmatprep.mubr.f32.mxu0 %v543
        %1659 = vmatmul.mubr.f32.gmra.mrb[0].mxu0 %v542
        %v1660 = vpop.f32.mrb[0].mxu0
        %v1661 = vadd.f32 %v1001, %v1660
        %v1662 = vpop.f32.mrb[0].mxu0
        %v1663 = vadd.f32 %v1005, %v1662
        %1664 = vmatprep.mubr.f32.mxu0 %v546
        %1665 = vmatmul.mubr.f32.gmra.mrb[0].mxu0 %v545
        %v1666 = vpop.f32.mrb[0].mxu0
        %v1667 = vadd.f32 %v1001, %v1666
        %v1668 = vpop.f32.mrb[0].mxu0
        %v1669 = vadd.f32 %v1005, %v1668
        %1670 = vdwg.mxu0
        %1671 = vmatprep.subr.mxu0 %v811
        %1672 = vmatpush1.msra.mxu0 %v810
        %1673 = vmatprep.subr.mxu0 %v819
        %1674 = vmatpush1.msra.mxu0 %v818
        %1675 = vmatprep.subr.mxu0 %v827
        %1676 = vmatpush1.msra.mxu0 %v826
        %1677 = vmatprep.subr.mxu0 %v835
        %1678 = vmatpush1.msra.mxu0 %v834
        %1679 = vmatprep.subr.mxu0 %v843
        %1680 = vmatpush1.msra.mxu0 %v842
        %1681 = vmatprep.subr.mxu0 %v851
        %1682 = vmatpush1.msra.mxu0 %v850
        %1683 = vmatprep.subr.mxu0 %v859
        %1684 = vmatpush1.msra.mxu0 %v858
        %1685 = vmatprep.subr.mxu0 %v867
        %1686 = vmatpush1.msra.mxu0 %v866
        %1687 = vmatprep.subr.mxu0 %v875
        %1688 = vmatpush1.msra.mxu0 %v874
        %1689 = vmatprep.subr.mxu0 %v883
        %1690 = vmatpush1.msra.mxu0 %v882
        %1691 = vmatprep.subr.mxu0 %v891
        %1692 = vmatpush1.msra.mxu0 %v890
        %1693 = vmatprep.subr.mxu0 %v899
        %1694 = vmatpush1.msra.mxu0 %v898
        %1695 = vmatprep.subr.mxu0 %v907
        %1696 = vmatpush1.msra.mxu0 %v906
        %1697 = vmatprep.subr.mxu0 %v915
        %1698 = vmatpush1.msra.mxu0 %v914
        %1699 = vmatprep.subr.mxu0 %v923
        %1700 = vmatpush1.msra.mxu0 %v922
        %1701 = vmatprep.subr.mxu0 %v931
        %1702 = vmatpush1.msra.mxu0 %v930
        %1703 = vmatprep.subr.mxu0 0.0
        %1704 = vmatpush1.msra.mxu0 0.0
        %1705 = vmatprep.subr.mxu0 0.0
        %1706 = vmatpush1.msra.mxu0 0.0
        %1707 = vmatprep.subr.mxu0 0.0
        %1708 = vmatpush1.msra.mxu0 0.0
        %1709 = vmatprep.subr.mxu0 0.0
        %1710 = vmatpush1.msra.mxu0 0.0
        %1711 = vmatprep.subr.mxu0 0.0
        %1712 = vmatpush1.msra.mxu0 0.0
        %1713 = vmatprep.subr.mxu0 0.0
        %1714 = vmatpush1.msra.mxu0 0.0
        %1715 = vmatprep.subr.mxu0 0.0
        %1716 = vmatpush1.msra.mxu0 0.0
        %1717 = vmatprep.subr.mxu0 0.0
        %1718 = vmatpush1.msra.mxu0 0.0
        %1719 = vmatprep.subr.mxu0 0.0
        %1720 = vmatpush1.msra.mxu0 0.0
        %1721 = vmatprep.subr.mxu0 0.0
        %1722 = vmatpush1.msra.mxu0 0.0
        %1723 = vmatprep.subr.mxu0 0.0
        %1724 = vmatpush1.msra.mxu0 0.0
        %1725 = vmatprep.subr.mxu0 0.0
        %1726 = vmatpush1.msra.mxu0 0.0
        %1727 = vmatprep.subr.mxu0 0.0
        %1728 = vmatpush1.msra.mxu0 0.0
        %1729 = vmatprep.subr.mxu0 0.0
        %1730 = vmatpush1.msra.mxu0 0.0
        %1731 = vmatprep.subr.mxu0 0.0
        %1732 = vmatpush1.msra.mxu0 0.0
        %1733 = vmatprep.subr.mxu0 0.0
        %1734 = vmatpush1.msra.mxu0 0.0
        %1735 = vmatprep.mubr.f32.mxu0 0.0
        %1736 = vmatmul.mubr.f32.gmra.mrb[0].mxu0 %v535
        %v1737 = vpop.f32.mrb[0].mxu0
        %v1738 = vadd.f32 %v1643, %v1737
        %v1739 = vpop.f32.mrb[0].mxu0
        %v1740 = vadd.f32 %v1645, %v1739
        %1741 = vmatprep.mubr.f32.mxu0 0.0
        %1742 = vmatmul.mubr.f32.gmra.mrb[0].mxu0 %v538
        %v1743 = vpop.f32.mrb[0].mxu0
        %v1744 = vadd.f32 %v1649, %v1743
        %v1745 = vpop.f32.mrb[0].mxu0
        %v1746 = vadd.f32 %v1651, %v1745
        %1747 = vmatprep.mubr.f32.mxu0 0.0
        %1748 = vmatmul.mubr.f32.gmra.mrb[0].mxu0 %v541
        %v1749 = vpop.f32.mrb[0].mxu0
        %v1750 = vadd.f32 %v1655, %v1749
        %v1751 = vpop.f32.mrb[0].mxu0
        %v1752 = vadd.f32 %v1657, %v1751
        %1753 = vmatprep.mubr.f32.mxu0 0.0
        %1754 = vmatmul.mubr.f32.gmra.mrb[0].mxu0 %v544
        %v1755 = vpop.f32.mrb[0].mxu0
        %v1756 = vadd.f32 %v1661, %v1755
        %v1757 = vpop.f32.mrb[0].mxu0
        %v1758 = vadd.f32 %v1663, %v1757
        %1759 = vmatprep.mubr.f32.mxu0 0.0
        %1760 = vmatmul.mubr.f32.gmra.mrb[0].mxu0 %v547
        %v1761 = vpop.f32.mrb[0].mxu0
        %v1762 = vadd.f32 %v1667, %v1761
        %v1763 = vpop.f32.mrb[0].mxu0
        %v1764 = vadd.f32 %v1669, %v1763
        %1765 = vdwg.mxu0
        %v1766 = vld [vmem:[%s448] sm:$0xff]
        %v1767 = vld [vmem:[%s448 + $0x8] sm:$0xf]
        %vm1770 = vcmask 1043456
        %v1771 = vrot.slane %v456, 4
        %v1772 = vrot.slane %v460, 4
        %v1773 = vsel %vm1770, %v1771, %v1772
        %1776 = vmatprep.subr.mxu0 0.0
        %1777 = vmatpush1.xpose.msra.mxu0 %v1168
        %1778 = vmatprep.subr.mxu0 0.0
        %1779 = vmatpush1.xpose.msra.mxu0 %v1174
        %1780 = vmatprep.subr.mxu0 0.0
        %1781 = vmatpush1.xpose.msra.mxu0 %v1180
        %1782 = vmatprep.subr.mxu0 0.0
        %1783 = vmatpush1.xpose.msra.mxu0 %v1186
        %1784 = vmatprep.subr.mxu0 0.0
        %1785 = vmatpush1.xpose.msra.mxu0 %v1192
        %1786 = vmatprep.subr.mxu0 0.0
        %1787 = vmatpush1.xpose.msra.mxu0 0.0
        %1788 = vmatprep.subr.mxu0 0.0
        %1789 = vmatpush1.xpose.msra.mxu0 0.0
        %1790 = vmatprep.subr.mxu0 0.0
        %1791 = vmatpush1.xpose.msra.mxu0 0.0
        %1792 = vmatprep.subr.mxu0 0.0
        %1793 = vmatpush1.xpose.msra.mxu0 0.0
        %1794 = vmatprep.subr.mxu0 0.0
        %1795 = vmatpush1.xpose.msra.mxu0 0.0
        %1796 = vmatprep.subr.mxu0 0.0
        %1797 = vmatpush1.xpose.msra.mxu0 0.0
        %1798 = vmatprep.subr.mxu0 0.0
        %1799 = vmatpush1.xpose.msra.mxu0 0.0
        %1800 = vmatprep.subr.mxu0 0.0
        %1801 = vmatpush1.xpose.msra.mxu0 0.0
        %1802 = vmatprep.subr.mxu0 0.0
        %1803 = vmatpush1.xpose.msra.mxu0 0.0
        %1804 = vmatprep.subr.mxu0 0.0
        %1805 = vmatpush1.xpose.msra.mxu0 0.0
        %1806 = vmatprep.subr.mxu0 0.0
        %1807 = vmatpush1.xpose.msra.mxu0 0.0
        %1808 = vmatprep.subr.mxu0 0.0
        %1809 = vmatpush1.xpose.msra.mxu0 0.0
        %1810 = vmatprep.subr.mxu0 0.0
        %1811 = vmatpush1.xpose.msra.mxu0 0.0
        %1812 = vmatprep.subr.mxu0 0.0
        %1813 = vmatpush1.xpose.msra.mxu0 0.0
        %1814 = vmatprep.subr.mxu0 0.0
        %1815 = vmatpush1.xpose.msra.mxu0 0.0
        %1816 = vmatprep.subr.mxu0 0.0
        %1817 = vmatpush1.xpose.msra.mxu0 0.0
        %1818 = vmatprep.subr.mxu0 0.0
        %1819 = vmatpush1.xpose.msra.mxu0 0.0
        %1820 = vmatprep.subr.mxu0 0.0
        %1821 = vmatpush1.xpose.msra.mxu0 0.0
        %1822 = vmatprep.subr.mxu0 0.0
        %1823 = vmatpush1.xpose.msra.mxu0 0.0
        %1824 = vmatprep.subr.mxu0 0.0
        %1825 = vmatpush1.xpose.msra.mxu0 0.0
        %1826 = vmatprep.subr.mxu0 0.0
        %1827 = vmatpush1.xpose.msra.mxu0 0.0
        %1828 = vmatprep.subr.mxu0 0.0
        %1829 = vmatpush1.xpose.msra.mxu0 0.0
        %1830 = vmatprep.subr.mxu0 0.0
        %1831 = vmatpush1.xpose.msra.mxu0 0.0
        %1832 = vmatprep.subr.mxu0 0.0
        %1833 = vmatpush1.xpose.msra.mxu0 0.0
        %1834 = vmatprep.subr.mxu0 0.0
        %1835 = vmatpush1.xpose.msra.mxu0 0.0
        %1836 = vmatprep.subr.mxu0 0.0
        %1837 = vmatpush1.xpose.msra.mxu0 0.0
        %1838 = vmatprep.subr.mxu0 0.0
        %1839 = vmatpush1.xpose.msra.mxu0 0.0
        %1840 = vmatprep.mubr.f32.mxu0 0.0
        %1841 = vmatmul.mubr.f32.gmra.mrb[0].mxu0 %v1773
        %v1842 = vpop.f32.mrb[0].mxu0
        %v1843 = vadd.f32 0.0, %v1842
        %v1844 = vpop.f32.mrb[0].mxu0
        %1845 = vmatprep.mubr.f32.mxu0 0.0
        %1846 = vmatmul.mubr.f32.gmra.mrb[0].mxu0 %v1772
        %v1847 = vpop.f32.mrb[0].mxu0
        %v1848 = vadd.f32 0.0, %v1847
        %v1849 = vpop.f32.mrb[0].mxu0
        %1850 = vdwg.mxu0
        %v1851 = vmul.f32 %v1843, 0.11547005
        %v1852 = vmul.f32 %v1848, 0.11547005
        %v1853 = vadd.f32 %v1851, %v1766
        %v1854 = vadd.f32 %v1852, %v1767
        %vm1855 = vcmask 293888
        %v1856 = vsel %vm1855, %v1853, -inf
        %1857 = vmax.xlane.f32.xlu0 %v1856
        %v1858 = vpop.xlane.xlu0 %1857
        %vm1859 = vcmask 289792
        %v1860 = vsel %vm1859, %v1854, -inf
        %1861 = vmax.xlane.f32.xlu0 %v1860
        %v1862 = vpop.xlane.xlu0 %1861
        %v1863 = vsub.f32 %v1853, %v1858
        %v1864 = vsub.f32 %v1854, %v1862
        %v1865 = vmul.f32 %v1863, 1.442695
        %v1866 = vpow.pop %v1865
        %v1867 = vmul.f32 %v1864, 1.442695
        %v1868 = vpow.pop %v1867
        %v1869 = vsel %vm1855, %v1866, 0.0
        %1870 = vadd.xlane.f32.xlu0 %v1869
        %v1871 = vpop.xlane.xlu0 %1870
        %v1872 = vsel %vm1859, %v1868, 0.0
        %1873 = vadd.xlane.f32.xlu0 %v1872
        %v1874 = vpop.xlane.xlu0 %1873
        %v1875 = vrcp.pop %v1871
        %v1876 = vmul.f32 %v1866, %v1875
        %v1877 = vrcp.pop %v1874
        %v1878 = vmul.f32 %v1868, %v1877
        %v1880 = vsel %vm1855, %v1876, 0
        %v1883 = vsel %vm1855, %v1878, 0
        %v1886 = vsel %vm1770, %v1572, 0
        %1888 = vmatprep.subr.mxu0 0.0
        %1889 = vmatpush1.msra.mxu0 %v1548
        %1890 = vmatprep.subr.mxu0 0.0
        %1891 = vmatpush1.msra.mxu0 %v1554
        %1892 = vmatprep.subr.mxu0 0.0
        %1893 = vmatpush1.msra.mxu0 %v1560
        %1894 = vmatprep.subr.mxu0 0.0
        %1895 = vmatpush1.msra.mxu0 %v1566
        %1896 = vmatprep.subr.mxu0 0.0
        %1897 = vmatpush1.msra.mxu0 %v1886
        %1898 = vmatprep.subr.mxu0 0.0
        %1899 = vmatpush1.msra.mxu0 0.0
        %1900 = vmatprep.subr.mxu0 0.0
        %1901 = vmatpush1.msra.mxu0 0.0
        %1902 = vmatprep.subr.mxu0 0.0
        %1903 = vmatpush1.msra.mxu0 0.0
        %1904 = vmatprep.subr.mxu0 0.0
        %1905 = vmatpush1.msra.mxu0 0.0
        %1906 = vmatprep.subr.mxu0 0.0
        %1907 = vmatpush1.msra.mxu0 0.0
        %1908 = vmatprep.subr.mxu0 0.0
        %1909 = vmatpush1.msra.mxu0 0.0
        %1910 = vmatprep.subr.mxu0 0.0
        %1911 = vmatpush1.msra.mxu0 0.0
        %1912 = vmatprep.subr.mxu0 0.0
        %1913 = vmatpush1.msra.mxu0 0.0
        %1914 = vmatprep.subr.mxu0 0.0
        %1915 = vmatpush1.msra.mxu0 0.0
        %1916 = vmatprep.subr.mxu0 0.0
        %1917 = vmatpush1.msra.mxu0 0.0
        %1918 = vmatprep.subr.mxu0 0.0
        %1919 = vmatpush1.msra.mxu0 0.0
        %1920 = vmatprep.subr.mxu0 0.0
        %1921 = vmatpush1.msra.mxu0 0.0
        %1922 = vmatprep.subr.mxu0 0.0
        %1923 = vmatpush1.msra.mxu0 0.0
        %1924 = vmatprep.subr.mxu0 0.0
        %1925 = vmatpush1.msra.mxu0 0.0
        %1926 = vmatprep.subr.mxu0 0.0
        %1927 = vmatpush1.msra.mxu0 0.0
        %1928 = vmatprep.subr.mxu0 0.0
        %1929 = vmatpush1.msra.mxu0 0.0
        %1930 = vmatprep.subr.mxu0 0.0
        %1931 = vmatpush1.msra.mxu0 0.0
        %1932 = vmatprep.subr.mxu0 0.0
        %1933 = vmatpush1.msra.mxu0 0.0
        %1934 = vmatprep.subr.mxu0 0.0
        %1935 = vmatpush1.msra.mxu0 0.0
        %1936 = vmatprep.subr.mxu0 0.0
        %1937 = vmatpush1.msra.mxu0 0.0
        %1938 = vmatprep.subr.mxu0 0.0
        %1939 = vmatpush1.msra.mxu0 0.0
        %1940 = vmatprep.subr.mxu0 0.0
        %1941 = vmatpush1.msra.mxu0 0.0
        %1942 = vmatprep.subr.mxu0 0.0
        %1943 = vmatpush1.msra.mxu0 0.0
        %1944 = vmatprep.subr.mxu0 0.0
        %1945 = vmatpush1.msra.mxu0 0.0
        %1946 = vmatprep.subr.mxu0 0.0
        %1947 = vmatpush1.msra.mxu0 0.0
        %1948 = vmatprep.subr.mxu0 0.0
        %1949 = vmatpush1.msra.mxu0 0.0
        %1950 = vmatprep.subr.mxu0 0.0
        %1951 = vmatpush1.msra.mxu0 0.0
        %1952 = vmatprep.mubr.f32.mxu0 0.0
        %1953 = vmatmul.mubr.f32.gmra.mrb[0].mxu0 %v1880
        %v1954 = vpop.f32.mrb[0].mxu0
        %v1955 = vadd.f32 0.0, %v1954
        %v1956 = vpop.f32.mrb[0].mxu0
        %1957 = vmatprep.mubr.f32.mxu0 0.0
        %1958 = vmatmul.mubr.f32.gmra.mrb[0].mxu0 %v1883
        %v1959 = vpop.f32.mrb[0].mxu0
        %v1960 = vadd.f32 0.0, %v1959
        %v1961 = vpop.f32.mrb[0].mxu0
        %1962 = vdwg.mxu0
        %v1965 = vrot.slane %v457, 4
        %v1966 = vrot.slane %v461, 4
        %v1967 = vsel %vm1770, %v1965, %v1966
        %1970 = vmatprep.subr.mxu0 0.0
        %1971 = vmatpush1.xpose.msra.mxu0 %v1170
        %1972 = vmatprep.subr.mxu0 0.0
        %1973 = vmatpush1.xpose.msra.mxu0 %v1176
        %1974 = vmatprep.subr.mxu0 0.0
        %1975 = vmatpush1.xpose.msra.mxu0 %v1182
        %1976 = vmatprep.subr.mxu0 0.0
        %1977 = vmatpush1.xpose.msra.mxu0 %v1188
        %1978 = vmatprep.subr.mxu0 0.0
        %1979 = vmatpush1.xpose.msra.mxu0 %v1194
        %1980 = vmatprep.subr.mxu0 0.0
        %1981 = vmatpush1.xpose.msra.mxu0 0.0
        %1982 = vmatprep.subr.mxu0 0.0
        %1983 = vmatpush1.xpose.msra.mxu0 0.0
        %1984 = vmatprep.subr.mxu0 0.0
        %1985 = vmatpush1.xpose.msra.mxu0 0.0
        %1986 = vmatprep.subr.mxu0 0.0
        %1987 = vmatpush1.xpose.msra.mxu0 0.0
        %1988 = vmatprep.subr.mxu0 0.0
        %1989 = vmatpush1.xpose.msra.mxu0 0.0
        %1990 = vmatprep.subr.mxu0 0.0
        %1991 = vmatpush1.xpose.msra.mxu0 0.0
        %1992 = vmatprep.subr.mxu0 0.0
        %1993 = vmatpush1.xpose.msra.mxu0 0.0
        %1994 = vmatprep.subr.mxu0 0.0
        %1995 = vmatpush1.xpose.msra.mxu0 0.0
        %1996 = vmatprep.subr.mxu0 0.0
        %1997 = vmatpush1.xpose.msra.mxu0 0.0
        %1998 = vmatprep.subr.mxu0 0.0
        %1999 = vmatpush1.xpose.msra.mxu0 0.0
        %2000 = vmatprep.subr.mxu0 0.0
        %2001 = vmatpush1.xpose.msra.mxu0 0.0
        %2002 = vmatprep.subr.mxu0 0.0
        %2003 = vmatpush1.xpose.msra.mxu0 0.0
        %2004 = vmatprep.subr.mxu0 0.0
        %2005 = vmatpush1.xpose.msra.mxu0 0.0
        %2006 = vmatprep.subr.mxu0 0.0
        %2007 = vmatpush1.xpose.msra.mxu0 0.0
        %2008 = vmatprep.subr.mxu0 0.0
        %2009 = vmatpush1.xpose.msra.mxu0 0.0
        %2010 = vmatprep.subr.mxu0 0.0
        %2011 = vmatpush1.xpose.msra.mxu0 0.0
        %2012 = vmatprep.subr.mxu0 0.0
        %2013 = vmatpush1.xpose.msra.mxu0 0.0
        %2014 = vmatprep.subr.mxu0 0.0
        %2015 = vmatpush1.xpose.msra.mxu0 0.0
        %2016 = vmatprep.subr.mxu0 0.0
        %2017 = vmatpush1.xpose.msra.mxu0 0.0
        %2018 = vmatprep.subr.mxu0 0.0
        %2019 = vmatpush1.xpose.msra.mxu0 0.0
        %2020 = vmatprep.subr.mxu0 0.0
        %2021 = vmatpush1.xpose.msra.mxu0 0.0
        %2022 = vmatprep.subr.mxu0 0.0
        %2023 = vmatpush1.xpose.msra.mxu0 0.0
        %2024 = vmatprep.subr.mxu0 0.0
        %2025 = vmatpush1.xpose.msra.mxu0 0.0
        %2026 = vmatprep.subr.mxu0 0.0
        %2027 = vmatpush1.xpose.msra.mxu0 0.0
        %2028 = vmatprep.subr.mxu0 0.0
        %2029 = vmatpush1.xpose.msra.mxu0 0.0
        %2030 = vmatprep.subr.mxu0 0.0
        %2031 = vmatpush1.xpose.msra.mxu0 0.0
        %2032 = vmatprep.subr.mxu0 0.0
        %2033 = vmatpush1.xpose.msra.mxu0 0.0
        %2034 = vmatprep.mubr.f32.mxu0 0.0
        %2035 = vmatmul.mubr.f32.gmra.mrb[0].mxu0 %v1967
        %v2036 = vpop.f32.mrb[0].mxu0
        %v2037 = vadd.f32 0.0, %v2036
        %v2038 = vpop.f32.mrb[0].mxu0
        %2039 = vmatprep.mubr.f32.mxu0 0.0
        %2040 = vmatmul.mubr.f32.gmra.mrb[0].mxu0 %v1966
        %v2041 = vpop.f32.mrb[0].mxu0
        %v2042 = vadd.f32 0.0, %v2041
        %v2043 = vpop.f32.mrb[0].mxu0
        %2044 = vdwg.mxu0
        %v2045 = vmul.f32 %v2037, 0.11547005
        %v2046 = vmul.f32 %v2042, 0.11547005
        %v2047 = vadd.f32 %v2045, %v1766
        %v2048 = vadd.f32 %v2046, %v1767
        %v2049 = vsel %vm1855, %v2047, -inf
        %2050 = vmax.xlane.f32.xlu0 %v2049
        %v2051 = vpop.xlane.xlu0 %2050
        %v2052 = vsel %vm1859, %v2048, -inf
        %2053 = vmax.xlane.f32.xlu0 %v2052
        %v2054 = vpop.xlane.xlu0 %2053
        %v2055 = vsub.f32 %v2047, %v2051
        %v2056 = vsub.f32 %v2048, %v2054
        %v2057 = vmul.f32 %v2055, 1.442695
        %v2058 = vpow.pop %v2057
        %v2059 = vmul.f32 %v2056, 1.442695
        %v2060 = vpow.pop %v2059
        %v2061 = vsel %vm1855, %v2058, 0.0
        %2062 = vadd.xlane.f32.xlu0 %v2061
        %v2063 = vpop.xlane.xlu0 %2062
        %v2064 = vsel %vm1859, %v2060, 0.0
        %2065 = vadd.xlane.f32.xlu0 %v2064
        %v2066 = vpop.xlane.xlu0 %2065
        %v2067 = vrcp.pop %v2063
        %v2068 = vmul.f32 %v2058, %v2067
        %v2069 = vrcp.pop %v2066
        %v2070 = vmul.f32 %v2060, %v2069
        %v2072 = vsel %vm1855, %v2068, 0
        %v2075 = vsel %vm1855, %v2070, 0
        %v2078 = vsel %vm1770, %v1574, 0
        %2080 = vmatprep.subr.mxu0 0.0
        %2081 = vmatpush1.msra.mxu0 %v1550
        %2082 = vmatprep.subr.mxu0 0.0
        %2083 = vmatpush1.msra.mxu0 %v1556
        %2084 = vmatprep.subr.mxu0 0.0
        %2085 = vmatpush1.msra.mxu0 %v1562
        %2086 = vmatprep.subr.mxu0 0.0
        %2087 = vmatpush1.msra.mxu0 %v1568
        %2088 = vmatprep.subr.mxu0 0.0
        %2089 = vmatpush1.msra.mxu0 %v2078
        %2090 = vmatprep.subr.mxu0 0.0
        %2091 = vmatpush1.msra.mxu0 0.0
        %2092 = vmatprep.subr.mxu0 0.0
        %2093 = vmatpush1.msra.mxu0 0.0
        %2094 = vmatprep.subr.mxu0 0.0
        %2095 = vmatpush1.msra.mxu0 0.0
        %2096 = vmatprep.subr.mxu0 0.0
        %2097 = vmatpush1.msra.mxu0 0.0
        %2098 = vmatprep.subr.mxu0 0.0
        %2099 = vmatpush1.msra.mxu0 0.0
        %2100 = vmatprep.subr.mxu0 0.0
        %2101 = vmatpush1.msra.mxu0 0.0
        %2102 = vmatprep.subr.mxu0 0.0
        %2103 = vmatpush1.msra.mxu0 0.0
        %2104 = vmatprep.subr.mxu0 0.0
        %2105 = vmatpush1.msra.mxu0 0.0
        %2106 = vmatprep.subr.mxu0 0.0
        %2107 = vmatpush1.msra.mxu0 0.0
        %2108 = vmatprep.subr.mxu0 0.0
        %2109 = vmatpush1.msra.mxu0 0.0
        %2110 = vmatprep.subr.mxu0 0.0
        %2111 = vmatpush1.msra.mxu0 0.0
        %2112 = vmatprep.subr.mxu0 0.0
        %2113 = vmatpush1.msra.mxu0 0.0
        %2114 = vmatprep.subr.mxu0 0.0
        %2115 = vmatpush1.msra.mxu0 0.0
        %2116 = vmatprep.subr.mxu0 0.0
        %2117 = vmatpush1.msra.mxu0 0.0
        %2118 = vmatprep.subr.mxu0 0.0
        %2119 = vmatpush1.msra.mxu0 0.0
        %2120 = vmatprep.subr.mxu0 0.0
        %2121 = vmatpush1.msra.mxu0 0.0
        %2122 = vmatprep.subr.mxu0 0.0
        %2123 = vmatpush1.msra.mxu0 0.0
        %2124 = vmatprep.subr.mxu0 0.0
        %2125 = vmatpush1.msra.mxu0 0.0
        %2126 = vmatprep.subr.mxu0 0.0
        %2127 = vmatpush1.msra.mxu0 0.0
        %2128 = vmatprep.subr.mxu0 0.0
        %2129 = vmatpush1.msra.mxu0 0.0
        %2130 = vmatprep.subr.mxu0 0.0
        %2131 = vmatpush1.msra.mxu0 0.0
        %2132 = vmatprep.subr.mxu0 0.0
        %2133 = vmatpush1.msra.mxu0 0.0
        %2134 = vmatprep.subr.mxu0 0.0
        %2135 = vmatpush1.msra.mxu0 0.0
        %2136 = vmatprep.subr.mxu0 0.0
        %2137 = vmatpush1.msra.mxu0 0.0
        %2138 = vmatprep.subr.mxu0 0.0
        %2139 = vmatpush1.msra.mxu0 0.0
        %2140 = vmatprep.subr.mxu0 0.0
        %2141 = vmatpush1.msra.mxu0 0.0
        %2142 = vmatprep.subr.mxu0 0.0
        %2143 = vmatpush1.msra.mxu0 0.0
        %2144 = vmatprep.mubr.f32.mxu0 0.0
        %2145 = vmatmul.mubr.f32.gmra.mrb[0].mxu0 %v2072
        %v2146 = vpop.f32.mrb[0].mxu0
        %v2147 = vadd.f32 0.0, %v2146
        %v2148 = vpop.f32.mrb[0].mxu0
        %2149 = vmatprep.mubr.f32.mxu0 0.0
        %2150 = vmatmul.mubr.f32.gmra.mrb[0].mxu0 %v2075
        %v2151 = vpop.f32.mrb[0].mxu0
        %v2152 = vadd.f32 0.0, %v2151
        %v2153 = vpop.f32.mrb[0].mxu0
        %2154 = vdwg.mxu0
        %v2157 = vrot.slane %v458, 4
        %v2158 = vrot.slane %v462, 4
        %v2159 = vsel %vm1770, %v2157, %v2158
        %2162 = vmatprep.subr.mxu0 0.0
        %2163 = vmatpush1.xpose.msra.mxu0 %v1358
        %2164 = vmatprep.subr.mxu0 0.0
        %2165 = vmatpush1.xpose.msra.mxu0 %v1364
        %2166 = vmatprep.subr.mxu0 0.0
        %2167 = vmatpush1.xpose.msra.mxu0 %v1370
        %2168 = vmatprep.subr.mxu0 0.0
        %2169 = vmatpush1.xpose.msra.mxu0 %v1376
        %2170 = vmatprep.subr.mxu0 0.0
        %2171 = vmatpush1.xpose.msra.mxu0 %v1382
        %2172 = vmatprep.subr.mxu0 0.0
        %2173 = vmatpush1.xpose.msra.mxu0 0.0
        %2174 = vmatprep.subr.mxu0 0.0
        %2175 = vmatpush1.xpose.msra.mxu0 0.0
        %2176 = vmatprep.subr.mxu0 0.0
        %2177 = vmatpush1.xpose.msra.mxu0 0.0
        %2178 = vmatprep.subr.mxu0 0.0
        %2179 = vmatpush1.xpose.msra.mxu0 0.0
        %2180 = vmatprep.subr.mxu0 0.0
        %2181 = vmatpush1.xpose.msra.mxu0 0.0
        %2182 = vmatprep.subr.mxu0 0.0
        %2183 = vmatpush1.xpose.msra.mxu0 0.0
        %2184 = vmatprep.subr.mxu0 0.0
        %2185 = vmatpush1.xpose.msra.mxu0 0.0
        %2186 = vmatprep.subr.mxu0 0.0
        %2187 = vmatpush1.xpose.msra.mxu0 0.0
        %2188 = vmatprep.subr.mxu0 0.0
        %2189 = vmatpush1.xpose.msra.mxu0 0.0
        %2190 = vmatprep.subr.mxu0 0.0
        %2191 = vmatpush1.xpose.msra.mxu0 0.0
        %2192 = vmatprep.subr.mxu0 0.0
        %2193 = vmatpush1.xpose.msra.mxu0 0.0
        %2194 = vmatprep.subr.mxu0 0.0
        %2195 = vmatpush1.xpose.msra.mxu0 0.0
        %2196 = vmatprep.subr.mxu0 0.0
        %2197 = vmatpush1.xpose.msra.mxu0 0.0
        %2198 = vmatprep.subr.mxu0 0.0
        %2199 = vmatpush1.xpose.msra.mxu0 0.0
        %2200 = vmatprep.subr.mxu0 0.0
        %2201 = vmatpush1.xpose.msra.mxu0 0.0
        %2202 = vmatprep.subr.mxu0 0.0
        %2203 = vmatpush1.xpose.msra.mxu0 0.0
        %2204 = vmatprep.subr.mxu0 0.0
        %2205 = vmatpush1.xpose.msra.mxu0 0.0
        %2206 = vmatprep.subr.mxu0 0.0
        %2207 = vmatpush1.xpose.msra.mxu0 0.0
        %2208 = vmatprep.subr.mxu0 0.0
        %2209 = vmatpush1.xpose.msra.mxu0 0.0
        %2210 = vmatprep.subr.mxu0 0.0
        %2211 = vmatpush1.xpose.msra.mxu0 0.0
        %2212 = vmatprep.subr.mxu0 0.0
        %2213 = vmatpush1.xpose.msra.mxu0 0.0
        %2214 = vmatprep.subr.mxu0 0.0
        %2215 = vmatpush1.xpose.msra.mxu0 0.0
        %2216 = vmatprep.subr.mxu0 0.0
        %2217 = vmatpush1.xpose.msra.mxu0 0.0
        %2218 = vmatprep.subr.mxu0 0.0
        %2219 = vmatpush1.xpose.msra.mxu0 0.0
        %2220 = vmatprep.subr.mxu0 0.0
        %2221 = vmatpush1.xpose.msra.mxu0 0.0
        %2222 = vmatprep.subr.mxu0 0.0
        %2223 = vmatpush1.xpose.msra.mxu0 0.0
        %2224 = vmatprep.subr.mxu0 0.0
        %2225 = vmatpush1.xpose.msra.mxu0 0.0
        %2226 = vmatprep.mubr.f32.mxu0 0.0
        %2227 = vmatmul.mubr.f32.gmra.mrb[0].mxu0 %v2159
        %v2228 = vpop.f32.mrb[0].mxu0
        %v2229 = vadd.f32 0.0, %v2228
        %v2230 = vpop.f32.mrb[0].mxu0
        %2231 = vmatprep.mubr.f32.mxu0 0.0
        %2232 = vmatmul.mubr.f32.gmra.mrb[0].mxu0 %v2158
        %v2233 = vpop.f32.mrb[0].mxu0
        %v2234 = vadd.f32 0.0, %v2233
        %v2235 = vpop.f32.mrb[0].mxu0
        %2236 = vdwg.mxu0
        %v2237 = vmul.f32 %v2229, 0.11547005
        %v2238 = vmul.f32 %v2234, 0.11547005
        %v2239 = vadd.f32 %v2237, %v1766
        %v2240 = vadd.f32 %v2238, %v1767
        %v2241 = vsel %vm1855, %v2239, -inf
        %2242 = vmax.xlane.f32.xlu0 %v2241
        %v2243 = vpop.xlane.xlu0 %2242
        %v2244 = vsel %vm1859, %v2240, -inf
        %2245 = vmax.xlane.f32.xlu0 %v2244
        %v2246 = vpop.xlane.xlu0 %2245
        %v2247 = vsub.f32 %v2239, %v2243
        %v2248 = vsub.f32 %v2240, %v2246
        %v2249 = vmul.f32 %v2247, 1.442695
        %v2250 = vpow.pop %v2249
        %v2251 = vmul.f32 %v2248, 1.442695
        %v2252 = vpow.pop %v2251
        %v2253 = vsel %vm1855, %v2250, 0.0
        %2254 = vadd.xlane.f32.xlu0 %v2253
        %v2255 = vpop.xlane.xlu0 %2254
        %v2256 = vsel %vm1859, %v2252, 0.0
        %2257 = vadd.xlane.f32.xlu0 %v2256
        %v2258 = vpop.xlane.xlu0 %2257
        %v2259 = vrcp.pop %v2255
        %v2260 = vmul.f32 %v2250, %v2259
        %v2261 = vrcp.pop %v2258
        %v2262 = vmul.f32 %v2252, %v2261
        %v2264 = vsel %vm1855, %v2260, 0
        %v2267 = vsel %vm1855, %v2262, 0
        %v2270 = vsel %vm1770, %v1762, 0
        %2272 = vmatprep.subr.mxu0 0.0
        %2273 = vmatpush1.msra.mxu0 %v1738
        %2274 = vmatprep.subr.mxu0 0.0
        %2275 = vmatpush1.msra.mxu0 %v1744
        %2276 = vmatprep.subr.mxu0 0.0
        %2277 = vmatpush1.msra.mxu0 %v1750
        %2278 = vmatprep.subr.mxu0 0.0
        %2279 = vmatpush1.msra.mxu0 %v1756
        %2280 = vmatprep.subr.mxu0 0.0
        %2281 = vmatpush1.msra.mxu0 %v2270
        %2282 = vmatprep.subr.mxu0 0.0
        %2283 = vmatpush1.msra.mxu0 0.0
        %2284 = vmatprep.subr.mxu0 0.0
        %2285 = vmatpush1.msra.mxu0 0.0
        %2286 = vmatprep.subr.mxu0 0.0
        %2287 = vmatpush1.msra.mxu0 0.0
        %2288 = vmatprep.subr.mxu0 0.0
        %2289 = vmatpush1.msra.mxu0 0.0
        %2290 = vmatprep.subr.mxu0 0.0
        %2291 = vmatpush1.msra.mxu0 0.0
        %2292 = vmatprep.subr.mxu0 0.0
        %2293 = vmatpush1.msra.mxu0 0.0
        %2294 = vmatprep.subr.mxu0 0.0
        %2295 = vmatpush1.msra.mxu0 0.0
        %2296 = vmatprep.subr.mxu0 0.0
        %2297 = vmatpush1.msra.mxu0 0.0
        %2298 = vmatprep.subr.mxu0 0.0
        %2299 = vmatpush1.msra.mxu0 0.0
        %2300 = vmatprep.subr.mxu0 0.0
        %2301 = vmatpush1.msra.mxu0 0.0
        %2302 = vmatprep.subr.mxu0 0.0
        %2303 = vmatpush1.msra.mxu0 0.0
        %2304 = vmatprep.subr.mxu0 0.0
        %2305 = vmatpush1.msra.mxu0 0.0
        %2306 = vmatprep.subr.mxu0 0.0
        %2307 = vmatpush1.msra.mxu0 0.0
        %2308 = vmatprep.subr.mxu0 0.0
        %2309 = vmatpush1.msra.mxu0 0.0
        %2310 = vmatprep.subr.mxu0 0.0
        %2311 = vmatpush1.msra.mxu0 0.0
        %2312 = vmatprep.subr.mxu0 0.0
        %2313 = vmatpush1.msra.mxu0 0.0
        %2314 = vmatprep.subr.mxu0 0.0
        %2315 = vmatpush1.msra.mxu0 0.0
        %2316 = vmatprep.subr.mxu0 0.0
        %2317 = vmatpush1.msra.mxu0 0.0
        %2318 = vmatprep.subr.mxu0 0.0
        %2319 = vmatpush1.msra.mxu0 0.0
        %2320 = vmatprep.subr.mxu0 0.0
        %2321 = vmatpush1.msra.mxu0 0.0
        %2322 = vmatprep.subr.mxu0 0.0
        %2323 = vmatpush1.msra.mxu0 0.0
        %2324 = vmatprep.subr.mxu0 0.0
        %2325 = vmatpush1.msra.mxu0 0.0
        %2326 = vmatprep.subr.mxu0 0.0
        %2327 = vmatpush1.msra.mxu0 0.0
        %2328 = vmatprep.subr.mxu0 0.0
        %2329 = vmatpush1.msra.mxu0 0.0
        %2330 = vmatprep.subr.mxu0 0.0
        %2331 = vmatpush1.msra.mxu0 0.0
        %2332 = vmatprep.subr.mxu0 0.0
        %2333 = vmatpush1.msra.mxu0 0.0
        %2334 = vmatprep.subr.mxu0 0.0
        %2335 = vmatpush1.msra.mxu0 0.0
        %2336 = vmatprep.mubr.f32.mxu0 0.0
        %2337 = vmatmul.mubr.f32.gmra.mrb[0].mxu0 %v2264
        %v2338 = vpop.f32.mrb[0].mxu0
        %v2339 = vadd.f32 0.0, %v2338
        %v2340 = vpop.f32.mrb[0].mxu0
        %2341 = vmatprep.mubr.f32.mxu0 0.0
        %2342 = vmatmul.mubr.f32.gmra.mrb[0].mxu0 %v2267
        %v2343 = vpop.f32.mrb[0].mxu0
        %v2344 = vadd.f32 0.0, %v2343
        %v2345 = vpop.f32.mrb[0].mxu0
        %2346 = vdwg.mxu0
        %v2349 = vrot.slane %v459, 4
        %v2350 = vrot.slane %v463, 4
        %v2351 = vsel %vm1770, %v2349, %v2350
        %2354 = vmatprep.subr.mxu0 0.0
        %2355 = vmatpush1.xpose.msra.mxu0 %v1360
        %2356 = vmatprep.subr.mxu0 0.0
        %2357 = vmatpush1.xpose.msra.mxu0 %v1366
        %2358 = vmatprep.subr.mxu0 0.0
        %2359 = vmatpush1.xpose.msra.mxu0 %v1372
        %2360 = vmatprep.subr.mxu0 0.0
        %2361 = vmatpush1.xpose.msra.mxu0 %v1378
        %2362 = vmatprep.subr.mxu0 0.0
        %2363 = vmatpush1.xpose.msra.mxu0 %v1384
        %2364 = vmatprep.subr.mxu0 0.0
        %2365 = vmatpush1.xpose.msra.mxu0 0.0
        %2366 = vmatprep.subr.mxu0 0.0
        %2367 = vmatpush1.xpose.msra.mxu0 0.0
        %2368 = vmatprep.subr.mxu0 0.0
        %2369 = vmatpush1.xpose.msra.mxu0 0.0
        %2370 = vmatprep.subr.mxu0 0.0
        %2371 = vmatpush1.xpose.msra.mxu0 0.0
        %2372 = vmatprep.subr.mxu0 0.0
        %2373 = vmatpush1.xpose.msra.mxu0 0.0
        %2374 = vmatprep.subr.mxu0 0.0
        %2375 = vmatpush1.xpose.msra.mxu0 0.0
        %2376 = vmatprep.subr.mxu0 0.0
        %2377 = vmatpush1.xpose.msra.mxu0 0.0
        %2378 = vmatprep.subr.mxu0 0.0
        %2379 = vmatpush1.xpose.msra.mxu0 0.0
        %2380 = vmatprep.subr.mxu0 0.0
        %2381 = vmatpush1.xpose.msra.mxu0 0.0
        %2382 = vmatprep.subr.mxu0 0.0
        %2383 = vmatpush1.xpose.msra.mxu0 0.0
        %2384 = vmatprep.subr.mxu0 0.0
        %2385 = vmatpush1.xpose.msra.mxu0 0.0
        %2386 = vmatprep.subr.mxu0 0.0
        %2387 = vmatpush1.xpose.msra.mxu0 0.0
        %2388 = vmatprep.subr.mxu0 0.0
        %2389 = vmatpush1.xpose.msra.mxu0 0.0
        %2390 = vmatprep.subr.mxu0 0.0
        %2391 = vmatpush1.xpose.msra.mxu0 0.0
        %2392 = vmatprep.subr.mxu0 0.0
        %2393 = vmatpush1.xpose.msra.mxu0 0.0
        %2394 = vmatprep.subr.mxu0 0.0
        %2395 = vmatpush1.xpose.msra.mxu0 0.0
        %2396 = vmatprep.subr.mxu0 0.0
        %2397 = vmatpush1.xpose.msra.mxu0 0.0
        %2398 = vmatprep.subr.mxu0 0.0
        %2399 = vmatpush1.xpose.msra.mxu0 0.0
        %2400 = vmatprep.subr.mxu0 0.0
        %2401 = vmatpush1.xpose.msra.mxu0 0.0
        %2402 = vmatprep.subr.mxu0 0.0
        %2403 = vmatpush1.xpose.msra.mxu0 0.0
        %2404 = vmatprep.subr.mxu0 0.0
        %2405 = vmatpush1.xpose.msra.mxu0 0.0
        %2406 = vmatprep.subr.mxu0 0.0
        %2407 = vmatpush1.xpose.msra.mxu0 0.0
        %2408 = vmatprep.subr.mxu0 0.0
        %2409 = vmatpush1.xpose.msra.mxu0 0.0
        %2410 = vmatprep.subr.mxu0 0.0
        %2411 = vmatpush1.xpose.msra.mxu0 0.0
        %2412 = vmatprep.subr.mxu0 0.0
        %2413 = vmatpush1.xpose.msra.mxu0 0.0
        %2414 = vmatprep.subr.mxu0 0.0
        %2415 = vmatpush1.xpose.msra.mxu0 0.0
        %2416 = vmatprep.subr.mxu0 0.0
        %2417 = vmatpush1.xpose.msra.mxu0 0.0
        %2418 = vmatprep.mubr.f32.mxu0 0.0
        %2419 = vmatmul.mubr.f32.gmra.mrb[0].mxu0 %v2351
        %v2420 = vpop.f32.mrb[0].mxu0
        %v2421 = vadd.f32 0.0, %v2420
        %v2422 = vpop.f32.mrb[0].mxu0
        %2423 = vmatprep.mubr.f32.mxu0 0.0
        %2424 = vmatmul.mubr.f32.gmra.mrb[0].mxu0 %v2350
        %v2425 = vpop.f32.mrb[0].mxu0
        %v2426 = vadd.f32 0.0, %v2425
        %v2427 = vpop.f32.mrb[0].mxu0
        %2428 = vdwg.mxu0
        %v2429 = vmul.f32 %v2421, 0.11547005
        %v2430 = vmul.f32 %v2426, 0.11547005
        %v2431 = vadd.f32 %v2429, %v1766
        %v2432 = vadd.f32 %v2430, %v1767
        %v2433 = vsel %vm1855, %v2431, -inf
        %2434 = vmax.xlane.f32.xlu0 %v2433
        %v2435 = vpop.xlane.xlu0 %2434
        %v2436 = vsel %vm1859, %v2432, -inf
        %2437 = vmax.xlane.f32.xlu0 %v2436
        %v2438 = vpop.xlane.xlu0 %2437
        %v2439 = vsub.f32 %v2431, %v2435
        %v2440 = vsub.f32 %v2432, %v2438
        %v2441 = vmul.f32 %v2439, 1.442695
        %v2442 = vpow.pop %v2441
        %v2443 = vmul.f32 %v2440, 1.442695
        %v2444 = vpow.pop %v2443
        %v2445 = vsel %vm1855, %v2442, 0.0
        %2446 = vadd.xlane.f32.xlu0 %v2445
        %v2447 = vpop.xlane.xlu0 %2446
        %v2448 = vsel %vm1859, %v2444, 0.0
        %2449 = vadd.xlane.f32.xlu0 %v2448
        %v2450 = vpop.xlane.xlu0 %2449
        %v2451 = vrcp.pop %v2447
        %v2452 = vmul.f32 %v2442, %v2451
        %v2453 = vrcp.pop %v2450
        %v2454 = vmul.f32 %v2444, %v2453
        %v2456 = vsel %vm1855, %v2452, 0
        %v2459 = vsel %vm1855, %v2454, 0
        %v2462 = vsel %vm1770, %v1764, 0
        %2464 = vmatprep.subr.mxu0 0.0
        %2465 = vmatpush1.msra.mxu0 %v1740
        %2466 = vmatprep.subr.mxu0 0.0
        %2467 = vmatpush1.msra.mxu0 %v1746
        %2468 = vmatprep.subr.mxu0 0.0
        %2469 = vmatpush1.msra.mxu0 %v1752
        %2470 = vmatprep.subr.mxu0 0.0
        %2471 = vmatpush1.msra.mxu0 %v1758
        %2472 = vmatprep.subr.mxu0 0.0
        %2473 = vmatpush1.msra.mxu0 %v2462
        %2474 = vmatprep.subr.mxu0 0.0
        %2475 = vmatpush1.msra.mxu0 0.0
        %2476 = vmatprep.subr.mxu0 0.0
        %2477 = vmatpush1.msra.mxu0 0.0
        %2478 = vmatprep.subr.mxu0 0.0
        %2479 = vmatpush1.msra.mxu0 0.0
        %2480 = vmatprep.subr.mxu0 0.0
        %2481 = vmatpush1.msra.mxu0 0.0
        %2482 = vmatprep.subr.mxu0 0.0
        %2483 = vmatpush1.msra.mxu0 0.0
        %2484 = vmatprep.subr.mxu0 0.0
        %2485 = vmatpush1.msra.mxu0 0.0
        %2486 = vmatprep.subr.mxu0 0.0
        %2487 = vmatpush1.msra.mxu0 0.0
        %2488 = vmatprep.subr.mxu0 0.0
        %2489 = vmatpush1.msra.mxu0 0.0
        %2490 = vmatprep.subr.mxu0 0.0
        %2491 = vmatpush1.msra.mxu0 0.0
        %2492 = vmatprep.subr.mxu0 0.0
        %2493 = vmatpush1.msra.mxu0 0.0
        %2494 = vmatprep.subr.mxu0 0.0
        %2495 = vmatpush1.msra.mxu0 0.0
        %2496 = vmatprep.subr.mxu0 0.0
        %2497 = vmatpush1.msra.mxu0 0.0
        %2498 = vmatprep.subr.mxu0 0.0
        %2499 = vmatpush1.msra.mxu0 0.0
        %2500 = vmatprep.subr.mxu0 0.0
        %2501 = vmatpush1.msra.mxu0 0.0
        %2502 = vmatprep.subr.mxu0 0.0
        %2503 = vmatpush1.msra.mxu0 0.0
        %2504 = vmatprep.subr.mxu0 0.0
        %2505 = vmatpush1.msra.mxu0 0.0
        %2506 = vmatprep.subr.mxu0 0.0
        %2507 = vmatpush1.msra.mxu0 0.0
        %2508 = vmatprep.subr.mxu0 0.0
        %2509 = vmatpush1.msra.mxu0 0.0
        %2510 = vmatprep.subr.mxu0 0.0
        %2511 = vmatpush1.msra.mxu0 0.0
        %2512 = vmatprep.subr.mxu0 0.0
        %2513 = vmatpush1.msra.mxu0 0.0
        %2514 = vmatprep.subr.mxu0 0.0
        %2515 = vmatpush1.msra.mxu0 0.0
        %2516 = vmatprep.subr.mxu0 0.0
        %2517 = vmatpush1.msra.mxu0 0.0
        %2518 = vmatprep.subr.mxu0 0.0
        %2519 = vmatpush1.msra.mxu0 0.0
        %2520 = vmatprep.subr.mxu0 0.0
        %2521 = vmatpush1.msra.mxu0 0.0
        %2522 = vmatprep.subr.mxu0 0.0
        %2523 = vmatpush1.msra.mxu0 0.0
        %2524 = vmatprep.subr.mxu0 0.0
        %2525 = vmatpush1.msra.mxu0 0.0
        %2526 = vmatprep.subr.mxu0 0.0
        %2527 = vmatpush1.msra.mxu0 0.0
        %2528 = vmatprep.mubr.f32.mxu0 0.0
        %2529 = vmatmul.mubr.f32.gmra.mrb[0].mxu0 %v2456
        %v2530 = vpop.f32.mrb[0].mxu0
        %v2531 = vadd.f32 0.0, %v2530
        %v2532 = vpop.f32.mrb[0].mxu0
        %2533 = vmatprep.mubr.f32.mxu0 0.0
        %2534 = vmatmul.mubr.f32.gmra.mrb[0].mxu0 %v2459
        %v2535 = vpop.f32.mrb[0].mxu0
        %v2536 = vadd.f32 0.0, %v2535
        %v2537 = vpop.f32.mrb[0].mxu0
        %2538 = vdwg.mxu0
        %v2539 = vld [vmem:[%s8] sm:$0xff]
        %v2540 = vld [vmem:[%s8 + $0x8] sm:$0xff]
        %v2541 = vld [vmem:[%s8 + $0x10] sm:$0xff]
        %v2542 = vld [vmem:[%s8 + $0x18] sm:$0xff]
        %v2543 = vld [vmem:[%s8 + $0x20] sm:$0xff]
        %v2544 = vld [vmem:[%s8 + $0x28] sm:$0xff]
        %v2545 = vld [vmem:[%s8 + $0x30] sm:$0xff]
        %v2546 = vld [vmem:[%s8 + $0x38] sm:$0xff]
        %v2547 = vld [vmem:[%s8 + $0x40] sm:$0xff]
        %v2548 = vld [vmem:[%s8 + $0x48] sm:$0xff]
        %v2549 = vld [vmem:[%s8 + $0x50] sm:$0xff]
        %v2550 = vld [vmem:[%s8 + $0x58] sm:$0xff]
        %v2551 = vld [vmem:[%s8 + $0x60] sm:$0xff]
        %v2552 = vld [vmem:[%s8 + $0x68] sm:$0xff]
        %v2553 = vld [vmem:[%s8 + $0x70] sm:$0xff]
        %v2554 = vld [vmem:[%s8 + $0x78] sm:$0xff]
        %v2555 = vld [vmem:[%s8 + $0x80] sm:$0xff]
        %v2556 = vld [vmem:[%s8 + $0x88] sm:$0xff]
        %v2557 = vld [vmem:[%s8 + $0x90] sm:$0xff]
        %v2558 = vld [vmem:[%s8 + $0x98] sm:$0xff]
        %v2559 = vld [vmem:[%s8 + $0xa0] sm:$0xff]
        %v2560 = vld [vmem:[%s8 + $0xa8] sm:$0xff]
        %v2561 = vld [vmem:[%s8 + $0xb0] sm:$0xff]
        %v2562 = vld [vmem:[%s8 + $0xb8] sm:$0xff]
        %v2563 = vld [vmem:[%s8 + $0xc0] sm:$0xff]
        %v2564 = vld [vmem:[%s8 + $0xc8] sm:$0xff]
        %v2565 = vld [vmem:[%s8 + $0xd0] sm:$0xff]
        %v2566 = vld [vmem:[%s8 + $0xd8] sm:$0xff]
        %v2567 = vld [vmem:[%s8 + $0xe0] sm:$0xff]
        %v2568 = vld [vmem:[%s8 + $0xe8] sm:$0xff]
        %v2569 = vld [vmem:[%s8 + $0xf0] sm:$0xff]
        %v2570 = vld [vmem:[%s8 + $0xf8] sm:$0xff]
        %v2571 = vld [vmem:[%s8 + $0x100] sm:$0xff]
        %v2572 = vld [vmem:[%s8 + $0x108] sm:$0xff]
        %v2573 = vld [vmem:[%s8 + $0x110] sm:$0xff]
        %v2574 = vld [vmem:[%s8 + $0x118] sm:$0xff]
        %v2575 = vld [vmem:[%s8 + $0x120] sm:$0xff]
        %v2576 = vld [vmem:[%s8 + $0x128] sm:$0xff]
        %v2577 = vld [vmem:[%s8 + $0x130] sm:$0xff]
        %v2578 = vld [vmem:[%s8 + $0x138] sm:$0xff]
        %v2579 = vld [vmem:[%s8 + $0x140] sm:$0xff]
        %v2580 = vld [vmem:[%s8 + $0x148] sm:$0xff]
        %v2581 = vld [vmem:[%s8 + $0x150] sm:$0xff]
        %v2582 = vld [vmem:[%s8 + $0x158] sm:$0xff]
        %v2583 = vld [vmem:[%s8 + $0x160] sm:$0xff]
        %v2584 = vld [vmem:[%s8 + $0x168] sm:$0xff]
        %v2585 = vld [vmem:[%s8 + $0x170] sm:$0xff]
        %v2586 = vld [vmem:[%s8 + $0x178] sm:$0xff]
        %v2587 = vld [vmem:[%s8 + $0x180] sm:$0xff]
        %v2588 = vld [vmem:[%s8 + $0x188] sm:$0xff]
        %v2589 = vld [vmem:[%s8 + $0x190] sm:$0xff]
        %v2590 = vld [vmem:[%s8 + $0x198] sm:$0xff]
        %v2591 = vld [vmem:[%s8 + $0x1a0] sm:$0xff]
        %v2592 = vld [vmem:[%s8 + $0x1a8] sm:$0xff]
        %v2593 = vld [vmem:[%s8 + $0x1b0] sm:$0xff]
        %v2594 = vld [vmem:[%s8 + $0x1b8] sm:$0xff]
        %v2595 = vld [vmem:[%s8 + $0x1c0] sm:$0xff]
        %v2596 = vld [vmem:[%s8 + $0x1c8] sm:$0xff]
        %v2597 = vld [vmem:[%s8 + $0x1d0] sm:$0xff]
        %v2598 = vld [vmem:[%s8 + $0x1d8] sm:$0xff]
        %v2599 = vld [vmem:[%s8 + $0x1e0] sm:$0xff]
        %v2600 = vld [vmem:[%s8 + $0x1e8] sm:$0xff]
        %v2601 = vld [vmem:[%s8 + $0x1f0] sm:$0xff]
        %v2602 = vld [vmem:[%s8 + $0x1f8] sm:$0xff]
        %v2603 = vld [vmem:[%s8 + $0x200] sm:$0xff]
        %v2604 = vld [vmem:[%s8 + $0x208] sm:$0xff]
        %v2605 = vld [vmem:[%s8 + $0x210] sm:$0xff]
        %v2606 = vld [vmem:[%s8 + $0x218] sm:$0xff]
        %v2607 = vld [vmem:[%s8 + $0x220] sm:$0xff]
        %v2608 = vld [vmem:[%s8 + $0x228] sm:$0xff]
        %v2609 = vld [vmem:[%s8 + $0x230] sm:$0xff]
        %v2610 = vld [vmem:[%s8 + $0x238] sm:$0xff]
        %v2611 = vld [vmem:[%s8 + $0x240] sm:$0xff]
        %v2612 = vld [vmem:[%s8 + $0x248] sm:$0xff]
        %v2613 = vld [vmem:[%s8 + $0x250] sm:$0xff]
        %v2614 = vld [vmem:[%s8 + $0x258] sm:$0xff]
        %v2615 = vld [vmem:[%s8 + $0x260] sm:$0xff]
        %v2616 = vld [vmem:[%s8 + $0x268] sm:$0xff]
        %v2617 = vld [vmem:[%s8 + $0x270] sm:$0xff]
        %v2618 = vld [vmem:[%s8 + $0x278] sm:$0xff]
        %v2619 = vld [vmem:[%s8 + $0x280] sm:$0xff]
        %v2620 = vld [vmem:[%s8 + $0x288] sm:$0xff]
        %v2621 = vld [vmem:[%s8 + $0x290] sm:$0xff]
        %v2622 = vld [vmem:[%s8 + $0x298] sm:$0xff]
        %v2623 = vld [vmem:[%s8 + $0x2a0] sm:$0xff]
        %v2624 = vld [vmem:[%s8 + $0x2a8] sm:$0xff]
        %v2625 = vld [vmem:[%s8 + $0x2b0] sm:$0xff]
        %v2626 = vld [vmem:[%s8 + $0x2b8] sm:$0xff]
        %v2627 = vld [vmem:[%s8 + $0x2c0] sm:$0xff]
        %v2628 = vld [vmem:[%s8 + $0x2c8] sm:$0xff]
        %v2629 = vld [vmem:[%s8 + $0x2d0] sm:$0xff]
        %v2630 = vld [vmem:[%s8 + $0x2d8] sm:$0xff]
        %v2631 = vld [vmem:[%s8 + $0x2e0] sm:$0xff]
        %v2632 = vld [vmem:[%s8 + $0x2e8] sm:$0xff]
        %v2633 = vld [vmem:[%s8 + $0x2f0] sm:$0xff]
        %v2634 = vld [vmem:[%s8 + $0x2f8] sm:$0xff]
        %v2635 = vld [vmem:[%s8 + $0x300] sm:$0xff]
        %v2636 = vld [vmem:[%s8 + $0x308] sm:$0xff]
        %v2637 = vld [vmem:[%s8 + $0x310] sm:$0xff]
        %v2638 = vld [vmem:[%s8 + $0x318] sm:$0xff]
        %v2639 = vld [vmem:[%s8 + $0x320] sm:$0xff]
        %v2640 = vld [vmem:[%s8 + $0x328] sm:$0xff]
        %v2641 = vld [vmem:[%s8 + $0x330] sm:$0xff]
        %v2642 = vld [vmem:[%s8 + $0x338] sm:$0xff]
        %v2643 = vld [vmem:[%s8 + $0x340] sm:$0xff]
        %v2644 = vld [vmem:[%s8 + $0x348] sm:$0xff]
        %v2645 = vld [vmem:[%s8 + $0x350] sm:$0xff]
        %v2646 = vld [vmem:[%s8 + $0x358] sm:$0xff]
        %v2647 = vld [vmem:[%s8 + $0x360] sm:$0xff]
        %v2648 = vld [vmem:[%s8 + $0x368] sm:$0xff]
        %v2649 = vld [vmem:[%s8 + $0x370] sm:$0xff]
        %v2650 = vld [vmem:[%s8 + $0x378] sm:$0xff]
        %v2651 = vld [vmem:[%s8 + $0x380] sm:$0xff]
        %v2652 = vld [vmem:[%s8 + $0x388] sm:$0xff]
        %v2653 = vld [vmem:[%s8 + $0x390] sm:$0xff]
        %v2654 = vld [vmem:[%s8 + $0x398] sm:$0xff]
        %v2655 = vld [vmem:[%s8 + $0x3a0] sm:$0xff]
        %v2656 = vld [vmem:[%s8 + $0x3a8] sm:$0xff]
        %v2657 = vld [vmem:[%s8 + $0x3b0] sm:$0xff]
        %v2658 = vld [vmem:[%s8 + $0x3b8] sm:$0xff]
        %v2659 = vld [vmem:[%s8 + $0x3c0] sm:$0xff]
        %v2660 = vld [vmem:[%s8 + $0x3c8] sm:$0xff]
        %v2661 = vld [vmem:[%s8 + $0x3d0] sm:$0xff]
        %v2662 = vld [vmem:[%s8 + $0x3d8] sm:$0xff]
        %v2663 = vld [vmem:[%s8 + $0x3e0] sm:$0xff]
        %v2664 = vld [vmem:[%s8 + $0x3e8] sm:$0xff]
        %v2665 = vld [vmem:[%s8 + $0x3f0] sm:$0xff]
        %v2666 = vld [vmem:[%s8 + $0x3f8] sm:$0xff]
        %v2667 = vld [vmem:[%s8 + $0x400] sm:$0xff]
        %v2668 = vld [vmem:[%s8 + $0x408] sm:$0xff]
        %v2669 = vld [vmem:[%s8 + $0x410] sm:$0xff]
        %v2670 = vld [vmem:[%s8 + $0x418] sm:$0xff]
        %v2671 = vld [vmem:[%s8 + $0x420] sm:$0xff]
        %v2672 = vld [vmem:[%s8 + $0x428] sm:$0xff]
        %v2673 = vld [vmem:[%s8 + $0x430] sm:$0xff]
        %v2674 = vld [vmem:[%s8 + $0x438] sm:$0xff]
        %v2675 = vld [vmem:[%s8 + $0x440] sm:$0xff]
        %v2676 = vld [vmem:[%s8 + $0x448] sm:$0xff]
        %v2677 = vld [vmem:[%s8 + $0x450] sm:$0xff]
        %v2678 = vld [vmem:[%s8 + $0x458] sm:$0xff]
        %v2679 = vld [vmem:[%s8 + $0x460] sm:$0xff]
        %v2680 = vld [vmem:[%s8 + $0x468] sm:$0xff]
        %v2681 = vld [vmem:[%s8 + $0x470] sm:$0xff]
        %v2682 = vld [vmem:[%s8 + $0x478] sm:$0xff]
        %v2683 = vld [vmem:[%s8 + $0x480] sm:$0xff]
        %v2684 = vld [vmem:[%s8 + $0x488] sm:$0xff]
        %v2685 = vld [vmem:[%s8 + $0x490] sm:$0xff]
        %v2686 = vld [vmem:[%s8 + $0x498] sm:$0xff]
        %v2687 = vld [vmem:[%s8 + $0x4a0] sm:$0xff]
        %v2688 = vld [vmem:[%s8 + $0x4a8] sm:$0xff]
        %v2689 = vld [vmem:[%s8 + $0x4b0] sm:$0xff]
        %v2690 = vld [vmem:[%s8 + $0x4b8] sm:$0xff]
        %v2691 = vld [vmem:[%s8 + $0x4c0] sm:$0xff]
        %v2692 = vld [vmem:[%s8 + $0x4c8] sm:$0xff]
        %v2693 = vld [vmem:[%s8 + $0x4d0] sm:$0xff]
        %v2694 = vld [vmem:[%s8 + $0x4d8] sm:$0xff]
        %v2695 = vld [vmem:[%s8 + $0x4e0] sm:$0xff]
        %v2696 = vld [vmem:[%s8 + $0x4e8] sm:$0xff]
        %v2697 = vld [vmem:[%s8 + $0x4f0] sm:$0xff]
        %v2698 = vld [vmem:[%s8 + $0x4f8] sm:$0xff]
        %v2699 = vld [vmem:[%s8 + $0x500] sm:$0xff]
        %v2700 = vld [vmem:[%s8 + $0x508] sm:$0xff]
        %v2701 = vld [vmem:[%s8 + $0x510] sm:$0xff]
        %v2702 = vld [vmem:[%s8 + $0x518] sm:$0xff]
        %v2703 = vld [vmem:[%s8 + $0x520] sm:$0xff]
        %v2704 = vld [vmem:[%s8 + $0x528] sm:$0xff]
        %v2705 = vld [vmem:[%s8 + $0x530] sm:$0xff]
        %v2706 = vld [vmem:[%s8 + $0x538] sm:$0xff]
        %v2707 = vld [vmem:[%s8 + $0x540] sm:$0xff]
        %v2708 = vld [vmem:[%s8 + $0x548] sm:$0xff]
        %v2709 = vld [vmem:[%s8 + $0x550] sm:$0xff]
        %v2710 = vld [vmem:[%s8 + $0x558] sm:$0xff]
        %v2711 = vld [vmem:[%s8 + $0x560] sm:$0xff]
        %v2712 = vld [vmem:[%s8 + $0x568] sm:$0xff]
        %v2713 = vld [vmem:[%s8 + $0x570] sm:$0xff]
        %v2714 = vld [vmem:[%s8 + $0x578] sm:$0xff]
        %v2715 = vld [vmem:[%s8 + $0x580] sm:$0xff]
        %v2716 = vld [vmem:[%s8 + $0x588] sm:$0xff]
        %v2717 = vld [vmem:[%s8 + $0x590] sm:$0xff]
        %v2718 = vld [vmem:[%s8 + $0x598] sm:$0xff]
        %v2719 = vld [vmem:[%s8 + $0x5a0] sm:$0xff]
        %v2720 = vld [vmem:[%s8 + $0x5a8] sm:$0xff]
        %v2721 = vld [vmem:[%s8 + $0x5b0] sm:$0xff]
        %v2722 = vld [vmem:[%s8 + $0x5b8] sm:$0xff]
        %v2723 = vld [vmem:[%s8 + $0x5c0] sm:$0xff]
        %v2724 = vld [vmem:[%s8 + $0x5c8] sm:$0xff]
        %v2725 = vld [vmem:[%s8 + $0x5d0] sm:$0xff]
        %v2726 = vld [vmem:[%s8 + $0x5d8] sm:$0xff]
        %v2727 = vld [vmem:[%s8 + $0x5e0] sm:$0xff]
        %v2728 = vld [vmem:[%s8 + $0x5e8] sm:$0xff]
        %v2729 = vld [vmem:[%s8 + $0x5f0] sm:$0xff]
        %v2730 = vld [vmem:[%s8 + $0x5f8] sm:$0xff]
        %v2731 = vlaneseq
        %v2732 = vshrl.u32 %v2731, 7
        %v2733 = vsub.s32 4, %v2732
        %v2734 = vrot.slane %v453, %v2733
        %v2735 = vlaneseq
        %v2736 = vshrl.u32 %v2735, 7
        %v2737 = vsub.s32 4, %v2736
        %v2738 = vrot.slane %v454, %v2737
        %v2739 = vlaneseq
        %v2740 = vshrl.u32 %v2739, 7
        %v2741 = vsub.s32 4, %v2740
        %v2742 = vrot.slane %v455, %v2741
        %2743 = vmatprep.subr.mxu0 %v2540
        %2744 = vmatpush1.msra.mxu0 %v2539
        %2745 = vmatprep.subr.mxu0 %v2543
        %2746 = vmatpush1.msra.mxu0 %v2542
        %2747 = vmatprep.subr.mxu0 %v2546
        %2748 = vmatpush1.msra.mxu0 %v2545
        %2749 = vmatprep.subr.mxu0 %v2549
        %2750 = vmatpush1.msra.mxu0 %v2548
        %2751 = vmatprep.subr.mxu0 %v2552
        %2752 = vmatpush1.msra.mxu0 %v2551
        %2753 = vmatprep.subr.mxu0 %v2555
        %2754 = vmatpush1.msra.mxu0 %v2554
        %2755 = vmatprep.subr.mxu0 %v2558
        %2756 = vmatpush1.msra.mxu0 %v2557
        %2757 = vmatprep.subr.mxu0 %v2561
        %2758 = vmatpush1.msra.mxu0 %v2560
        %2759 = vmatprep.subr.mxu0 %v2564
        %2760 = vmatpush1.msra.mxu0 %v2563
        %2761 = vmatprep.subr.mxu0 %v2567
        %2762 = vmatpush1.msra.mxu0 %v2566
        %2763 = vmatprep.subr.mxu0 %v2570
        %2764 = vmatpush1.msra.mxu0 %v2569
        %2765 = vmatprep.subr.mxu0 %v2573
        %2766 = vmatpush1.msra.mxu0 %v2572
        %2767 = vmatprep.subr.mxu0 %v2576
        %2768 = vmatpush1.msra.mxu0 %v2575
        %2769 = vmatprep.subr.mxu0 %v2579
        %2770 = vmatpush1.msra.mxu0 %v2578
        %2771 = vmatprep.subr.mxu0 %v2582
        %2772 = vmatpush1.msra.mxu0 %v2581
        %2773 = vmatprep.subr.mxu0 %v2585
        %2774 = vmatpush1.msra.mxu0 %v2584
        %2775 = vmatprep.subr.mxu0 %v2588
        %2776 = vmatpush1.msra.mxu0 %v2587
        %2777 = vmatprep.subr.mxu0 %v2591
        %2778 = vmatpush1.msra.mxu0 %v2590
        %2779 = vmatprep.subr.mxu0 %v2594
        %2780 = vmatpush1.msra.mxu0 %v2593
        %2781 = vmatprep.subr.mxu0 %v2597
        %2782 = vmatpush1.msra.mxu0 %v2596
        %2783 = vmatprep.subr.mxu0 %v2600
        %2784 = vmatpush1.msra.mxu0 %v2599
        %2785 = vmatprep.subr.mxu0 %v2603
        %2786 = vmatpush1.msra.mxu0 %v2602
        %2787 = vmatprep.subr.mxu0 %v2606
        %2788 = vmatpush1.msra.mxu0 %v2605
        %2789 = vmatprep.subr.mxu0 %v2609
        %2790 = vmatpush1.msra.mxu0 %v2608
        %2791 = vmatprep.subr.mxu0 %v2612
        %2792 = vmatpush1.msra.mxu0 %v2611
        %2793 = vmatprep.subr.mxu0 %v2615
        %2794 = vmatpush1.msra.mxu0 %v2614
        %2795 = vmatprep.subr.mxu0 %v2618
        %2796 = vmatpush1.msra.mxu0 %v2617
        %2797 = vmatprep.subr.mxu0 %v2621
        %2798 = vmatpush1.msra.mxu0 %v2620
        %2799 = vmatprep.subr.mxu0 %v2624
        %2800 = vmatpush1.msra.mxu0 %v2623
        %2801 = vmatprep.subr.mxu0 %v2627
        %2802 = vmatpush1.msra.mxu0 %v2626
        %2803 = vmatprep.subr.mxu0 %v2630
        %2804 = vmatpush1.msra.mxu0 %v2629
        %2805 = vmatprep.subr.mxu0 %v2633
        %2806 = vmatpush1.msra.mxu0 %v2632
        %2807 = vmatprep.mubr.f32.mxu0 %v2147
        %2808 = vmatmul.mubr.f32.gmra.mrb[0].mxu0 %v1955
        %v2809 = vpop.f32.mrb[0].mxu0
        %v2810 = vadd.f32 %v2734, %v2809
        %v2811 = vpop.f32.mrb[0].mxu0
        %v2812 = vadd.f32 %v2738, %v2811
        %2813 = vmatprep.mubr.f32.mxu0 %v2152
        %2814 = vmatmul.mubr.f32.gmra.mrb[0].mxu0 %v1960
        %v2815 = vpop.f32.mrb[0].mxu0
        %v2816 = vadd.f32 %v2734, %v2815
        %v2817 = vpop.f32.mrb[0].mxu0
        %v2818 = vadd.f32 %v2738, %v2817
        %2819 = vdwg.mxu0
        %2820 = vmatprep.subr.mxu0 %v2636
        %2821 = vmatpush1.msra.mxu0 %v2635
        %2822 = vmatprep.subr.mxu0 %v2639
        %2823 = vmatpush1.msra.mxu0 %v2638
        %2824 = vmatprep.subr.mxu0 %v2642
        %2825 = vmatpush1.msra.mxu0 %v2641
        %2826 = vmatprep.subr.mxu0 %v2645
        %2827 = vmatpush1.msra.mxu0 %v2644
        %2828 = vmatprep.subr.mxu0 %v2648
        %2829 = vmatpush1.msra.mxu0 %v2647
        %2830 = vmatprep.subr.mxu0 %v2651
        %2831 = vmatpush1.msra.mxu0 %v2650
        %2832 = vmatprep.subr.mxu0 %v2654
        %2833 = vmatpush1.msra.mxu0 %v2653
        %2834 = vmatprep.subr.mxu0 %v2657
        %2835 = vmatpush1.msra.mxu0 %v2656
        %2836 = vmatprep.subr.mxu0 %v2660
        %2837 = vmatpush1.msra.mxu0 %v2659
        %2838 = vmatprep.subr.mxu0 %v2663
        %2839 = vmatpush1.msra.mxu0 %v2662
        %2840 = vmatprep.subr.mxu0 %v2666
        %2841 = vmatpush1.msra.mxu0 %v2665
        %2842 = vmatprep.subr.mxu0 %v2669
        %2843 = vmatpush1.msra.mxu0 %v2668
        %2844 = vmatprep.subr.mxu0 %v2672
        %2845 = vmatpush1.msra.mxu0 %v2671
        %2846 = vmatprep.subr.mxu0 %v2675
        %2847 = vmatpush1.msra.mxu0 %v2674
        %2848 = vmatprep.subr.mxu0 %v2678
        %2849 = vmatpush1.msra.mxu0 %v2677
        %2850 = vmatprep.subr.mxu0 %v2681
        %2851 = vmatpush1.msra.mxu0 %v2680
        %2852 = vmatprep.subr.mxu0 %v2684
        %2853 = vmatpush1.msra.mxu0 %v2683
        %2854 = vmatprep.subr.mxu0 %v2687
        %2855 = vmatpush1.msra.mxu0 %v2686
        %2856 = vmatprep.subr.mxu0 %v2690
        %2857 = vmatpush1.msra.mxu0 %v2689
        %2858 = vmatprep.subr.mxu0 %v2693
        %2859 = vmatpush1.msra.mxu0 %v2692
        %2860 = vmatprep.subr.mxu0 %v2696
        %2861 = vmatpush1.msra.mxu0 %v2695
        %2862 = vmatprep.subr.mxu0 %v2699
        %2863 = vmatpush1.msra.mxu0 %v2698
        %2864 = vmatprep.subr.mxu0 %v2702
        %2865 = vmatpush1.msra.mxu0 %v2701
        %2866 = vmatprep.subr.mxu0 %v2705
        %2867 = vmatpush1.msra.mxu0 %v2704
        %2868 = vmatprep.subr.mxu0 %v2708
        %2869 = vmatpush1.msra.mxu0 %v2707
        %2870 = vmatprep.subr.mxu0 %v2711
        %2871 = vmatpush1.msra.mxu0 %v2710
        %2872 = vmatprep.subr.mxu0 %v2714
        %2873 = vmatpush1.msra.mxu0 %v2713
        %2874 = vmatprep.subr.mxu0 %v2717
        %2875 = vmatpush1.msra.mxu0 %v2716
        %2876 = vmatprep.subr.mxu0 %v2720
        %2877 = vmatpush1.msra.mxu0 %v2719
        %2878 = vmatprep.subr.mxu0 %v2723
        %2879 = vmatpush1.msra.mxu0 %v2722
        %2880 = vmatprep.subr.mxu0 %v2726
        %2881 = vmatpush1.msra.mxu0 %v2725
        %2882 = vmatprep.subr.mxu0 %v2729
        %2883 = vmatpush1.msra.mxu0 %v2728
        %2884 = vmatprep.mubr.f32.mxu0 %v2531
        %2885 = vmatmul.mubr.f32.gmra.mrb[0].mxu0 %v2339
        %v2886 = vpop.f32.mrb[0].mxu0
        %v2887 = vadd.f32 %v2810, %v2886
        %v2888 = vpop.f32.mrb[0].mxu0
        %v2889 = vadd.f32 %v2812, %v2888
        %2890 = vmatprep.mubr.f32.mxu0 %v2536
        %2891 = vmatmul.mubr.f32.gmra.mrb[0].mxu0 %v2344
        %v2892 = vpop.f32.mrb[0].mxu0
        %v2893 = vadd.f32 %v2816, %v2892
        %v2894 = vpop.f32.mrb[0].mxu0
        %v2895 = vadd.f32 %v2818, %v2894
        %2896 = vdwg.mxu0
        %2897 = vmatprep.subr.mxu0 0.0
        %2898 = vmatpush1.msra.mxu0 %v2541
        %2899 = vmatprep.subr.mxu0 0.0
        %2900 = vmatpush1.msra.mxu0 %v2544
        %2901 = vmatprep.subr.mxu0 0.0
        %2902 = vmatpush1.msra.mxu0 %v2547
        %2903 = vmatprep.subr.mxu0 0.0
        %2904 = vmatpush1.msra.mxu0 %v2550
        %2905 = vmatprep.subr.mxu0 0.0
        %2906 = vmatpush1.msra.mxu0 %v2553
        %2907 = vmatprep.subr.mxu0 0.0
        %2908 = vmatpush1.msra.mxu0 %v2556
        %2909 = vmatprep.subr.mxu0 0.0
        %2910 = vmatpush1.msra.mxu0 %v2559
        %2911 = vmatprep.subr.mxu0 0.0
        %2912 = vmatpush1.msra.mxu0 %v2562
        %2913 = vmatprep.subr.mxu0 0.0
        %2914 = vmatpush1.msra.mxu0 %v2565
        %2915 = vmatprep.subr.mxu0 0.0
        %2916 = vmatpush1.msra.mxu0 %v2568
        %2917 = vmatprep.subr.mxu0 0.0
        %2918 = vmatpush1.msra.mxu0 %v2571
        %2919 = vmatprep.subr.mxu0 0.0
        %2920 = vmatpush1.msra.mxu0 %v2574
        %2921 = vmatprep.subr.mxu0 0.0
        %2922 = vmatpush1.msra.mxu0 %v2577
        %2923 = vmatprep.subr.mxu0 0.0
        %2924 = vmatpush1.msra.mxu0 %v2580
        %2925 = vmatprep.subr.mxu0 0.0
        %2926 = vmatpush1.msra.mxu0 %v2583
        %2927 = vmatprep.subr.mxu0 0.0
        %2928 = vmatpush1.msra.mxu0 %v2586
        %2929 = vmatprep.subr.mxu0 0.0
        %2930 = vmatpush1.msra.mxu0 %v2589
        %2931 = vmatprep.subr.mxu0 0.0
        %2932 = vmatpush1.msra.mxu0 %v2592
        %2933 = vmatprep.subr.mxu0 0.0
        %2934 = vmatpush1.msra.mxu0 %v2595
        %2935 = vmatprep.subr.mxu0 0.0
        %2936 = vmatpush1.msra.mxu0 %v2598
        %2937 = vmatprep.subr.mxu0 0.0
        %2938 = vmatpush1.msra.mxu0 %v2601
        %2939 = vmatprep.subr.mxu0 0.0
        %2940 = vmatpush1.msra.mxu0 %v2604
        %2941 = vmatprep.subr.mxu0 0.0
        %2942 = vmatpush1.msra.mxu0 %v2607
        %2943 = vmatprep.subr.mxu0 0.0
        %2944 = vmatpush1.msra.mxu0 %v2610
        %2945 = vmatprep.subr.mxu0 0.0
        %2946 = vmatpush1.msra.mxu0 %v2613
        %2947 = vmatprep.subr.mxu0 0.0
        %2948 = vmatpush1.msra.mxu0 %v2616
        %2949 = vmatprep.subr.mxu0 0.0
        %2950 = vmatpush1.msra.mxu0 %v2619
        %2951 = vmatprep.subr.mxu0 0.0
        %2952 = vmatpush1.msra.mxu0 %v2622
        %2953 = vmatprep.subr.mxu0 0.0
        %2954 = vmatpush1.msra.mxu0 %v2625
        %2955 = vmatprep.subr.mxu0 0.0
        %2956 = vmatpush1.msra.mxu0 %v2628
        %2957 = vmatprep.subr.mxu0 0.0
        %2958 = vmatpush1.msra.mxu0 %v2631
        %2959 = vmatprep.subr.mxu0 0.0
        %2960 = vmatpush1.msra.mxu0 %v2634
        %2961 = vmatprep.mubr.f32.mxu0 %v2147
        %2962 = vmatmul.mubr.f32.gmra.mrb[0].mxu0 %v1955
        %v2963 = vpop.f32.mrb[0].mxu0
        %v2964 = vadd.f32 %v2742, %v2963
        %v2965 = vpop.f32.mrb[0].mxu0
        %2966 = vmatprep.mubr.f32.mxu0 %v2152
        %2967 = vmatmul.mubr.f32.gmra.mrb[0].mxu0 %v1960
        %v2968 = vpop.f32.mrb[0].mxu0
        %v2969 = vadd.f32 %v2742, %v2968
        %v2970 = vpop.f32.mrb[0].mxu0
        %2971 = vdwg.mxu0
        %2972 = vmatprep.subr.mxu0 0.0
        %2973 = vmatpush1.msra.mxu0 %v2637
        %2974 = vmatprep.subr.mxu0 0.0
        %2975 = vmatpush1.msra.mxu0 %v2640
        %2976 = vmatprep.subr.mxu0 0.0
        %2977 = vmatpush1.msra.mxu0 %v2643
        %2978 = vmatprep.subr.mxu0 0.0
        %2979 = vmatpush1.msra.mxu0 %v2646
        %2980 = vmatprep.subr.mxu0 0.0
        %2981 = vmatpush1.msra.mxu0 %v2649
        %2982 = vmatprep.subr.mxu0 0.0
        %2983 = vmatpush1.msra.mxu0 %v2652
        %2984 = vmatprep.subr.mxu0 0.0
        %2985 = vmatpush1.msra.mxu0 %v2655
        %2986 = vmatprep.subr.mxu0 0.0
        %2987 = vmatpush1.msra.mxu0 %v2658
        %2988 = vmatprep.subr.mxu0 0.0
        %2989 = vmatpush1.msra.mxu0 %v2661
        %2990 = vmatprep.subr.mxu0 0.0
        %2991 = vmatpush1.msra.mxu0 %v2664
        %2992 = vmatprep.subr.mxu0 0.0
        %2993 = vmatpush1.msra.mxu0 %v2667
        %2994 = vmatprep.subr.mxu0 0.0
        %2995 = vmatpush1.msra.mxu0 %v2670
        %2996 = vmatprep.subr.mxu0 0.0
        %2997 = vmatpush1.msra.mxu0 %v2673
        %2998 = vmatprep.subr.mxu0 0.0
        %2999 = vmatpush1.msra.mxu0 %v2676
        %3000 = vmatprep.subr.mxu0 0.0
        %3001 = vmatpush1.msra.mxu0 %v2679
        %3002 = vmatprep.subr.mxu0 0.0
        %3003 = vmatpush1.msra.mxu0 %v2682
        %3004 = vmatprep.subr.mxu0 0.0
        %3005 = vmatpush1.msra.mxu0 %v2685
        %3006 = vmatprep.subr.mxu0 0.0
        %3007 = vmatpush1.msra.mxu0 %v2688
        %3008 = vmatprep.subr.mxu0 0.0
        %3009 = vmatpush1.msra.mxu0 %v2691
        %3010 = vmatprep.subr.mxu0 0.0
        %3011 = vmatpush1.msra.mxu0 %v2694
        %3012 = vmatprep.subr.mxu0 0.0
        %3013 = vmatpush1.msra.mxu0 %v2697
        %3014 = vmatprep.subr.mxu0 0.0
        %3015 = vmatpush1.msra.mxu0 %v2700
        %3016 = vmatprep.subr.mxu0 0.0
        %3017 = vmatpush1.msra.mxu0 %v2703
        %3018 = vmatprep.subr.mxu0 0.0
        %3019 = vmatpush1.msra.mxu0 %v2706
        %3020 = vmatprep.subr.mxu0 0.0
        %3021 = vmatpush1.msra.mxu0 %v2709
        %3022 = vmatprep.subr.mxu0 0.0
        %3023 = vmatpush1.msra.mxu0 %v2712
        %3024 = vmatprep.subr.mxu0 0.0
        %3025 = vmatpush1.msra.mxu0 %v2715
        %3026 = vmatprep.subr.mxu0 0.0
        %3027 = vmatpush1.msra.mxu0 %v2718
        %3028 = vmatprep.subr.mxu0 0.0
        %3029 = vmatpush1.msra.mxu0 %v2721
        %3030 = vmatprep.subr.mxu0 0.0
        %3031 = vmatpush1.msra.mxu0 %v2724
        %3032 = vmatprep.subr.mxu0 0.0
        %3033 = vmatpush1.msra.mxu0 %v2727
        %3034 = vmatprep.subr.mxu0 0.0
        %3035 = vmatpush1.msra.mxu0 %v2730
        %3036 = vmatprep.mubr.f32.mxu0 %v2531
        %3037 = vmatmul.mubr.f32.gmra.mrb[0].mxu0 %v2339
        %v3038 = vpop.f32.mrb[0].mxu0
        %v3039 = vadd.f32 %v2964, %v3038
        %v3040 = vpop.f32.mrb[0].mxu0
        %3041 = vmatprep.mubr.f32.mxu0 %v2536
        %3042 = vmatmul.mubr.f32.gmra.mrb[0].mxu0 %v2344
        %v3043 = vpop.f32.mrb[0].mxu0
        %v3044 = vadd.f32 %v2969, %v3043
        %v3045 = vpop.f32.mrb[0].mxu0
        %3046 = vdwg.mxu0
        %v3047 = vld [vmem:[%s452] sm:$0x1f]
        %v3048 = vld [vmem:[%s4] sm:$0xff]
        %v3049 = vld [vmem:[%s4 + $0x8] sm:$0xff]
        %v3050 = vld [vmem:[%s4 + $0x10] sm:$0xff]
        %v3051 = vld [vmem:[%s4 + $0x18] sm:$0x3]
        %v3052 = vld [vmem:[%s4 + $0x20] sm:$0x3]
        %v3053 = vld [vmem:[%s4 + $0x28] sm:$0x3]
        %vm3054 = vcmask 80896
        %v3056 = vsel %vm3054, %v3047, 0
        %vm3058 = vcmask 1041408
        %v3060 = vsel %vm3058, %v3051, 0
        %v3063 = vsel %vm3058, %v3052, 0
        %v3066 = vsel %vm3058, %v3053, 0
        %3068 = vmatprep.subr.mxu0 %v3049
        %3069 = vmatpush1.msra.mxu0 %v3048
        %3070 = vmatprep.subr.mxu0 %v3063
        %3071 = vmatpush1.msra.mxu0 %v3060
        %3072 = vmatprep.subr.mxu0 0.0
        %3073 = vmatpush1.msra.mxu0 0.0
        %3074 = vmatprep.subr.mxu0 0.0
        %3075 = vmatpush1.msra.mxu0 0.0
        %3076 = vmatprep.subr.mxu0 0.0
        %3077 = vmatpush1.msra.mxu0 0.0
        %3078 = vmatprep.subr.mxu0 0.0
        %3079 = vmatpush1.msra.mxu0 0.0
        %3080 = vmatprep.subr.mxu0 0.0
        %3081 = vmatpush1.msra.mxu0 0.0
        %3082 = vmatprep.subr.mxu0 0.0
        %3083 = vmatpush1.msra.mxu0 0.0
        %3084 = vmatprep.subr.mxu0 0.0
        %3085 = vmatpush1.msra.mxu0 0.0
        %3086 = vmatprep.subr.mxu0 0.0
        %3087 = vmatpush1.msra.mxu0 0.0
        %3088 = vmatprep.subr.mxu0 0.0
        %3089 = vmatpush1.msra.mxu0 0.0
        %3090 = vmatprep.subr.mxu0 0.0
        %3091 = vmatpush1.msra.mxu0 0.0
        %3092 = vmatprep.subr.mxu0 0.0
        %3093 = vmatpush1.msra.mxu0 0.0
        %3094 = vmatprep.subr.mxu0 0.0
        %3095 = vmatpush1.msra.mxu0 0.0
        %3096 = vmatprep.subr.mxu0 0.0
        %3097 = vmatpush1.msra.mxu0 0.0
        %3098 = vmatprep.subr.mxu0 0.0
        %3099 = vmatpush1.msra.mxu0 0.0
        %3100 = vmatprep.subr.mxu0 0.0
        %3101 = vmatpush1.msra.mxu0 0.0
        %3102 = vmatprep.subr.mxu0 0.0
        %3103 = vmatpush1.msra.mxu0 0.0
        %3104 = vmatprep.subr.mxu0 0.0
        %3105 = vmatpush1.msra.mxu0 0.0
        %3106 = vmatprep.subr.mxu0 0.0
        %3107 = vmatpush1.msra.mxu0 0.0
        %3108 = vmatprep.subr.mxu0 0.0
        %3109 = vmatpush1.msra.mxu0 0.0
        %3110 = vmatprep.subr.mxu0 0.0
        %3111 = vmatpush1.msra.mxu0 0.0
        %3112 = vmatprep.subr.mxu0 0.0
        %3113 = vmatpush1.msra.mxu0 0.0
        %3114 = vmatprep.subr.mxu0 0.0
        %3115 = vmatpush1.msra.mxu0 0.0
        %3116 = vmatprep.subr.mxu0 0.0
        %3117 = vmatpush1.msra.mxu0 0.0
        %3118 = vmatprep.subr.mxu0 0.0
        %3119 = vmatpush1.msra.mxu0 0.0
        %3120 = vmatprep.subr.mxu0 0.0
        %3121 = vmatpush1.msra.mxu0 0.0
        %3122 = vmatprep.subr.mxu0 0.0
        %3123 = vmatpush1.msra.mxu0 0.0
        %3124 = vmatprep.subr.mxu0 0.0
        %3125 = vmatpush1.msra.mxu0 0.0
        %3126 = vmatprep.subr.mxu0 0.0
        %3127 = vmatpush1.msra.mxu0 0.0
        %3128 = vmatprep.subr.mxu0 0.0
        %3129 = vmatpush1.msra.mxu0 0.0
        %3130 = vmatprep.subr.mxu0 0.0
        %3131 = vmatpush1.msra.mxu0 0.0
        %3132 = vmatprep.mubr.f32.mxu0 0.0
        %3133 = vmatmul.mubr.f32.gmra.mrb[0].mxu0 %v3056
        %v3134 = vpop.f32.mrb[0].mxu0
        %v3135 = vadd.f32 0.0, %v3134
        %v3136 = vpop.f32.mrb[0].mxu0
        %v3137 = vadd.f32 0.0, %v3136
        %3138 = vdwg.mxu0
        %3139 = vmatprep.subr.mxu0 0.0
        %3140 = vmatpush1.msra.mxu0 %v3050
        %3141 = vmatprep.subr.mxu0 0.0
        %3142 = vmatpush1.msra.mxu0 %v3066
        %3143 = vmatprep.subr.mxu0 0.0
        %3144 = vmatpush1.msra.mxu0 0.0
        %3145 = vmatprep.subr.mxu0 0.0
        %3146 = vmatpush1.msra.mxu0 0.0
        %3147 = vmatprep.subr.mxu0 0.0
        %3148 = vmatpush1.msra.mxu0 0.0
        %3149 = vmatprep.subr.mxu0 0.0
        %3150 = vmatpush1.msra.mxu0 0.0
        %3151 = vmatprep.subr.mxu0 0.0
        %3152 = vmatpush1.msra.mxu0 0.0
        %3153 = vmatprep.subr.mxu0 0.0
        %3154 = vmatpush1.msra.mxu0 0.0
        %3155 = vmatprep.subr.mxu0 0.0
        %3156 = vmatpush1.msra.mxu0 0.0
        %3157 = vmatprep.subr.mxu0 0.0
        %3158 = vmatpush1.msra.mxu0 0.0
        %3159 = vmatprep.subr.mxu0 0.0
        %3160 = vmatpush1.msra.mxu0 0.0
        %3161 = vmatprep.subr.mxu0 0.0
        %3162 = vmatpush1.msra.mxu0 0.0
        %3163 = vmatprep.subr.mxu0 0.0
        %3164 = vmatpush1.msra.mxu0 0.0
        %3165 = vmatprep.subr.mxu0 0.0
        %3166 = vmatpush1.msra.mxu0 0.0
        %3167 = vmatprep.subr.mxu0 0.0
        %3168 = vmatpush1.msra.mxu0 0.0
        %3169 = vmatprep.subr.mxu0 0.0
        %3170 = vmatpush1.msra.mxu0 0.0
        %3171 = vmatprep.subr.mxu0 0.0
        %3172 = vmatpush1.msra.mxu0 0.0
        %3173 = vmatprep.subr.mxu0 0.0
        %3174 = vmatpush1.msra.mxu0 0.0
        %3175 = vmatprep.subr.mxu0 0.0
        %3176 = vmatpush1.msra.mxu0 0.0
        %3177 = vmatprep.subr.mxu0 0.0
        %3178 = vmatpush1.msra.mxu0 0.0
        %3179 = vmatprep.subr.mxu0 0.0
        %3180 = vmatpush1.msra.mxu0 0.0
        %3181 = vmatprep.subr.mxu0 0.0
        %3182 = vmatpush1.msra.mxu0 0.0
        %3183 = vmatprep.subr.mxu0 0.0
        %3184 = vmatpush1.msra.mxu0 0.0
        %3185 = vmatprep.subr.mxu0 0.0
        %3186 = vmatpush1.msra.mxu0 0.0
        %3187 = vmatprep.subr.mxu0 0.0
        %3188 = vmatpush1.msra.mxu0 0.0
        %3189 = vmatprep.subr.mxu0 0.0
        %3190 = vmatpush1.msra.mxu0 0.0
        %3191 = vmatprep.subr.mxu0 0.0
        %3192 = vmatpush1.msra.mxu0 0.0
        %3193 = vmatprep.subr.mxu0 0.0
        %3194 = vmatpush1.msra.mxu0 0.0
        %3195 = vmatprep.subr.mxu0 0.0
        %3196 = vmatpush1.msra.mxu0 0.0
        %3197 = vmatprep.subr.mxu0 0.0
        %3198 = vmatpush1.msra.mxu0 0.0
        %3199 = vmatprep.subr.mxu0 0.0
        %3200 = vmatpush1.msra.mxu0 0.0
        %3201 = vmatprep.subr.mxu0 0.0
        %3202 = vmatpush1.msra.mxu0 0.0
        %3203 = vmatprep.mubr.f32.mxu0 0.0
        %3204 = vmatmul.mubr.f32.gmra.mrb[0].mxu0 %v3056
        %v3205 = vpop.f32.mrb[0].mxu0
        %v3206 = vadd.f32 0.0, %v3205
        %v3207 = vpop.f32.mrb[0].mxu0
        %3208 = vdwg.mxu0
        %s3209 = scalar_lea.vmem %s6, 3072
        %v3210 = vld [vmem:[%s3209] sm:$0xff]
        %v3211 = vld [vmem:[%s3209 + $0x8] sm:$0xff]
        %v3212 = vld [vmem:[%s3209 + $0x10] sm:$0xff]
        %v3213 = vld [vmem:[%s3209 + $0x18] sm:$0xff]
        %v3214 = vld [vmem:[%s3209 + $0x20] sm:$0xff]
        %v3215 = vld [vmem:[%s3209 + $0x28] sm:$0xff]
        %v3216 = vld [vmem:[%s3209 + $0x30] sm:$0xff]
        %v3217 = vld [vmem:[%s3209 + $0x38] sm:$0xff]
        %v3218 = vld [vmem:[%s3209 + $0x40] sm:$0xff]
        %v3219 = vld [vmem:[%s3209 + $0x48] sm:$0xff]
        %v3220 = vld [vmem:[%s3209 + $0x50] sm:$0xff]
        %v3221 = vld [vmem:[%s3209 + $0x58] sm:$0xff]
        %v3222 = vld [vmem:[%s3209 + $0x60] sm:$0xff]
        %v3223 = vld [vmem:[%s3209 + $0x68] sm:$0xff]
        %v3224 = vld [vmem:[%s3209 + $0x70] sm:$0xff]
        %v3225 = vld [vmem:[%s3209 + $0x78] sm:$0xff]
        %v3226 = vld [vmem:[%s3209 + $0x80] sm:$0xff]
        %v3227 = vld [vmem:[%s3209 + $0x88] sm:$0xff]
        %v3228 = vld [vmem:[%s3209 + $0x90] sm:$0xff]
        %v3229 = vld [vmem:[%s3209 + $0x98] sm:$0xff]
        %v3230 = vld [vmem:[%s3209 + $0xa0] sm:$0xff]
        %v3231 = vld [vmem:[%s3209 + $0xa8] sm:$0xff]
        %v3232 = vld [vmem:[%s3209 + $0xb0] sm:$0xff]
        %v3233 = vld [vmem:[%s3209 + $0xb8] sm:$0xff]
        %v3234 = vld [vmem:[%s3209 + $0xc0] sm:$0xff]
        %v3235 = vld [vmem:[%s3209 + $0xc8] sm:$0xff]
        %v3236 = vld [vmem:[%s3209 + $0xd0] sm:$0xff]
        %v3237 = vld [vmem:[%s3209 + $0xd8] sm:$0xff]
        %v3238 = vld [vmem:[%s3209 + $0xe0] sm:$0xff]
        %v3239 = vld [vmem:[%s3209 + $0xe8] sm:$0xff]
        %v3240 = vld [vmem:[%s3209 + $0xf0] sm:$0xff]
        %v3241 = vld [vmem:[%s3209 + $0xf8] sm:$0xff]
        %v3242 = vld [vmem:[%s3209 + $0x100] sm:$0xff]
        %v3243 = vld [vmem:[%s3209 + $0x108] sm:$0xff]
        %v3244 = vld [vmem:[%s3209 + $0x110] sm:$0xff]
        %v3245 = vld [vmem:[%s3209 + $0x118] sm:$0xff]
        %v3246 = vld [vmem:[%s3209 + $0x120] sm:$0xff]
        %v3247 = vld [vmem:[%s3209 + $0x128] sm:$0xff]
        %v3248 = vld [vmem:[%s3209 + $0x130] sm:$0xff]
        %v3249 = vld [vmem:[%s3209 + $0x138] sm:$0xff]
        %v3250 = vld [vmem:[%s3209 + $0x140] sm:$0xff]
        %v3251 = vld [vmem:[%s3209 + $0x148] sm:$0xff]
        %v3252 = vld [vmem:[%s3209 + $0x150] sm:$0xff]
        %v3253 = vld [vmem:[%s3209 + $0x158] sm:$0xff]
        %v3254 = vld [vmem:[%s3209 + $0x160] sm:$0xff]
        %v3255 = vld [vmem:[%s3209 + $0x168] sm:$0xff]
        %v3256 = vld [vmem:[%s3209 + $0x170] sm:$0xff]
        %v3257 = vld [vmem:[%s3209 + $0x178] sm:$0xff]
        %v3258 = vld [vmem:[%s3209 + $0x180] sm:$0xff]
        %v3259 = vld [vmem:[%s3209 + $0x188] sm:$0xff]
        %v3260 = vld [vmem:[%s3209 + $0x190] sm:$0xff]
        %v3261 = vld [vmem:[%s3209 + $0x198] sm:$0xff]
        %v3262 = vld [vmem:[%s3209 + $0x1a0] sm:$0xff]
        %v3263 = vld [vmem:[%s3209 + $0x1a8] sm:$0xff]
        %v3264 = vld [vmem:[%s3209 + $0x1b0] sm:$0xff]
        %v3265 = vld [vmem:[%s3209 + $0x1b8] sm:$0xff]
        %v3266 = vld [vmem:[%s3209 + $0x1c0] sm:$0xff]
        %v3267 = vld [vmem:[%s3209 + $0x1c8] sm:$0xff]
        %v3268 = vld [vmem:[%s3209 + $0x1d0] sm:$0xff]
        %v3269 = vld [vmem:[%s3209 + $0x1d8] sm:$0xff]
        %v3270 = vld [vmem:[%s3209 + $0x1e0] sm:$0xff]
        %v3271 = vld [vmem:[%s3209 + $0x1e8] sm:$0xff]
        %v3272 = vld [vmem:[%s3209 + $0x1f0] sm:$0xff]
        %v3273 = vld [vmem:[%s3209 + $0x1f8] sm:$0xff]
        %v3274 = vld [vmem:[%s3209 + $0x200] sm:$0xff]
        %v3275 = vld [vmem:[%s3209 + $0x208] sm:$0xff]
        %v3276 = vld [vmem:[%s3209 + $0x210] sm:$0xff]
        %v3277 = vld [vmem:[%s3209 + $0x218] sm:$0xff]
        %v3278 = vld [vmem:[%s3209 + $0x220] sm:$0xff]
        %v3279 = vld [vmem:[%s3209 + $0x228] sm:$0xff]
        %v3280 = vld [vmem:[%s3209 + $0x230] sm:$0xff]
        %v3281 = vld [vmem:[%s3209 + $0x238] sm:$0xff]
        %v3282 = vld [vmem:[%s3209 + $0x240] sm:$0xff]
        %v3283 = vld [vmem:[%s3209 + $0x248] sm:$0xff]
        %v3284 = vld [vmem:[%s3209 + $0x250] sm:$0xff]
        %v3285 = vld [vmem:[%s3209 + $0x258] sm:$0xff]
        %v3286 = vld [vmem:[%s3209 + $0x260] sm:$0xff]
        %v3287 = vld [vmem:[%s3209 + $0x268] sm:$0xff]
        %v3288 = vld [vmem:[%s3209 + $0x270] sm:$0xff]
        %v3289 = vld [vmem:[%s3209 + $0x278] sm:$0xff]
        %v3290 = vld [vmem:[%s3209 + $0x280] sm:$0xff]
        %v3291 = vld [vmem:[%s3209 + $0x288] sm:$0xff]
        %v3292 = vld [vmem:[%s3209 + $0x290] sm:$0xff]
        %v3293 = vld [vmem:[%s3209 + $0x298] sm:$0xff]
        %v3294 = vld [vmem:[%s3209 + $0x2a0] sm:$0xff]
        %v3295 = vld [vmem:[%s3209 + $0x2a8] sm:$0xff]
        %v3296 = vld [vmem:[%s3209 + $0x2b0] sm:$0xff]
        %v3297 = vld [vmem:[%s3209 + $0x2b8] sm:$0xff]
        %v3298 = vld [vmem:[%s3209 + $0x2c0] sm:$0xff]
        %v3299 = vld [vmem:[%s3209 + $0x2c8] sm:$0xff]
        %v3300 = vld [vmem:[%s3209 + $0x2d0] sm:$0xff]
        %v3301 = vld [vmem:[%s3209 + $0x2d8] sm:$0xff]
        %v3302 = vld [vmem:[%s3209 + $0x2e0] sm:$0xff]
        %v3303 = vld [vmem:[%s3209 + $0x2e8] sm:$0xff]
        %v3304 = vld [vmem:[%s3209 + $0x2f0] sm:$0xff]
        %v3305 = vld [vmem:[%s3209 + $0x2f8] sm:$0xff]
        %v3306 = vld [vmem:[%s3209 + $0x300] sm:$0xff]
        %v3307 = vld [vmem:[%s3209 + $0x308] sm:$0xff]
        %v3308 = vld [vmem:[%s3209 + $0x310] sm:$0xff]
        %v3309 = vld [vmem:[%s3209 + $0x318] sm:$0xff]
        %v3310 = vld [vmem:[%s3209 + $0x320] sm:$0xff]
        %v3311 = vld [vmem:[%s3209 + $0x328] sm:$0xff]
        %v3312 = vld [vmem:[%s3209 + $0x330] sm:$0xff]
        %v3313 = vld [vmem:[%s3209 + $0x338] sm:$0xff]
        %v3314 = vld [vmem:[%s3209 + $0x340] sm:$0xff]
        %v3315 = vld [vmem:[%s3209 + $0x348] sm:$0xff]
        %v3316 = vld [vmem:[%s3209 + $0x350] sm:$0xff]
        %v3317 = vld [vmem:[%s3209 + $0x358] sm:$0xff]
        %v3318 = vld [vmem:[%s3209 + $0x360] sm:$0xff]
        %v3319 = vld [vmem:[%s3209 + $0x368] sm:$0xff]
        %v3320 = vld [vmem:[%s3209 + $0x370] sm:$0xff]
        %v3321 = vld [vmem:[%s3209 + $0x378] sm:$0xff]
        %v3322 = vld [vmem:[%s3209 + $0x380] sm:$0xff]
        %v3323 = vld [vmem:[%s3209 + $0x388] sm:$0xff]
        %v3324 = vld [vmem:[%s3209 + $0x390] sm:$0xff]
        %v3325 = vld [vmem:[%s3209 + $0x398] sm:$0xff]
        %v3326 = vld [vmem:[%s3209 + $0x3a0] sm:$0xff]
        %v3327 = vld [vmem:[%s3209 + $0x3a8] sm:$0xff]
        %v3328 = vld [vmem:[%s3209 + $0x3b0] sm:$0xff]
        %v3329 = vld [vmem:[%s3209 + $0x3b8] sm:$0xff]
        %v3330 = vld [vmem:[%s3209 + $0x3c0] sm:$0xff]
        %v3331 = vld [vmem:[%s3209 + $0x3c8] sm:$0xff]
        %v3332 = vld [vmem:[%s3209 + $0x3d0] sm:$0xff]
        %v3333 = vld [vmem:[%s3209 + $0x3d8] sm:$0xff]
        %v3334 = vld [vmem:[%s3209 + $0x3e0] sm:$0xff]
        %v3335 = vld [vmem:[%s3209 + $0x3e8] sm:$0xff]
        %v3336 = vld [vmem:[%s3209 + $0x3f0] sm:$0xff]
        %v3337 = vld [vmem:[%s3209 + $0x3f8] sm:$0xff]
        %v3338 = vld [vmem:[%s3209 + $0x400] sm:$0xff]
        %v3339 = vld [vmem:[%s3209 + $0x408] sm:$0xff]
        %v3340 = vld [vmem:[%s3209 + $0x410] sm:$0xff]
        %v3341 = vld [vmem:[%s3209 + $0x418] sm:$0xff]
        %v3342 = vld [vmem:[%s3209 + $0x420] sm:$0xff]
        %v3343 = vld [vmem:[%s3209 + $0x428] sm:$0xff]
        %v3344 = vld [vmem:[%s3209 + $0x430] sm:$0xff]
        %v3345 = vld [vmem:[%s3209 + $0x438] sm:$0xff]
        %v3346 = vld [vmem:[%s3209 + $0x440] sm:$0xff]
        %v3347 = vld [vmem:[%s3209 + $0x448] sm:$0xff]
        %v3348 = vld [vmem:[%s3209 + $0x450] sm:$0xff]
        %v3349 = vld [vmem:[%s3209 + $0x458] sm:$0xff]
        %v3350 = vld [vmem:[%s3209 + $0x460] sm:$0xff]
        %v3351 = vld [vmem:[%s3209 + $0x468] sm:$0xff]
        %v3352 = vld [vmem:[%s3209 + $0x470] sm:$0xff]
        %v3353 = vld [vmem:[%s3209 + $0x478] sm:$0xff]
        %v3354 = vld [vmem:[%s3209 + $0x480] sm:$0xff]
        %v3355 = vld [vmem:[%s3209 + $0x488] sm:$0xff]
        %v3356 = vld [vmem:[%s3209 + $0x490] sm:$0xff]
        %v3357 = vld [vmem:[%s3209 + $0x498] sm:$0xff]
        %v3358 = vld [vmem:[%s3209 + $0x4a0] sm:$0xff]
        %v3359 = vld [vmem:[%s3209 + $0x4a8] sm:$0xff]
        %v3360 = vld [vmem:[%s3209 + $0x4b0] sm:$0xff]
        %v3361 = vld [vmem:[%s3209 + $0x4b8] sm:$0xff]
        %v3362 = vld [vmem:[%s3209 + $0x4c0] sm:$0xff]
        %v3363 = vld [vmem:[%s3209 + $0x4c8] sm:$0xff]
        %v3364 = vld [vmem:[%s3209 + $0x4d0] sm:$0xff]
        %v3365 = vld [vmem:[%s3209 + $0x4d8] sm:$0xff]
        %v3366 = vld [vmem:[%s3209 + $0x4e0] sm:$0xff]
        %v3367 = vld [vmem:[%s3209 + $0x4e8] sm:$0xff]
        %v3368 = vld [vmem:[%s3209 + $0x4f0] sm:$0xff]
        %v3369 = vld [vmem:[%s3209 + $0x4f8] sm:$0xff]
        %v3370 = vld [vmem:[%s3209 + $0x500] sm:$0xff]
        %v3371 = vld [vmem:[%s3209 + $0x508] sm:$0xff]
        %v3372 = vld [vmem:[%s3209 + $0x510] sm:$0xff]
        %v3373 = vld [vmem:[%s3209 + $0x518] sm:$0xff]
        %v3374 = vld [vmem:[%s3209 + $0x520] sm:$0xff]
        %v3375 = vld [vmem:[%s3209 + $0x528] sm:$0xff]
        %v3376 = vld [vmem:[%s3209 + $0x530] sm:$0xff]
        %v3377 = vld [vmem:[%s3209 + $0x538] sm:$0xff]
        %v3378 = vld [vmem:[%s3209 + $0x540] sm:$0xff]
        %v3379 = vld [vmem:[%s3209 + $0x548] sm:$0xff]
        %v3380 = vld [vmem:[%s3209 + $0x550] sm:$0xff]
        %v3381 = vld [vmem:[%s3209 + $0x558] sm:$0xff]
        %v3382 = vld [vmem:[%s3209 + $0x560] sm:$0xff]
        %v3383 = vld [vmem:[%s3209 + $0x568] sm:$0xff]
        %v3384 = vld [vmem:[%s3209 + $0x570] sm:$0xff]
        %v3385 = vld [vmem:[%s3209 + $0x578] sm:$0xff]
        %v3386 = vld [vmem:[%s3209 + $0x580] sm:$0xff]
        %v3387 = vld [vmem:[%s3209 + $0x588] sm:$0xff]
        %v3388 = vld [vmem:[%s3209 + $0x590] sm:$0xff]
        %v3389 = vld [vmem:[%s3209 + $0x598] sm:$0xff]
        %v3390 = vld [vmem:[%s3209 + $0x5a0] sm:$0xff]
        %v3391 = vld [vmem:[%s3209 + $0x5a8] sm:$0xff]
        %v3392 = vld [vmem:[%s3209 + $0x5b0] sm:$0xff]
        %v3393 = vld [vmem:[%s3209 + $0x5b8] sm:$0xff]
        %v3394 = vld [vmem:[%s3209 + $0x5c0] sm:$0xff]
        %v3395 = vld [vmem:[%s3209 + $0x5c8] sm:$0xff]
        %v3396 = vld [vmem:[%s3209 + $0x5d0] sm:$0xff]
        %v3397 = vld [vmem:[%s3209 + $0x5d8] sm:$0xff]
        %v3398 = vld [vmem:[%s3209 + $0x5e0] sm:$0xff]
        %v3399 = vld [vmem:[%s3209 + $0x5e8] sm:$0xff]
        %v3400 = vld [vmem:[%s3209 + $0x5f0] sm:$0xff]
        %v3401 = vld [vmem:[%s3209 + $0x5f8] sm:$0xff]
        %v3402 = vld [vmem:[%s3209 + $0x600] sm:$0xff]
        %v3403 = vld [vmem:[%s3209 + $0x608] sm:$0xff]
        %v3404 = vld [vmem:[%s3209 + $0x610] sm:$0xff]
        %v3405 = vld [vmem:[%s3209 + $0x618] sm:$0xff]
        %v3406 = vld [vmem:[%s3209 + $0x620] sm:$0xff]
        %v3407 = vld [vmem:[%s3209 + $0x628] sm:$0xff]
        %v3408 = vld [vmem:[%s3209 + $0x630] sm:$0xff]
        %v3409 = vld [vmem:[%s3209 + $0x638] sm:$0xff]
        %v3410 = vld [vmem:[%s3209 + $0x640] sm:$0xff]
        %v3411 = vld [vmem:[%s3209 + $0x648] sm:$0xff]
        %v3412 = vld [vmem:[%s3209 + $0x650] sm:$0xff]
        %v3413 = vld [vmem:[%s3209 + $0x658] sm:$0xff]
        %v3414 = vld [vmem:[%s3209 + $0x660] sm:$0xff]
        %v3415 = vld [vmem:[%s3209 + $0x668] sm:$0xff]
        %v3416 = vld [vmem:[%s3209 + $0x670] sm:$0xff]
        %v3417 = vld [vmem:[%s3209 + $0x678] sm:$0xff]
        %v3418 = vld [vmem:[%s3209 + $0x680] sm:$0xff]
        %v3419 = vld [vmem:[%s3209 + $0x688] sm:$0xff]
        %v3420 = vld [vmem:[%s3209 + $0x690] sm:$0xff]
        %v3421 = vld [vmem:[%s3209 + $0x698] sm:$0xff]
        %v3422 = vld [vmem:[%s3209 + $0x6a0] sm:$0xff]
        %v3423 = vld [vmem:[%s3209 + $0x6a8] sm:$0xff]
        %v3424 = vld [vmem:[%s3209 + $0x6b0] sm:$0xff]
        %v3425 = vld [vmem:[%s3209 + $0x6b8] sm:$0xff]
        %v3426 = vld [vmem:[%s3209 + $0x6c0] sm:$0xff]
        %v3427 = vld [vmem:[%s3209 + $0x6c8] sm:$0xff]
        %v3428 = vld [vmem:[%s3209 + $0x6d0] sm:$0xff]
        %v3429 = vld [vmem:[%s3209 + $0x6d8] sm:$0xff]
        %v3430 = vld [vmem:[%s3209 + $0x6e0] sm:$0xff]
        %v3431 = vld [vmem:[%s3209 + $0x6e8] sm:$0xff]
        %v3432 = vld [vmem:[%s3209 + $0x6f0] sm:$0xff]
        %v3433 = vld [vmem:[%s3209 + $0x6f8] sm:$0xff]
        %v3434 = vld [vmem:[%s3209 + $0x700] sm:$0xff]
        %v3435 = vld [vmem:[%s3209 + $0x708] sm:$0xff]
        %v3436 = vld [vmem:[%s3209 + $0x710] sm:$0xff]
        %v3437 = vld [vmem:[%s3209 + $0x718] sm:$0xff]
        %v3438 = vld [vmem:[%s3209 + $0x720] sm:$0xff]
        %v3439 = vld [vmem:[%s3209 + $0x728] sm:$0xff]
        %v3440 = vld [vmem:[%s3209 + $0x730] sm:$0xff]
        %v3441 = vld [vmem:[%s3209 + $0x738] sm:$0xff]
        %v3442 = vld [vmem:[%s3209 + $0x740] sm:$0xff]
        %v3443 = vld [vmem:[%s3209 + $0x748] sm:$0xff]
        %v3444 = vld [vmem:[%s3209 + $0x750] sm:$0xff]
        %v3445 = vld [vmem:[%s3209 + $0x758] sm:$0xff]
        %v3446 = vld [vmem:[%s3209 + $0x760] sm:$0xff]
        %v3447 = vld [vmem:[%s3209 + $0x768] sm:$0xff]
        %v3448 = vld [vmem:[%s3209 + $0x770] sm:$0xff]
        %v3449 = vld [vmem:[%s3209 + $0x778] sm:$0xff]
        %v3450 = vld [vmem:[%s3209 + $0x780] sm:$0xff]
        %v3451 = vld [vmem:[%s3209 + $0x788] sm:$0xff]
        %v3452 = vld [vmem:[%s3209 + $0x790] sm:$0xff]
        %v3453 = vld [vmem:[%s3209 + $0x798] sm:$0xff]
        %v3454 = vld [vmem:[%s3209 + $0x7a0] sm:$0xff]
        %v3455 = vld [vmem:[%s3209 + $0x7a8] sm:$0xff]
        %v3456 = vld [vmem:[%s3209 + $0x7b0] sm:$0xff]
        %v3457 = vld [vmem:[%s3209 + $0x7b8] sm:$0xff]
        %v3458 = vld [vmem:[%s3209 + $0x7c0] sm:$0xff]
        %v3459 = vld [vmem:[%s3209 + $0x7c8] sm:$0xff]
        %v3460 = vld [vmem:[%s3209 + $0x7d0] sm:$0xff]
        %v3461 = vld [vmem:[%s3209 + $0x7d8] sm:$0xff]
        %v3462 = vld [vmem:[%s3209 + $0x7e0] sm:$0xff]
        %v3463 = vld [vmem:[%s3209 + $0x7e8] sm:$0xff]
        %v3464 = vld [vmem:[%s3209 + $0x7f0] sm:$0xff]
        %v3465 = vld [vmem:[%s3209 + $0x7f8] sm:$0xff]
        %v3466 = vld [vmem:[%s3209 + $0x800] sm:$0xff]
        %v3467 = vld [vmem:[%s3209 + $0x808] sm:$0xff]
        %v3468 = vld [vmem:[%s3209 + $0x810] sm:$0xff]
        %v3469 = vld [vmem:[%s3209 + $0x818] sm:$0xff]
        %v3470 = vld [vmem:[%s3209 + $0x820] sm:$0xff]
        %v3471 = vld [vmem:[%s3209 + $0x828] sm:$0xff]
        %v3472 = vld [vmem:[%s3209 + $0x830] sm:$0xff]
        %v3473 = vld [vmem:[%s3209 + $0x838] sm:$0xff]
        %v3474 = vld [vmem:[%s3209 + $0x840] sm:$0xff]
        %v3475 = vld [vmem:[%s3209 + $0x848] sm:$0xff]
        %v3476 = vld [vmem:[%s3209 + $0x850] sm:$0xff]
        %v3477 = vld [vmem:[%s3209 + $0x858] sm:$0xff]
        %v3478 = vld [vmem:[%s3209 + $0x860] sm:$0xff]
        %v3479 = vld [vmem:[%s3209 + $0x868] sm:$0xff]
        %v3480 = vld [vmem:[%s3209 + $0x870] sm:$0xff]
        %v3481 = vld [vmem:[%s3209 + $0x878] sm:$0xff]
        %v3482 = vld [vmem:[%s3209 + $0x880] sm:$0xff]
        %v3483 = vld [vmem:[%s3209 + $0x888] sm:$0xff]
        %v3484 = vld [vmem:[%s3209 + $0x890] sm:$0xff]
        %v3485 = vld [vmem:[%s3209 + $0x898] sm:$0xff]
        %v3486 = vld [vmem:[%s3209 + $0x8a0] sm:$0xff]
        %v3487 = vld [vmem:[%s3209 + $0x8a8] sm:$0xff]
        %v3488 = vld [vmem:[%s3209 + $0x8b0] sm:$0xff]
        %v3489 = vld [vmem:[%s3209 + $0x8b8] sm:$0xff]
        %v3490 = vld [vmem:[%s3209 + $0x8c0] sm:$0xff]
        %v3491 = vld [vmem:[%s3209 + $0x8c8] sm:$0xff]
        %v3492 = vld [vmem:[%s3209 + $0x8d0] sm:$0xff]
        %v3493 = vld [vmem:[%s3209 + $0x8d8] sm:$0xff]
        %v3494 = vld [vmem:[%s3209 + $0x8e0] sm:$0xff]
        %v3495 = vld [vmem:[%s3209 + $0x8e8] sm:$0xff]
        %v3496 = vld [vmem:[%s3209 + $0x8f0] sm:$0xff]
        %v3497 = vld [vmem:[%s3209 + $0x8f8] sm:$0xff]
        %v3498 = vld [vmem:[%s3209 + $0x900] sm:$0xff]
        %v3499 = vld [vmem:[%s3209 + $0x908] sm:$0xff]
        %v3500 = vld [vmem:[%s3209 + $0x910] sm:$0xff]
        %v3501 = vld [vmem:[%s3209 + $0x918] sm:$0xff]
        %v3502 = vld [vmem:[%s3209 + $0x920] sm:$0xff]
        %v3503 = vld [vmem:[%s3209 + $0x928] sm:$0xff]
        %v3504 = vld [vmem:[%s3209 + $0x930] sm:$0xff]
        %v3505 = vld [vmem:[%s3209 + $0x938] sm:$0xff]
        %v3506 = vld [vmem:[%s3209 + $0x940] sm:$0xff]
        %v3507 = vld [vmem:[%s3209 + $0x948] sm:$0xff]
        %v3508 = vld [vmem:[%s3209 + $0x950] sm:$0xff]
        %v3509 = vld [vmem:[%s3209 + $0x958] sm:$0xff]
        %v3510 = vld [vmem:[%s3209 + $0x960] sm:$0xff]
        %v3511 = vld [vmem:[%s3209 + $0x968] sm:$0xff]
        %v3512 = vld [vmem:[%s3209 + $0x970] sm:$0xff]
        %v3513 = vld [vmem:[%s3209 + $0x978] sm:$0xff]
        %v3514 = vld [vmem:[%s3209 + $0x980] sm:$0xff]
        %v3515 = vld [vmem:[%s3209 + $0x988] sm:$0xff]
        %v3516 = vld [vmem:[%s3209 + $0x990] sm:$0xff]
        %v3517 = vld [vmem:[%s3209 + $0x998] sm:$0xff]
        %v3518 = vld [vmem:[%s3209 + $0x9a0] sm:$0xff]
        %v3519 = vld [vmem:[%s3209 + $0x9a8] sm:$0xff]
        %v3520 = vld [vmem:[%s3209 + $0x9b0] sm:$0xff]
        %v3521 = vld [vmem:[%s3209 + $0x9b8] sm:$0xff]
        %v3522 = vld [vmem:[%s3209 + $0x9c0] sm:$0xff]
        %v3523 = vld [vmem:[%s3209 + $0x9c8] sm:$0xff]
        %v3524 = vld [vmem:[%s3209 + $0x9d0] sm:$0xff]
        %v3525 = vld [vmem:[%s3209 + $0x9d8] sm:$0xff]
        %v3526 = vld [vmem:[%s3209 + $0x9e0] sm:$0xff]
        %v3527 = vld [vmem:[%s3209 + $0x9e8] sm:$0xff]
        %v3528 = vld [vmem:[%s3209 + $0x9f0] sm:$0xff]
        %v3529 = vld [vmem:[%s3209 + $0x9f8] sm:$0xff]
        %v3530 = vld [vmem:[%s3209 + $0xa00] sm:$0xff]
        %v3531 = vld [vmem:[%s3209 + $0xa08] sm:$0xff]
        %v3532 = vld [vmem:[%s3209 + $0xa10] sm:$0xff]
        %v3533 = vld [vmem:[%s3209 + $0xa18] sm:$0xff]
        %v3534 = vld [vmem:[%s3209 + $0xa20] sm:$0xff]
        %v3535 = vld [vmem:[%s3209 + $0xa28] sm:$0xff]
        %v3536 = vld [vmem:[%s3209 + $0xa30] sm:$0xff]
        %v3537 = vld [vmem:[%s3209 + $0xa38] sm:$0xff]
        %v3538 = vld [vmem:[%s3209 + $0xa40] sm:$0xff]
        %v3539 = vld [vmem:[%s3209 + $0xa48] sm:$0xff]
        %v3540 = vld [vmem:[%s3209 + $0xa50] sm:$0xff]
        %v3541 = vld [vmem:[%s3209 + $0xa58] sm:$0xff]
        %v3542 = vld [vmem:[%s3209 + $0xa60] sm:$0xff]
        %v3543 = vld [vmem:[%s3209 + $0xa68] sm:$0xff]
        %v3544 = vld [vmem:[%s3209 + $0xa70] sm:$0xff]
        %v3545 = vld [vmem:[%s3209 + $0xa78] sm:$0xff]
        %v3546 = vld [vmem:[%s3209 + $0xa80] sm:$0xff]
        %v3547 = vld [vmem:[%s3209 + $0xa88] sm:$0xff]
        %v3548 = vld [vmem:[%s3209 + $0xa90] sm:$0xff]
        %v3549 = vld [vmem:[%s3209 + $0xa98] sm:$0xff]
        %v3550 = vld [vmem:[%s3209 + $0xaa0] sm:$0xff]
        %v3551 = vld [vmem:[%s3209 + $0xaa8] sm:$0xff]
        %v3552 = vld [vmem:[%s3209 + $0xab0] sm:$0xff]
        %v3553 = vld [vmem:[%s3209 + $0xab8] sm:$0xff]
        %v3554 = vld [vmem:[%s3209 + $0xac0] sm:$0xff]
        %v3555 = vld [vmem:[%s3209 + $0xac8] sm:$0xff]
        %v3556 = vld [vmem:[%s3209 + $0xad0] sm:$0xff]
        %v3557 = vld [vmem:[%s3209 + $0xad8] sm:$0xff]
        %v3558 = vld [vmem:[%s3209 + $0xae0] sm:$0xff]
        %v3559 = vld [vmem:[%s3209 + $0xae8] sm:$0xff]
        %v3560 = vld [vmem:[%s3209 + $0xaf0] sm:$0xff]
        %v3561 = vld [vmem:[%s3209 + $0xaf8] sm:$0xff]
        %v3562 = vld [vmem:[%s3209 + $0xb00] sm:$0xff]
        %v3563 = vld [vmem:[%s3209 + $0xb08] sm:$0xff]
        %v3564 = vld [vmem:[%s3209 + $0xb10] sm:$0xff]
        %v3565 = vld [vmem:[%s3209 + $0xb18] sm:$0xff]
        %v3566 = vld [vmem:[%s3209 + $0xb20] sm:$0xff]
        %v3567 = vld [vmem:[%s3209 + $0xb28] sm:$0xff]
        %v3568 = vld [vmem:[%s3209 + $0xb30] sm:$0xff]
        %v3569 = vld [vmem:[%s3209 + $0xb38] sm:$0xff]
        %v3570 = vld [vmem:[%s3209 + $0xb40] sm:$0xff]
        %v3571 = vld [vmem:[%s3209 + $0xb48] sm:$0xff]
        %v3572 = vld [vmem:[%s3209 + $0xb50] sm:$0xff]
        %v3573 = vld [vmem:[%s3209 + $0xb58] sm:$0xff]
        %v3574 = vld [vmem:[%s3209 + $0xb60] sm:$0xff]
        %v3575 = vld [vmem:[%s3209 + $0xb68] sm:$0xff]
        %v3576 = vld [vmem:[%s3209 + $0xb70] sm:$0xff]
        %v3577 = vld [vmem:[%s3209 + $0xb78] sm:$0xff]
        %v3578 = vld [vmem:[%s3209 + $0xb80] sm:$0xff]
        %v3579 = vld [vmem:[%s3209 + $0xb88] sm:$0xff]
        %v3580 = vld [vmem:[%s3209 + $0xb90] sm:$0xff]
        %v3581 = vld [vmem:[%s3209 + $0xb98] sm:$0xff]
        %v3582 = vld [vmem:[%s3209 + $0xba0] sm:$0xff]
        %v3583 = vld [vmem:[%s3209 + $0xba8] sm:$0xff]
        %v3584 = vld [vmem:[%s3209 + $0xbb0] sm:$0xff]
        %v3585 = vld [vmem:[%s3209 + $0xbb8] sm:$0xff]
        %v3586 = vld [vmem:[%s3209 + $0xbc0] sm:$0xff]
        %v3587 = vld [vmem:[%s3209 + $0xbc8] sm:$0xff]
        %v3588 = vld [vmem:[%s3209 + $0xbd0] sm:$0xff]
        %v3589 = vld [vmem:[%s3209 + $0xbd8] sm:$0xff]
        %v3590 = vld [vmem:[%s3209 + $0xbe0] sm:$0xff]
        %v3591 = vld [vmem:[%s3209 + $0xbe8] sm:$0xff]
        %v3592 = vld [vmem:[%s3209 + $0xbf0] sm:$0xff]
        %v3593 = vld [vmem:[%s3209 + $0xbf8] sm:$0xff]
        %v3594 = vlaneseq
        %v3595 = vshrl.u32 %v3594, 7
        %v3596 = vsub.s32 1, %v3595
        %v3597 = vrot.slane %v464, %v3596
        %v3598 = vlaneseq
        %v3599 = vshrl.u32 %v3598, 7
        %v3600 = vsub.s32 3, %v3599
        %v3601 = vrot.slane %v464, %v3600
        %v3602 = vlaneseq
        %v3603 = vshrl.u32 %v3602, 7
        %v3604 = vsub.s32 5, %v3603
        %v3605 = vrot.slane %v464, %v3604
        %v3606 = vlaneseq
        %v3607 = vshrl.u32 %v3606, 7
        %v3608 = vsub.s32 7, %v3607
        %v3609 = vrot.slane %v464, %v3608
        %v3610 = vlaneseq
        %v3611 = vshrl.u32 %v3610, 7
        %v3612 = vsub.s32 1, %v3611
        %v3613 = vrot.slane %v465, %v3612
        %v3614 = vlaneseq
        %v3615 = vshrl.u32 %v3614, 7
        %v3616 = vsub.s32 3, %v3615
        %v3617 = vrot.slane %v465, %v3616
        %v3618 = vlaneseq
        %v3619 = vshrl.u32 %v3618, 7
        %v3620 = vsub.s32 5, %v3619
        %v3621 = vrot.slane %v465, %v3620
        %v3622 = vlaneseq
        %v3623 = vshrl.u32 %v3622, 7
        %v3624 = vsub.s32 7, %v3623
        %v3625 = vrot.slane %v465, %v3624
        %v3634 = vlaneseq
        %v3635 = vshrl.u32 %v3634, 7
        %v3636 = vsub.s32 1, %v3635
        %v3637 = vrot.slane %v3597, %v3636
        %v3638 = vlaneseq
        %v3639 = vshrl.u32 %v3638, 7
        %v3640 = vsub.s32 1, %v3639
        %v3641 = vrot.slane %v3601, %v3640
        %v3642 = vlaneseq
        %v3643 = vshrl.u32 %v3642, 7
        %v3644 = vsub.s32 1, %v3643
        %v3645 = vrot.slane %v3605, %v3644
        %v3646 = vlaneseq
        %v3647 = vshrl.u32 %v3646, 7
        %v3648 = vsub.s32 1, %v3647
        %v3649 = vrot.slane %v3609, %v3648
        %v3650 = vlaneseq
        %v3651 = vshrl.u32 %v3650, 7
        %v3652 = vsub.s32 1, %v3651
        %v3653 = vrot.slane %v3613, %v3652
        %v3654 = vlaneseq
        %v3655 = vshrl.u32 %v3654, 7
        %v3656 = vsub.s32 1, %v3655
        %v3657 = vrot.slane %v3617, %v3656
        %v3658 = vlaneseq
        %v3659 = vshrl.u32 %v3658, 7
        %v3660 = vsub.s32 1, %v3659
        %v3661 = vrot.slane %v3621, %v3660
        %v3662 = vlaneseq
        %v3663 = vshrl.u32 %v3662, 7
        %v3664 = vsub.s32 1, %v3663
        %v3665 = vrot.slane %v3625, %v3664
        %3666 = vmatprep.subr.mxu0 %v3211
        %3667 = vmatpush1.msra.mxu0 %v3210
        %3668 = vmatprep.subr.mxu0 %v3219
        %3669 = vmatpush1.msra.mxu0 %v3218
        %3670 = vmatprep.subr.mxu0 %v3227
        %3671 = vmatpush1.msra.mxu0 %v3226
        %3672 = vmatprep.subr.mxu0 %v3235
        %3673 = vmatpush1.msra.mxu0 %v3234
        %3674 = vmatprep.subr.mxu0 %v3243
        %3675 = vmatpush1.msra.mxu0 %v3242
        %3676 = vmatprep.subr.mxu0 %v3251
        %3677 = vmatpush1.msra.mxu0 %v3250
        %3678 = vmatprep.subr.mxu0 %v3259
        %3679 = vmatpush1.msra.mxu0 %v3258
        %3680 = vmatprep.subr.mxu0 %v3267
        %3681 = vmatpush1.msra.mxu0 %v3266
        %3682 = vmatprep.subr.mxu0 %v3275
        %3683 = vmatpush1.msra.mxu0 %v3274
        %3684 = vmatprep.subr.mxu0 %v3283
        %3685 = vmatpush1.msra.mxu0 %v3282
        %3686 = vmatprep.subr.mxu0 %v3291
        %3687 = vmatpush1.msra.mxu0 %v3290
        %3688 = vmatprep.subr.mxu0 %v3299
        %3689 = vmatpush1.msra.mxu0 %v3298
        %3690 = vmatprep.subr.mxu0 %v3307
        %3691 = vmatpush1.msra.mxu0 %v3306
        %3692 = vmatprep.subr.mxu0 %v3315
        %3693 = vmatpush1.msra.mxu0 %v3314
        %3694 = vmatprep.subr.mxu0 %v3323
        %3695 = vmatpush1.msra.mxu0 %v3322
        %3696 = vmatprep.subr.mxu0 %v3331
        %3697 = vmatpush1.msra.mxu0 %v3330
        %3698 = vmatprep.subr.mxu0 %v3339
        %3699 = vmatpush1.msra.mxu0 %v3338
        %3700 = vmatprep.subr.mxu0 %v3347
        %3701 = vmatpush1.msra.mxu0 %v3346
        %3702 = vmatprep.subr.mxu0 %v3355
        %3703 = vmatpush1.msra.mxu0 %v3354
        %3704 = vmatprep.subr.mxu0 %v3363
        %3705 = vmatpush1.msra.mxu0 %v3362
        %3706 = vmatprep.subr.mxu0 %v3371
        %3707 = vmatpush1.msra.mxu0 %v3370
        %3708 = vmatprep.subr.mxu0 %v3379
        %3709 = vmatpush1.msra.mxu0 %v3378
        %3710 = vmatprep.subr.mxu0 %v3387
        %3711 = vmatpush1.msra.mxu0 %v3386
        %3712 = vmatprep.subr.mxu0 %v3395
        %3713 = vmatpush1.msra.mxu0 %v3394
        %3714 = vmatprep.subr.mxu0 %v3403
        %3715 = vmatpush1.msra.mxu0 %v3402
        %3716 = vmatprep.subr.mxu0 %v3411
        %3717 = vmatpush1.msra.mxu0 %v3410
        %3718 = vmatprep.subr.mxu0 %v3419
        %3719 = vmatpush1.msra.mxu0 %v3418
        %3720 = vmatprep.subr.mxu0 %v3427
        %3721 = vmatpush1.msra.mxu0 %v3426
        %3722 = vmatprep.subr.mxu0 %v3435
        %3723 = vmatpush1.msra.mxu0 %v3434
        %3724 = vmatprep.subr.mxu0 %v3443
        %3725 = vmatpush1.msra.mxu0 %v3442
        %3726 = vmatprep.subr.mxu0 %v3451
        %3727 = vmatpush1.msra.mxu0 %v3450
        %3728 = vmatprep.subr.mxu0 %v3459
        %3729 = vmatpush1.msra.mxu0 %v3458
        %3730 = vmatprep.mubr.f32.mxu0 %v3137
        %3731 = vmatmul.mubr.f32.gmra.mrb[0].mxu0 %v3135
        %v3732 = vpop.f32.mrb[0].mxu0
        %v3733 = vadd.f32 %v3637, %v3732
        %v3734 = vpop.f32.mrb[0].mxu0
        %v3735 = vadd.f32 %v3641, %v3734
        %3736 = vdwg.mxu0
        %3737 = vmatprep.subr.mxu0 %v3467
        %3738 = vmatpush1.msra.mxu0 %v3466
        %3739 = vmatprep.subr.mxu0 %v3475
        %3740 = vmatpush1.msra.mxu0 %v3474
        %3741 = vmatprep.subr.mxu0 %v3483
        %3742 = vmatpush1.msra.mxu0 %v3482
        %3743 = vmatprep.subr.mxu0 %v3491
        %3744 = vmatpush1.msra.mxu0 %v3490
        %3745 = vmatprep.subr.mxu0 %v3499
        %3746 = vmatpush1.msra.mxu0 %v3498
        %3747 = vmatprep.subr.mxu0 %v3507
        %3748 = vmatpush1.msra.mxu0 %v3506
        %3749 = vmatprep.subr.mxu0 %v3515
        %3750 = vmatpush1.msra.mxu0 %v3514
        %3751 = vmatprep.subr.mxu0 %v3523
        %3752 = vmatpush1.msra.mxu0 %v3522
        %3753 = vmatprep.subr.mxu0 %v3531
        %3754 = vmatpush1.msra.mxu0 %v3530
        %3755 = vmatprep.subr.mxu0 %v3539
        %3756 = vmatpush1.msra.mxu0 %v3538
        %3757 = vmatprep.subr.mxu0 %v3547
        %3758 = vmatpush1.msra.mxu0 %v3546
        %3759 = vmatprep.subr.mxu0 %v3555
        %3760 = vmatpush1.msra.mxu0 %v3554
        %3761 = vmatprep.subr.mxu0 %v3563
        %3762 = vmatpush1.msra.mxu0 %v3562
        %3763 = vmatprep.subr.mxu0 %v3571
        %3764 = vmatpush1.msra.mxu0 %v3570
        %3765 = vmatprep.subr.mxu0 %v3579
        %3766 = vmatpush1.msra.mxu0 %v3578
        %3767 = vmatprep.subr.mxu0 %v3587
        %3768 = vmatpush1.msra.mxu0 %v3586
        %3769 = vmatprep.subr.mxu0 0.0
        %3770 = vmatpush1.msra.mxu0 0.0
        %3771 = vmatprep.subr.mxu0 0.0
        %3772 = vmatpush1.msra.mxu0 0.0
        %3773 = vmatprep.subr.mxu0 0.0
        %3774 = vmatpush1.msra.mxu0 0.0
        %3775 = vmatprep.subr.mxu0 0.0
        %3776 = vmatpush1.msra.mxu0 0.0
        %3777 = vmatprep.subr.mxu0 0.0
        %3778 = vmatpush1.msra.mxu0 0.0
        %3779 = vmatprep.subr.mxu0 0.0
        %3780 = vmatpush1.msra.mxu0 0.0
        %3781 = vmatprep.subr.mxu0 0.0
        %3782 = vmatpush1.msra.mxu0 0.0
        %3783 = vmatprep.subr.mxu0 0.0
        %3784 = vmatpush1.msra.mxu0 0.0
        %3785 = vmatprep.subr.mxu0 0.0
        %3786 = vmatpush1.msra.mxu0 0.0
        %3787 = vmatprep.subr.mxu0 0.0
        %3788 = vmatpush1.msra.mxu0 0.0
        %3789 = vmatprep.subr.mxu0 0.0
        %3790 = vmatpush1.msra.mxu0 0.0
        %3791 = vmatprep.subr.mxu0 0.0
        %3792 = vmatpush1.msra.mxu0 0.0
        %3793 = vmatprep.subr.mxu0 0.0
        %3794 = vmatpush1.msra.mxu0 0.0
        %3795 = vmatprep.subr.mxu0 0.0
        %3796 = vmatpush1.msra.mxu0 0.0
        %3797 = vmatprep.subr.mxu0 0.0
        %3798 = vmatpush1.msra.mxu0 0.0
        %3799 = vmatprep.subr.mxu0 0.0
        %3800 = vmatpush1.msra.mxu0 0.0
        %3801 = vmatprep.mubr.f32.mxu0 0.0
        %3802 = vmatmul.mubr.f32.gmra.mrb[0].mxu0 %v3206
        %v3803 = vpop.f32.mrb[0].mxu0
        %v3804 = vadd.f32 %v3733, %v3803
        %v3805 = vpop.f32.mrb[0].mxu0
        %v3806 = vadd.f32 %v3735, %v3805
        %3807 = vdwg.mxu0
        %3808 = vmatprep.subr.mxu0 %v3213
        %3809 = vmatpush1.msra.mxu0 %v3212
        %3810 = vmatprep.subr.mxu0 %v3221
        %3811 = vmatpush1.msra.mxu0 %v3220
        %3812 = vmatprep.subr.mxu0 %v3229
        %3813 = vmatpush1.msra.mxu0 %v3228
        %3814 = vmatprep.subr.mxu0 %v3237
        %3815 = vmatpush1.msra.mxu0 %v3236
        %3816 = vmatprep.subr.mxu0 %v3245
        %3817 = vmatpush1.msra.mxu0 %v3244
        %3818 = vmatprep.subr.mxu0 %v3253
        %3819 = vmatpush1.msra.mxu0 %v3252
        %3820 = vmatprep.subr.mxu0 %v3261
        %3821 = vmatpush1.msra.mxu0 %v3260
        %3822 = vmatprep.subr.mxu0 %v3269
        %3823 = vmatpush1.msra.mxu0 %v3268
        %3824 = vmatprep.subr.mxu0 %v3277
        %3825 = vmatpush1.msra.mxu0 %v3276
        %3826 = vmatprep.subr.mxu0 %v3285
        %3827 = vmatpush1.msra.mxu0 %v3284
        %3828 = vmatprep.subr.mxu0 %v3293
        %3829 = vmatpush1.msra.mxu0 %v3292
        %3830 = vmatprep.subr.mxu0 %v3301
        %3831 = vmatpush1.msra.mxu0 %v3300
        %3832 = vmatprep.subr.mxu0 %v3309
        %3833 = vmatpush1.msra.mxu0 %v3308
        %3834 = vmatprep.subr.mxu0 %v3317
        %3835 = vmatpush1.msra.mxu0 %v3316
        %3836 = vmatprep.subr.mxu0 %v3325
        %3837 = vmatpush1.msra.mxu0 %v3324
        %3838 = vmatprep.subr.mxu0 %v3333
        %3839 = vmatpush1.msra.mxu0 %v3332
        %3840 = vmatprep.subr.mxu0 %v3341
        %3841 = vmatpush1.msra.mxu0 %v3340
        %3842 = vmatprep.subr.mxu0 %v3349
        %3843 = vmatpush1.msra.mxu0 %v3348
        %3844 = vmatprep.subr.mxu0 %v3357
        %3845 = vmatpush1.msra.mxu0 %v3356
        %3846 = vmatprep.subr.mxu0 %v3365
        %3847 = vmatpush1.msra.mxu0 %v3364
        %3848 = vmatprep.subr.mxu0 %v3373
        %3849 = vmatpush1.msra.mxu0 %v3372
        %3850 = vmatprep.subr.mxu0 %v3381
        %3851 = vmatpush1.msra.mxu0 %v3380
        %3852 = vmatprep.subr.mxu0 %v3389
        %3853 = vmatpush1.msra.mxu0 %v3388
        %3854 = vmatprep.subr.mxu0 %v3397
        %3855 = vmatpush1.msra.mxu0 %v3396
        %3856 = vmatprep.subr.mxu0 %v3405
        %3857 = vmatpush1.msra.mxu0 %v3404
        %3858 = vmatprep.subr.mxu0 %v3413
        %3859 = vmatpush1.msra.mxu0 %v3412
        %3860 = vmatprep.subr.mxu0 %v3421
        %3861 = vmatpush1.msra.mxu0 %v3420
        %3862 = vmatprep.subr.mxu0 %v3429
        %3863 = vmatpush1.msra.mxu0 %v3428
        %3864 = vmatprep.subr.mxu0 %v3437
        %3865 = vmatpush1.msra.mxu0 %v3436
        %3866 = vmatprep.subr.mxu0 %v3445
        %3867 = vmatpush1.msra.mxu0 %v3444
        %3868 = vmatprep.subr.mxu0 %v3453
        %3869 = vmatpush1.msra.mxu0 %v3452
        %3870 = vmatprep.subr.mxu0 %v3461
        %3871 = vmatpush1.msra.mxu0 %v3460
        %3872 = vmatprep.mubr.f32.mxu0 %v3137
        %3873 = vmatmul.mubr.f32.gmra.mrb[0].mxu0 %v3135
        %v3874 = vpop.f32.mrb[0].mxu0
        %v3875 = vadd.f32 %v3645, %v3874
        %v3876 = vpop.f32.mrb[0].mxu0
        %v3877 = vadd.f32 %v3649, %v3876
        %3878 = vdwg.mxu0
        %3879 = vmatprep.subr.mxu0 %v3469
        %3880 = vmatpush1.msra.mxu0 %v3468
        %3881 = vmatprep.subr.mxu0 %v3477
        %3882 = vmatpush1.msra.mxu0 %v3476
        %3883 = vmatprep.subr.mxu0 %v3485
        %3884 = vmatpush1.msra.mxu0 %v3484
        %3885 = vmatprep.subr.mxu0 %v3493
        %3886 = vmatpush1.msra.mxu0 %v3492
        %3887 = vmatprep.subr.mxu0 %v3501
        %3888 = vmatpush1.msra.mxu0 %v3500
        %3889 = vmatprep.subr.mxu0 %v3509
        %3890 = vmatpush1.msra.mxu0 %v3508
        %3891 = vmatprep.subr.mxu0 %v3517
        %3892 = vmatpush1.msra.mxu0 %v3516
        %3893 = vmatprep.subr.mxu0 %v3525
        %3894 = vmatpush1.msra.mxu0 %v3524
        %3895 = vmatprep.subr.mxu0 %v3533
        %3896 = vmatpush1.msra.mxu0 %v3532
        %3897 = vmatprep.subr.mxu0 %v3541
        %3898 = vmatpush1.msra.mxu0 %v3540
        %3899 = vmatprep.subr.mxu0 %v3549
        %3900 = vmatpush1.msra.mxu0 %v3548
        %3901 = vmatprep.subr.mxu0 %v3557
        %3902 = vmatpush1.msra.mxu0 %v3556
        %3903 = vmatprep.subr.mxu0 %v3565
        %3904 = vmatpush1.msra.mxu0 %v3564
        %3905 = vmatprep.subr.mxu0 %v3573
        %3906 = vmatpush1.msra.mxu0 %v3572
        %3907 = vmatprep.subr.mxu0 %v3581
        %3908 = vmatpush1.msra.mxu0 %v3580
        %3909 = vmatprep.subr.mxu0 %v3589
        %3910 = vmatpush1.msra.mxu0 %v3588
        %3911 = vmatprep.subr.mxu0 0.0
        %3912 = vmatpush1.msra.mxu0 0.0
        %3913 = vmatprep.subr.mxu0 0.0
        %3914 = vmatpush1.msra.mxu0 0.0
        %3915 = vmatprep.subr.mxu0 0.0
        %3916 = vmatpush1.msra.mxu0 0.0
        %3917 = vmatprep.subr.mxu0 0.0
        %3918 = vmatpush1.msra.mxu0 0.0
        %3919 = vmatprep.subr.mxu0 0.0
        %3920 = vmatpush1.msra.mxu0 0.0
        %3921 = vmatprep.subr.mxu0 0.0
        %3922 = vmatpush1.msra.mxu0 0.0
        %3923 = vmatprep.subr.mxu0 0.0
        %3924 = vmatpush1.msra.mxu0 0.0
        %3925 = vmatprep.subr.mxu0 0.0
        %3926 = vmatpush1.msra.mxu0 0.0
        %3927 = vmatprep.subr.mxu0 0.0
        %3928 = vmatpush1.msra.mxu0 0.0
        %3929 = vmatprep.subr.mxu0 0.0
        %3930 = vmatpush1.msra.mxu0 0.0
        %3931 = vmatprep.subr.mxu0 0.0
        %3932 = vmatpush1.msra.mxu0 0.0
        %3933 = vmatprep.subr.mxu0 0.0
        %3934 = vmatpush1.msra.mxu0 0.0
        %3935 = vmatprep.subr.mxu0 0.0
        %3936 = vmatpush1.msra.mxu0 0.0
        %3937 = vmatprep.subr.mxu0 0.0
        %3938 = vmatpush1.msra.mxu0 0.0
        %3939 = vmatprep.subr.mxu0 0.0
        %3940 = vmatpush1.msra.mxu0 0.0
        %3941 = vmatprep.subr.mxu0 0.0
        %3942 = vmatpush1.msra.mxu0 0.0
        %3943 = vmatprep.mubr.f32.mxu0 0.0
        %3944 = vmatmul.mubr.f32.gmra.mrb[0].mxu0 %v3206
        %v3945 = vpop.f32.mrb[0].mxu0
        %v3946 = vadd.f32 %v3875, %v3945
        %v3947 = vpop.f32.mrb[0].mxu0
        %v3948 = vadd.f32 %v3877, %v3947
        %3949 = vdwg.mxu0
        %3950 = vmatprep.subr.mxu0 %v3215
        %3951 = vmatpush1.msra.mxu0 %v3214
        %3952 = vmatprep.subr.mxu0 %v3223
        %3953 = vmatpush1.msra.mxu0 %v3222
        %3954 = vmatprep.subr.mxu0 %v3231
        %3955 = vmatpush1.msra.mxu0 %v3230
        %3956 = vmatprep.subr.mxu0 %v3239
        %3957 = vmatpush1.msra.mxu0 %v3238
        %3958 = vmatprep.subr.mxu0 %v3247
        %3959 = vmatpush1.msra.mxu0 %v3246
        %3960 = vmatprep.subr.mxu0 %v3255
        %3961 = vmatpush1.msra.mxu0 %v3254
        %3962 = vmatprep.subr.mxu0 %v3263
        %3963 = vmatpush1.msra.mxu0 %v3262
        %3964 = vmatprep.subr.mxu0 %v3271
        %3965 = vmatpush1.msra.mxu0 %v3270
        %3966 = vmatprep.subr.mxu0 %v3279
        %3967 = vmatpush1.msra.mxu0 %v3278
        %3968 = vmatprep.subr.mxu0 %v3287
        %3969 = vmatpush1.msra.mxu0 %v3286
        %3970 = vmatprep.subr.mxu0 %v3295
        %3971 = vmatpush1.msra.mxu0 %v3294
        %3972 = vmatprep.subr.mxu0 %v3303
        %3973 = vmatpush1.msra.mxu0 %v3302
        %3974 = vmatprep.subr.mxu0 %v3311
        %3975 = vmatpush1.msra.mxu0 %v3310
        %3976 = vmatprep.subr.mxu0 %v3319
        %3977 = vmatpush1.msra.mxu0 %v3318
        %3978 = vmatprep.subr.mxu0 %v3327
        %3979 = vmatpush1.msra.mxu0 %v3326
        %3980 = vmatprep.subr.mxu0 %v3335
        %3981 = vmatpush1.msra.mxu0 %v3334
        %3982 = vmatprep.subr.mxu0 %v3343
        %3983 = vmatpush1.msra.mxu0 %v3342
        %3984 = vmatprep.subr.mxu0 %v3351
        %3985 = vmatpush1.msra.mxu0 %v3350
        %3986 = vmatprep.subr.mxu0 %v3359
        %3987 = vmatpush1.msra.mxu0 %v3358
        %3988 = vmatprep.subr.mxu0 %v3367
        %3989 = vmatpush1.msra.mxu0 %v3366
        %3990 = vmatprep.subr.mxu0 %v3375
        %3991 = vmatpush1.msra.mxu0 %v3374
        %3992 = vmatprep.subr.mxu0 %v3383
        %3993 = vmatpush1.msra.mxu0 %v3382
        %3994 = vmatprep.subr.mxu0 %v3391
        %3995 = vmatpush1.msra.mxu0 %v3390
        %3996 = vmatprep.subr.mxu0 %v3399
        %3997 = vmatpush1.msra.mxu0 %v3398
        %3998 = vmatprep.subr.mxu0 %v3407
        %3999 = vmatpush1.msra.mxu0 %v3406
        %4000 = vmatprep.subr.mxu0 %v3415
        %4001 = vmatpush1.msra.mxu0 %v3414
        %4002 = vmatprep.subr.mxu0 %v3423
        %4003 = vmatpush1.msra.mxu0 %v3422
        %4004 = vmatprep.subr.mxu0 %v3431
        %4005 = vmatpush1.msra.mxu0 %v3430
        %4006 = vmatprep.subr.mxu0 %v3439
        %4007 = vmatpush1.msra.mxu0 %v3438
        %4008 = vmatprep.subr.mxu0 %v3447
        %4009 = vmatpush1.msra.mxu0 %v3446
        %4010 = vmatprep.subr.mxu0 %v3455
        %4011 = vmatpush1.msra.mxu0 %v3454
        %4012 = vmatprep.subr.mxu0 %v3463
        %4013 = vmatpush1.msra.mxu0 %v3462
        %4014 = vmatprep.mubr.f32.mxu0 %v3137
        %4015 = vmatmul.mubr.f32.gmra.mrb[0].mxu0 %v3135
        %v4016 = vpop.f32.mrb[0].mxu0
        %v4017 = vadd.f32 %v3653, %v4016
        %v4018 = vpop.f32.mrb[0].mxu0
        %v4019 = vadd.f32 %v3657, %v4018
        %4020 = vdwg.mxu0
        %4021 = vmatprep.subr.mxu0 %v3471
        %4022 = vmatpush1.msra.mxu0 %v3470
        %4023 = vmatprep.subr.mxu0 %v3479
        %4024 = vmatpush1.msra.mxu0 %v3478
        %4025 = vmatprep.subr.mxu0 %v3487
        %4026 = vmatpush1.msra.mxu0 %v3486
        %4027 = vmatprep.subr.mxu0 %v3495
        %4028 = vmatpush1.msra.mxu0 %v3494
        %4029 = vmatprep.subr.mxu0 %v3503
        %4030 = vmatpush1.msra.mxu0 %v3502
        %4031 = vmatprep.subr.mxu0 %v3511
        %4032 = vmatpush1.msra.mxu0 %v3510
        %4033 = vmatprep.subr.mxu0 %v3519
        %4034 = vmatpush1.msra.mxu0 %v3518
        %4035 = vmatprep.subr.mxu0 %v3527
        %4036 = vmatpush1.msra.mxu0 %v3526
        %4037 = vmatprep.subr.mxu0 %v3535
        %4038 = vmatpush1.msra.mxu0 %v3534
        %4039 = vmatprep.subr.mxu0 %v3543
        %4040 = vmatpush1.msra.mxu0 %v3542
        %4041 = vmatprep.subr.mxu0 %v3551
        %4042 = vmatpush1.msra.mxu0 %v3550
        %4043 = vmatprep.subr.mxu0 %v3559
        %4044 = vmatpush1.msra.mxu0 %v3558
        %4045 = vmatprep.subr.mxu0 %v3567
        %4046 = vmatpush1.msra.mxu0 %v3566
        %4047 = vmatprep.subr.mxu0 %v3575
        %4048 = vmatpush1.msra.mxu0 %v3574
        %4049 = vmatprep.subr.mxu0 %v3583
        %4050 = vmatpush1.msra.mxu0 %v3582
        %4051 = vmatprep.subr.mxu0 %v3591
        %4052 = vmatpush1.msra.mxu0 %v3590
        %4053 = vmatprep.subr.mxu0 0.0
        %4054 = vmatpush1.msra.mxu0 0.0
        %4055 = vmatprep.subr.mxu0 0.0
        %4056 = vmatpush1.msra.mxu0 0.0
        %4057 = vmatprep.subr.mxu0 0.0
        %4058 = vmatpush1.msra.mxu0 0.0
        %4059 = vmatprep.subr.mxu0 0.0
        %4060 = vmatpush1.msra.mxu0 0.0
        %4061 = vmatprep.subr.mxu0 0.0
        %4062 = vmatpush1.msra.mxu0 0.0
        %4063 = vmatprep.subr.mxu0 0.0
        %4064 = vmatpush1.msra.mxu0 0.0
        %4065 = vmatprep.subr.mxu0 0.0
        %4066 = vmatpush1.msra.mxu0 0.0
        %4067 = vmatprep.subr.mxu0 0.0
        %4068 = vmatpush1.msra.mxu0 0.0
        %4069 = vmatprep.subr.mxu0 0.0
        %4070 = vmatpush1.msra.mxu0 0.0
        %4071 = vmatprep.subr.mxu0 0.0
        %4072 = vmatpush1.msra.mxu0 0.0
        %4073 = vmatprep.subr.mxu0 0.0
        %4074 = vmatpush1.msra.mxu0 0.0
        %4075 = vmatprep.subr.mxu0 0.0
        %4076 = vmatpush1.msra.mxu0 0.0
        %4077 = vmatprep.subr.mxu0 0.0
        %4078 = vmatpush1.msra.mxu0 0.0
        %4079 = vmatprep.subr.mxu0 0.0
        %4080 = vmatpush1.msra.mxu0 0.0
        %4081 = vmatprep.subr.mxu0 0.0
        %4082 = vmatpush1.msra.mxu0 0.0
        %4083 = vmatprep.subr.mxu0 0.0
        %4084 = vmatpush1.msra.mxu0 0.0
        %4085 = vmatprep.mubr.f32.mxu0 0.0
        %4086 = vmatmul.mubr.f32.gmra.mrb[0].mxu0 %v3206
        %v4087 = vpop.f32.mrb[0].mxu0
        %v4088 = vadd.f32 %v4017, %v4087
        %v4089 = vpop.f32.mrb[0].mxu0
        %v4090 = vadd.f32 %v4019, %v4089
        %4091 = vdwg.mxu0
        %4092 = vmatprep.subr.mxu0 %v3217
        %4093 = vmatpush1.msra.mxu0 %v3216
        %4094 = vmatprep.subr.mxu0 %v3225
        %4095 = vmatpush1.msra.mxu0 %v3224
        %4096 = vmatprep.subr.mxu0 %v3233
        %4097 = vmatpush1.msra.mxu0 %v3232
        %4098 = vmatprep.subr.mxu0 %v3241
        %4099 = vmatpush1.msra.mxu0 %v3240
        %4100 = vmatprep.subr.mxu0 %v3249
        %4101 = vmatpush1.msra.mxu0 %v3248
        %4102 = vmatprep.subr.mxu0 %v3257
        %4103 = vmatpush1.msra.mxu0 %v3256
        %4104 = vmatprep.subr.mxu0 %v3265
        %4105 = vmatpush1.msra.mxu0 %v3264
        %4106 = vmatprep.subr.mxu0 %v3273
        %4107 = vmatpush1.msra.mxu0 %v3272
        %4108 = vmatprep.subr.mxu0 %v3281
        %4109 = vmatpush1.msra.mxu0 %v3280
        %4110 = vmatprep.subr.mxu0 %v3289
        %4111 = vmatpush1.msra.mxu0 %v3288
        %4112 = vmatprep.subr.mxu0 %v3297
        %4113 = vmatpush1.msra.mxu0 %v3296
        %4114 = vmatprep.subr.mxu0 %v3305
        %4115 = vmatpush1.msra.mxu0 %v3304
        %4116 = vmatprep.subr.mxu0 %v3313
        %4117 = vmatpush1.msra.mxu0 %v3312
        %4118 = vmatprep.subr.mxu0 %v3321
        %4119 = vmatpush1.msra.mxu0 %v3320
        %4120 = vmatprep.subr.mxu0 %v3329
        %4121 = vmatpush1.msra.mxu0 %v3328
        %4122 = vmatprep.subr.mxu0 %v3337
        %4123 = vmatpush1.msra.mxu0 %v3336
        %4124 = vmatprep.subr.mxu0 %v3345
        %4125 = vmatpush1.msra.mxu0 %v3344
        %4126 = vmatprep.subr.mxu0 %v3353
        %4127 = vmatpush1.msra.mxu0 %v3352
        %4128 = vmatprep.subr.mxu0 %v3361
        %4129 = vmatpush1.msra.mxu0 %v3360
        %4130 = vmatprep.subr.mxu0 %v3369
        %4131 = vmatpush1.msra.mxu0 %v3368
        %4132 = vmatprep.subr.mxu0 %v3377
        %4133 = vmatpush1.msra.mxu0 %v3376
        %4134 = vmatprep.subr.mxu0 %v3385
        %4135 = vmatpush1.msra.mxu0 %v3384
        %4136 = vmatprep.subr.mxu0 %v3393
        %4137 = vmatpush1.msra.mxu0 %v3392
        %4138 = vmatprep.subr.mxu0 %v3401
        %4139 = vmatpush1.msra.mxu0 %v3400
        %4140 = vmatprep.subr.mxu0 %v3409
        %4141 = vmatpush1.msra.mxu0 %v3408
        %4142 = vmatprep.subr.mxu0 %v3417
        %4143 = vmatpush1.msra.mxu0 %v3416
        %4144 = vmatprep.subr.mxu0 %v3425
        %4145 = vmatpush1.msra.mxu0 %v3424
        %4146 = vmatprep.subr.mxu0 %v3433
        %4147 = vmatpush1.msra.mxu0 %v3432
        %4148 = vmatprep.subr.mxu0 %v3441
        %4149 = vmatpush1.msra.mxu0 %v3440
        %4150 = vmatprep.subr.mxu0 %v3449
        %4151 = vmatpush1.msra.mxu0 %v3448
        %4152 = vmatprep.subr.mxu0 %v3457
        %4153 = vmatpush1.msra.mxu0 %v3456
        %4154 = vmatprep.subr.mxu0 %v3465
        %4155 = vmatpush1.msra.mxu0 %v3464
        %4156 = vmatprep.mubr.f32.mxu0 %v3137
        %4157 = vmatmul.mubr.f32.gmra.mrb[0].mxu0 %v3135
        %v4158 = vpop.f32.mrb[0].mxu0
        %v4159 = vadd.f32 %v3661, %v4158
        %v4160 = vpop.f32.mrb[0].mxu0
        %v4161 = vadd.f32 %v3665, %v4160
        %4162 = vdwg.mxu0
        %4163 = vmatprep.subr.mxu0 %v3473
        %4164 = vmatpush1.msra.mxu0 %v3472
        %4165 = vmatprep.subr.mxu0 %v3481
        %4166 = vmatpush1.msra.mxu0 %v3480
        %4167 = vmatprep.subr.mxu0 %v3489
        %4168 = vmatpush1.msra.mxu0 %v3488
        %4169 = vmatprep.subr.mxu0 %v3497
        %4170 = vmatpush1.msra.mxu0 %v3496
        %4171 = vmatprep.subr.mxu0 %v3505
        %4172 = vmatpush1.msra.mxu0 %v3504
        %4173 = vmatprep.subr.mxu0 %v3513
        %4174 = vmatpush1.msra.mxu0 %v3512
        %4175 = vmatprep.subr.mxu0 %v3521
        %4176 = vmatpush1.msra.mxu0 %v3520
        %4177 = vmatprep.subr.mxu0 %v3529
        %4178 = vmatpush1.msra.mxu0 %v3528
        %4179 = vmatprep.subr.mxu0 %v3537
        %4180 = vmatpush1.msra.mxu0 %v3536
        %4181 = vmatprep.subr.mxu0 %v3545
        %4182 = vmatpush1.msra.mxu0 %v3544
        %4183 = vmatprep.subr.mxu0 %v3553
        %4184 = vmatpush1.msra.mxu0 %v3552
        %4185 = vmatprep.subr.mxu0 %v3561
        %4186 = vmatpush1.msra.mxu0 %v3560
        %4187 = vmatprep.subr.mxu0 %v3569
        %4188 = vmatpush1.msra.mxu0 %v3568
        %4189 = vmatprep.subr.mxu0 %v3577
        %4190 = vmatpush1.msra.mxu0 %v3576
        %4191 = vmatprep.subr.mxu0 %v3585
        %4192 = vmatpush1.msra.mxu0 %v3584
        %4193 = vmatprep.subr.mxu0 %v3593
        %4194 = vmatpush1.msra.mxu0 %v3592
        %4195 = vmatprep.subr.mxu0 0.0
        %4196 = vmatpush1.msra.mxu0 0.0
        %4197 = vmatprep.subr.mxu0 0.0
        %4198 = vmatpush1.msra.mxu0 0.0
        %4199 = vmatprep.subr.mxu0 0.0
        %4200 = vmatpush1.msra.mxu0 0.0
        %4201 = vmatprep.subr.mxu0 0.0
        %4202 = vmatpush1.msra.mxu0 0.0
        %4203 = vmatprep.subr.mxu0 0.0
        %4204 = vmatpush1.msra.mxu0 0.0
        %4205 = vmatprep.subr.mxu0 0.0
        %4206 = vmatpush1.msra.mxu0 0.0
        %4207 = vmatprep.subr.mxu0 0.0
        %4208 = vmatpush1.msra.mxu0 0.0
        %4209 = vmatprep.subr.mxu0 0.0
        %4210 = vmatpush1.msra.mxu0 0.0
        %4211 = vmatprep.subr.mxu0 0.0
        %4212 = vmatpush1.msra.mxu0 0.0
        %4213 = vmatprep.subr.mxu0 0.0
        %4214 = vmatpush1.msra.mxu0 0.0
        %4215 = vmatprep.subr.mxu0 0.0
        %4216 = vmatpush1.msra.mxu0 0.0
        %4217 = vmatprep.subr.mxu0 0.0
        %4218 = vmatpush1.msra.mxu0 0.0
        %4219 = vmatprep.subr.mxu0 0.0
        %4220 = vmatpush1.msra.mxu0 0.0
        %4221 = vmatprep.subr.mxu0 0.0
        %4222 = vmatpush1.msra.mxu0 0.0
        %4223 = vmatprep.subr.mxu0 0.0
        %4224 = vmatpush1.msra.mxu0 0.0
        %4225 = vmatprep.subr.mxu0 0.0
        %4226 = vmatpush1.msra.mxu0 0.0
        %4227 = vmatprep.mubr.f32.mxu0 0.0
        %4228 = vmatmul.mubr.f32.gmra.mrb[0].mxu0 %v3206
        %v4229 = vpop.f32.mrb[0].mxu0
        %v4230 = vadd.f32 %v4159, %v4229
        %v4231 = vpop.f32.mrb[0].mxu0
        %v4232 = vadd.f32 %v4161, %v4231
        %4233 = vdwg.mxu0
        %4234 = vmatprep.subr.mxu0 0.0
        %4235 = vmatpush1.xpose.msra.mxu0 %v3804
        %4236 = vmatprep.subr.mxu0 0.0
        %4237 = vmatpush1.xpose.msra.mxu0 0.0
        %4238 = vmatprep.subr.mxu0 0.0
        %4239 = vmatpush1.xpose.msra.mxu0 0.0
        %4240 = vmatprep.subr.mxu0 0.0
        %4241 = vmatpush1.xpose.msra.mxu0 0.0
        %4242 = vmatprep.subr.mxu0 0.0
        %4243 = vmatpush1.xpose.msra.mxu0 0.0
        %4244 = vmatprep.subr.mxu0 0.0
        %4245 = vmatpush1.xpose.msra.mxu0 0.0
        %4246 = vmatprep.subr.mxu0 0.0
        %4247 = vmatpush1.xpose.msra.mxu0 0.0
        %4248 = vmatprep.subr.mxu0 0.0
        %4249 = vmatpush1.xpose.msra.mxu0 0.0
        %4250 = vmatprep.subr.mxu0 0.0
        %4251 = vmatpush1.xpose.msra.mxu0 0.0
        %4252 = vmatprep.subr.mxu0 0.0
        %4253 = vmatpush1.xpose.msra.mxu0 0.0
        %4254 = vmatprep.subr.mxu0 0.0
        %4255 = vmatpush1.xpose.msra.mxu0 0.0
        %4256 = vmatprep.subr.mxu0 0.0
        %4257 = vmatpush1.xpose.msra.mxu0 0.0
        %4258 = vmatprep.subr.mxu0 0.0
        %4259 = vmatpush1.xpose.msra.mxu0 0.0
        %4260 = vmatprep.subr.mxu0 0.0
        %4261 = vmatpush1.xpose.msra.mxu0 0.0
        %4262 = vmatprep.subr.mxu0 0.0
        %4263 = vmatpush1.xpose.msra.mxu0 0.0
        %4264 = vmatprep.subr.mxu0 0.0
        %4265 = vmatpush1.xpose.msra.mxu0 0.0
        %4266 = vmatprep.subr.mxu0 0.0
        %4267 = vmatpush1.xpose.msra.mxu0 0.0
        %4268 = vmatprep.subr.mxu0 0.0
        %4269 = vmatpush1.xpose.msra.mxu0 0.0
        %4270 = vmatprep.subr.mxu0 0.0
        %4271 = vmatpush1.xpose.msra.mxu0 0.0
        %4272 = vmatprep.subr.mxu0 0.0
        %4273 = vmatpush1.xpose.msra.mxu0 0.0
        %4274 = vmatprep.subr.mxu0 0.0
        %4275 = vmatpush1.xpose.msra.mxu0 0.0
        %4276 = vmatprep.subr.mxu0 0.0
        %4277 = vmatpush1.xpose.msra.mxu0 0.0
        %4278 = vmatprep.subr.mxu0 0.0
        %4279 = vmatpush1.xpose.msra.mxu0 0.0
        %4280 = vmatprep.subr.mxu0 0.0
        %4281 = vmatpush1.xpose.msra.mxu0 0.0
        %4282 = vmatprep.subr.mxu0 0.0
        %4283 = vmatpush1.xpose.msra.mxu0 0.0
        %4284 = vmatprep.subr.mxu0 0.0
        %4285 = vmatpush1.xpose.msra.mxu0 0.0
        %4286 = vmatprep.subr.mxu0 0.0
        %4287 = vmatpush1.xpose.msra.mxu0 0.0
        %4288 = vmatprep.subr.mxu0 0.0
        %4289 = vmatpush1.xpose.msra.mxu0 0.0
        %4290 = vmatprep.subr.mxu0 0.0
        %4291 = vmatpush1.xpose.msra.mxu0 0.0
        %4292 = vmatprep.subr.mxu0 0.0
        %4293 = vmatpush1.xpose.msra.mxu0 0.0
        %4294 = vmatprep.subr.mxu0 0.0
        %4295 = vmatpush1.xpose.msra.mxu0 0.0
        %4296 = vmatprep.subr.mxu0 0.0
        %4297 = vmatpush1.xpose.msra.mxu0 0.0
        %4298 = vmatprep.mubr.f32.mxu0 0.0
        %4299 = vmatmul.mubr.f32.gmra.mrb[0].mxu0 %v456
        %v4300 = vpop.f32.mrb[0].mxu0
        %v4301 = vadd.f32 0.0, %v4300
        %v4302 = vpop.f32.mrb[0].mxu0
        %4303 = vdwg.mxu0
        %v4304 = vmul.f32 %v4301, 0.11547005
        %vm4305 = vcmask 35840
        %v4306 = vsel %vm4305, %v4304, -inf
        %4307 = vmax.xlane.f32.xlu0 %v4306
        %v4308 = vpop.xlane.xlu0 %4307
        %v4309 = vsub.f32 %v4304, %v4308
        %v4310 = vmul.f32 %v4309, 1.442695
        %v4311 = vpow.pop %v4310
        %v4312 = vsel %vm4305, %v4311, 0.0
        %4313 = vadd.xlane.f32.xlu0 %v4312
        %v4314 = vpop.xlane.xlu0 %4313
        %v4315 = vrcp.pop %v4314
        %v4316 = vmul.f32 %v4311, %v4315
        %vm4317 = vcmask 39936
        %v4319 = vsel %vm4317, %v4316, 0
        %vm4321 = vcmask 1044480
        %v4323 = vsel %vm4321, %v4088, 0
        %4325 = vmatprep.subr.mxu0 0.0
        %4326 = vmatpush1.msra.mxu0 %v4323
        %4327 = vmatprep.subr.mxu0 0.0
        %4328 = vmatpush1.msra.mxu0 0.0
        %4329 = vmatprep.subr.mxu0 0.0
        %4330 = vmatpush1.msra.mxu0 0.0
        %4331 = vmatprep.subr.mxu0 0.0
        %4332 = vmatpush1.msra.mxu0 0.0
        %4333 = vmatprep.subr.mxu0 0.0
        %4334 = vmatpush1.msra.mxu0 0.0
        %4335 = vmatprep.subr.mxu0 0.0
        %4336 = vmatpush1.msra.mxu0 0.0
        %4337 = vmatprep.subr.mxu0 0.0
        %4338 = vmatpush1.msra.mxu0 0.0
        %4339 = vmatprep.subr.mxu0 0.0
        %4340 = vmatpush1.msra.mxu0 0.0
        %4341 = vmatprep.subr.mxu0 0.0
        %4342 = vmatpush1.msra.mxu0 0.0
        %4343 = vmatprep.subr.mxu0 0.0
        %4344 = vmatpush1.msra.mxu0 0.0
        %4345 = vmatprep.subr.mxu0 0.0
        %4346 = vmatpush1.msra.mxu0 0.0
        %4347 = vmatprep.subr.mxu0 0.0
        %4348 = vmatpush1.msra.mxu0 0.0
        %4349 = vmatprep.subr.mxu0 0.0
        %4350 = vmatpush1.msra.mxu0 0.0
        %4351 = vmatprep.subr.mxu0 0.0
        %4352 = vmatpush1.msra.mxu0 0.0
        %4353 = vmatprep.subr.mxu0 0.0
        %4354 = vmatpush1.msra.mxu0 0.0
        %4355 = vmatprep.subr.mxu0 0.0
        %4356 = vmatpush1.msra.mxu0 0.0
        %4357 = vmatprep.subr.mxu0 0.0
        %4358 = vmatpush1.msra.mxu0 0.0
        %4359 = vmatprep.subr.mxu0 0.0
        %4360 = vmatpush1.msra.mxu0 0.0
        %4361 = vmatprep.subr.mxu0 0.0
        %4362 = vmatpush1.msra.mxu0 0.0
        %4363 = vmatprep.subr.mxu0 0.0
        %4364 = vmatpush1.msra.mxu0 0.0
        %4365 = vmatprep.subr.mxu0 0.0
        %4366 = vmatpush1.msra.mxu0 0.0
        %4367 = vmatprep.subr.mxu0 0.0
        %4368 = vmatpush1.msra.mxu0 0.0
        %4369 = vmatprep.subr.mxu0 0.0
        %4370 = vmatpush1.msra.mxu0 0.0
        %4371 = vmatprep.subr.mxu0 0.0
        %4372 = vmatpush1.msra.mxu0 0.0
        %4373 = vmatprep.subr.mxu0 0.0
        %4374 = vmatpush1.msra.mxu0 0.0
        %4375 = vmatprep.subr.mxu0 0.0
        %4376 = vmatpush1.msra.mxu0 0.0
        %4377 = vmatprep.subr.mxu0 0.0
        %4378 = vmatpush1.msra.mxu0 0.0
        %4379 = vmatprep.subr.mxu0 0.0
        %4380 = vmatpush1.msra.mxu0 0.0
        %4381 = vmatprep.subr.mxu0 0.0
        %4382 = vmatpush1.msra.mxu0 0.0
        %4383 = vmatprep.subr.mxu0 0.0
        %4384 = vmatpush1.msra.mxu0 0.0
        %4385 = vmatprep.subr.mxu0 0.0
        %4386 = vmatpush1.msra.mxu0 0.0
        %4387 = vmatprep.subr.mxu0 0.0
        %4388 = vmatpush1.msra.mxu0 0.0
        %4389 = vmatprep.mubr.f32.mxu0 0.0
        %4390 = vmatmul.mubr.f32.gmra.mrb[0].mxu0 %v4319
        %v4391 = vpop.f32.mrb[0].mxu0
        %v4392 = vadd.f32 0.0, %v4391
        %v4393 = vpop.f32.mrb[0].mxu0
        %4394 = vdwg.mxu0
        %4395 = vmatprep.subr.mxu0 0.0
        %4396 = vmatpush1.xpose.msra.mxu0 %v3806
        %4397 = vmatprep.subr.mxu0 0.0
        %4398 = vmatpush1.xpose.msra.mxu0 0.0
        %4399 = vmatprep.subr.mxu0 0.0
        %4400 = vmatpush1.xpose.msra.mxu0 0.0
        %4401 = vmatprep.subr.mxu0 0.0
        %4402 = vmatpush1.xpose.msra.mxu0 0.0
        %4403 = vmatprep.subr.mxu0 0.0
        %4404 = vmatpush1.xpose.msra.mxu0 0.0
        %4405 = vmatprep.subr.mxu0 0.0
        %4406 = vmatpush1.xpose.msra.mxu0 0.0
        %4407 = vmatprep.subr.mxu0 0.0
        %4408 = vmatpush1.xpose.msra.mxu0 0.0
        %4409 = vmatprep.subr.mxu0 0.0
        %4410 = vmatpush1.xpose.msra.mxu0 0.0
        %4411 = vmatprep.subr.mxu0 0.0
        %4412 = vmatpush1.xpose.msra.mxu0 0.0
        %4413 = vmatprep.subr.mxu0 0.0
        %4414 = vmatpush1.xpose.msra.mxu0 0.0
        %4415 = vmatprep.subr.mxu0 0.0
        %4416 = vmatpush1.xpose.msra.mxu0 0.0
        %4417 = vmatprep.subr.mxu0 0.0
        %4418 = vmatpush1.xpose.msra.mxu0 0.0
        %4419 = vmatprep.subr.mxu0 0.0
        %4420 = vmatpush1.xpose.msra.mxu0 0.0
        %4421 = vmatprep.subr.mxu0 0.0
        %4422 = vmatpush1.xpose.msra.mxu0 0.0
        %4423 = vmatprep.subr.mxu0 0.0
        %4424 = vmatpush1.xpose.msra.mxu0 0.0
        %4425 = vmatprep.subr.mxu0 0.0
        %4426 = vmatpush1.xpose.msra.mxu0 0.0
        %4427 = vmatprep.subr.mxu0 0.0
        %4428 = vmatpush1.xpose.msra.mxu0 0.0
        %4429 = vmatprep.subr.mxu0 0.0
        %4430 = vmatpush1.xpose.msra.mxu0 0.0
        %4431 = vmatprep.subr.mxu0 0.0
        %4432 = vmatpush1.xpose.msra.mxu0 0.0
        %4433 = vmatprep.subr.mxu0 0.0
        %4434 = vmatpush1.xpose.msra.mxu0 0.0
        %4435 = vmatprep.subr.mxu0 0.0
        %4436 = vmatpush1.xpose.msra.mxu0 0.0
        %4437 = vmatprep.subr.mxu0 0.0
        %4438 = vmatpush1.xpose.msra.mxu0 0.0
        %4439 = vmatprep.subr.mxu0 0.0
        %4440 = vmatpush1.xpose.msra.mxu0 0.0
        %4441 = vmatprep.subr.mxu0 0.0
        %4442 = vmatpush1.xpose.msra.mxu0 0.0
        %4443 = vmatprep.subr.mxu0 0.0
        %4444 = vmatpush1.xpose.msra.mxu0 0.0
        %4445 = vmatprep.subr.mxu0 0.0
        %4446 = vmatpush1.xpose.msra.mxu0 0.0
        %4447 = vmatprep.subr.mxu0 0.0
        %4448 = vmatpush1.xpose.msra.mxu0 0.0
        %4449 = vmatprep.subr.mxu0 0.0
        %4450 = vmatpush1.xpose.msra.mxu0 0.0
        %4451 = vmatprep.subr.mxu0 0.0
        %4452 = vmatpush1.xpose.msra.mxu0 0.0
        %4453 = vmatprep.subr.mxu0 0.0
        %4454 = vmatpush1.xpose.msra.mxu0 0.0
        %4455 = vmatprep.subr.mxu0 0.0
        %4456 = vmatpush1.xpose.msra.mxu0 0.0
        %4457 = vmatprep.subr.mxu0 0.0
        %4458 = vmatpush1.xpose.msra.mxu0 0.0
        %4459 = vmatprep.mubr.f32.mxu0 0.0
        %4460 = vmatmul.mubr.f32.gmra.mrb[0].mxu0 %v457
        %v4461 = vpop.f32.mrb[0].mxu0
        %v4462 = vadd.f32 0.0, %v4461
        %v4463 = vpop.f32.mrb[0].mxu0
        %4464 = vdwg.mxu0
        %v4465 = vmul.f32 %v4462, 0.11547005
        %v4466 = vsel %vm4305, %v4465, -inf
        %4467 = vmax.xlane.f32.xlu0 %v4466
        %v4468 = vpop.xlane.xlu0 %4467
        %v4469 = vsub.f32 %v4465, %v4468
        %v4470 = vmul.f32 %v4469, 1.442695
        %v4471 = vpow.pop %v4470
        %v4472 = vsel %vm4305, %v4471, 0.0
        %4473 = vadd.xlane.f32.xlu0 %v4472
        %v4474 = vpop.xlane.xlu0 %4473
        %v4475 = vrcp.pop %v4474
        %v4476 = vmul.f32 %v4471, %v4475
        %v4478 = vsel %vm4317, %v4476, 0
        %v4481 = vsel %vm4321, %v4090, 0
        %4483 = vmatprep.subr.mxu0 0.0
        %4484 = vmatpush1.msra.mxu0 %v4481
        %4485 = vmatprep.subr.mxu0 0.0
        %4486 = vmatpush1.msra.mxu0 0.0
        %4487 = vmatprep.subr.mxu0 0.0
        %4488 = vmatpush1.msra.mxu0 0.0
        %4489 = vmatprep.subr.mxu0 0.0
        %4490 = vmatpush1.msra.mxu0 0.0
        %4491 = vmatprep.subr.mxu0 0.0
        %4492 = vmatpush1.msra.mxu0 0.0
        %4493 = vmatprep.subr.mxu0 0.0
        %4494 = vmatpush1.msra.mxu0 0.0
        %4495 = vmatprep.subr.mxu0 0.0
        %4496 = vmatpush1.msra.mxu0 0.0
        %4497 = vmatprep.subr.mxu0 0.0
        %4498 = vmatpush1.msra.mxu0 0.0
        %4499 = vmatprep.subr.mxu0 0.0
        %4500 = vmatpush1.msra.mxu0 0.0
        %4501 = vmatprep.subr.mxu0 0.0
        %4502 = vmatpush1.msra.mxu0 0.0
        %4503 = vmatprep.subr.mxu0 0.0
        %4504 = vmatpush1.msra.mxu0 0.0
        %4505 = vmatprep.subr.mxu0 0.0
        %4506 = vmatpush1.msra.mxu0 0.0
        %4507 = vmatprep.subr.mxu0 0.0
        %4508 = vmatpush1.msra.mxu0 0.0
        %4509 = vmatprep.subr.mxu0 0.0
        %4510 = vmatpush1.msra.mxu0 0.0
        %4511 = vmatprep.subr.mxu0 0.0
        %4512 = vmatpush1.msra.mxu0 0.0
        %4513 = vmatprep.subr.mxu0 0.0
        %4514 = vmatpush1.msra.mxu0 0.0
        %4515 = vmatprep.subr.mxu0 0.0
        %4516 = vmatpush1.msra.mxu0 0.0
        %4517 = vmatprep.subr.mxu0 0.0
        %4518 = vmatpush1.msra.mxu0 0.0
        %4519 = vmatprep.subr.mxu0 0.0
        %4520 = vmatpush1.msra.mxu0 0.0
        %4521 = vmatprep.subr.mxu0 0.0
        %4522 = vmatpush1.msra.mxu0 0.0
        %4523 = vmatprep.subr.mxu0 0.0
        %4524 = vmatpush1.msra.mxu0 0.0
        %4525 = vmatprep.subr.mxu0 0.0
        %4526 = vmatpush1.msra.mxu0 0.0
        %4527 = vmatprep.subr.mxu0 0.0
        %4528 = vmatpush1.msra.mxu0 0.0
        %4529 = vmatprep.subr.mxu0 0.0
        %4530 = vmatpush1.msra.mxu0 0.0
        %4531 = vmatprep.subr.mxu0 0.0
        %4532 = vmatpush1.msra.mxu0 0.0
        %4533 = vmatprep.subr.mxu0 0.0
        %4534 = vmatpush1.msra.mxu0 0.0
        %4535 = vmatprep.subr.mxu0 0.0
        %4536 = vmatpush1.msra.mxu0 0.0
        %4537 = vmatprep.subr.mxu0 0.0
        %4538 = vmatpush1.msra.mxu0 0.0
        %4539 = vmatprep.subr.mxu0 0.0
        %4540 = vmatpush1.msra.mxu0 0.0
        %4541 = vmatprep.subr.mxu0 0.0
        %4542 = vmatpush1.msra.mxu0 0.0
        %4543 = vmatprep.subr.mxu0 0.0
        %4544 = vmatpush1.msra.mxu0 0.0
        %4545 = vmatprep.subr.mxu0 0.0
        %4546 = vmatpush1.msra.mxu0 0.0
        %4547 = vmatprep.mubr.f32.mxu0 0.0
        %4548 = vmatmul.mubr.f32.gmra.mrb[0].mxu0 %v4478
        %v4549 = vpop.f32.mrb[0].mxu0
        %v4550 = vadd.f32 0.0, %v4549
        %v4551 = vpop.f32.mrb[0].mxu0
        %4552 = vdwg.mxu0
        %4553 = vmatprep.subr.mxu0 0.0
        %4554 = vmatpush1.xpose.msra.mxu0 %v3946
        %4555 = vmatprep.subr.mxu0 0.0
        %4556 = vmatpush1.xpose.msra.mxu0 0.0
        %4557 = vmatprep.subr.mxu0 0.0
        %4558 = vmatpush1.xpose.msra.mxu0 0.0
        %4559 = vmatprep.subr.mxu0 0.0
        %4560 = vmatpush1.xpose.msra.mxu0 0.0
        %4561 = vmatprep.subr.mxu0 0.0
        %4562 = vmatpush1.xpose.msra.mxu0 0.0
        %4563 = vmatprep.subr.mxu0 0.0
        %4564 = vmatpush1.xpose.msra.mxu0 0.0
        %4565 = vmatprep.subr.mxu0 0.0
        %4566 = vmatpush1.xpose.msra.mxu0 0.0
        %4567 = vmatprep.subr.mxu0 0.0
        %4568 = vmatpush1.xpose.msra.mxu0 0.0
        %4569 = vmatprep.subr.mxu0 0.0
        %4570 = vmatpush1.xpose.msra.mxu0 0.0
        %4571 = vmatprep.subr.mxu0 0.0
        %4572 = vmatpush1.xpose.msra.mxu0 0.0
        %4573 = vmatprep.subr.mxu0 0.0
        %4574 = vmatpush1.xpose.msra.mxu0 0.0
        %4575 = vmatprep.subr.mxu0 0.0
        %4576 = vmatpush1.xpose.msra.mxu0 0.0
        %4577 = vmatprep.subr.mxu0 0.0
        %4578 = vmatpush1.xpose.msra.mxu0 0.0
        %4579 = vmatprep.subr.mxu0 0.0
        %4580 = vmatpush1.xpose.msra.mxu0 0.0
        %4581 = vmatprep.subr.mxu0 0.0
        %4582 = vmatpush1.xpose.msra.mxu0 0.0
        %4583 = vmatprep.subr.mxu0 0.0
        %4584 = vmatpush1.xpose.msra.mxu0 0.0
        %4585 = vmatprep.subr.mxu0 0.0
        %4586 = vmatpush1.xpose.msra.mxu0 0.0
        %4587 = vmatprep.subr.mxu0 0.0
        %4588 = vmatpush1.xpose.msra.mxu0 0.0
        %4589 = vmatprep.subr.mxu0 0.0
        %4590 = vmatpush1.xpose.msra.mxu0 0.0
        %4591 = vmatprep.subr.mxu0 0.0
        %4592 = vmatpush1.xpose.msra.mxu0 0.0
        %4593 = vmatprep.subr.mxu0 0.0
        %4594 = vmatpush1.xpose.msra.mxu0 0.0
        %4595 = vmatprep.subr.mxu0 0.0
        %4596 = vmatpush1.xpose.msra.mxu0 0.0
        %4597 = vmatprep.subr.mxu0 0.0
        %4598 = vmatpush1.xpose.msra.mxu0 0.0
        %4599 = vmatprep.subr.mxu0 0.0
        %4600 = vmatpush1.xpose.msra.mxu0 0.0
        %4601 = vmatprep.subr.mxu0 0.0
        %4602 = vmatpush1.xpose.msra.mxu0 0.0
        %4603 = vmatprep.subr.mxu0 0.0
        %4604 = vmatpush1.xpose.msra.mxu0 0.0
        %4605 = vmatprep.subr.mxu0 0.0
        %4606 = vmatpush1.xpose.msra.mxu0 0.0
        %4607 = vmatprep.subr.mxu0 0.0
        %4608 = vmatpush1.xpose.msra.mxu0 0.0
        %4609 = vmatprep.subr.mxu0 0.0
        %4610 = vmatpush1.xpose.msra.mxu0 0.0
        %4611 = vmatprep.subr.mxu0 0.0
        %4612 = vmatpush1.xpose.msra.mxu0 0.0
        %4613 = vmatprep.subr.mxu0 0.0
        %4614 = vmatpush1.xpose.msra.mxu0 0.0
        %4615 = vmatprep.subr.mxu0 0.0
        %4616 = vmatpush1.xpose.msra.mxu0 0.0
        %4617 = vmatprep.mubr.f32.mxu0 0.0
        %4618 = vmatmul.mubr.f32.gmra.mrb[0].mxu0 %v458
        %v4619 = vpop.f32.mrb[0].mxu0
        %v4620 = vadd.f32 0.0, %v4619
        %v4621 = vpop.f32.mrb[0].mxu0
        %4622 = vdwg.mxu0
        %v4623 = vmul.f32 %v4620, 0.11547005
        %v4624 = vsel %vm4305, %v4623, -inf
        %4625 = vmax.xlane.f32.xlu0 %v4624
        %v4626 = vpop.xlane.xlu0 %4625
        %v4627 = vsub.f32 %v4623, %v4626
        %v4628 = vmul.f32 %v4627, 1.442695
        %v4629 = vpow.pop %v4628
        %v4630 = vsel %vm4305, %v4629, 0.0
        %4631 = vadd.xlane.f32.xlu0 %v4630
        %v4632 = vpop.xlane.xlu0 %4631
        %v4633 = vrcp.pop %v4632
        %v4634 = vmul.f32 %v4629, %v4633
        %v4636 = vsel %vm4317, %v4634, 0
        %v4639 = vsel %vm4321, %v4230, 0
        %4641 = vmatprep.subr.mxu0 0.0
        %4642 = vmatpush1.msra.mxu0 %v4639
        %4643 = vmatprep.subr.mxu0 0.0
        %4644 = vmatpush1.msra.mxu0 0.0
        %4645 = vmatprep.subr.mxu0 0.0
        %4646 = vmatpush1.msra.mxu0 0.0
        %4647 = vmatprep.subr.mxu0 0.0
        %4648 = vmatpush1.msra.mxu0 0.0
        %4649 = vmatprep.subr.mxu0 0.0
        %4650 = vmatpush1.msra.mxu0 0.0
        %4651 = vmatprep.subr.mxu0 0.0
        %4652 = vmatpush1.msra.mxu0 0.0
        %4653 = vmatprep.subr.mxu0 0.0
        %4654 = vmatpush1.msra.mxu0 0.0
        %4655 = vmatprep.subr.mxu0 0.0
        %4656 = vmatpush1.msra.mxu0 0.0
        %4657 = vmatprep.subr.mxu0 0.0
        %4658 = vmatpush1.msra.mxu0 0.0
        %4659 = vmatprep.subr.mxu0 0.0
        %4660 = vmatpush1.msra.mxu0 0.0
        %4661 = vmatprep.subr.mxu0 0.0
        %4662 = vmatpush1.msra.mxu0 0.0
        %4663 = vmatprep.subr.mxu0 0.0
        %4664 = vmatpush1.msra.mxu0 0.0
        %4665 = vmatprep.subr.mxu0 0.0
        %4666 = vmatpush1.msra.mxu0 0.0
        %4667 = vmatprep.subr.mxu0 0.0
        %4668 = vmatpush1.msra.mxu0 0.0
        %4669 = vmatprep.subr.mxu0 0.0
        %4670 = vmatpush1.msra.mxu0 0.0
        %4671 = vmatprep.subr.mxu0 0.0
        %4672 = vmatpush1.msra.mxu0 0.0
        %4673 = vmatprep.subr.mxu0 0.0
        %4674 = vmatpush1.msra.mxu0 0.0
        %4675 = vmatprep.subr.mxu0 0.0
        %4676 = vmatpush1.msra.mxu0 0.0
        %4677 = vmatprep.subr.mxu0 0.0
        %4678 = vmatpush1.msra.mxu0 0.0
        %4679 = vmatprep.subr.mxu0 0.0
        %4680 = vmatpush1.msra.mxu0 0.0
        %4681 = vmatprep.subr.mxu0 0.0
        %4682 = vmatpush1.msra.mxu0 0.0
        %4683 = vmatprep.subr.mxu0 0.0
        %4684 = vmatpush1.msra.mxu0 0.0
        %4685 = vmatprep.subr.mxu0 0.0
        %4686 = vmatpush1.msra.mxu0 0.0
        %4687 = vmatprep.subr.mxu0 0.0
        %4688 = vmatpush1.msra.mxu0 0.0
        %4689 = vmatprep.subr.mxu0 0.0
        %4690 = vmatpush1.msra.mxu0 0.0
        %4691 = vmatprep.subr.mxu0 0.0
        %4692 = vmatpush1.msra.mxu0 0.0
        %4693 = vmatprep.subr.mxu0 0.0
        %4694 = vmatpush1.msra.mxu0 0.0
        %4695 = vmatprep.subr.mxu0 0.0
        %4696 = vmatpush1.msra.mxu0 0.0
        %4697 = vmatprep.subr.mxu0 0.0
        %4698 = vmatpush1.msra.mxu0 0.0
        %4699 = vmatprep.subr.mxu0 0.0
        %4700 = vmatpush1.msra.mxu0 0.0
        %4701 = vmatprep.subr.mxu0 0.0
        %4702 = vmatpush1.msra.mxu0 0.0
        %4703 = vmatprep.subr.mxu0 0.0
        %4704 = vmatpush1.msra.mxu0 0.0
        %4705 = vmatprep.mubr.f32.mxu0 0.0
        %4706 = vmatmul.mubr.f32.gmra.mrb[0].mxu0 %v4636
        %v4707 = vpop.f32.mrb[0].mxu0
        %v4708 = vadd.f32 0.0, %v4707
        %v4709 = vpop.f32.mrb[0].mxu0
        %4710 = vdwg.mxu0
        %4711 = vmatprep.subr.mxu0 0.0
        %4712 = vmatpush1.xpose.msra.mxu0 %v3948
        %4713 = vmatprep.subr.mxu0 0.0
        %4714 = vmatpush1.xpose.msra.mxu0 0.0
        %4715 = vmatprep.subr.mxu0 0.0
        %4716 = vmatpush1.xpose.msra.mxu0 0.0
        %4717 = vmatprep.subr.mxu0 0.0
        %4718 = vmatpush1.xpose.msra.mxu0 0.0
        %4719 = vmatprep.subr.mxu0 0.0
        %4720 = vmatpush1.xpose.msra.mxu0 0.0
        %4721 = vmatprep.subr.mxu0 0.0
        %4722 = vmatpush1.xpose.msra.mxu0 0.0
        %4723 = vmatprep.subr.mxu0 0.0
        %4724 = vmatpush1.xpose.msra.mxu0 0.0
        %4725 = vmatprep.subr.mxu0 0.0
        %4726 = vmatpush1.xpose.msra.mxu0 0.0
        %4727 = vmatprep.subr.mxu0 0.0
        %4728 = vmatpush1.xpose.msra.mxu0 0.0
        %4729 = vmatprep.subr.mxu0 0.0
        %4730 = vmatpush1.xpose.msra.mxu0 0.0
        %4731 = vmatprep.subr.mxu0 0.0
        %4732 = vmatpush1.xpose.msra.mxu0 0.0
        %4733 = vmatprep.subr.mxu0 0.0
        %4734 = vmatpush1.xpose.msra.mxu0 0.0
        %4735 = vmatprep.subr.mxu0 0.0
        %4736 = vmatpush1.xpose.msra.mxu0 0.0
        %4737 = vmatprep.subr.mxu0 0.0
        %4738 = vmatpush1.xpose.msra.mxu0 0.0
        %4739 = vmatprep.subr.mxu0 0.0
        %4740 = vmatpush1.xpose.msra.mxu0 0.0
        %4741 = vmatprep.subr.mxu0 0.0
        %4742 = vmatpush1.xpose.msra.mxu0 0.0
        %4743 = vmatprep.subr.mxu0 0.0
        %4744 = vmatpush1.xpose.msra.mxu0 0.0
        %4745 = vmatprep.subr.mxu0 0.0
        %4746 = vmatpush1.xpose.msra.mxu0 0.0
        %4747 = vmatprep.subr.mxu0 0.0
        %4748 = vmatpush1.xpose.msra.mxu0 0.0
        %4749 = vmatprep.subr.mxu0 0.0
        %4750 = vmatpush1.xpose.msra.mxu0 0.0
        %4751 = vmatprep.subr.mxu0 0.0
        %4752 = vmatpush1.xpose.msra.mxu0 0.0
        %4753 = vmatprep.subr.mxu0 0.0
        %4754 = vmatpush1.xpose.msra.mxu0 0.0
        %4755 = vmatprep.subr.mxu0 0.0
        %4756 = vmatpush1.xpose.msra.mxu0 0.0
        %4757 = vmatprep.subr.mxu0 0.0
        %4758 = vmatpush1.xpose.msra.mxu0 0.0
        %4759 = vmatprep.subr.mxu0 0.0
        %4760 = vmatpush1.xpose.msra.mxu0 0.0
        %4761 = vmatprep.subr.mxu0 0.0
        %4762 = vmatpush1.xpose.msra.mxu0 0.0
        %4763 = vmatprep.subr.mxu0 0.0
        %4764 = vmatpush1.xpose.msra.mxu0 0.0
        %4765 = vmatprep.subr.mxu0 0.0
        %4766 = vmatpush1.xpose.msra.mxu0 0.0
        %4767 = vmatprep.subr.mxu0 0.0
        %4768 = vmatpush1.xpose.msra.mxu0 0.0
        %4769 = vmatprep.subr.mxu0 0.0
        %4770 = vmatpush1.xpose.msra.mxu0 0.0
        %4771 = vmatprep.subr.mxu0 0.0
        %4772 = vmatpush1.xpose.msra.mxu0 0.0
        %4773 = vmatprep.subr.mxu0 0.0
        %4774 = vmatpush1.xpose.msra.mxu0 0.0
        %4775 = vmatprep.mubr.f32.mxu0 0.0
        %4776 = vmatmul.mubr.f32.gmra.mrb[0].mxu0 %v459
        %v4777 = vpop.f32.mrb[0].mxu0
        %v4778 = vadd.f32 0.0, %v4777
        %v4779 = vpop.f32.mrb[0].mxu0
        %4780 = vdwg.mxu0
        %v4781 = vmul.f32 %v4778, 0.11547005
        %v4782 = vsel %vm4305, %v4781, -inf
        %4783 = vmax.xlane.f32.xlu0 %v4782
        %v4784 = vpop.xlane.xlu0 %4783
        %v4785 = vsub.f32 %v4781, %v4784
        %v4786 = vmul.f32 %v4785, 1.442695
        %v4787 = vpow.pop %v4786
        %v4788 = vsel %vm4305, %v4787, 0.0
        %4789 = vadd.xlane.f32.xlu0 %v4788
        %v4790 = vpop.xlane.xlu0 %4789
        %v4791 = vrcp.pop %v4790
        %v4792 = vmul.f32 %v4787, %v4791
        %v4794 = vsel %vm4317, %v4792, 0
        %v4797 = vsel %vm4321, %v4232, 0
        %4799 = vmatprep.subr.mxu0 0.0
        %4800 = vmatpush1.msra.mxu0 %v4797
        %4801 = vmatprep.subr.mxu0 0.0
        %4802 = vmatpush1.msra.mxu0 0.0
        %4803 = vmatprep.subr.mxu0 0.0
        %4804 = vmatpush1.msra.mxu0 0.0
        %4805 = vmatprep.subr.mxu0 0.0
        %4806 = vmatpush1.msra.mxu0 0.0
        %4807 = vmatprep.subr.mxu0 0.0
        %4808 = vmatpush1.msra.mxu0 0.0
        %4809 = vmatprep.subr.mxu0 0.0
        %4810 = vmatpush1.msra.mxu0 0.0
        %4811 = vmatprep.subr.mxu0 0.0
        %4812 = vmatpush1.msra.mxu0 0.0
        %4813 = vmatprep.subr.mxu0 0.0
        %4814 = vmatpush1.msra.mxu0 0.0
        %4815 = vmatprep.subr.mxu0 0.0
        %4816 = vmatpush1.msra.mxu0 0.0
        %4817 = vmatprep.subr.mxu0 0.0
        %4818 = vmatpush1.msra.mxu0 0.0
        %4819 = vmatprep.subr.mxu0 0.0
        %4820 = vmatpush1.msra.mxu0 0.0
        %4821 = vmatprep.subr.mxu0 0.0
        %4822 = vmatpush1.msra.mxu0 0.0
        %4823 = vmatprep.subr.mxu0 0.0
        %4824 = vmatpush1.msra.mxu0 0.0
        %4825 = vmatprep.subr.mxu0 0.0
        %4826 = vmatpush1.msra.mxu0 0.0
        %4827 = vmatprep.subr.mxu0 0.0
        %4828 = vmatpush1.msra.mxu0 0.0
        %4829 = vmatprep.subr.mxu0 0.0
        %4830 = vmatpush1.msra.mxu0 0.0
        %4831 = vmatprep.subr.mxu0 0.0
        %4832 = vmatpush1.msra.mxu0 0.0
        %4833 = vmatprep.subr.mxu0 0.0
        %4834 = vmatpush1.msra.mxu0 0.0
        %4835 = vmatprep.subr.mxu0 0.0
        %4836 = vmatpush1.msra.mxu0 0.0
        %4837 = vmatprep.subr.mxu0 0.0
        %4838 = vmatpush1.msra.mxu0 0.0
        %4839 = vmatprep.subr.mxu0 0.0
        %4840 = vmatpush1.msra.mxu0 0.0
        %4841 = vmatprep.subr.mxu0 0.0
        %4842 = vmatpush1.msra.mxu0 0.0
        %4843 = vmatprep.subr.mxu0 0.0
        %4844 = vmatpush1.msra.mxu0 0.0
        %4845 = vmatprep.subr.mxu0 0.0
        %4846 = vmatpush1.msra.mxu0 0.0
        %4847 = vmatprep.subr.mxu0 0.0
        %4848 = vmatpush1.msra.mxu0 0.0
        %4849 = vmatprep.subr.mxu0 0.0
        %4850 = vmatpush1.msra.mxu0 0.0
        %4851 = vmatprep.subr.mxu0 0.0
        %4852 = vmatpush1.msra.mxu0 0.0
        %4853 = vmatprep.subr.mxu0 0.0
        %4854 = vmatpush1.msra.mxu0 0.0
        %4855 = vmatprep.subr.mxu0 0.0
        %4856 = vmatpush1.msra.mxu0 0.0
        %4857 = vmatprep.subr.mxu0 0.0
        %4858 = vmatpush1.msra.mxu0 0.0
        %4859 = vmatprep.subr.mxu0 0.0
        %4860 = vmatpush1.msra.mxu0 0.0
        %4861 = vmatprep.subr.mxu0 0.0
        %4862 = vmatpush1.msra.mxu0 0.0
        %4863 = vmatprep.mubr.f32.mxu0 0.0
        %4864 = vmatmul.mubr.f32.gmra.mrb[0].mxu0 %v4794
        %v4865 = vpop.f32.mrb[0].mxu0
        %v4866 = vadd.f32 0.0, %v4865
        %v4867 = vpop.f32.mrb[0].mxu0
        %4868 = vdwg.mxu0
        %s4869 = scalar_lea.vmem %s8, 1536
        %v4870 = vld [vmem:[%s4869] sm:$0xff]
        %v4871 = vld [vmem:[%s4869 + $0x8] sm:$0xff]
        %v4872 = vld [vmem:[%s4869 + $0x10] sm:$0xff]
        %v4873 = vld [vmem:[%s4869 + $0x18] sm:$0xff]
        %v4874 = vld [vmem:[%s4869 + $0x20] sm:$0xff]
        %v4875 = vld [vmem:[%s4869 + $0x28] sm:$0xff]
        %v4876 = vld [vmem:[%s4869 + $0x30] sm:$0xff]
        %v4877 = vld [vmem:[%s4869 + $0x38] sm:$0xff]
        %v4878 = vld [vmem:[%s4869 + $0x40] sm:$0xff]
        %v4879 = vld [vmem:[%s4869 + $0x48] sm:$0xff]
        %v4880 = vld [vmem:[%s4869 + $0x50] sm:$0xff]
        %v4881 = vld [vmem:[%s4869 + $0x58] sm:$0xff]
        %v4882 = vld [vmem:[%s4869 + $0x60] sm:$0xff]
        %v4883 = vld [vmem:[%s4869 + $0x68] sm:$0xff]
        %v4884 = vld [vmem:[%s4869 + $0x70] sm:$0xff]
        %v4885 = vld [vmem:[%s4869 + $0x78] sm:$0xff]
        %v4886 = vld [vmem:[%s4869 + $0x80] sm:$0xff]
        %v4887 = vld [vmem:[%s4869 + $0x88] sm:$0xff]
        %v4888 = vld [vmem:[%s4869 + $0x90] sm:$0xff]
        %v4889 = vld [vmem:[%s4869 + $0x98] sm:$0xff]
        %v4890 = vld [vmem:[%s4869 + $0xa0] sm:$0xff]
        %v4891 = vld [vmem:[%s4869 + $0xa8] sm:$0xff]
        %v4892 = vld [vmem:[%s4869 + $0xb0] sm:$0xff]
        %v4893 = vld [vmem:[%s4869 + $0xb8] sm:$0xff]
        %v4894 = vld [vmem:[%s4869 + $0xc0] sm:$0xff]
        %v4895 = vld [vmem:[%s4869 + $0xc8] sm:$0xff]
        %v4896 = vld [vmem:[%s4869 + $0xd0] sm:$0xff]
        %v4897 = vld [vmem:[%s4869 + $0xd8] sm:$0xff]
        %v4898 = vld [vmem:[%s4869 + $0xe0] sm:$0xff]
        %v4899 = vld [vmem:[%s4869 + $0xe8] sm:$0xff]
        %v4900 = vld [vmem:[%s4869 + $0xf0] sm:$0xff]
        %v4901 = vld [vmem:[%s4869 + $0xf8] sm:$0xff]
        %v4902 = vld [vmem:[%s4869 + $0x100] sm:$0xff]
        %v4903 = vld [vmem:[%s4869 + $0x108] sm:$0xff]
        %v4904 = vld [vmem:[%s4869 + $0x110] sm:$0xff]
        %v4905 = vld [vmem:[%s4869 + $0x118] sm:$0xff]
        %v4906 = vld [vmem:[%s4869 + $0x120] sm:$0xff]
        %v4907 = vld [vmem:[%s4869 + $0x128] sm:$0xff]
        %v4908 = vld [vmem:[%s4869 + $0x130] sm:$0xff]
        %v4909 = vld [vmem:[%s4869 + $0x138] sm:$0xff]
        %v4910 = vld [vmem:[%s4869 + $0x140] sm:$0xff]
        %v4911 = vld [vmem:[%s4869 + $0x148] sm:$0xff]
        %v4912 = vld [vmem:[%s4869 + $0x150] sm:$0xff]
        %v4913 = vld [vmem:[%s4869 + $0x158] sm:$0xff]
        %v4914 = vld [vmem:[%s4869 + $0x160] sm:$0xff]
        %v4915 = vld [vmem:[%s4869 + $0x168] sm:$0xff]
        %v4916 = vld [vmem:[%s4869 + $0x170] sm:$0xff]
        %v4917 = vld [vmem:[%s4869 + $0x178] sm:$0xff]
        %v4918 = vld [vmem:[%s4869 + $0x180] sm:$0xff]
        %v4919 = vld [vmem:[%s4869 + $0x188] sm:$0xff]
        %v4920 = vld [vmem:[%s4869 + $0x190] sm:$0xff]
        %v4921 = vld [vmem:[%s4869 + $0x198] sm:$0xff]
        %v4922 = vld [vmem:[%s4869 + $0x1a0] sm:$0xff]
        %v4923 = vld [vmem:[%s4869 + $0x1a8] sm:$0xff]
        %v4924 = vld [vmem:[%s4869 + $0x1b0] sm:$0xff]
        %v4925 = vld [vmem:[%s4869 + $0x1b8] sm:$0xff]
        %v4926 = vld [vmem:[%s4869 + $0x1c0] sm:$0xff]
        %v4927 = vld [vmem:[%s4869 + $0x1c8] sm:$0xff]
        %v4928 = vld [vmem:[%s4869 + $0x1d0] sm:$0xff]
        %v4929 = vld [vmem:[%s4869 + $0x1d8] sm:$0xff]
        %v4930 = vld [vmem:[%s4869 + $0x1e0] sm:$0xff]
        %v4931 = vld [vmem:[%s4869 + $0x1e8] sm:$0xff]
        %v4932 = vld [vmem:[%s4869 + $0x1f0] sm:$0xff]
        %v4933 = vld [vmem:[%s4869 + $0x1f8] sm:$0xff]
        %v4934 = vld [vmem:[%s4869 + $0x200] sm:$0xff]
        %v4935 = vld [vmem:[%s4869 + $0x208] sm:$0xff]
        %v4936 = vld [vmem:[%s4869 + $0x210] sm:$0xff]
        %v4937 = vld [vmem:[%s4869 + $0x218] sm:$0xff]
        %v4938 = vld [vmem:[%s4869 + $0x220] sm:$0xff]
        %v4939 = vld [vmem:[%s4869 + $0x228] sm:$0xff]
        %v4940 = vld [vmem:[%s4869 + $0x230] sm:$0xff]
        %v4941 = vld [vmem:[%s4869 + $0x238] sm:$0xff]
        %v4942 = vld [vmem:[%s4869 + $0x240] sm:$0xff]
        %v4943 = vld [vmem:[%s4869 + $0x248] sm:$0xff]
        %v4944 = vld [vmem:[%s4869 + $0x250] sm:$0xff]
        %v4945 = vld [vmem:[%s4869 + $0x258] sm:$0xff]
        %v4946 = vld [vmem:[%s4869 + $0x260] sm:$0xff]
        %v4947 = vld [vmem:[%s4869 + $0x268] sm:$0xff]
        %v4948 = vld [vmem:[%s4869 + $0x270] sm:$0xff]
        %v4949 = vld [vmem:[%s4869 + $0x278] sm:$0xff]
        %v4950 = vld [vmem:[%s4869 + $0x280] sm:$0xff]
        %v4951 = vld [vmem:[%s4869 + $0x288] sm:$0xff]
        %v4952 = vld [vmem:[%s4869 + $0x290] sm:$0xff]
        %v4953 = vld [vmem:[%s4869 + $0x298] sm:$0xff]
        %v4954 = vld [vmem:[%s4869 + $0x2a0] sm:$0xff]
        %v4955 = vld [vmem:[%s4869 + $0x2a8] sm:$0xff]
        %v4956 = vld [vmem:[%s4869 + $0x2b0] sm:$0xff]
        %v4957 = vld [vmem:[%s4869 + $0x2b8] sm:$0xff]
        %v4958 = vld [vmem:[%s4869 + $0x2c0] sm:$0xff]
        %v4959 = vld [vmem:[%s4869 + $0x2c8] sm:$0xff]
        %v4960 = vld [vmem:[%s4869 + $0x2d0] sm:$0xff]
        %v4961 = vld [vmem:[%s4869 + $0x2d8] sm:$0xff]
        %v4962 = vld [vmem:[%s4869 + $0x2e0] sm:$0xff]
        %v4963 = vld [vmem:[%s4869 + $0x2e8] sm:$0xff]
        %v4964 = vld [vmem:[%s4869 + $0x2f0] sm:$0xff]
        %v4965 = vld [vmem:[%s4869 + $0x2f8] sm:$0xff]
        %v4966 = vld [vmem:[%s4869 + $0x300] sm:$0xff]
        %v4967 = vld [vmem:[%s4869 + $0x308] sm:$0xff]
        %v4968 = vld [vmem:[%s4869 + $0x310] sm:$0xff]
        %v4969 = vld [vmem:[%s4869 + $0x318] sm:$0xff]
        %v4970 = vld [vmem:[%s4869 + $0x320] sm:$0xff]
        %v4971 = vld [vmem:[%s4869 + $0x328] sm:$0xff]
        %v4972 = vld [vmem:[%s4869 + $0x330] sm:$0xff]
        %v4973 = vld [vmem:[%s4869 + $0x338] sm:$0xff]
        %v4974 = vld [vmem:[%s4869 + $0x340] sm:$0xff]
        %v4975 = vld [vmem:[%s4869 + $0x348] sm:$0xff]
        %v4976 = vld [vmem:[%s4869 + $0x350] sm:$0xff]
        %v4977 = vld [vmem:[%s4869 + $0x358] sm:$0xff]
        %v4978 = vld [vmem:[%s4869 + $0x360] sm:$0xff]
        %v4979 = vld [vmem:[%s4869 + $0x368] sm:$0xff]
        %v4980 = vld [vmem:[%s4869 + $0x370] sm:$0xff]
        %v4981 = vld [vmem:[%s4869 + $0x378] sm:$0xff]
        %v4982 = vld [vmem:[%s4869 + $0x380] sm:$0xff]
        %v4983 = vld [vmem:[%s4869 + $0x388] sm:$0xff]
        %v4984 = vld [vmem:[%s4869 + $0x390] sm:$0xff]
        %v4985 = vld [vmem:[%s4869 + $0x398] sm:$0xff]
        %v4986 = vld [vmem:[%s4869 + $0x3a0] sm:$0xff]
        %v4987 = vld [vmem:[%s4869 + $0x3a8] sm:$0xff]
        %v4988 = vld [vmem:[%s4869 + $0x3b0] sm:$0xff]
        %v4989 = vld [vmem:[%s4869 + $0x3b8] sm:$0xff]
        %v4990 = vld [vmem:[%s4869 + $0x3c0] sm:$0xff]
        %v4991 = vld [vmem:[%s4869 + $0x3c8] sm:$0xff]
        %v4992 = vld [vmem:[%s4869 + $0x3d0] sm:$0xff]
        %v4993 = vld [vmem:[%s4869 + $0x3d8] sm:$0xff]
        %v4994 = vld [vmem:[%s4869 + $0x3e0] sm:$0xff]
        %v4995 = vld [vmem:[%s4869 + $0x3e8] sm:$0xff]
        %v4996 = vld [vmem:[%s4869 + $0x3f0] sm:$0xff]
        %v4997 = vld [vmem:[%s4869 + $0x3f8] sm:$0xff]
        %v4998 = vld [vmem:[%s4869 + $0x400] sm:$0xff]
        %v4999 = vld [vmem:[%s4869 + $0x408] sm:$0xff]
        %v5000 = vld [vmem:[%s4869 + $0x410] sm:$0xff]
        %v5001 = vld [vmem:[%s4869 + $0x418] sm:$0xff]
        %v5002 = vld [vmem:[%s4869 + $0x420] sm:$0xff]
        %v5003 = vld [vmem:[%s4869 + $0x428] sm:$0xff]
        %v5004 = vld [vmem:[%s4869 + $0x430] sm:$0xff]
        %v5005 = vld [vmem:[%s4869 + $0x438] sm:$0xff]
        %v5006 = vld [vmem:[%s4869 + $0x440] sm:$0xff]
        %v5007 = vld [vmem:[%s4869 + $0x448] sm:$0xff]
        %v5008 = vld [vmem:[%s4869 + $0x450] sm:$0xff]
        %v5009 = vld [vmem:[%s4869 + $0x458] sm:$0xff]
        %v5010 = vld [vmem:[%s4869 + $0x460] sm:$0xff]
        %v5011 = vld [vmem:[%s4869 + $0x468] sm:$0xff]
        %v5012 = vld [vmem:[%s4869 + $0x470] sm:$0xff]
        %v5013 = vld [vmem:[%s4869 + $0x478] sm:$0xff]
        %v5014 = vld [vmem:[%s4869 + $0x480] sm:$0xff]
        %v5015 = vld [vmem:[%s4869 + $0x488] sm:$0xff]
        %v5016 = vld [vmem:[%s4869 + $0x490] sm:$0xff]
        %v5017 = vld [vmem:[%s4869 + $0x498] sm:$0xff]
        %v5018 = vld [vmem:[%s4869 + $0x4a0] sm:$0xff]
        %v5019 = vld [vmem:[%s4869 + $0x4a8] sm:$0xff]
        %v5020 = vld [vmem:[%s4869 + $0x4b0] sm:$0xff]
        %v5021 = vld [vmem:[%s4869 + $0x4b8] sm:$0xff]
        %v5022 = vld [vmem:[%s4869 + $0x4c0] sm:$0xff]
        %v5023 = vld [vmem:[%s4869 + $0x4c8] sm:$0xff]
        %v5024 = vld [vmem:[%s4869 + $0x4d0] sm:$0xff]
        %v5025 = vld [vmem:[%s4869 + $0x4d8] sm:$0xff]
        %v5026 = vld [vmem:[%s4869 + $0x4e0] sm:$0xff]
        %v5027 = vld [vmem:[%s4869 + $0x4e8] sm:$0xff]
        %v5028 = vld [vmem:[%s4869 + $0x4f0] sm:$0xff]
        %v5029 = vld [vmem:[%s4869 + $0x4f8] sm:$0xff]
        %v5030 = vld [vmem:[%s4869 + $0x500] sm:$0xff]
        %v5031 = vld [vmem:[%s4869 + $0x508] sm:$0xff]
        %v5032 = vld [vmem:[%s4869 + $0x510] sm:$0xff]
        %v5033 = vld [vmem:[%s4869 + $0x518] sm:$0xff]
        %v5034 = vld [vmem:[%s4869 + $0x520] sm:$0xff]
        %v5035 = vld [vmem:[%s4869 + $0x528] sm:$0xff]
        %v5036 = vld [vmem:[%s4869 + $0x530] sm:$0xff]
        %v5037 = vld [vmem:[%s4869 + $0x538] sm:$0xff]
        %v5038 = vld [vmem:[%s4869 + $0x540] sm:$0xff]
        %v5039 = vld [vmem:[%s4869 + $0x548] sm:$0xff]
        %v5040 = vld [vmem:[%s4869 + $0x550] sm:$0xff]
        %v5041 = vld [vmem:[%s4869 + $0x558] sm:$0xff]
        %v5042 = vld [vmem:[%s4869 + $0x560] sm:$0xff]
        %v5043 = vld [vmem:[%s4869 + $0x568] sm:$0xff]
        %v5044 = vld [vmem:[%s4869 + $0x570] sm:$0xff]
        %v5045 = vld [vmem:[%s4869 + $0x578] sm:$0xff]
        %v5046 = vld [vmem:[%s4869 + $0x580] sm:$0xff]
        %v5047 = vld [vmem:[%s4869 + $0x588] sm:$0xff]
        %v5048 = vld [vmem:[%s4869 + $0x590] sm:$0xff]
        %v5049 = vld [vmem:[%s4869 + $0x598] sm:$0xff]
        %v5050 = vld [vmem:[%s4869 + $0x5a0] sm:$0xff]
        %v5051 = vld [vmem:[%s4869 + $0x5a8] sm:$0xff]
        %v5052 = vld [vmem:[%s4869 + $0x5b0] sm:$0xff]
        %v5053 = vld [vmem:[%s4869 + $0x5b8] sm:$0xff]
        %v5054 = vld [vmem:[%s4869 + $0x5c0] sm:$0xff]
        %v5055 = vld [vmem:[%s4869 + $0x5c8] sm:$0xff]
        %v5056 = vld [vmem:[%s4869 + $0x5d0] sm:$0xff]
        %v5057 = vld [vmem:[%s4869 + $0x5d8] sm:$0xff]
        %v5058 = vld [vmem:[%s4869 + $0x5e0] sm:$0xff]
        %v5059 = vld [vmem:[%s4869 + $0x5e8] sm:$0xff]
        %v5060 = vld [vmem:[%s4869 + $0x5f0] sm:$0xff]
        %v5061 = vld [vmem:[%s4869 + $0x5f8] sm:$0xff]
        %v5062 = vlaneseq
        %v5063 = vshrl.u32 %v5062, 7
        %v5064 = vsub.s32 5, %v5063
        %v5065 = vrot.slane %v453, %v5064
        %v5066 = vlaneseq
        %v5067 = vshrl.u32 %v5066, 7
        %v5068 = vsub.s32 5, %v5067
        %v5069 = vrot.slane %v454, %v5068
        %v5070 = vlaneseq
        %v5071 = vshrl.u32 %v5070, 7
        %v5072 = vsub.s32 5, %v5071
        %v5073 = vrot.slane %v455, %v5072
        %5074 = vmatprep.subr.mxu0 %v4871
        %5075 = vmatpush1.msra.mxu0 %v4870
        %5076 = vmatprep.subr.mxu0 %v4874
        %5077 = vmatpush1.msra.mxu0 %v4873
        %5078 = vmatprep.subr.mxu0 %v4877
        %5079 = vmatpush1.msra.mxu0 %v4876
        %5080 = vmatprep.subr.mxu0 %v4880
        %5081 = vmatpush1.msra.mxu0 %v4879
        %5082 = vmatprep.subr.mxu0 %v4883
        %5083 = vmatpush1.msra.mxu0 %v4882
        %5084 = vmatprep.subr.mxu0 %v4886
        %5085 = vmatpush1.msra.mxu0 %v4885
        %5086 = vmatprep.subr.mxu0 %v4889
        %5087 = vmatpush1.msra.mxu0 %v4888
        %5088 = vmatprep.subr.mxu0 %v4892
        %5089 = vmatpush1.msra.mxu0 %v4891
        %5090 = vmatprep.subr.mxu0 %v4895
        %5091 = vmatpush1.msra.mxu0 %v4894
        %5092 = vmatprep.subr.mxu0 %v4898
        %5093 = vmatpush1.msra.mxu0 %v4897
        %5094 = vmatprep.subr.mxu0 %v4901
        %5095 = vmatpush1.msra.mxu0 %v4900
        %5096 = vmatprep.subr.mxu0 %v4904
        %5097 = vmatpush1.msra.mxu0 %v4903
        %5098 = vmatprep.subr.mxu0 %v4907
        %5099 = vmatpush1.msra.mxu0 %v4906
        %5100 = vmatprep.subr.mxu0 %v4910
        %5101 = vmatpush1.msra.mxu0 %v4909
        %5102 = vmatprep.subr.mxu0 %v4913
        %5103 = vmatpush1.msra.mxu0 %v4912
        %5104 = vmatprep.subr.mxu0 %v4916
        %5105 = vmatpush1.msra.mxu0 %v4915
        %5106 = vmatprep.subr.mxu0 %v4919
        %5107 = vmatpush1.msra.mxu0 %v4918
        %5108 = vmatprep.subr.mxu0 %v4922
        %5109 = vmatpush1.msra.mxu0 %v4921
        %5110 = vmatprep.subr.mxu0 %v4925
        %5111 = vmatpush1.msra.mxu0 %v4924
        %5112 = vmatprep.subr.mxu0 %v4928
        %5113 = vmatpush1.msra.mxu0 %v4927
        %5114 = vmatprep.subr.mxu0 %v4931
        %5115 = vmatpush1.msra.mxu0 %v4930
        %5116 = vmatprep.subr.mxu0 %v4934
        %5117 = vmatpush1.msra.mxu0 %v4933
        %5118 = vmatprep.subr.mxu0 %v4937
        %5119 = vmatpush1.msra.mxu0 %v4936
        %5120 = vmatprep.subr.mxu0 %v4940
        %5121 = vmatpush1.msra.mxu0 %v4939
        %5122 = vmatprep.subr.mxu0 %v4943
        %5123 = vmatpush1.msra.mxu0 %v4942
        %5124 = vmatprep.subr.mxu0 %v4946
        %5125 = vmatpush1.msra.mxu0 %v4945
        %5126 = vmatprep.subr.mxu0 %v4949
        %5127 = vmatpush1.msra.mxu0 %v4948
        %5128 = vmatprep.subr.mxu0 %v4952
        %5129 = vmatpush1.msra.mxu0 %v4951
        %5130 = vmatprep.subr.mxu0 %v4955
        %5131 = vmatpush1.msra.mxu0 %v4954
        %5132 = vmatprep.subr.mxu0 %v4958
        %5133 = vmatpush1.msra.mxu0 %v4957
        %5134 = vmatprep.subr.mxu0 %v4961
        %5135 = vmatpush1.msra.mxu0 %v4960
        %5136 = vmatprep.subr.mxu0 %v4964
        %5137 = vmatpush1.msra.mxu0 %v4963
        %5138 = vmatprep.mubr.f32.mxu0 %v4550
        %5139 = vmatmul.mubr.f32.gmra.mrb[0].mxu0 %v4392
        %v5140 = vpop.f32.mrb[0].mxu0
        %v5141 = vadd.f32 %v5065, %v5140
        %v5142 = vpop.f32.mrb[0].mxu0
        %v5143 = vadd.f32 %v5069, %v5142
        %5144 = vdwg.mxu0
        %5145 = vmatprep.subr.mxu0 %v4967
        %5146 = vmatpush1.msra.mxu0 %v4966
        %5147 = vmatprep.subr.mxu0 %v4970
        %5148 = vmatpush1.msra.mxu0 %v4969
        %5149 = vmatprep.subr.mxu0 %v4973
        %5150 = vmatpush1.msra.mxu0 %v4972
        %5151 = vmatprep.subr.mxu0 %v4976
        %5152 = vmatpush1.msra.mxu0 %v4975
        %5153 = vmatprep.subr.mxu0 %v4979
        %5154 = vmatpush1.msra.mxu0 %v4978
        %5155 = vmatprep.subr.mxu0 %v4982
        %5156 = vmatpush1.msra.mxu0 %v4981
        %5157 = vmatprep.subr.mxu0 %v4985
        %5158 = vmatpush1.msra.mxu0 %v4984
        %5159 = vmatprep.subr.mxu0 %v4988
        %5160 = vmatpush1.msra.mxu0 %v4987
        %5161 = vmatprep.subr.mxu0 %v4991
        %5162 = vmatpush1.msra.mxu0 %v4990
        %5163 = vmatprep.subr.mxu0 %v4994
        %5164 = vmatpush1.msra.mxu0 %v4993
        %5165 = vmatprep.subr.mxu0 %v4997
        %5166 = vmatpush1.msra.mxu0 %v4996
        %5167 = vmatprep.subr.mxu0 %v5000
        %5168 = vmatpush1.msra.mxu0 %v4999
        %5169 = vmatprep.subr.mxu0 %v5003
        %5170 = vmatpush1.msra.mxu0 %v5002
        %5171 = vmatprep.subr.mxu0 %v5006
        %5172 = vmatpush1.msra.mxu0 %v5005
        %5173 = vmatprep.subr.mxu0 %v5009
        %5174 = vmatpush1.msra.mxu0 %v5008
        %5175 = vmatprep.subr.mxu0 %v5012
        %5176 = vmatpush1.msra.mxu0 %v5011
        %5177 = vmatprep.subr.mxu0 %v5015
        %5178 = vmatpush1.msra.mxu0 %v5014
        %5179 = vmatprep.subr.mxu0 %v5018
        %5180 = vmatpush1.msra.mxu0 %v5017
        %5181 = vmatprep.subr.mxu0 %v5021
        %5182 = vmatpush1.msra.mxu0 %v5020
        %5183 = vmatprep.subr.mxu0 %v5024
        %5184 = vmatpush1.msra.mxu0 %v5023
        %5185 = vmatprep.subr.mxu0 %v5027
        %5186 = vmatpush1.msra.mxu0 %v5026
        %5187 = vmatprep.subr.mxu0 %v5030
        %5188 = vmatpush1.msra.mxu0 %v5029
        %5189 = vmatprep.subr.mxu0 %v5033
        %5190 = vmatpush1.msra.mxu0 %v5032
        %5191 = vmatprep.subr.mxu0 %v5036
        %5192 = vmatpush1.msra.mxu0 %v5035
        %5193 = vmatprep.subr.mxu0 %v5039
        %5194 = vmatpush1.msra.mxu0 %v5038
        %5195 = vmatprep.subr.mxu0 %v5042
        %5196 = vmatpush1.msra.mxu0 %v5041
        %5197 = vmatprep.subr.mxu0 %v5045
        %5198 = vmatpush1.msra.mxu0 %v5044
        %5199 = vmatprep.subr.mxu0 %v5048
        %5200 = vmatpush1.msra.mxu0 %v5047
        %5201 = vmatprep.subr.mxu0 %v5051
        %5202 = vmatpush1.msra.mxu0 %v5050
        %5203 = vmatprep.subr.mxu0 %v5054
        %5204 = vmatpush1.msra.mxu0 %v5053
        %5205 = vmatprep.subr.mxu0 %v5057
        %5206 = vmatpush1.msra.mxu0 %v5056
        %5207 = vmatprep.subr.mxu0 %v5060
        %5208 = vmatpush1.msra.mxu0 %v5059
        %5209 = vmatprep.mubr.f32.mxu0 %v4866
        %5210 = vmatmul.mubr.f32.gmra.mrb[0].mxu0 %v4708
        %v5211 = vpop.f32.mrb[0].mxu0
        %v5212 = vadd.f32 %v5141, %v5211
        %v5213 = vpop.f32.mrb[0].mxu0
        %v5214 = vadd.f32 %v5143, %v5213
        %5215 = vdwg.mxu0
        %5216 = vmatprep.subr.mxu0 0.0
        %5217 = vmatpush1.msra.mxu0 %v4872
        %5218 = vmatprep.subr.mxu0 0.0
        %5219 = vmatpush1.msra.mxu0 %v4875
        %5220 = vmatprep.subr.mxu0 0.0
        %5221 = vmatpush1.msra.mxu0 %v4878
        %5222 = vmatprep.subr.mxu0 0.0
        %5223 = vmatpush1.msra.mxu0 %v4881
        %5224 = vmatprep.subr.mxu0 0.0
        %5225 = vmatpush1.msra.mxu0 %v4884
        %5226 = vmatprep.subr.mxu0 0.0
        %5227 = vmatpush1.msra.mxu0 %v4887
        %5228 = vmatprep.subr.mxu0 0.0
        %5229 = vmatpush1.msra.mxu0 %v4890
        %5230 = vmatprep.subr.mxu0 0.0
        %5231 = vmatpush1.msra.mxu0 %v4893
        %5232 = vmatprep.subr.mxu0 0.0
        %5233 = vmatpush1.msra.mxu0 %v4896
        %5234 = vmatprep.subr.mxu0 0.0
        %5235 = vmatpush1.msra.mxu0 %v4899
        %5236 = vmatprep.subr.mxu0 0.0
        %5237 = vmatpush1.msra.mxu0 %v4902
        %5238 = vmatprep.subr.mxu0 0.0
        %5239 = vmatpush1.msra.mxu0 %v4905
        %5240 = vmatprep.subr.mxu0 0.0
        %5241 = vmatpush1.msra.mxu0 %v4908
        %5242 = vmatprep.subr.mxu0 0.0
        %5243 = vmatpush1.msra.mxu0 %v4911
        %5244 = vmatprep.subr.mxu0 0.0
        %5245 = vmatpush1.msra.mxu0 %v4914
        %5246 = vmatprep.subr.mxu0 0.0
        %5247 = vmatpush1.msra.mxu0 %v4917
        %5248 = vmatprep.subr.mxu0 0.0
        %5249 = vmatpush1.msra.mxu0 %v4920
        %5250 = vmatprep.subr.mxu0 0.0
        %5251 = vmatpush1.msra.mxu0 %v4923
        %5252 = vmatprep.subr.mxu0 0.0
        %5253 = vmatpush1.msra.mxu0 %v4926
        %5254 = vmatprep.subr.mxu0 0.0
        %5255 = vmatpush1.msra.mxu0 %v4929
        %5256 = vmatprep.subr.mxu0 0.0
        %5257 = vmatpush1.msra.mxu0 %v4932
        %5258 = vmatprep.subr.mxu0 0.0
        %5259 = vmatpush1.msra.mxu0 %v4935
        %5260 = vmatprep.subr.mxu0 0.0
        %5261 = vmatpush1.msra.mxu0 %v4938
        %5262 = vmatprep.subr.mxu0 0.0
        %5263 = vmatpush1.msra.mxu0 %v4941
        %5264 = vmatprep.subr.mxu0 0.0
        %5265 = vmatpush1.msra.mxu0 %v4944
        %5266 = vmatprep.subr.mxu0 0.0
        %5267 = vmatpush1.msra.mxu0 %v4947
        %5268 = vmatprep.subr.mxu0 0.0
        %5269 = vmatpush1.msra.mxu0 %v4950
        %5270 = vmatprep.subr.mxu0 0.0
        %5271 = vmatpush1.msra.mxu0 %v4953
        %5272 = vmatprep.subr.mxu0 0.0
        %5273 = vmatpush1.msra.mxu0 %v4956
        %5274 = vmatprep.subr.mxu0 0.0
        %5275 = vmatpush1.msra.mxu0 %v4959
        %5276 = vmatprep.subr.mxu0 0.0
        %5277 = vmatpush1.msra.mxu0 %v4962
        %5278 = vmatprep.subr.mxu0 0.0
        %5279 = vmatpush1.msra.mxu0 %v4965
        %5280 = vmatprep.mubr.f32.mxu0 %v4550
        %5281 = vmatmul.mubr.f32.gmra.mrb[0].mxu0 %v4392
        %v5282 = vpop.f32.mrb[0].mxu0
        %v5283 = vadd.f32 %v5073, %v5282
        %v5284 = vpop.f32.mrb[0].mxu0
        %5285 = vdwg.mxu0
        %5286 = vmatprep.subr.mxu0 0.0
        %5287 = vmatpush1.msra.mxu0 %v4968
        %5288 = vmatprep.subr.mxu0 0.0
        %5289 = vmatpush1.msra.mxu0 %v4971
        %5290 = vmatprep.subr.mxu0 0.0
        %5291 = vmatpush1.msra.mxu0 %v4974
        %5292 = vmatprep.subr.mxu0 0.0
        %5293 = vmatpush1.msra.mxu0 %v4977
        %5294 = vmatprep.subr.mxu0 0.0
        %5295 = vmatpush1.msra.mxu0 %v4980
        %5296 = vmatprep.subr.mxu0 0.0
        %5297 = vmatpush1.msra.mxu0 %v4983
        %5298 = vmatprep.subr.mxu0 0.0
        %5299 = vmatpush1.msra.mxu0 %v4986
        %5300 = vmatprep.subr.mxu0 0.0
        %5301 = vmatpush1.msra.mxu0 %v4989
        %5302 = vmatprep.subr.mxu0 0.0
        %5303 = vmatpush1.msra.mxu0 %v4992
        %5304 = vmatprep.subr.mxu0 0.0
        %5305 = vmatpush1.msra.mxu0 %v4995
        %5306 = vmatprep.subr.mxu0 0.0
        %5307 = vmatpush1.msra.mxu0 %v4998
        %5308 = vmatprep.subr.mxu0 0.0
        %5309 = vmatpush1.msra.mxu0 %v5001
        %5310 = vmatprep.subr.mxu0 0.0
        %5311 = vmatpush1.msra.mxu0 %v5004
        %5312 = vmatprep.subr.mxu0 0.0
        %5313 = vmatpush1.msra.mxu0 %v5007
        %5314 = vmatprep.subr.mxu0 0.0
        %5315 = vmatpush1.msra.mxu0 %v5010
        %5316 = vmatprep.subr.mxu0 0.0
        %5317 = vmatpush1.msra.mxu0 %v5013
        %5318 = vmatprep.subr.mxu0 0.0
        %5319 = vmatpush1.msra.mxu0 %v5016
        %5320 = vmatprep.subr.mxu0 0.0
        %5321 = vmatpush1.msra.mxu0 %v5019
        %5322 = vmatprep.subr.mxu0 0.0
        %5323 = vmatpush1.msra.mxu0 %v5022
        %5324 = vmatprep.subr.mxu0 0.0
        %5325 = vmatpush1.msra.mxu0 %v5025
        %5326 = vmatprep.subr.mxu0 0.0
        %5327 = vmatpush1.msra.mxu0 %v5028
        %5328 = vmatprep.subr.mxu0 0.0
        %5329 = vmatpush1.msra.mxu0 %v5031
        %5330 = vmatprep.subr.mxu0 0.0
        %5331 = vmatpush1.msra.mxu0 %v5034
        %5332 = vmatprep.subr.mxu0 0.0
        %5333 = vmatpush1.msra.mxu0 %v5037
        %5334 = vmatprep.subr.mxu0 0.0
        %5335 = vmatpush1.msra.mxu0 %v5040
        %5336 = vmatprep.subr.mxu0 0.0
        %5337 = vmatpush1.msra.mxu0 %v5043
        %5338 = vmatprep.subr.mxu0 0.0
        %5339 = vmatpush1.msra.mxu0 %v5046
        %5340 = vmatprep.subr.mxu0 0.0
        %5341 = vmatpush1.msra.mxu0 %v5049
        %5342 = vmatprep.subr.mxu0 0.0
        %5343 = vmatpush1.msra.mxu0 %v5052
        %5344 = vmatprep.subr.mxu0 0.0
        %5345 = vmatpush1.msra.mxu0 %v5055
        %5346 = vmatprep.subr.mxu0 0.0
        %5347 = vmatpush1.msra.mxu0 %v5058
        %5348 = vmatprep.subr.mxu0 0.0
        %5349 = vmatpush1.msra.mxu0 %v5061
        %5350 = vmatprep.mubr.f32.mxu0 %v4866
        %5351 = vmatmul.mubr.f32.gmra.mrb[0].mxu0 %v4708
        %v5352 = vpop.f32.mrb[0].mxu0
        %v5353 = vadd.f32 %v5283, %v5352
        %v5354 = vpop.f32.mrb[0].mxu0
        %5355 = vdwg.mxu0
        %v5362 = vrot.slane %v2887, 4
        %v5363 = vrot.slane %v2889, 4
        %v5364 = vrot.slane %v3039, 4
        %v5365 = vrot.slane %v2893, 4
        %v5366 = vsel %vm1770, %v5362, %v5365
        %v5367 = vrot.slane %v2895, 4
        %v5368 = vsel %vm1770, %v5363, %v5367
        %v5369 = vrot.slane %v3044, 4
        %v5370 = vsel %vm1770, %v5364, %v5369
        %v5377 = vsel %vm1770, %v5212, %v5362
        %v5378 = vsel %vm1770, %v5214, %v5363
        %v5379 = vsel %vm1770, %v5353, %v5364
        %v5380 = vadd.f32 %v5377, %v5378
        %v5381 = vadd.f32 %v5380, %v5379
        %5382 = vadd.xlane.f32.xlu0 %v5381
        %v5383 = vpop.xlane.xlu0 %5382
        %v5384 = vadd.f32 %v5366, %v5368
        %v5385 = vadd.f32 %v5384, %v5370
        %5386 = vadd.xlane.f32.xlu0 %v5385
        %v5387 = vpop.xlane.xlu0 %5386
        %v5388 = vmul.f32 %v5383, 0.0033333334
        %v5389 = vmul.f32 %v5387, 0.0033333334
        %v5390 = vsub.f32 %v5377, %v5388
        %v5391 = vsub.f32 %v5378, %v5388
        %v5392 = vsub.f32 %v5379, %v5388
        %v5393 = vsub.f32 %v5366, %v5389
        %v5394 = vsub.f32 %v5368, %v5389
        %v5395 = vsub.f32 %v5370, %v5389
        %v5396 = vsel %vm478, %v5390, 0.0
        %v5397 = vsel %vm479, %v5391, 0.0
        %v5398 = vsel %vm480, %v5392, 0.0
        %v5399 = vsel %vm478, %v5393, 0.0
        %v5400 = vsel %vm479, %v5394, 0.0
        %v5401 = vsel %vm480, %v5395, 0.0
        %v5402 = vmul.f32 %v5396, %v5396
        %v5403 = vmul.f32 %v5397, %v5397
        %v5404 = vmul.f32 %v5398, %v5398
        %v5405 = vmul.f32 %v5399, %v5399
        %v5406 = vmul.f32 %v5400, %v5400
        %v5407 = vmul.f32 %v5401, %v5401
        %v5408 = vadd.f32 %v5402, %v5403
        %v5409 = vadd.f32 %v5408, %v5404
        %5410 = vadd.xlane.f32.xlu0 %v5409
        %v5411 = vpop.xlane.xlu0 %5410
        %v5412 = vadd.f32 %v5405, %v5406
        %v5413 = vadd.f32 %v5412, %v5407
        %5414 = vadd.xlane.f32.xlu0 %v5413
        %v5415 = vpop.xlane.xlu0 %5414
        %v5416 = vmul.f32 %v5411, 0.0033333334
        %v5417 = vmul.f32 %v5415, 0.0033333334
        %v5418 = vadd.f32 %v5416, 1e-05
        %v5419 = vadd.f32 %v5417, 1e-05
        %v5420 = vrsqrt.pop %v5418
        %v5421 = vrsqrt.pop %v5419
        %v5422 = vmul.f32 %v5396, %v5420
        %v5423 = vmul.f32 %v5397, %v5420
        %v5424 = vmul.f32 %v5398, %v5420
        %v5425 = vmul.f32 %v5399, %v5421
        %v5426 = vmul.f32 %v5400, %v5421
        %v5427 = vmul.f32 %v5401, %v5421
        %v5428 = vlaneseq
        %v5429 = vshrl.u32 %v5428, 7
        %v5430 = vsub.s32 2, %v5429
        %v5431 = vrot.slane %v453, %v5430
        %v5432 = vlaneseq
        %v5433 = vshrl.u32 %v5432, 7
        %v5434 = vsub.s32 2, %v5433
        %v5435 = vrot.slane %v454, %v5434
        %v5436 = vlaneseq
        %v5437 = vshrl.u32 %v5436, 7
        %v5438 = vsub.s32 2, %v5437
        %v5439 = vrot.slane %v455, %v5438
        %v5440 = vmul.f32 %v5422, %v5431
        %v5441 = vmul.f32 %v5423, %v5435
        %v5442 = vmul.f32 %v5424, %v5439
        %v5443 = vmul.f32 %v5425, %v5431
        %v5444 = vmul.f32 %v5426, %v5435
        %v5445 = vmul.f32 %v5427, %v5439
        %v5446 = vlaneseq
        %v5447 = vshrl.u32 %v5446, 7
        %v5448 = vsub.s32 3, %v5447
        %v5449 = vrot.slane %v453, %v5448
        %v5450 = vlaneseq
        %v5451 = vshrl.u32 %v5450, 7
        %v5452 = vsub.s32 3, %v5451
        %v5453 = vrot.slane %v454, %v5452
        %v5454 = vlaneseq
        %v5455 = vshrl.u32 %v5454, 7
        %v5456 = vsub.s32 3, %v5455
        %v5457 = vrot.slane %v455, %v5456
        %v5458 = vadd.f32 %v5440, %v5449
        %v5459 = vadd.f32 %v5441, %v5453
        %v5460 = vadd.f32 %v5442, %v5457
        %v5461 = vadd.f32 %v5443, %v5449
        %v5462 = vadd.f32 %v5444, %v5453
        %v5463 = vadd.f32 %v5445, %v5457
        %5464 = vst [vmem:[%s426] sm:$0xff] %v5458
        %5465 = vst [vmem:[%s426 + $0x8] sm:$0xff] %v5459
        %5466 = vst [vmem:[%s426 + $0x10] sm:$0xff] %v5460
        %5467 = vst [vmem:[%s426 + $0x18] sm:$0xff] %v5461
        %5468 = vst [vmem:[%s426 + $0x20] sm:$0xff] %v5462
        %5469 = vst [vmem:[%s426 + $0x28] sm:$0xff] %v5463
        %s5470 = sand.u32 %s267, 1
        %s5471 = scalar_lea.sflag [#allocation3], %s5470
        %s5472 = sand.u32 %s267, 1
        %s5473 = smul.addr %s5472, 48
        %s5474 = scalar_lea.vmem [#allocation2], %s5473
        %s5475 = sand.u32 %s293, 1
        %s5476 = scalar_lea.sflag [#allocation5], %s5475
        %s5477 = sand.u32 %s293, 1
        %s5478 = smul.addr %s5477, 24
        %s5479 = scalar_lea.vmem [#allocation4], %s5478
        // Predicated region
        $region61: #{multilevel_projector_forward.1} parent=59 // pred_check
          %p5480 = pneg %p277
        $region62: #{multilevel_projector_forward.1} parent=59 // pred_check_branch
          %5482 = sbr.rel (%p5480) target = $region64
        $region63: #{multilevel_projector_forward.1} parent=59 // pred_region
          %s5484 = ssub.s32 768, 768
          %5485 = vsyncadd %s5471, %s5484
          %s5486 = smul.addr %s29, 6
          %s5487 = smul.addr %s5486, 128
          %s5488 = scalar_lea.hbm %s10, %s5487
          %s5489 = sshll.u32 %s5474, 4
          %s5490 = int_to_ptr.vmem [resolvable:$true] %s5489
          %5495 = dma.vmem_to_hbm [thread:$0]  %s5490, 768, %s5488, %s5471, 384, 384, 24
        $region64: #{multilevel_projector_forward.1} parent=59 // pred_fallthru
          _
        // Predicated region
        $region65: #{multilevel_projector_forward.1} parent=59 // pred_check
          %p5496 = pneg %p303
        $region66: #{multilevel_projector_forward.1} parent=59 // pred_check_branch
          %5498 = sbr.rel (%p5496) target = $region68
        $region67: #{multilevel_projector_forward.1} parent=59 // pred_region
          %s5500 = ssub.s32 384, 384
          %5501 = vsyncadd %s5476, %s5500
          %s5502 = smul.addr %s29, 3
          %s5503 = smul.addr %s5502, 128
          %s5504 = scalar_lea.hbm %s11, %s5503
          %s5506 = sshll.u32 %s5479, 4
          %s5507 = int_to_ptr.vmem [resolvable:$true] %s5506
          %5509 = dma.vmem_to_hbm [thread:$0]  %s5507, 384, %s5504, %s5476
        $region68: #{multilevel_projector_forward.1} parent=59 // pred_fallthru
          _
      $region60: #{multilevel_projector_forward.1} parent=5 // pred_fallthru
        _
      %p5510 = scmp.le.s32.totalorder 2, %s24
      // Predicated region
      $region69: #{multilevel_projector_forward.1} parent=5 // pred_check
        %p5511 = pneg %p5510
      $region70: #{multilevel_projector_forward.1} parent=5 // pred_check_branch
        %5513 = sbr.rel (%p5511) target = $region72
      $region71: #{multilevel_projector_forward.1} parent=5 // pred_region
        %s5514 = ssub.s32 %s24, 2
        // Predicated region
        $region73: #{multilevel_projector_forward.1} parent=71 // pred_check
          %p5515 = pneg %p283
        $region74: #{multilevel_projector_forward.1} parent=71 // pred_check_branch
          %5517 = sbr.rel (%p5515) target = $region76
        $region75: #{multilevel_projector_forward.1} parent=71 // pred_region
          %s5518 = sand.u32 %s268, 1
          %s5519 = scalar_lea.sflag [#allocation3], %s5518
          %s5520 = sand.u32 %s268, 1
          %s5521 = smul.addr %s5520, 48
          %s5522 = scalar_lea.vmem [#allocation2], %s5521
          %5523 = dma.done %s5519, 768
        $region76: #{multilevel_projector_forward.1} parent=71 // pred_fallthru
          _
        // Predicated region
        $region77: #{multilevel_projector_forward.1} parent=71 // pred_check
          %p5524 = pneg %p309
        $region78: #{multilevel_projector_forward.1} parent=71 // pred_check_branch
          %5526 = sbr.rel (%p5524) target = $region80
        $region79: #{multilevel_projector_forward.1} parent=71 // pred_region
          %s5527 = sand.u32 %s294, 1
          %s5528 = scalar_lea.sflag [#allocation5], %s5527
          %s5529 = sand.u32 %s294, 1
          %s5530 = smul.addr %s5529, 24
          %s5531 = scalar_lea.vmem [#allocation4], %s5530
          %5532 = dma.done %s5528, 384
        $region80: #{multilevel_projector_forward.1} parent=71 // pred_fallthru
          _
      $region72: #{multilevel_projector_forward.1} parent=5 // pred_fallthru
        _
    $region6: #{multilevel_projector_forward.1} parent=1 // loop_footer
      %s28 = sadd.s32 1, %s24
    $region7: #{multilevel_projector_forward.1} parent=1 // loop_footer_branch
      %23 = sbr.rel target = $region3
    $region8: #{multilevel_projector_forward.1} parent=1 // loop_exit
      _
    %5533 = vsyncpa [#allocation3], 1
    %s5534 = scalar_lea.sflag [#allocation3], 1
    %5535 = vsyncpa %s5534, 1
    %5536 = vsyncpa [#allocation5], 1
    %s5537 = scalar_lea.sflag [#allocation5], 1
    %5538 = vsyncpa %s5537, 1

</llo_original>
